<compile_context>
chip_gen: v6e
topology: v6e:2x2x1
jax: 0.10.0
libtpu: 0.0.40
codegen_flags: <defaults>
</compile_context>

<pallas_src>
import numpy as np
import jax
import jax.numpy as jnp
from jax import lax
from jax.experimental import pallas as pl
from jax.experimental.pallas import tpu as pltpu

CPAD = 128   # conv output channels padded to full lane width
LPAD = 128   # logits padded to full lane width


def _round_up(x, m):
    return ((x + m - 1) // m) * m


# ----------------------------- Pallas kernels ------------------------------ #

def make_conv_bias_pool_kernel(G, q):
    """Conv GEMM + fused 2x2 max-pool + bias epilogue for one M-tile.

    x_ref: (G*4*q, Kpad) bf16, rows ordered (g, pool-tap, wo, n)
    w_ref: (Kpad, CPAD)  bf16 (zero rows past true K, zero cols past Cout)
    b_ref: (1, CPAD)     f32  (zero past Cout)
    o_ref: (G*q, CPAD)   bf16, rows ordered (g, wo, n)
    """
    rows_per = 4 * q

    def kernel(x_ref, w_ref, b_ref, o_ref):
        def body(g, carry):
            base = pl.multiple_of(g * rows_per, rows_per)
            acc = jnp.dot(x_ref[pl.ds(base, rows_per), :], w_ref[...],
                          preferred_element_type=jnp.float32)
            pooled = jnp.maximum(jnp.maximum(acc[0:q], acc[q:2 * q]),
                                 jnp.maximum(acc[2 * q:3 * q], acc[3 * q:4 * q]))
            out = (pooled + b_ref[...]).astype(o_ref.dtype)
            o_ref[pl.ds(pl.multiple_of(g * q, q), q), :] = out
            return carry

        lax.fori_loop(0, G, body, 0, unroll=True)

    return kernel


def make_conv_pool_fc_kernel(Ho, Wo, N, q):
    """Conv3 GEMM + 2x2 max-pool + bias + folded fc1@fc2 epilogue (grid=1).

    x_ref:   (Ho*4*q, Kpad)     bf16, rows ordered (ho, pool-tap, wo, n)
    w_ref:   (Kpad, CPAD)       bf16
    b_ref:   (1, CPAD)          f32
    fcw_ref: (Ho*Wo*CPAD, LPAD) bf16, row ((ho*Wo+wo)*CPAD + c) = fc_w[c*16 + ho*4 + wo]
    fcb_ref: (1, LPAD)          f32
    o_ref:   (N, LPAD)          f32 (first 10 lanes valid)
    """
    def kernel(x_ref, w_ref, b_ref, fcw_ref, fcb_ref, o_ref):
        logits = jnp.zeros((N, LPAD), jnp.float32)
        for ho in range(Ho):                          # static unroll (Ho = 4)
            base = ho * 4 * q
            acc = jnp.dot(x_ref[base:base + 4 * q, :], w_ref[...],
                          preferred_element_type=jnp.float32)
            pooled = jnp.maximum(jnp.maximum(acc[0:q], acc[q:2 * q]),
                                 jnp.maximum(acc[2 * q:3 * q], acc[3 * q:4 * q]))
            pooled = pooled + b_ref[...]              # (q, CPAD) f32
            for wo in range(Wo):                      # static unroll (Wo = 4)
                blk = pooled[wo * N:(wo + 1) * N, :].astype(jnp.bfloat16)  # (N,CPAD)
                wrow = (ho * Wo + wo) * CPAD
                wp = fcw_ref[wrow:wrow + CPAD, :]                          # (CPAD,LPAD)
                logits = logits + jnp.dot(blk, wp,
                                          preferred_element_type=jnp.float32)
        o_ref[...] = logits + fcb_ref[...]

    return kernel


# --------------------------- XLA-glue im2col ------------------------------- #

def _im2col_pool_rows(x_hwnc, k=5, pad=2):
    """(H,W,N,Cin) -> (Ho*4*Wo*N, k*k*Cin) bf16 rows ordered (ho, tap, wo, n).

    Stride-2 slices of the padded input emit the four pool taps of each 2x2
    output window as contiguous row blocks directly -- no 6-D transpose.
    """
    H, W, N, Cin = x_hwnc.shape
    Ho, Wo = H // 2, W // 2
    K = k * k * Cin
    xp = jnp.pad(x_hwnc.astype(jnp.bfloat16),
                 ((pad, pad), (pad, pad), (0, 0), (0, 0)))
    taps = []
    for dh in range(2):
        for dw in range(2):
            cols = [xp[dh + dy:dh + dy + 2 * Ho - 1:2,
                       dw + dx:dw + dx + 2 * Wo - 1:2]
                    for dy in range(k) for dx in range(k)]   # (Ho,Wo,N,Cin) each
            taps.append(jnp.stack(cols, axis=3).reshape(Ho, Wo, N, K))
    patches = jnp.stack(taps, axis=1)                        # (Ho, 4, Wo, N, K)
    return patches.reshape(Ho * 4 * Wo * N, K)


# ------------------------------ wrappers ----------------------------------- #

def conv5x5_pool(x_hwnc, w_pad, b_pad, cout):
    """Conv2d(Cin,cout,5,s=1,p=2) + MaxPool2d(2) on (H,W,N,Cin) -> (Ho,Wo,N,cout)."""
    H, W, N, Cin = x_hwnc.shape
    Ho, Wo = H // 2, W // 2
    Kpad, Cpad = w_pad.shape

    patches = _im2col_pool_rows(x_hwnc)
    K = patches.shape[1]
    if Kpad > K:                        # lane-align K (75->128, 800->896)
        patches = jnp.pad(patches, ((0, 0), (0, Kpad - K)))

    q = Wo * N                          # pooled rows per output H-row (%8==0 for N=2)
    rows_per = 4 * q                    # im2col rows per pooled output H-row
    # ~1024 im2col rows per grid step, but keep grid >= 2 (v7x: 2 TensorCores).
    G = max(1, min(Ho, 1024 // rows_per))
    if Ho >= 2:
        G = max(1, min(G, Ho // 2))
    while Ho % G:
        G -= 1
    grid = Ho // G

    out = pl.pallas_call(
        make_conv_bias_pool_kernel(G, q),
        out_shape=jax.ShapeDtypeStruct((Ho * Wo * N, Cpad), jnp.bfloat16),
        grid=(grid,),
        in_specs=[
            pl.BlockSpec((G * rows_per, Kpad), lambda i: (i, 0)),   # M-tiled
            pl.BlockSpec((Kpad, Cpad), lambda i: (0, 0)),           # resident
            pl.BlockSpec((1, Cpad), lambda i: (0, 0)),              # resident
        ],
        out_specs=pl.BlockSpec((G * q, Cpad), lambda i: (i, 0)),
        compiler_params=pltpu.CompilerParams(
            dimension_semantics=("parallel",)),
    )(patches, w_pad, b_pad)
    # strip the lane padding before the next layer's im2col (keep its K at 25*cout)
    return out.reshape(Ho, Wo, N, Cpad)[..., :cout]


def conv5x5_pool_fc(x_hwnc, w_pad, b_pad, fcw_pad, fcb_pad, n_logits):
    """Last conv layer + pool + folded FC, fused into one grid=1 pallas_call."""
    H, W, N, Cin = x_hwnc.shape
    Ho, Wo = H // 2, W // 2
    Kpad, Cpad = w_pad.shape

    patches = _im2col_pool_rows(x_hwnc)
    K = patches.shape[1]
    if Kpad > K:
        patches = jnp.pad(patches, ((0, 0), (0, Kpad - K)))

    q = Wo * N
    out = pl.pallas_call(
        make_conv_pool_fc_kernel(Ho, Wo, N, q),
        out_shape=jax.ShapeDtypeStruct((N, LPAD), jnp.float32),
        grid=(1,),
        in_specs=[
            pl.BlockSpec((Ho * 4 * q, Kpad), lambda i: (0, 0)),
            pl.BlockSpec((Kpad, Cpad), lambda i: (0, 0)),
            pl.BlockSpec((1, Cpad), lambda i: (0, 0)),
            pl.BlockSpec((Ho * Wo * CPAD, LPAD), lambda i: (0, 0)),
            pl.BlockSpec((1, LPAD), lambda i: (0, 0)),
        ],
        out_specs=pl.BlockSpec((N, LPAD), lambda i: (0, 0)),
        compiler_params=pltpu.CompilerParams(
            dimension_semantics=("arbitrary",)),
    )(patches, w_pad, b_pad, fcw_pad, fcb_pad)
    return out[:, :n_logits]


@jax.jit
def cifar10_forward(x_nchw, kparams):
    """Forward pass of CIFAR10_model. Input NCHW (N, 3, 32, 32) -> (N, 10) f32."""
    x = jnp.transpose(x_nchw, (2, 3, 0, 1))             # NCHW -> HWNC
    (w1, b1), (w2, b2), (w3, b3) = kparams["convs"]
    x = conv5x5_pool(x, w1, b1, 32)                     # (16,16,N,32)
    x = conv5x5_pool(x, w2, b2, 32)                     # ( 8, 8,N,32)
    return conv5x5_pool_fc(x, w3, b3, kparams["fcw"], kparams["fcb"], 10)


# ------------------------- parameters & reference -------------------------- #

def _conv_weight_gemm(W):
    """(Cout,Cin,kh,kw) -> (Kpad, CPAD) bf16; K padded to 128n, Cout padded to 128."""
    co, ci, kh, kw = W.shape
    K = kh * kw * ci
    wm = jnp.transpose(W, (2, 3, 1, 0)).reshape(K, co)   # row = (dy*kw + dx)*Cin + ci
    wm = jnp.pad(wm, ((0, _round_up(K, 128) - K), (0, CPAD - co)))
    return wm.astype(jnp.bfloat16)


def _conv_bias(b):
    return jnp.pad(b, (0, CPAD - b.shape[0])).astype(jnp.float32).reshape(1, CPAD)


def init_params(key):
    """Deterministic synthetic parameters in PyTorch shapes + kernel layouts."""
    ks = jax.random.split(key, 10)
    s = 0.05
    W1 = s * jax.random.normal(ks[0], (32, 3, 5, 5), jnp.float32)
    b1 = s * jax.random.normal(ks[1], (32,), jnp.float32)
    W2 = s * jax.random.normal(ks[2], (32, 32, 5, 5), jnp.float32)
    b2 = s * jax.random.normal(ks[3], (32,), jnp.float32)
    W3 = s * jax.random.normal(ks[4], (64, 32, 5, 5), jnp.float32)
    b3 = s * jax.random.normal(ks[5], (64,), jnp.float32)
    Wf1 = s * jax.random.normal(ks[6], (64, 1024), jnp.float32)
    bf1 = s * jax.random.normal(ks[7], (64,), jnp.float32)
    Wf2 = s * jax.random.normal(ks[8], (10, 64), jnp.float32)
    bf2 = s * jax.random.normal(ks[9], (10,), jnp.float32)

    torch_params = dict(W1=W1, b1=b1, W2=W2, b2=b2, W3=W3, b3=b3,
                        Wf1=Wf1, bf1=bf1, Wf2=Wf2, bf2=bf2)

    hp = lax.Precision.HIGHEST
    # Fold fc1 and fc2 (no nonlinearity between them): exact.
    fc_w = jnp.matmul(Wf1.T, Wf2.T, precision=hp)         # (1024, 10)
    fc_b = jnp.matmul(bf1, Wf2.T, precision=hp) + bf2     # (10,)
    # Permute fc_w rows (PyTorch flat index c*16 + h*4 + w) into the conv3
    # pooled-row layout (h, w, c); pad c -> 128 (matches zero-padded conv3
    # channels) and logits -> 128 (lane-dense output store).
    C3, H3, W3sp = 64, 4, 4
    fcw = fc_w.reshape(C3, H3, W3sp, 10).transpose(1, 2, 0, 3)    # (h, w, c, 10)
    fcw = jnp.pad(fcw, ((0, 0), (0, 0), (0, CPAD - C3), (0, LPAD - 10)))
    fcw = fcw.reshape(H3 * W3sp * CPAD, LPAD).astype(jnp.bfloat16)
    fcb = jnp.pad(fc_b, (0, LPAD - 10)).astype(jnp.float32).reshape(1, LPAD)

    kernel_params = {
        "convs": [(_conv_weight_gemm(W1), _conv_bias(b1)),
                  (_conv_weight_gemm(W2), _conv_bias(b2)),
                  (_conv_weight_gemm(W3), _conv_bias(b3))],
        "fcw": fcw, "fcb": fcb,
    }
    return torch_params, kernel_params


def reference_forward(x_nchw, p):
    """Pure-JAX f32 replica of the PyTorch forward (for correctness check)."""
    hp = lax.Precision.HIGHEST
    y = x_nchw
    for W, b in [(p["W1"], p["b1"]), (p["W2"], p["b2"]), (p["W3"], p["b3"])]:
        y = lax.conv_general_dilated(
            y, W, window_strides=(1, 1), padding=((2, 2), (2, 2)),
            dimension_numbers=("NCHW", "OIHW", "NCHW"), precision=hp)
        y = y + b[None, :, None, None]
        y = lax.reduce_window(y, -jnp.inf, lax.max,
                              (1, 1, 2, 2), (1, 1, 2, 2), "VALID")
    y = y.reshape(y.shape[0], -1)
    y = jnp.matmul(y, p["Wf1"].T, precision=hp) + p["bf1"]
    y = jnp.matmul(y, p["Wf2"].T, precision=hp) + p["bf2"]
    return y


# ---------------------------------- main ----------------------------------- #

if __name__ == "__main__":
    key = jax.random.PRNGKey(0)
    pkey, xkey = jax.random.split(key)
    torch_params, kernel_params = init_params(pkey)

    # Linear(1024, 64) after three 2x pools of 64ch forces 32x32 spatial input.
    x = jax.random.normal(xkey, (2, 3, 32, 32), jnp.float32)   # NCHW, batch=2

    out = jax.block_until_ready(cifar10_forward(x, kernel_params))
    assert out.shape == (2, 10) and out.dtype == jnp.float32

    ref = jax.block_until_ready(reference_forward(x, torch_params))
    np.testing.assert_allclose(np.asarray(out), np.asarray(ref),
                               rtol=5e-2, atol=5e-2)
    print("KERNEL_OK")
</pallas_src>

<mosaic_0001>
module attributes {stable_mosaic.version = 11 : i64} {
  func.func @kernel(%arg0: i32, %arg1: memref<1024x128xbf16, #tpu.memory_space<vmem>>, %arg2: memref<128x128xbf16, #tpu.memory_space<vmem>>, %arg3: memref<1x128xf32, #tpu.memory_space<vmem>>, %arg4: memref<256x128xbf16, #tpu.memory_space<vmem>>) attributes {dimension_semantics = [#tpu.dimension_semantics<parallel>], iteration_bounds = array<i64: 2>, scalar_prefetch = 0 : i64, scratch_operands = 0 : i64, tpu.core_type = #tpu.core_type<tc>, window_params = [{transform_indices = @transform_0, window_bounds = array<i64: 1024, 128>}, {pipeline_mode = #tpu.pipeline_mode<synchronous>, transform_indices = @transform_1, window_bounds = array<i64: 128, 128>}, {pipeline_mode = #tpu.pipeline_mode<synchronous>, transform_indices = @transform_2, window_bounds = array<i64: 1, 128>}, {transform_indices = @transform_3, window_bounds = array<i64: 256, 128>}]} {
    %c0_i32 = arith.constant 0 : i32
    %c128_i32 = arith.constant 128 : i32
    %0 = arith.muli %c0_i32, %c128_i32 : i32
    %1 = tpu.assume_multiple %0, 128 : i32
    %2 = arith.index_cast %1 : i32 to index
    %c0 = arith.constant 0 : index
    %3 = vector.load %arg1[%2, %c0] : memref<1024x128xbf16, #tpu.memory_space<vmem>>, vector<128x128xbf16>
    %c0_0 = arith.constant 0 : index
    %c0_1 = arith.constant 0 : index
    %4 = vector.load %arg2[%c0_0, %c0_1] : memref<128x128xbf16, #tpu.memory_space<vmem>>, vector<128x128xbf16>
    %cst = arith.constant dense<0.000000e+00> : vector<128x128xf32>
    %5 = tpu.matmul %3, %4, %cst {dimension_numbers = #tpu.dot_dimension_numbers<[1], [0], [0], [1], [0, 0, 1, 1], [], []>} : vector<128x128xbf16>, vector<128x128xbf16>, vector<128x128xf32> -> vector<128x128xf32>
    %6 = vector.extract_strided_slice %5 {offsets = [0, 0], sizes = [32, 128], strides = [1, 1]} : vector<128x128xf32> to vector<32x128xf32>
    %7 = vector.extract_strided_slice %5 {offsets = [32, 0], sizes = [32, 128], strides = [1, 1]} : vector<128x128xf32> to vector<32x128xf32>
    %8 = arith.maximumf %6, %7 : vector<32x128xf32>
    %9 = vector.extract_strided_slice %5 {offsets = [64, 0], sizes = [32, 128], strides = [1, 1]} : vector<128x128xf32> to vector<32x128xf32>
    %10 = vector.extract_strided_slice %5 {offsets = [96, 0], sizes = [32, 128], strides = [1, 1]} : vector<128x128xf32> to vector<32x128xf32>
    %11 = arith.maximumf %9, %10 : vector<32x128xf32>
    %12 = arith.maximumf %8, %11 : vector<32x128xf32>
    %c0_2 = arith.constant 0 : index
    %c0_3 = arith.constant 0 : index
    %13 = vector.load %arg3[%c0_2, %c0_3] : memref<1x128xf32, #tpu.memory_space<vmem>>, vector<1x128xf32>
    %14 = vector.broadcast %13 : vector<1x128xf32> to vector<32x128xf32>
    %15 = arith.addf %12, %14 : vector<32x128xf32>
    %16 = arith.truncf %15 : vector<32x128xf32> to vector<32x128xbf16>
    %c32_i32 = arith.constant 32 : i32
    %17 = arith.muli %c0_i32, %c32_i32 : i32
    %18 = tpu.assume_multiple %17, 32 : i32
    %19 = arith.index_cast %18 : i32 to index
    %c0_4 = arith.constant 0 : index
    %20 = vector.load %arg4[%19, %c0_4] : memref<256x128xbf16, #tpu.memory_space<vmem>>, vector<32x128xbf16>
    tpu.vector_store %arg4[%19, %c0_4], %16 {strides = array<i32>} : memref<256x128xbf16, #tpu.memory_space<vmem>>, vector<32x128xbf16>,
    %c1_i32 = arith.constant 1 : i32
    %c128_i32_5 = arith.constant 128 : i32
    %21 = arith.muli %c1_i32, %c128_i32_5 : i32
    %22 = tpu.assume_multiple %21, 128 : i32
    %23 = arith.index_cast %22 : i32 to index
    %c0_6 = arith.constant 0 : index
    %24 = vector.load %arg1[%23, %c0_6] : memref<1024x128xbf16, #tpu.memory_space<vmem>>, vector<128x128xbf16>
    %c0_7 = arith.constant 0 : index
    %c0_8 = arith.constant 0 : index
    %25 = vector.load %arg2[%c0_7, %c0_8] : memref<128x128xbf16, #tpu.memory_space<vmem>>, vector<128x128xbf16>
    %cst_9 = arith.constant dense<0.000000e+00> : vector<128x128xf32>
    %26 = tpu.matmul %24, %25, %cst_9 {dimension_numbers = #tpu.dot_dimension_numbers<[1], [0], [0], [1], [0, 0, 1, 1], [], []>} : vector<128x128xbf16>, vector<128x128xbf16>, vector<128x128xf32> -> vector<128x128xf32>
    %27 = vector.extract_strided_slice %26 {offsets = [0, 0], sizes = [32, 128], strides = [1, 1]} : vector<128x128xf32> to vector<32x128xf32>
    %28 = vector.extract_strided_slice %26 {offsets = [32, 0], sizes = [32, 128], strides = [1, 1]} : vector<128x128xf32> to vector<32x128xf32>
    %29 = arith.maximumf %27, %28 : vector<32x128xf32>
    %30 = vector.extract_strided_slice %26 {offsets = [64, 0], sizes = [32, 128], strides = [1, 1]} : vector<128x128xf32> to vector<32x128xf32>
    %31 = vector.extract_strided_slice %26 {offsets = [96, 0], sizes = [32, 128], strides = [1, 1]} : vector<128x128xf32> to vector<32x128xf32>
    %32 = arith.maximumf %30, %31 : vector<32x128xf32>
    %33 = arith.maximumf %29, %32 : vector<32x128xf32>
    %c0_10 = arith.constant 0 : index
    %c0_11 = arith.constant 0 : index
    %34 = vector.load %arg3[%c0_10, %c0_11] : memref<1x128xf32, #tpu.memory_space<vmem>>, vector<1x128xf32>
    %35 = vector.broadcast %34 : vector<1x128xf32> to vector<32x128xf32>
    %36 = arith.addf %33, %35 : vector<32x128xf32>
    %37 = arith.truncf %36 : vector<32x128xf32> to vector<32x128xbf16>
    %c32_i32_12 = arith.constant 32 : i32
    %38 = arith.muli %c1_i32, %c32_i32_12 : i32
    %39 = tpu.assume_multiple %38, 32 : i32
    %40 = arith.index_cast %39 : i32 to index
    %c0_13 = arith.constant 0 : index
    %41 = vector.load %arg4[%40, %c0_13] : memref<256x128xbf16, #tpu.memory_space<vmem>>, vector<32x128xbf16>
    tpu.vector_store %arg4[%40, %c0_13], %37 {strides = array<i32>} : memref<256x128xbf16, #tpu.memory_space<vmem>>, vector<32x128xbf16>,
    %c2_i32 = arith.constant 2 : i32
    %c128_i32_14 = arith.constant 128 : i32
    %42 = arith.muli %c2_i32, %c128_i32_14 : i32
    %43 = tpu.assume_multiple %42, 128 : i32
    %44 = arith.index_cast %43 : i32 to index
    %c0_15 = arith.constant 0 : index
    %45 = vector.load %arg1[%44, %c0_15] : memref<1024x128xbf16, #tpu.memory_space<vmem>>, vector<128x128xbf16>
    %c0_16 = arith.constant 0 : index
    %c0_17 = arith.constant 0 : index
    %46 = vector.load %arg2[%c0_16, %c0_17] : memref<128x128xbf16, #tpu.memory_space<vmem>>, vector<128x128xbf16>
    %cst_18 = arith.constant dense<0.000000e+00> : vector<128x128xf32>
    %47 = tpu.matmul %45, %46, %cst_18 {dimension_numbers = #tpu.dot_dimension_numbers<[1], [0], [0], [1], [0, 0, 1, 1], [], []>} : vector<128x128xbf16>, vector<128x128xbf16>, vector<128x128xf32> -> vector<128x128xf32>
    %48 = vector.extract_strided_slice %47 {offsets = [0, 0], sizes = [32, 128], strides = [1, 1]} : vector<128x128xf32> to vector<32x128xf32>
    %49 = vector.extract_strided_slice %47 {offsets = [32, 0], sizes = [32, 128], strides = [1, 1]} : vector<128x128xf32> to vector<32x128xf32>
    %50 = arith.maximumf %48, %49 : vector<32x128xf32>
    %51 = vector.extract_strided_slice %47 {offsets = [64, 0], sizes = [32, 128], strides = [1, 1]} : vector<128x128xf32> to vector<32x128xf32>
    %52 = vector.extract_strided_slice %47 {offsets = [96, 0], sizes = [32, 128], strides = [1, 1]} : vector<128x128xf32> to vector<32x128xf32>
    %53 = arith.maximumf %51, %52 : vector<32x128xf32>
    %54 = arith.maximumf %50, %53 : vector<32x128xf32>
    %c0_19 = arith.constant 0 : index
    %c0_20 = arith.constant 0 : index
    %55 = vector.load %arg3[%c0_19, %c0_20] : memref<1x128xf32, #tpu.memory_space<vmem>>, vector<1x128xf32>
    %56 = vector.broadcast %55 : vector<1x128xf32> to vector<32x128xf32>
    %57 = arith.addf %54, %56 : vector<32x128xf32>
    %58 = arith.truncf %57 : vector<32x128xf32> to vector<32x128xbf16>
    %c32_i32_21 = arith.constant 32 : i32
    %59 = arith.muli %c2_i32, %c32_i32_21 : i32
    %60 = tpu.assume_multiple %59, 32 : i32
    %61 = arith.index_cast %60 : i32 to index
    %c0_22 = arith.constant 0 : index
    %62 = vector.load %arg4[%61, %c0_22] : memref<256x128xbf16, #tpu.memory_space<vmem>>, vector<32x128xbf16>
    tpu.vector_store %arg4[%61, %c0_22], %58 {strides = array<i32>} : memref<256x128xbf16, #tpu.memory_space<vmem>>, vector<32x128xbf16>,
    %c3_i32 = arith.constant 3 : i32
    %c128_i32_23 = arith.constant 128 : i32
    %63 = arith.muli %c3_i32, %c128_i32_23 : i32
    %64 = tpu.assume_multiple %63, 128 : i32
    %65 = arith.index_cast %64 : i32 to index
    %c0_24 = arith.constant 0 : index
    %66 = vector.load %arg1[%65, %c0_24] : memref<1024x128xbf16, #tpu.memory_space<vmem>>, vector<128x128xbf16>
    %c0_25 = arith.constant 0 : index
    %c0_26 = arith.constant 0 : index
    %67 = vector.load %arg2[%c0_25, %c0_26] : memref<128x128xbf16, #tpu.memory_space<vmem>>, vector<128x128xbf16>
    %cst_27 = arith.constant dense<0.000000e+00> : vector<128x128xf32>
    %68 = tpu.matmul %66, %67, %cst_27 {dimension_numbers = #tpu.dot_dimension_numbers<[1], [0], [0], [1], [0, 0, 1, 1], [], []>} : vector<128x128xbf16>, vector<128x128xbf16>, vector<128x128xf32> -> vector<128x128xf32>
    %69 = vector.extract_strided_slice %68 {offsets = [0, 0], sizes = [32, 128], strides = [1, 1]} : vector<128x128xf32> to vector<32x128xf32>
    %70 = vector.extract_strided_slice %68 {offsets = [32, 0], sizes = [32, 128], strides = [1, 1]} : vector<128x128xf32> to vector<32x128xf32>
    %71 = arith.maximumf %69, %70 : vector<32x128xf32>
    %72 = vector.extract_strided_slice %68 {offsets = [64, 0], sizes = [32, 128], strides = [1, 1]} : vector<128x128xf32> to vector<32x128xf32>
    %73 = vector.extract_strided_slice %68 {offsets = [96, 0], sizes = [32, 128], strides = [1, 1]} : vector<128x128xf32> to vector<32x128xf32>
    %74 = arith.maximumf %72, %73 : vector<32x128xf32>
    %75 = arith.maximumf %71, %74 : vector<32x128xf32>
    %c0_28 = arith.constant 0 : index
    %c0_29 = arith.constant 0 : index
    %76 = vector.load %arg3[%c0_28, %c0_29] : memref<1x128xf32, #tpu.memory_space<vmem>>, vector<1x128xf32>
    %77 = vector.broadcast %76 : vector<1x128xf32> to vector<32x128xf32>
    %78 = arith.addf %75, %77 : vector<32x128xf32>
    %79 = arith.truncf %78 : vector<32x128xf32> to vector<32x128xbf16>
    %c32_i32_30 = arith.constant 32 : i32
    %80 = arith.muli %c3_i32, %c32_i32_30 : i32
    %81 = tpu.assume_multiple %80, 32 : i32
    %82 = arith.index_cast %81 : i32 to index
    %c0_31 = arith.constant 0 : index
    %83 = vector.load %arg4[%82, %c0_31] : memref<256x128xbf16, #tpu.memory_space<vmem>>, vector<32x128xbf16>
    tpu.vector_store %arg4[%82, %c0_31], %79 {strides = array<i32>} : memref<256x128xbf16, #tpu.memory_space<vmem>>, vector<32x128xbf16>,
    %c4_i32 = arith.constant 4 : i32
    %c128_i32_32 = arith.constant 128 : i32
    %84 = arith.muli %c4_i32, %c128_i32_32 : i32
    %85 = tpu.assume_multiple %84, 128 : i32
    %86 = arith.index_cast %85 : i32 to index
    %c0_33 = arith.constant 0 : index
    %87 = vector.load %arg1[%86, %c0_33] : memref<1024x128xbf16, #tpu.memory_space<vmem>>, vector<128x128xbf16>
    %c0_34 = arith.constant 0 : index
    %c0_35 = arith.constant 0 : index
    %88 = vector.load %arg2[%c0_34, %c0_35] : memref<128x128xbf16, #tpu.memory_space<vmem>>, vector<128x128xbf16>
    %cst_36 = arith.constant dense<0.000000e+00> : vector<128x128xf32>
    %89 = tpu.matmul %87, %88, %cst_36 {dimension_numbers = #tpu.dot_dimension_numbers<[1], [0], [0], [1], [0, 0, 1, 1], [], []>} : vector<128x128xbf16>, vector<128x128xbf16>, vector<128x128xf32> -> vector<128x128xf32>
    %90 = vector.extract_strided_slice %89 {offsets = [0, 0], sizes = [32, 128], strides = [1, 1]} : vector<128x128xf32> to vector<32x128xf32>
    %91 = vector.extract_strided_slice %89 {offsets = [32, 0], sizes = [32, 128], strides = [1, 1]} : vector<128x128xf32> to vector<32x128xf32>
    %92 = arith.maximumf %90, %91 : vector<32x128xf32>
    %93 = vector.extract_strided_slice %89 {offsets = [64, 0], sizes = [32, 128], strides = [1, 1]} : vector<128x128xf32> to vector<32x128xf32>
    %94 = vector.extract_strided_slice %89 {offsets = [96, 0], sizes = [32, 128], strides = [1, 1]} : vector<128x128xf32> to vector<32x128xf32>
    %95 = arith.maximumf %93, %94 : vector<32x128xf32>
    %96 = arith.maximumf %92, %95 : vector<32x128xf32>
    %c0_37 = arith.constant 0 : index
    %c0_38 = arith.constant 0 : index
    %97 = vector.load %arg3[%c0_37, %c0_38] : memref<1x128xf32, #tpu.memory_space<vmem>>, vector<1x128xf32>
    %98 = vector.broadcast %97 : vector<1x128xf32> to vector<32x128xf32>
    %99 = arith.addf %96, %98 : vector<32x128xf32>
    %100 = arith.truncf %99 : vector<32x128xf32> to vector<32x128xbf16>
    %c32_i32_39 = arith.constant 32 : i32
    %101 = arith.muli %c4_i32, %c32_i32_39 : i32
    %102 = tpu.assume_multiple %101, 32 : i32
    %103 = arith.index_cast %102 : i32 to index
    %c0_40 = arith.constant 0 : index
    %104 = vector.load %arg4[%103, %c0_40] : memref<256x128xbf16, #tpu.memory_space<vmem>>, vector<32x128xbf16>
    tpu.vector_store %arg4[%103, %c0_40], %100 {strides = array<i32>} : memref<256x128xbf16, #tpu.memory_space<vmem>>, vector<32x128xbf16>,
    %c5_i32 = arith.constant 5 : i32
    %c128_i32_41 = arith.constant 128 : i32
    %105 = arith.muli %c5_i32, %c128_i32_41 : i32
    %106 = tpu.assume_multiple %105, 128 : i32
    %107 = arith.index_cast %106 : i32 to index
    %c0_42 = arith.constant 0 : index
    %108 = vector.load %arg1[%107, %c0_42] : memref<1024x128xbf16, #tpu.memory_space<vmem>>, vector<128x128xbf16>
    %c0_43 = arith.constant 0 : index
    %c0_44 = arith.constant 0 : index
    %109 = vector.load %arg2[%c0_43, %c0_44] : memref<128x128xbf16, #tpu.memory_space<vmem>>, vector<128x128xbf16>
    %cst_45 = arith.constant dense<0.000000e+00> : vector<128x128xf32>
    %110 = tpu.matmul %108, %109, %cst_45 {dimension_numbers = #tpu.dot_dimension_numbers<[1], [0], [0], [1], [0, 0, 1, 1], [], []>} : vector<128x128xbf16>, vector<128x128xbf16>, vector<128x128xf32> -> vector<128x128xf32>
    %111 = vector.extract_strided_slice %110 {offsets = [0, 0], sizes = [32, 128], strides = [1, 1]} : vector<128x128xf32> to vector<32x128xf32>
    %112 = vector.extract_strided_slice %110 {offsets = [32, 0], sizes = [32, 128], strides = [1, 1]} : vector<128x128xf32> to vector<32x128xf32>
    %113 = arith.maximumf %111, %112 : vector<32x128xf32>
    %114 = vector.extract_strided_slice %110 {offsets = [64, 0], sizes = [32, 128], strides = [1, 1]} : vector<128x128xf32> to vector<32x128xf32>
    %115 = vector.extract_strided_slice %110 {offsets = [96, 0], sizes = [32, 128], strides = [1, 1]} : vector<128x128xf32> to vector<32x128xf32>
    %116 = arith.maximumf %114, %115 : vector<32x128xf32>
    %117 = arith.maximumf %113, %116 : vector<32x128xf32>
    %c0_46 = arith.constant 0 : index
    %c0_47 = arith.constant 0 : index
    %118 = vector.load %arg3[%c0_46, %c0_47] : memref<1x128xf32, #tpu.memory_space<vmem>>, vector<1x128xf32>
    %119 = vector.broadcast %118 : vector<1x128xf32> to vector<32x128xf32>
    %120 = arith.addf %117, %119 : vector<32x128xf32>
    %121 = arith.truncf %120 : vector<32x128xf32> to vector<32x128xbf16>
    %c32_i32_48 = arith.constant 32 : i32
    %122 = arith.muli %c5_i32, %c32_i32_48 : i32
    %123 = tpu.assume_multiple %122, 32 : i32
    %124 = arith.index_cast %123 : i32 to index
    %c0_49 = arith.constant 0 : index
    %125 = vector.load %arg4[%124, %c0_49] : memref<256x128xbf16, #tpu.memory_space<vmem>>, vector<32x128xbf16>
    tpu.vector_store %arg4[%124, %c0_49], %121 {strides = array<i32>} : memref<256x128xbf16, #tpu.memory_space<vmem>>, vector<32x128xbf16>,
    %c6_i32 = arith.constant 6 : i32
    %c128_i32_50 = arith.constant 128 : i32
    %126 = arith.muli %c6_i32, %c128_i32_50 : i32
    %127 = tpu.assume_multiple %126, 128 : i32
    %128 = arith.index_cast %127 : i32 to index
    %c0_51 = arith.constant 0 : index
    %129 = vector.load %arg1[%128, %c0_51] : memref<1024x128xbf16, #tpu.memory_space<vmem>>, vector<128x128xbf16>
    %c0_52 = arith.constant 0 : index
    %c0_53 = arith.constant 0 : index
    %130 = vector.load %arg2[%c0_52, %c0_53] : memref<128x128xbf16, #tpu.memory_space<vmem>>, vector<128x128xbf16>
    %cst_54 = arith.constant dense<0.000000e+00> : vector<128x128xf32>
    %131 = tpu.matmul %129, %130, %cst_54 {dimension_numbers = #tpu.dot_dimension_numbers<[1], [0], [0], [1], [0, 0, 1, 1], [], []>} : vector<128x128xbf16>, vector<128x128xbf16>, vector<128x128xf32> -> vector<128x128xf32>
    %132 = vector.extract_strided_slice %131 {offsets = [0, 0], sizes = [32, 128], strides = [1, 1]} : vector<128x128xf32> to vector<32x128xf32>
    %133 = vector.extract_strided_slice %131 {offsets = [32, 0], sizes = [32, 128], strides = [1, 1]} : vector<128x128xf32> to vector<32x128xf32>
    %134 = arith.maximumf %132, %133 : vector<32x128xf32>
    %135 = vector.extract_strided_slice %131 {offsets = [64, 0], sizes = [32, 128], strides = [1, 1]} : vector<128x128xf32> to vector<32x128xf32>
    %136 = vector.extract_strided_slice %131 {offsets = [96, 0], sizes = [32, 128], strides = [1, 1]} : vector<128x128xf32> to vector<32x128xf32>
    %137 = arith.maximumf %135, %136 : vector<32x128xf32>
    %138 = arith.maximumf %134, %137 : vector<32x128xf32>
    %c0_55 = arith.constant 0 : index
    %c0_56 = arith.constant 0 : index
    %139 = vector.load %arg3[%c0_55, %c0_56] : memref<1x128xf32, #tpu.memory_space<vmem>>, vector<1x128xf32>
    %140 = vector.broadcast %139 : vector<1x128xf32> to vector<32x128xf32>
    %141 = arith.addf %138, %140 : vector<32x128xf32>
    %142 = arith.truncf %141 : vector<32x128xf32> to vector<32x128xbf16>
    %c32_i32_57 = arith.constant 32 : i32
    %143 = arith.muli %c6_i32, %c32_i32_57 : i32
    %144 = tpu.assume_multiple %143, 32 : i32
    %145 = arith.index_cast %144 : i32 to index
    %c0_58 = arith.constant 0 : index
    %146 = vector.load %arg4[%145, %c0_58] : memref<256x128xbf16, #tpu.memory_space<vmem>>, vector<32x128xbf16>
    tpu.vector_store %arg4[%145, %c0_58], %142 {strides = array<i32>} : memref<256x128xbf16, #tpu.memory_space<vmem>>, vector<32x128xbf16>,
    %c7_i32 = arith.constant 7 : i32
    %c128_i32_59 = arith.constant 128 : i32
    %147 = arith.muli %c7_i32, %c128_i32_59 : i32
    %148 = tpu.assume_multiple %147, 128 : i32
    %149 = arith.index_cast %148 : i32 to index
    %c0_60 = arith.constant 0 : index
    %150 = vector.load %arg1[%149, %c0_60] : memref<1024x128xbf16, #tpu.memory_space<vmem>>, vector<128x128xbf16>
    %c0_61 = arith.constant 0 : index
    %c0_62 = arith.constant 0 : index
    %151 = vector.load %arg2[%c0_61, %c0_62] : memref<128x128xbf16, #tpu.memory_space<vmem>>, vector<128x128xbf16>
    %cst_63 = arith.constant dense<0.000000e+00> : vector<128x128xf32>
    %152 = tpu.matmul %150, %151, %cst_63 {dimension_numbers = #tpu.dot_dimension_numbers<[1], [0], [0], [1], [0, 0, 1, 1], [], []>} : vector<128x128xbf16>, vector<128x128xbf16>, vector<128x128xf32> -> vector<128x128xf32>
    %153 = vector.extract_strided_slice %152 {offsets = [0, 0], sizes = [32, 128], strides = [1, 1]} : vector<128x128xf32> to vector<32x128xf32>
    %154 = vector.extract_strided_slice %152 {offsets = [32, 0], sizes = [32, 128], strides = [1, 1]} : vector<128x128xf32> to vector<32x128xf32>
    %155 = arith.maximumf %153, %154 : vector<32x128xf32>
    %156 = vector.extract_strided_slice %152 {offsets = [64, 0], sizes = [32, 128], strides = [1, 1]} : vector<128x128xf32> to vector<32x128xf32>
    %157 = vector.extract_strided_slice %152 {offsets = [96, 0], sizes = [32, 128], strides = [1, 1]} : vector<128x128xf32> to vector<32x128xf32>
    %158 = arith.maximumf %156, %157 : vector<32x128xf32>
    %159 = arith.maximumf %155, %158 : vector<32x128xf32>
    %c0_64 = arith.constant 0 : index
    %c0_65 = arith.constant 0 : index
    %160 = vector.load %arg3[%c0_64, %c0_65] : memref<1x128xf32, #tpu.memory_space<vmem>>, vector<1x128xf32>
    %161 = vector.broadcast %160 : vector<1x128xf32> to vector<32x128xf32>
    %162 = arith.addf %159, %161 : vector<32x128xf32>
    %163 = arith.truncf %162 : vector<32x128xf32> to vector<32x128xbf16>
    %c32_i32_66 = arith.constant 32 : i32
    %164 = arith.muli %c7_i32, %c32_i32_66 : i32
    %165 = tpu.assume_multiple %164, 32 : i32
    %166 = arith.index_cast %165 : i32 to index
    %c0_67 = arith.constant 0 : index
    %167 = vector.load %arg4[%166, %c0_67] : memref<256x128xbf16, #tpu.memory_space<vmem>>, vector<32x128xbf16>
    tpu.vector_store %arg4[%166, %c0_67], %163 {strides = array<i32>} : memref<256x128xbf16, #tpu.memory_space<vmem>>, vector<32x128xbf16>,
    %c8_i32 = arith.constant 8 : i32
    return
  }
  func.func @transform_0(%arg0: i32) -> (i32, i32) {
    %c0_i32 = arith.constant 0 : i32
    %c0_i32_0 = arith.constant 0 : i32
    return %arg0, %c0_i32 : i32, i32
  }
  func.func @transform_1(%arg0: i32) -> (i32, i32) {
    %c0_i32 = arith.constant 0 : i32
    %c0_i32_0 = arith.constant 0 : i32
    %c0_i32_1 = arith.constant 0 : i32
    return %c0_i32, %c0_i32_0 : i32, i32
  }
  func.func @transform_2(%arg0: i32) -> (i32, i32) {
    %c0_i32 = arith.constant 0 : i32
    %c0_i32_0 = arith.constant 0 : i32
    %c0_i32_1 = arith.constant 0 : i32
    return %c0_i32, %c0_i32_0 : i32, i32
  }
  func.func @transform_3(%arg0: i32) -> (i32, i32) {
    %c0_i32 = arith.constant 0 : i32
    %c0_i32_0 = arith.constant 0 : i32
    return %arg0, %c0_i32 : i32, i32
  }
}

module attributes {stable_mosaic.version = 11 : i64} {
  func.func @kernel(%arg0: i32, %arg1: memref<256x896xbf16, #tpu.memory_space<vmem>>, %arg2: memref<896x128xbf16, #tpu.memory_space<vmem>>, %arg3: memref<1x128xf32, #tpu.memory_space<vmem>>, %arg4: memref<64x128xbf16, #tpu.memory_space<vmem>>) attributes {dimension_semantics = [#tpu.dimension_semantics<parallel>], iteration_bounds = array<i64: 2>, scalar_prefetch = 0 : i64, scratch_operands = 0 : i64, tpu.core_type = #tpu.core_type<tc>, window_params = [{transform_indices = @transform_0, window_bounds = array<i64: 256, 896>}, {pipeline_mode = #tpu.pipeline_mode<synchronous>, transform_indices = @transform_1, window_bounds = array<i64: 896, 128>}, {pipeline_mode = #tpu.pipeline_mode<synchronous>, transform_indices = @transform_2, window_bounds = array<i64: 1, 128>}, {transform_indices = @transform_3, window_bounds = array<i64: 64, 128>}]} {
    %c0_i32 = arith.constant 0 : i32
    %c64_i32 = arith.constant 64 : i32
    %0 = arith.muli %c0_i32, %c64_i32 : i32
    %1 = tpu.assume_multiple %0, 64 : i32
    %2 = arith.index_cast %1 : i32 to index
    %c0 = arith.constant 0 : index
    %3 = vector.load %arg1[%2, %c0] : memref<256x896xbf16, #tpu.memory_space<vmem>>, vector<64x896xbf16>
    %c0_0 = arith.constant 0 : index
    %c0_1 = arith.constant 0 : index
    %4 = vector.load %arg2[%c0_0, %c0_1] : memref<896x128xbf16, #tpu.memory_space<vmem>>, vector<896x128xbf16>
    %cst = arith.constant dense<0.000000e+00> : vector<64x128xf32>
    %5 = tpu.matmul %3, %4, %cst {dimension_numbers = #tpu.dot_dimension_numbers<[1], [0], [0], [1], [0, 0, 1, 1], [], []>} : vector<64x896xbf16>, vector<896x128xbf16>, vector<64x128xf32> -> vector<64x128xf32>
    %6 = vector.extract_strided_slice %5 {offsets = [0, 0], sizes = [16, 128], strides = [1, 1]} : vector<64x128xf32> to vector<16x128xf32>
    %7 = vector.extract_strided_slice %5 {offsets = [16, 0], sizes = [16, 128], strides = [1, 1]} : vector<64x128xf32> to vector<16x128xf32>
    %8 = arith.maximumf %6, %7 : vector<16x128xf32>
    %9 = vector.extract_strided_slice %5 {offsets = [32, 0], sizes = [16, 128], strides = [1, 1]} : vector<64x128xf32> to vector<16x128xf32>
    %10 = vector.extract_strided_slice %5 {offsets = [48, 0], sizes = [16, 128], strides = [1, 1]} : vector<64x128xf32> to vector<16x128xf32>
    %11 = arith.maximumf %9, %10 : vector<16x128xf32>
    %12 = arith.maximumf %8, %11 : vector<16x128xf32>
    %c0_2 = arith.constant 0 : index
    %c0_3 = arith.constant 0 : index
    %13 = vector.load %arg3[%c0_2, %c0_3] : memref<1x128xf32, #tpu.memory_space<vmem>>, vector<1x128xf32>
    %14 = vector.broadcast %13 : vector<1x128xf32> to vector<16x128xf32>
    %15 = arith.addf %12, %14 : vector<16x128xf32>
    %16 = arith.truncf %15 : vector<16x128xf32> to vector<16x128xbf16>
    %c16_i32 = arith.constant 16 : i32
    %17 = arith.muli %c0_i32, %c16_i32 : i32
    %18 = tpu.assume_multiple %17, 16 : i32
    %19 = arith.index_cast %18 : i32 to index
    %c0_4 = arith.constant 0 : index
    %20 = vector.load %arg4[%19, %c0_4] : memref<64x128xbf16, #tpu.memory_space<vmem>>, vector<16x128xbf16>
    tpu.vector_store %arg4[%19, %c0_4], %16 {strides = array<i32>} : memref<64x128xbf16, #tpu.memory_space<vmem>>, vector<16x128xbf16>,
    %c1_i32 = arith.constant 1 : i32
    %c64_i32_5 = arith.constant 64 : i32
    %21 = arith.muli %c1_i32, %c64_i32_5 : i32
    %22 = tpu.assume_multiple %21, 64 : i32
    %23 = arith.index_cast %22 : i32 to index
    %c0_6 = arith.constant 0 : index
    %24 = vector.load %arg1[%23, %c0_6] : memref<256x896xbf16, #tpu.memory_space<vmem>>, vector<64x896xbf16>
    %c0_7 = arith.constant 0 : index
    %c0_8 = arith.constant 0 : index
    %25 = vector.load %arg2[%c0_7, %c0_8] : memref<896x128xbf16, #tpu.memory_space<vmem>>, vector<896x128xbf16>
    %cst_9 = arith.constant dense<0.000000e+00> : vector<64x128xf32>
    %26 = tpu.matmul %24, %25, %cst_9 {dimension_numbers = #tpu.dot_dimension_numbers<[1], [0], [0], [1], [0, 0, 1, 1], [], []>} : vector<64x896xbf16>, vector<896x128xbf16>, vector<64x128xf32> -> vector<64x128xf32>
    %27 = vector.extract_strided_slice %26 {offsets = [0, 0], sizes = [16, 128], strides = [1, 1]} : vector<64x128xf32> to vector<16x128xf32>
    %28 = vector.extract_strided_slice %26 {offsets = [16, 0], sizes = [16, 128], strides = [1, 1]} : vector<64x128xf32> to vector<16x128xf32>
    %29 = arith.maximumf %27, %28 : vector<16x128xf32>
    %30 = vector.extract_strided_slice %26 {offsets = [32, 0], sizes = [16, 128], strides = [1, 1]} : vector<64x128xf32> to vector<16x128xf32>
    %31 = vector.extract_strided_slice %26 {offsets = [48, 0], sizes = [16, 128], strides = [1, 1]} : vector<64x128xf32> to vector<16x128xf32>
    %32 = arith.maximumf %30, %31 : vector<16x128xf32>
    %33 = arith.maximumf %29, %32 : vector<16x128xf32>
    %c0_10 = arith.constant 0 : index
    %c0_11 = arith.constant 0 : index
    %34 = vector.load %arg3[%c0_10, %c0_11] : memref<1x128xf32, #tpu.memory_space<vmem>>, vector<1x128xf32>
    %35 = vector.broadcast %34 : vector<1x128xf32> to vector<16x128xf32>
    %36 = arith.addf %33, %35 : vector<16x128xf32>
    %37 = arith.truncf %36 : vector<16x128xf32> to vector<16x128xbf16>
    %c16_i32_12 = arith.constant 16 : i32
    %38 = arith.muli %c1_i32, %c16_i32_12 : i32
    %39 = tpu.assume_multiple %38, 16 : i32
    %40 = arith.index_cast %39 : i32 to index
    %c0_13 = arith.constant 0 : index
    %41 = vector.load %arg4[%40, %c0_13] : memref<64x128xbf16, #tpu.memory_space<vmem>>, vector<16x128xbf16>
    tpu.vector_store %arg4[%40, %c0_13], %37 {strides = array<i32>} : memref<64x128xbf16, #tpu.memory_space<vmem>>, vector<16x128xbf16>,
    %c2_i32 = arith.constant 2 : i32
    %c64_i32_14 = arith.constant 64 : i32
    %42 = arith.muli %c2_i32, %c64_i32_14 : i32
    %43 = tpu.assume_multiple %42, 64 : i32
    %44 = arith.index_cast %43 : i32 to index
    %c0_15 = arith.constant 0 : index
    %45 = vector.load %arg1[%44, %c0_15] : memref<256x896xbf16, #tpu.memory_space<vmem>>, vector<64x896xbf16>
    %c0_16 = arith.constant 0 : index
    %c0_17 = arith.constant 0 : index
    %46 = vector.load %arg2[%c0_16, %c0_17] : memref<896x128xbf16, #tpu.memory_space<vmem>>, vector<896x128xbf16>
    %cst_18 = arith.constant dense<0.000000e+00> : vector<64x128xf32>
    %47 = tpu.matmul %45, %46, %cst_18 {dimension_numbers = #tpu.dot_dimension_numbers<[1], [0], [0], [1], [0, 0, 1, 1], [], []>} : vector<64x896xbf16>, vector<896x128xbf16>, vector<64x128xf32> -> vector<64x128xf32>
    %48 = vector.extract_strided_slice %47 {offsets = [0, 0], sizes = [16, 128], strides = [1, 1]} : vector<64x128xf32> to vector<16x128xf32>
    %49 = vector.extract_strided_slice %47 {offsets = [16, 0], sizes = [16, 128], strides = [1, 1]} : vector<64x128xf32> to vector<16x128xf32>
    %50 = arith.maximumf %48, %49 : vector<16x128xf32>
    %51 = vector.extract_strided_slice %47 {offsets = [32, 0], sizes = [16, 128], strides = [1, 1]} : vector<64x128xf32> to vector<16x128xf32>
    %52 = vector.extract_strided_slice %47 {offsets = [48, 0], sizes = [16, 128], strides = [1, 1]} : vector<64x128xf32> to vector<16x128xf32>
    %53 = arith.maximumf %51, %52 : vector<16x128xf32>
    %54 = arith.maximumf %50, %53 : vector<16x128xf32>
    %c0_19 = arith.constant 0 : index
    %c0_20 = arith.constant 0 : index
    %55 = vector.load %arg3[%c0_19, %c0_20] : memref<1x128xf32, #tpu.memory_space<vmem>>, vector<1x128xf32>
    %56 = vector.broadcast %55 : vector<1x128xf32> to vector<16x128xf32>
    %57 = arith.addf %54, %56 : vector<16x128xf32>
    %58 = arith.truncf %57 : vector<16x128xf32> to vector<16x128xbf16>
    %c16_i32_21 = arith.constant 16 : i32
    %59 = arith.muli %c2_i32, %c16_i32_21 : i32
    %60 = tpu.assume_multiple %59, 16 : i32
    %61 = arith.index_cast %60 : i32 to index
    %c0_22 = arith.constant 0 : index
    %62 = vector.load %arg4[%61, %c0_22] : memref<64x128xbf16, #tpu.memory_space<vmem>>, vector<16x128xbf16>
    tpu.vector_store %arg4[%61, %c0_22], %58 {strides = array<i32>} : memref<64x128xbf16, #tpu.memory_space<vmem>>, vector<16x128xbf16>,
    %c3_i32 = arith.constant 3 : i32
    %c64_i32_23 = arith.constant 64 : i32
    %63 = arith.muli %c3_i32, %c64_i32_23 : i32
    %64 = tpu.assume_multiple %63, 64 : i32
    %65 = arith.index_cast %64 : i32 to index
    %c0_24 = arith.constant 0 : index
    %66 = vector.load %arg1[%65, %c0_24] : memref<256x896xbf16, #tpu.memory_space<vmem>>, vector<64x896xbf16>
    %c0_25 = arith.constant 0 : index
    %c0_26 = arith.constant 0 : index
    %67 = vector.load %arg2[%c0_25, %c0_26] : memref<896x128xbf16, #tpu.memory_space<vmem>>, vector<896x128xbf16>
    %cst_27 = arith.constant dense<0.000000e+00> : vector<64x128xf32>
    %68 = tpu.matmul %66, %67, %cst_27 {dimension_numbers = #tpu.dot_dimension_numbers<[1], [0], [0], [1], [0, 0, 1, 1], [], []>} : vector<64x896xbf16>, vector<896x128xbf16>, vector<64x128xf32> -> vector<64x128xf32>
    %69 = vector.extract_strided_slice %68 {offsets = [0, 0], sizes = [16, 128], strides = [1, 1]} : vector<64x128xf32> to vector<16x128xf32>
    %70 = vector.extract_strided_slice %68 {offsets = [16, 0], sizes = [16, 128], strides = [1, 1]} : vector<64x128xf32> to vector<16x128xf32>
    %71 = arith.maximumf %69, %70 : vector<16x128xf32>
    %72 = vector.extract_strided_slice %68 {offsets = [32, 0], sizes = [16, 128], strides = [1, 1]} : vector<64x128xf32> to vector<16x128xf32>
    %73 = vector.extract_strided_slice %68 {offsets = [48, 0], sizes = [16, 128], strides = [1, 1]} : vector<64x128xf32> to vector<16x128xf32>
    %74 = arith.maximumf %72, %73 : vector<16x128xf32>
    %75 = arith.maximumf %71, %74 : vector<16x128xf32>
    %c0_28 = arith.constant 0 : index
    %c0_29 = arith.constant 0 : index
    %76 = vector.load %arg3[%c0_28, %c0_29] : memref<1x128xf32, #tpu.memory_space<vmem>>, vector<1x128xf32>
    %77 = vector.broadcast %76 : vector<1x128xf32> to vector<16x128xf32>
    %78 = arith.addf %75, %77 : vector<16x128xf32>
    %79 = arith.truncf %78 : vector<16x128xf32> to vector<16x128xbf16>
    %c16_i32_30 = arith.constant 16 : i32
    %80 = arith.muli %c3_i32, %c16_i32_30 : i32
    %81 = tpu.assume_multiple %80, 16 : i32
    %82 = arith.index_cast %81 : i32 to index
    %c0_31 = arith.constant 0 : index
    %83 = vector.load %arg4[%82, %c0_31] : memref<64x128xbf16, #tpu.memory_space<vmem>>, vector<16x128xbf16>
    tpu.vector_store %arg4[%82, %c0_31], %79 {strides = array<i32>} : memref<64x128xbf16, #tpu.memory_space<vmem>>, vector<16x128xbf16>,
    %c4_i32 = arith.constant 4 : i32
    return
  }
  func.func @transform_0(%arg0: i32) -> (i32, i32) {
    %c0_i32 = arith.constant 0 : i32
    %c0_i32_0 = arith.constant 0 : i32
    return %arg0, %c0_i32 : i32, i32
  }
  func.func @transform_1(%arg0: i32) -> (i32, i32) {
    %c0_i32 = arith.constant 0 : i32
    %c0_i32_0 = arith.constant 0 : i32
    %c0_i32_1 = arith.constant 0 : i32
    return %c0_i32, %c0_i32_0 : i32, i32
  }
  func.func @transform_2(%arg0: i32) -> (i32, i32) {
    %c0_i32 = arith.constant 0 : i32
    %c0_i32_0 = arith.constant 0 : i32
    %c0_i32_1 = arith.constant 0 : i32
    return %c0_i32, %c0_i32_0 : i32, i32
  }
  func.func @transform_3(%arg0: i32) -> (i32, i32) {
    %c0_i32 = arith.constant 0 : i32
    %c0_i32_0 = arith.constant 0 : i32
    return %arg0, %c0_i32 : i32, i32
  }
}

module attributes {stable_mosaic.version = 11 : i64} {
  func.func @kernel(%arg0: i32, %arg1: memref<128x896xbf16, #tpu.memory_space<vmem>>, %arg2: memref<896x128xbf16, #tpu.memory_space<vmem>>, %arg3: memref<1x128xf32, #tpu.memory_space<vmem>>, %arg4: memref<2048x128xbf16, #tpu.memory_space<vmem>>, %arg5: memref<1x128xf32, #tpu.memory_space<vmem>>, %arg6: memref<2x128xf32, #tpu.memory_space<vmem>>) attributes {dimension_semantics = [#tpu.dimension_semantics<arbitrary>], iteration_bounds = array<i64: 1>, scalar_prefetch = 0 : i64, scratch_operands = 0 : i64, tpu.core_type = #tpu.core_type<tc>, window_params = [{pipeline_mode = #tpu.pipeline_mode<synchronous>, transform_indices = @transform_0, window_bounds = array<i64: 128, 896>}, {pipeline_mode = #tpu.pipeline_mode<synchronous>, transform_indices = @transform_1, window_bounds = array<i64: 896, 128>}, {pipeline_mode = #tpu.pipeline_mode<synchronous>, transform_indices = @transform_2, window_bounds = array<i64: 1, 128>}, {pipeline_mode = #tpu.pipeline_mode<synchronous>, transform_indices = @transform_3, window_bounds = array<i64: 2048, 128>}, {pipeline_mode = #tpu.pipeline_mode<synchronous>, transform_indices = @transform_4, window_bounds = array<i64: 1, 128>}, {pipeline_mode = #tpu.pipeline_mode<synchronous>, transform_indices = @transform_5, window_bounds = array<i64: 2, 128>}]} {
    %cst = arith.constant 0.000000e+00 : f32
    %0 = vector.broadcast %cst : f32 to vector<2x128xf32>
    %c0 = arith.constant 0 : index
    %c0_0 = arith.constant 0 : index
    %1 = vector.load %arg1[%c0, %c0_0] : memref<128x896xbf16, #tpu.memory_space<vmem>>, vector<32x896xbf16>
    %c0_1 = arith.constant 0 : index
    %c0_2 = arith.constant 0 : index
    %2 = vector.load %arg2[%c0_1, %c0_2] : memref<896x128xbf16, #tpu.memory_space<vmem>>, vector<896x128xbf16>
    %cst_3 = arith.constant dense<0.000000e+00> : vector<32x128xf32>
    %3 = tpu.matmul %1, %2, %cst_3 {dimension_numbers = #tpu.dot_dimension_numbers<[1], [0], [0], [1], [0, 0, 1, 1], [], []>} : vector<32x896xbf16>, vector<896x128xbf16>, vector<32x128xf32> -> vector<32x128xf32>
    %4 = vector.extract_strided_slice %3 {offsets = [0, 0], sizes = [8, 128], strides = [1, 1]} : vector<32x128xf32> to vector<8x128xf32>
    %5 = vector.extract_strided_slice %3 {offsets = [8, 0], sizes = [8, 128], strides = [1, 1]} : vector<32x128xf32> to vector<8x128xf32>
    %6 = arith.maximumf %4, %5 : vector<8x128xf32>
    %7 = vector.extract_strided_slice %3 {offsets = [16, 0], sizes = [8, 128], strides = [1, 1]} : vector<32x128xf32> to vector<8x128xf32>
    %8 = vector.extract_strided_slice %3 {offsets = [24, 0], sizes = [8, 128], strides = [1, 1]} : vector<32x128xf32> to vector<8x128xf32>
    %9 = arith.maximumf %7, %8 : vector<8x128xf32>
    %10 = arith.maximumf %6, %9 : vector<8x128xf32>
    %c0_4 = arith.constant 0 : index
    %c0_5 = arith.constant 0 : index
    %11 = vector.load %arg3[%c0_4, %c0_5] : memref<1x128xf32, #tpu.memory_space<vmem>>, vector<1x128xf32>
    %12 = vector.broadcast %11 : vector<1x128xf32> to vector<8x128xf32>
    %13 = arith.addf %10, %12 : vector<8x128xf32>
    %14 = vector.extract_strided_slice %13 {offsets = [0, 0], sizes = [2, 128], strides = [1, 1]} : vector<8x128xf32> to vector<2x128xf32>
    %15 = arith.truncf %14 : vector<2x128xf32> to vector<2x128xbf16>
    %c0_6 = arith.constant 0 : index
    %c0_7 = arith.constant 0 : index
    %16 = vector.load %arg4[%c0_6, %c0_7] : memref<2048x128xbf16, #tpu.memory_space<vmem>>, vector<128x128xbf16>
    %cst_8 = arith.constant dense<0.000000e+00> : vector<2x128xf32>
    %17 = tpu.matmul %15, %16, %cst_8 {dimension_numbers = #tpu.dot_dimension_numbers<[1], [0], [0], [1], [0, 0, 1, 1], [], []>} : vector<2x128xbf16>, vector<128x128xbf16>, vector<2x128xf32> -> vector<2x128xf32>
    %18 = arith.addf %0, %17 : vector<2x128xf32>
    %19 = vector.extract_strided_slice %13 {offsets = [2, 0], sizes = [2, 128], strides = [1, 1]} : vector<8x128xf32> to vector<2x128xf32>
    %20 = arith.truncf %19 : vector<2x128xf32> to vector<2x128xbf16>
    %c128 = arith.constant 128 : index
    %c0_9 = arith.constant 0 : index
    %21 = vector.load %arg4[%c128, %c0_9] : memref<2048x128xbf16, #tpu.memory_space<vmem>>, vector<128x128xbf16>
    %cst_10 = arith.constant dense<0.000000e+00> : vector<2x128xf32>
    %22 = tpu.matmul %20, %21, %cst_10 {dimension_numbers = #tpu.dot_dimension_numbers<[1], [0], [0], [1], [0, 0, 1, 1], [], []>} : vector<2x128xbf16>, vector<128x128xbf16>, vector<2x128xf32> -> vector<2x128xf32>
    %23 = arith.addf %18, %22 : vector<2x128xf32>
    %24 = vector.extract_strided_slice %13 {offsets = [4, 0], sizes = [2, 128], strides = [1, 1]} : vector<8x128xf32> to vector<2x128xf32>
    %25 = arith.truncf %24 : vector<2x128xf32> to vector<2x128xbf16>
    %c256 = arith.constant 256 : index
    %c0_11 = arith.constant 0 : index
    %26 = vector.load %arg4[%c256, %c0_11] : memref<2048x128xbf16, #tpu.memory_space<vmem>>, vector<128x128xbf16>
    %cst_12 = arith.constant dense<0.000000e+00> : vector<2x128xf32>
    %27 = tpu.matmul %25, %26, %cst_12 {dimension_numbers = #tpu.dot_dimension_numbers<[1], [0], [0], [1], [0, 0, 1, 1], [], []>} : vector<2x128xbf16>, vector<128x128xbf16>, vector<2x128xf32> -> vector<2x128xf32>
    %28 = arith.addf %23, %27 : vector<2x128xf32>
    %29 = vector.extract_strided_slice %13 {offsets = [6, 0], sizes = [2, 128], strides = [1, 1]} : vector<8x128xf32> to vector<2x128xf32>
    %30 = arith.truncf %29 : vector<2x128xf32> to vector<2x128xbf16>
    %c384 = arith.constant 384 : index
    %c0_13 = arith.constant 0 : index
    %31 = vector.load %arg4[%c384, %c0_13] : memref<2048x128xbf16, #tpu.memory_space<vmem>>, vector<128x128xbf16>
    %cst_14 = arith.constant dense<0.000000e+00> : vector<2x128xf32>
    %32 = tpu.matmul %30, %31, %cst_14 {dimension_numbers = #tpu.dot_dimension_numbers<[1], [0], [0], [1], [0, 0, 1, 1], [], []>} : vector<2x128xbf16>, vector<128x128xbf16>, vector<2x128xf32> -> vector<2x128xf32>
    %33 = arith.addf %28, %32 : vector<2x128xf32>
    %c32 = arith.constant 32 : index
    %c0_15 = arith.constant 0 : index
    %34 = vector.load %arg1[%c32, %c0_15] : memref<128x896xbf16, #tpu.memory_space<vmem>>, vector<32x896xbf16>
    %c0_16 = arith.constant 0 : index
    %c0_17 = arith.constant 0 : index
    %35 = vector.load %arg2[%c0_16, %c0_17] : memref<896x128xbf16, #tpu.memory_space<vmem>>, vector<896x128xbf16>
    %cst_18 = arith.constant dense<0.000000e+00> : vector<32x128xf32>
    %36 = tpu.matmul %34, %35, %cst_18 {dimension_numbers = #tpu.dot_dimension_numbers<[1], [0], [0], [1], [0, 0, 1, 1], [], []>} : vector<32x896xbf16>, vector<896x128xbf16>, vector<32x128xf32> -> vector<32x128xf32>
    %37 = vector.extract_strided_slice %36 {offsets = [0, 0], sizes = [8, 128], strides = [1, 1]} : vector<32x128xf32> to vector<8x128xf32>
    %38 = vector.extract_strided_slice %36 {offsets = [8, 0], sizes = [8, 128], strides = [1, 1]} : vector<32x128xf32> to vector<8x128xf32>
    %39 = arith.maximumf %37, %38 : vector<8x128xf32>
    %40 = vector.extract_strided_slice %36 {offsets = [16, 0], sizes = [8, 128], strides = [1, 1]} : vector<32x128xf32> to vector<8x128xf32>
    %41 = vector.extract_strided_slice %36 {offsets = [24, 0], sizes = [8, 128], strides = [1, 1]} : vector<32x128xf32> to vector<8x128xf32>
    %42 = arith.maximumf %40, %41 : vector<8x128xf32>
    %43 = arith.maximumf %39, %42 : vector<8x128xf32>
    %c0_19 = arith.constant 0 : index
    %c0_20 = arith.constant 0 : index
    %44 = vector.load %arg3[%c0_19, %c0_20] : memref<1x128xf32, #tpu.memory_space<vmem>>, vector<1x128xf32>
    %45 = vector.broadcast %44 : vector<1x128xf32> to vector<8x128xf32>
    %46 = arith.addf %43, %45 : vector<8x128xf32>
    %47 = vector.extract_strided_slice %46 {offsets = [0, 0], sizes = [2, 128], strides = [1, 1]} : vector<8x128xf32> to vector<2x128xf32>
    %48 = arith.truncf %47 : vector<2x128xf32> to vector<2x128xbf16>
    %c512 = arith.constant 512 : index
    %c0_21 = arith.constant 0 : index
    %49 = vector.load %arg4[%c512, %c0_21] : memref<2048x128xbf16, #tpu.memory_space<vmem>>, vector<128x128xbf16>
    %cst_22 = arith.constant dense<0.000000e+00> : vector<2x128xf32>
    %50 = tpu.matmul %48, %49, %cst_22 {dimension_numbers = #tpu.dot_dimension_numbers<[1], [0], [0], [1], [0, 0, 1, 1], [], []>} : vector<2x128xbf16>, vector<128x128xbf16>, vector<2x128xf32> -> vector<2x128xf32>
    %51 = arith.addf %33, %50 : vector<2x128xf32>
    %52 = vector.extract_strided_slice %46 {offsets = [2, 0], sizes = [2, 128], strides = [1, 1]} : vector<8x128xf32> to vector<2x128xf32>
    %53 = arith.truncf %52 : vector<2x128xf32> to vector<2x128xbf16>
    %c640 = arith.constant 640 : index
    %c0_23 = arith.constant 0 : index
    %54 = vector.load %arg4[%c640, %c0_23] : memref<2048x128xbf16, #tpu.memory_space<vmem>>, vector<128x128xbf16>
    %cst_24 = arith.constant dense<0.000000e+00> : vector<2x128xf32>
    %55 = tpu.matmul %53, %54, %cst_24 {dimension_numbers = #tpu.dot_dimension_numbers<[1], [0], [0], [1], [0, 0, 1, 1], [], []>} : vector<2x128xbf16>, vector<128x128xbf16>, vector<2x128xf32> -> vector<2x128xf32>
    %56 = arith.addf %51, %55 : vector<2x128xf32>
    %57 = vector.extract_strided_slice %46 {offsets = [4, 0], sizes = [2, 128], strides = [1, 1]} : vector<8x128xf32> to vector<2x128xf32>
    %58 = arith.truncf %57 : vector<2x128xf32> to vector<2x128xbf16>
    %c768 = arith.constant 768 : index
    %c0_25 = arith.constant 0 : index
    %59 = vector.load %arg4[%c768, %c0_25] : memref<2048x128xbf16, #tpu.memory_space<vmem>>, vector<128x128xbf16>
    %cst_26 = arith.constant dense<0.000000e+00> : vector<2x128xf32>
    %60 = tpu.matmul %58, %59, %cst_26 {dimension_numbers = #tpu.dot_dimension_numbers<[1], [0], [0], [1], [0, 0, 1, 1], [], []>} : vector<2x128xbf16>, vector<128x128xbf16>, vector<2x128xf32> -> vector<2x128xf32>
    %61 = arith.addf %56, %60 : vector<2x128xf32>
    %62 = vector.extract_strided_slice %46 {offsets = [6, 0], sizes = [2, 128], strides = [1, 1]} : vector<8x128xf32> to vector<2x128xf32>
    %63 = arith.truncf %62 : vector<2x128xf32> to vector<2x128xbf16>
    %c896 = arith.constant 896 : index
    %c0_27 = arith.constant 0 : index
    %64 = vector.load %arg4[%c896, %c0_27] : memref<2048x128xbf16, #tpu.memory_space<vmem>>, vector<128x128xbf16>
    %cst_28 = arith.constant dense<0.000000e+00> : vector<2x128xf32>
    %65 = tpu.matmul %63, %64, %cst_28 {dimension_numbers = #tpu.dot_dimension_numbers<[1], [0], [0], [1], [0, 0, 1, 1], [], []>} : vector<2x128xbf16>, vector<128x128xbf16>, vector<2x128xf32> -> vector<2x128xf32>
    %66 = arith.addf %61, %65 : vector<2x128xf32>
    %c64 = arith.constant 64 : index
    %c0_29 = arith.constant 0 : index
    %67 = vector.load %arg1[%c64, %c0_29] : memref<128x896xbf16, #tpu.memory_space<vmem>>, vector<32x896xbf16>
    %c0_30 = arith.constant 0 : index
    %c0_31 = arith.constant 0 : index
    %68 = vector.load %arg2[%c0_30, %c0_31] : memref<896x128xbf16, #tpu.memory_space<vmem>>, vector<896x128xbf16>
    %cst_32 = arith.constant dense<0.000000e+00> : vector<32x128xf32>
    %69 = tpu.matmul %67, %68, %cst_32 {dimension_numbers = #tpu.dot_dimension_numbers<[1], [0], [0], [1], [0, 0, 1, 1], [], []>} : vector<32x896xbf16>, vector<896x128xbf16>, vector<32x128xf32> -> vector<32x128xf32>
    %70 = vector.extract_strided_slice %69 {offsets = [0, 0], sizes = [8, 128], strides = [1, 1]} : vector<32x128xf32> to vector<8x128xf32>
    %71 = vector.extract_strided_slice %69 {offsets = [8, 0], sizes = [8, 128], strides = [1, 1]} : vector<32x128xf32> to vector<8x128xf32>
    %72 = arith.maximumf %70, %71 : vector<8x128xf32>
    %73 = vector.extract_strided_slice %69 {offsets = [16, 0], sizes = [8, 128], strides = [1, 1]} : vector<32x128xf32> to vector<8x128xf32>
    %74 = vector.extract_strided_slice %69 {offsets = [24, 0], sizes = [8, 128], strides = [1, 1]} : vector<32x128xf32> to vector<8x128xf32>
    %75 = arith.maximumf %73, %74 : vector<8x128xf32>
    %76 = arith.maximumf %72, %75 : vector<8x128xf32>
    %c0_33 = arith.constant 0 : index
    %c0_34 = arith.constant 0 : index
    %77 = vector.load %arg3[%c0_33, %c0_34] : memref<1x128xf32, #tpu.memory_space<vmem>>, vector<1x128xf32>
    %78 = vector.broadcast %77 : vector<1x128xf32> to vector<8x128xf32>
    %79 = arith.addf %76, %78 : vector<8x128xf32>
    %80 = vector.extract_strided_slice %79 {offsets = [0, 0], sizes = [2, 128], strides = [1, 1]} : vector<8x128xf32> to vector<2x128xf32>
    %81 = arith.truncf %80 : vector<2x128xf32> to vector<2x128xbf16>
    %c1024 = arith.constant 1024 : index
    %c0_35 = arith.constant 0 : index
    %82 = vector.load %arg4[%c1024, %c0_35] : memref<2048x128xbf16, #tpu.memory_space<vmem>>, vector<128x128xbf16>
    %cst_36 = arith.constant dense<0.000000e+00> : vector<2x128xf32>
    %83 = tpu.matmul %81, %82, %cst_36 {dimension_numbers = #tpu.dot_dimension_numbers<[1], [0], [0], [1], [0, 0, 1, 1], [], []>} : vector<2x128xbf16>, vector<128x128xbf16>, vector<2x128xf32> -> vector<2x128xf32>
    %84 = arith.addf %66, %83 : vector<2x128xf32>
    %85 = vector.extract_strided_slice %79 {offsets = [2, 0], sizes = [2, 128], strides = [1, 1]} : vector<8x128xf32> to vector<2x128xf32>
    %86 = arith.truncf %85 : vector<2x128xf32> to vector<2x128xbf16>
    %c1152 = arith.constant 1152 : index
    %c0_37 = arith.constant 0 : index
    %87 = vector.load %arg4[%c1152, %c0_37] : memref<2048x128xbf16, #tpu.memory_space<vmem>>, vector<128x128xbf16>
    %cst_38 = arith.constant dense<0.000000e+00> : vector<2x128xf32>
    %88 = tpu.matmul %86, %87, %cst_38 {dimension_numbers = #tpu.dot_dimension_numbers<[1], [0], [0], [1], [0, 0, 1, 1], [], []>} : vector<2x128xbf16>, vector<128x128xbf16>, vector<2x128xf32> -> vector<2x128xf32>
    %89 = arith.addf %84, %88 : vector<2x128xf32>
    %90 = vector.extract_strided_slice %79 {offsets = [4, 0], sizes = [2, 128], strides = [1, 1]} : vector<8x128xf32> to vector<2x128xf32>
    %91 = arith.truncf %90 : vector<2x128xf32> to vector<2x128xbf16>
    %c1280 = arith.constant 1280 : index
    %c0_39 = arith.constant 0 : index
    %92 = vector.load %arg4[%c1280, %c0_39] : memref<2048x128xbf16, #tpu.memory_space<vmem>>, vector<128x128xbf16>
    %cst_40 = arith.constant dense<0.000000e+00> : vector<2x128xf32>
    %93 = tpu.matmul %91, %92, %cst_40 {dimension_numbers = #tpu.dot_dimension_numbers<[1], [0], [0], [1], [0, 0, 1, 1], [], []>} : vector<2x128xbf16>, vector<128x128xbf16>, vector<2x128xf32> -> vector<2x128xf32>
    %94 = arith.addf %89, %93 : vector<2x128xf32>
    %95 = vector.extract_strided_slice %79 {offsets = [6, 0], sizes = [2, 128], strides = [1, 1]} : vector<8x128xf32> to vector<2x128xf32>
    %96 = arith.truncf %95 : vector<2x128xf32> to vector<2x128xbf16>
    %c1408 = arith.constant 1408 : index
    %c0_41 = arith.constant 0 : index
    %97 = vector.load %arg4[%c1408, %c0_41] : memref<2048x128xbf16, #tpu.memory_space<vmem>>, vector<128x128xbf16>
    %cst_42 = arith.constant dense<0.000000e+00> : vector<2x128xf32>
    %98 = tpu.matmul %96, %97, %cst_42 {dimension_numbers = #tpu.dot_dimension_numbers<[1], [0], [0], [1], [0, 0, 1, 1], [], []>} : vector<2x128xbf16>, vector<128x128xbf16>, vector<2x128xf32> -> vector<2x128xf32>
    %99 = arith.addf %94, %98 : vector<2x128xf32>
    %c96 = arith.constant 96 : index
    %c0_43 = arith.constant 0 : index
    %100 = vector.load %arg1[%c96, %c0_43] : memref<128x896xbf16, #tpu.memory_space<vmem>>, vector<32x896xbf16>
    %c0_44 = arith.constant 0 : index
    %c0_45 = arith.constant 0 : index
    %101 = vector.load %arg2[%c0_44, %c0_45] : memref<896x128xbf16, #tpu.memory_space<vmem>>, vector<896x128xbf16>
    %cst_46 = arith.constant dense<0.000000e+00> : vector<32x128xf32>
    %102 = tpu.matmul %100, %101, %cst_46 {dimension_numbers = #tpu.dot_dimension_numbers<[1], [0], [0], [1], [0, 0, 1, 1], [], []>} : vector<32x896xbf16>, vector<896x128xbf16>, vector<32x128xf32> -> vector<32x128xf32>
    %103 = vector.extract_strided_slice %102 {offsets = [0, 0], sizes = [8, 128], strides = [1, 1]} : vector<32x128xf32> to vector<8x128xf32>
    %104 = vector.extract_strided_slice %102 {offsets = [8, 0], sizes = [8, 128], strides = [1, 1]} : vector<32x128xf32> to vector<8x128xf32>
    %105 = arith.maximumf %103, %104 : vector<8x128xf32>
    %106 = vector.extract_strided_slice %102 {offsets = [16, 0], sizes = [8, 128], strides = [1, 1]} : vector<32x128xf32> to vector<8x128xf32>
    %107 = vector.extract_strided_slice %102 {offsets = [24, 0], sizes = [8, 128], strides = [1, 1]} : vector<32x128xf32> to vector<8x128xf32>
    %108 = arith.maximumf %106, %107 : vector<8x128xf32>
    %109 = arith.maximumf %105, %108 : vector<8x128xf32>
    %c0_47 = arith.constant 0 : index
    %c0_48 = arith.constant 0 : index
    %110 = vector.load %arg3[%c0_47, %c0_48] : memref<1x128xf32, #tpu.memory_space<vmem>>, vector<1x128xf32>
    %111 = vector.broadcast %110 : vector<1x128xf32> to vector<8x128xf32>
    %112 = arith.addf %109, %111 : vector<8x128xf32>
    %113 = vector.extract_strided_slice %112 {offsets = [0, 0], sizes = [2, 128], strides = [1, 1]} : vector<8x128xf32> to vector<2x128xf32>
    %114 = arith.truncf %113 : vector<2x128xf32> to vector<2x128xbf16>
    %c1536 = arith.constant 1536 : index
    %c0_49 = arith.constant 0 : index
    %115 = vector.load %arg4[%c1536, %c0_49] : memref<2048x128xbf16, #tpu.memory_space<vmem>>, vector<128x128xbf16>
    %cst_50 = arith.constant dense<0.000000e+00> : vector<2x128xf32>
    %116 = tpu.matmul %114, %115, %cst_50 {dimension_numbers = #tpu.dot_dimension_numbers<[1], [0], [0], [1], [0, 0, 1, 1], [], []>} : vector<2x128xbf16>, vector<128x128xbf16>, vector<2x128xf32> -> vector<2x128xf32>
    %117 = arith.addf %99, %116 : vector<2x128xf32>
    %118 = vector.extract_strided_slice %112 {offsets = [2, 0], sizes = [2, 128], strides = [1, 1]} : vector<8x128xf32> to vector<2x128xf32>
    %119 = arith.truncf %118 : vector<2x128xf32> to vector<2x128xbf16>
    %c1664 = arith.constant 1664 : index
    %c0_51 = arith.constant 0 : index
    %120 = vector.load %arg4[%c1664, %c0_51] : memref<2048x128xbf16, #tpu.memory_space<vmem>>, vector<128x128xbf16>
    %cst_52 = arith.constant dense<0.000000e+00> : vector<2x128xf32>
    %121 = tpu.matmul %119, %120, %cst_52 {dimension_numbers = #tpu.dot_dimension_numbers<[1], [0], [0], [1], [0, 0, 1, 1], [], []>} : vector<2x128xbf16>, vector<128x128xbf16>, vector<2x128xf32> -> vector<2x128xf32>
    %122 = arith.addf %117, %121 : vector<2x128xf32>
    %123 = vector.extract_strided_slice %112 {offsets = [4, 0], sizes = [2, 128], strides = [1, 1]} : vector<8x128xf32> to vector<2x128xf32>
    %124 = arith.truncf %123 : vector<2x128xf32> to vector<2x128xbf16>
    %c1792 = arith.constant 1792 : index
    %c0_53 = arith.constant 0 : index
    %125 = vector.load %arg4[%c1792, %c0_53] : memref<2048x128xbf16, #tpu.memory_space<vmem>>, vector<128x128xbf16>
    %cst_54 = arith.constant dense<0.000000e+00> : vector<2x128xf32>
    %126 = tpu.matmul %124, %125, %cst_54 {dimension_numbers = #tpu.dot_dimension_numbers<[1], [0], [0], [1], [0, 0, 1, 1], [], []>} : vector<2x128xbf16>, vector<128x128xbf16>, vector<2x128xf32> -> vector<2x128xf32>
    %127 = arith.addf %122, %126 : vector<2x128xf32>
    %128 = vector.extract_strided_slice %112 {offsets = [6, 0], sizes = [2, 128], strides = [1, 1]} : vector<8x128xf32> to vector<2x128xf32>
    %129 = arith.truncf %128 : vector<2x128xf32> to vector<2x128xbf16>
    %c1920 = arith.constant 1920 : index
    %c0_55 = arith.constant 0 : index
    %130 = vector.load %arg4[%c1920, %c0_55] : memref<2048x128xbf16, #tpu.memory_space<vmem>>, vector<128x128xbf16>
    %cst_56 = arith.constant dense<0.000000e+00> : vector<2x128xf32>
    %131 = tpu.matmul %129, %130, %cst_56 {dimension_numbers = #tpu.dot_dimension_numbers<[1], [0], [0], [1], [0, 0, 1, 1], [], []>} : vector<2x128xbf16>, vector<128x128xbf16>, vector<2x128xf32> -> vector<2x128xf32>
    %132 = arith.addf %127, %131 : vector<2x128xf32>
    %c0_57 = arith.constant 0 : index
    %c0_58 = arith.constant 0 : index
    %133 = vector.load %arg5[%c0_57, %c0_58] : memref<1x128xf32, #tpu.memory_space<vmem>>, vector<1x128xf32>
    %134 = vector.broadcast %133 : vector<1x128xf32> to vector<2x128xf32>
    %135 = arith.addf %132, %134 : vector<2x128xf32>
    %c0_59 = arith.constant 0 : index
    %c0_60 = arith.constant 0 : index
    %136 = vector.load %arg6[%c0_59, %c0_60] : memref<2x128xf32, #tpu.memory_space<vmem>>, vector<2x128xf32>
    tpu.vector_store %arg6[%c0_59, %c0_60], %135 {strides = array<i32>} : memref<2x128xf32, #tpu.memory_space<vmem>>, vector<2x128xf32>,
    return
  }
  func.func @transform_0(%arg0: i32) -> (i32, i32) {
    %c0_i32 = arith.constant 0 : i32
    %c0_i32_0 = arith.constant 0 : i32
    %c0_i32_1 = arith.constant 0 : i32
    return %c0_i32, %c0_i32_0 : i32, i32
  }
  func.func @transform_1(%arg0: i32) -> (i32, i32) {
    %c0_i32 = arith.constant 0 : i32
    %c0_i32_0 = arith.constant 0 : i32
    %c0_i32_1 = arith.constant 0 : i32
    return %c0_i32, %c0_i32_0 : i32, i32
  }
  func.func @transform_2(%arg0: i32) -> (i32, i32) {
    %c0_i32 = arith.constant 0 : i32
    %c0_i32_0 = arith.constant 0 : i32
    %c0_i32_1 = arith.constant 0 : i32
    return %c0_i32, %c0_i32_0 : i32, i32
  }
  func.func @transform_3(%arg0: i32) -> (i32, i32) {
    %c0_i32 = arith.constant 0 : i32
    %c0_i32_0 = arith.constant 0 : i32
    %c0_i32_1 = arith.constant 0 : i32
    return %c0_i32, %c0_i32_0 : i32, i32
  }
  func.func @transform_4(%arg0: i32) -> (i32, i32) {
    %c0_i32 = arith.constant 0 : i32
    %c0_i32_0 = arith.constant 0 : i32
    %c0_i32_1 = arith.constant 0 : i32
    return %c0_i32, %c0_i32_0 : i32, i32
  }
  func.func @transform_5(%arg0: i32) -> (i32, i32) {
    %c0_i32 = arith.constant 0 : i32
    %c0_i32_0 = arith.constant 0 : i32
    %c0_i32_1 = arith.constant 0 : i32
    return %c0_i32, %c0_i32_0 : i32, i32
  }
}

</mosaic_0001>

<llo_original>
// kernel: cifar10_forward.3
$region0: #{cifar10_forward.3}
  #allocation0 [shape = 'u32[]', space=smem, size = 0x4, offset = 0x4, fixed_abs, tag = 'smem constant byte address 0x4 - core index']
  #allocation1 [shape = 'u32[144,128]{1,0:T(1,128)}', space=vmem, size = 0x12000, scoped, tag = 'internal scratch']
  %s0 = inlined_call_operand.vmem [shape: bf16[2048,128], index: 0, kind: input, shape index: {}]
  %s1 = inlined_call_operand.vmem [shape: bf16[128,128], index: 1, kind: input, shape index: {}]
  %s2 = inlined_call_operand.vmem [shape: f32[1,128], index: 2, kind: input, shape index: {}]
  %s3 = inlined_call_operand.vmem [shape: bf16[512,128], index: 3, kind: output, shape index: {}]
  %s4 = sld [smem:[#allocation0]]
  $region45: #{cifar10_forward.3} parent=0
    _
  %s6 = ssub.s32 1, %s4
  %s7 = scalar_select 0, %s6, %s4
  loop: start=0, step=1, limit=4
  $region2: #{cifar10_forward.3} parent=0 // loop_pre_header
    _
  $region3: #{cifar10_forward.3} parent=0 // loop_header
    %s9 = sphi 0, %s13
    %p10 = scmp.ge.s32.totalorder %s9, 4
    %s19 = sphi 0, %s21
    %s22 = sphi 0, %s19
    %s23 = sphi 0, %s22
    %s39 = sphi 0, %s23
    %s43 = sphi 0, %s43
    %s45 = sphi 0, %s43
    %s46 = sphi 0, %s45
    %s60 = sphi 0, %s46
    %s64 = sphi 0, %s64
    %s66 = sphi 0, %s64
    %s67 = sphi 0, %s66
    %s81 = sphi 0, %s67
    %s87 = sphi 0, %s89
    %s90 = sphi 0, %s87
    %s91 = sphi 0, %s90
    %s107 = sphi 0, %s91
  $region4: #{cifar10_forward.3} parent=0 // loop_header_branch
    %12 = sbr.rel (%p10) target = $region8
  $region5: #{cifar10_forward.3} parent=0 // loop_body
    %s14 = ssub.s32 %s9, 1
    %s15 = ssub.s32 %s9, 2
    %s16 = sadd.s32 %s9, 1
    %s17 = ssub.s32 %s9, %s16
    %p18 = scmp.eq.s32.totalorder %s17, 0
    %s20 = sadd.s32 %s19, 1
    %s21 = scalar_select %p18, %s19, %s20
    %p24 = pneg %p18
    %p25 = scmp.eq.s32.totalorder %s9, 1
    %p26 = por %p24, %p25
    %p27 = scmp.ne.s32.totalorder %s19, %s22
    %p28 = scmp.eq.s32.totalorder %s9, 0
    %p29 = por %p27, %p28
    %p30 = scmp.ne.s32.totalorder %s19, %s22
    %p31 = scmp.eq.s32.totalorder %s14, 1
    %p32 = por %p30, %p31
    %p33 = scmp.ne.s32.totalorder %s22, %s23
    %p34 = scmp.eq.s32.totalorder %s14, 0
    %p35 = por %p33, %p34
    %p36 = scmp.ne.s32.totalorder %s22, %s23
    %p37 = scmp.eq.s32.totalorder %s15, 1
    %p38 = por %p36, %p37
    %p40 = scmp.ne.s32.totalorder %s23, %s39
    %p41 = scmp.eq.s32.totalorder %s15, 0
    %p42 = por %p40, %p41
    %s44 = sadd.s32 %s43, 1
    %p47 = scmp.eq.s32.totalorder %s9, 1
    %p48 = scmp.ne.s32.totalorder %s43, %s45
    %p49 = scmp.eq.s32.totalorder %s9, 0
    %p50 = por %p48, %p49
    %p51 = scmp.ne.s32.totalorder %s43, %s45
    %p52 = scmp.eq.s32.totalorder %s14, 1
    %p53 = por %p51, %p52
    %p54 = scmp.ne.s32.totalorder %s45, %s46
    %p55 = scmp.eq.s32.totalorder %s14, 0
    %p56 = por %p54, %p55
    %p57 = scmp.ne.s32.totalorder %s45, %s46
    %p58 = scmp.eq.s32.totalorder %s15, 1
    %p59 = por %p57, %p58
    %p61 = scmp.ne.s32.totalorder %s46, %s60
    %p62 = scmp.eq.s32.totalorder %s15, 0
    %p63 = por %p61, %p62
    %s65 = sadd.s32 %s64, 1
    %p68 = scmp.eq.s32.totalorder %s9, 1
    %p69 = scmp.ne.s32.totalorder %s64, %s66
    %p70 = scmp.eq.s32.totalorder %s9, 0
    %p71 = por %p69, %p70
    %p72 = scmp.ne.s32.totalorder %s64, %s66
    %p73 = scmp.eq.s32.totalorder %s14, 1
    %p74 = por %p72, %p73
    %p75 = scmp.ne.s32.totalorder %s66, %s67
    %p76 = scmp.eq.s32.totalorder %s14, 0
    %p77 = por %p75, %p76
    %p78 = scmp.ne.s32.totalorder %s66, %s67
    %p79 = scmp.eq.s32.totalorder %s15, 1
    %p80 = por %p78, %p79
    %p82 = scmp.ne.s32.totalorder %s67, %s81
    %p83 = scmp.eq.s32.totalorder %s15, 0
    %p84 = por %p82, %p83
    %s85 = ssub.s32 %s9, %s16
    %p86 = scmp.eq.s32.totalorder %s85, 0
    %s88 = sadd.s32 %s87, 1
    %s89 = scalar_select %p86, %s87, %s88
    %p92 = pneg %p86
    %p93 = scmp.eq.s32.totalorder %s9, 1
    %p94 = por %p92, %p93
    %p95 = scmp.ne.s32.totalorder %s87, %s90
    %p96 = scmp.eq.s32.totalorder %s9, 0
    %p97 = por %p95, %p96
    %p98 = scmp.ne.s32.totalorder %s87, %s90
    %p99 = scmp.eq.s32.totalorder %s14, 1
    %p100 = por %p98, %p99
    %p101 = scmp.ne.s32.totalorder %s90, %s91
    %p102 = scmp.eq.s32.totalorder %s14, 0
    %p103 = por %p101, %p102
    %p104 = scmp.ne.s32.totalorder %s90, %s91
    %p105 = scmp.eq.s32.totalorder %s15, 1
    %p106 = por %p104, %p105
    %p108 = scmp.ne.s32.totalorder %s91, %s107
    %p109 = scmp.eq.s32.totalorder %s15, 0
    %p110 = por %p108, %p109
    %p111 = scmp.le.s32.totalorder 1, %s9
    %p112 = scmp.lt.s32.totalorder %s9, 3
    %p113 = pnand %p111, %p112
    %p114 = pneg %p113
    // Predicated region
    $region9: #{cifar10_forward.3} parent=5 // pred_check
      _
    $region10: #{cifar10_forward.3} parent=5 // pred_check_branch
      %116 = sbr.rel (%p113) target = $region12
    $region11: #{cifar10_forward.3} parent=5 // pred_region
      %s117 = ssub.s32 %s9, 1
      // Predicated region
      $region13: #{cifar10_forward.3} parent=11 // pred_check
        %p118 = pneg %p56
      $region14: #{cifar10_forward.3} parent=11 // pred_check_branch
        %120 = sbr.rel (%p118) target = $region16
      $region15: #{cifar10_forward.3} parent=11 // pred_region
        _
      $region16: #{cifar10_forward.3} parent=11 // pred_fallthru
        _
      // Predicated region
      $region17: #{cifar10_forward.3} parent=11 // pred_check
        %p121 = pneg %p77
      $region18: #{cifar10_forward.3} parent=11 // pred_check_branch
        %123 = sbr.rel (%p121) target = $region20
      $region19: #{cifar10_forward.3} parent=11 // pred_region
        _
      $region20: #{cifar10_forward.3} parent=11 // pred_fallthru
        _
    $region12: #{cifar10_forward.3} parent=5 // pred_fallthru
      _
    %p124 = scmp.lt.s32.totalorder %s9, 2
    // Predicated region
    $region21: #{cifar10_forward.3} parent=5 // pred_check
      %p125 = pneg %p124
    $region22: #{cifar10_forward.3} parent=5 // pred_check_branch
      %127 = sbr.rel (%p125) target = $region24
    $region23: #{cifar10_forward.3} parent=5 // pred_region
      // Predicated region
      $region25: #{cifar10_forward.3} parent=23 // pred_check
        %p128 = pneg %p29
      $region26: #{cifar10_forward.3} parent=23 // pred_check_branch
        %130 = sbr.rel (%p128) target = $region28
      $region27: #{cifar10_forward.3} parent=23 // pred_region
        %s131 = smul.u32 128, %s9
        %p132 = scmp.lt.s32.totalorder %s131, 255
        %s133 = scalar_select %p132, %s131, 255
        %s134 = smul.addr %s133, 4
        %s135 = scalar_lea.vmem %s0, %s134
        %s136 = smul.u32 128, %s9
      $region28: #{cifar10_forward.3} parent=23 // pred_fallthru
        _
    $region24: #{cifar10_forward.3} parent=5 // pred_fallthru
      _
    %p137 = scmp.le.s32.totalorder 1, %s9
    %p138 = scmp.lt.s32.totalorder %s9, 3
    %p139 = pnand %p137, %p138
    %p140 = pneg %p139
    // Predicated region
    $region29: #{cifar10_forward.3} parent=5 // pred_check
      _
    $region30: #{cifar10_forward.3} parent=5 // pred_check_branch
      %142 = sbr.rel (%p139) target = $region32
    $region31: #{cifar10_forward.3} parent=5 // pred_region
      %s143 = ssub.s32 %s9, 1
      %s144 = smul.u32 128, %s14
      %p145 = scmp.lt.s32.totalorder %s144, 255
      %s146 = scalar_select %p145, %s144, 255
      %s147 = smul.addr %s146, 4
      %s148 = scalar_lea.vmem %s0, %s147
      %p149 = pneg %p35
      %p150 = pneg %p32
      %p151 = pneg %p56
      %p152 = pneg %p53
      %p153 = pneg %p77
      %p154 = pneg %p74
      %p155 = pneg %p103
      %p156 = pneg %p100
      %s157 = smul.u32 32, %s14
      %p158 = scmp.lt.s32.totalorder %s157, 63
      %s159 = scalar_select %p158, %s157, 63
      %s160 = smul.addr %s159, 4
      %s161 = scalar_lea.vmem %s3, %s160
      %s162 = smul.u32 128, %s14
      %p163 = scmp.lt.s32.totalorder %s162, 255
      %s164 = scalar_select %p163, %s162, 255
      %s165 = smul.addr %s164, 4
      %s166 = scalar_lea.vmem %s0, %s165
      %s167 = smul.u32 128, %s14
      %s168 = smul.u32 32, %s14
      %p169 = scmp.lt.s32.totalorder %s168, 63
      %s170 = scalar_select %p169, %s168, 63
      %s171 = smul.addr %s170, 4
      %s172 = scalar_lea.vmem %s3, %s171
      %s173 = smul.u32 32, %s14
      %v175 = vld [vmem:[%s166] sm:$0xf]
      %v176 = vld [vmem:[%s166 + $0x4] sm:$0xf]
      %v177 = vld [vmem:[%s166 + $0x8] sm:$0xf]
      %v178 = vld [vmem:[%s166 + $0xc] sm:$0xf]
      %v179 = vld [vmem:[%s166 + $0x10] sm:$0xf]
      %v180 = vld [vmem:[%s166 + $0x14] sm:$0xf]
      %v181 = vld [vmem:[%s166 + $0x18] sm:$0xf]
      %v182 = vld [vmem:[%s166 + $0x1c] sm:$0xf]
      %v183 = vld [vmem:[%s166 + $0x20] sm:$0xf]
      %v184 = vld [vmem:[%s166 + $0x24] sm:$0xf]
      %v185 = vld [vmem:[%s166 + $0x28] sm:$0xf]
      %v186 = vld [vmem:[%s166 + $0x2c] sm:$0xf]
      %v187 = vld [vmem:[%s166 + $0x30] sm:$0xf]
      %v188 = vld [vmem:[%s166 + $0x34] sm:$0xf]
      %v189 = vld [vmem:[%s166 + $0x38] sm:$0xf]
      %v190 = vld [vmem:[%s166 + $0x3c] sm:$0xf]
      %v191 = vld [vmem:[%s1] sm:$0xf]
      %v192 = vld [vmem:[%s1 + $0x4] sm:$0xf]
      %v193 = vld [vmem:[%s1 + $0x8] sm:$0xf]
      %v194 = vld [vmem:[%s1 + $0xc] sm:$0xf]
      %v195 = vld [vmem:[%s1 + $0x10] sm:$0xf]
      %v196 = vld [vmem:[%s1 + $0x14] sm:$0xf]
      %v197 = vld [vmem:[%s1 + $0x18] sm:$0xf]
      %v198 = vld [vmem:[%s1 + $0x1c] sm:$0xf]
      %v199 = vld [vmem:[%s1 + $0x20] sm:$0xf]
      %v200 = vld [vmem:[%s1 + $0x24] sm:$0xf]
      %v201 = vld [vmem:[%s1 + $0x28] sm:$0xf]
      %v202 = vld [vmem:[%s1 + $0x2c] sm:$0xf]
      %v203 = vld [vmem:[%s1 + $0x30] sm:$0xf]
      %v204 = vld [vmem:[%s1 + $0x34] sm:$0xf]
      %v205 = vld [vmem:[%s1 + $0x38] sm:$0xf]
      %v206 = vld [vmem:[%s1 + $0x3c] sm:$0xf]
      %v223 = vunpack.c.l.b16 %v175
      %v224 = vunpack.c.l.b16 %v176
      %v225 = vunpack.c.l.b16 %v177
      %v226 = vunpack.c.l.b16 %v178
      %v227 = vunpack.c.l.b16 %v179
      %v228 = vunpack.c.l.b16 %v180
      %v229 = vunpack.c.l.b16 %v181
      %v230 = vunpack.c.l.b16 %v182
      %v231 = vunpack.c.l.b16 %v183
      %v232 = vunpack.c.l.b16 %v184
      %v233 = vunpack.c.l.b16 %v185
      %v234 = vunpack.c.l.b16 %v186
      %v235 = vunpack.c.l.b16 %v187
      %v236 = vunpack.c.l.b16 %v188
      %v237 = vunpack.c.l.b16 %v189
      %v238 = vunpack.c.l.b16 %v190
      %v239 = vpack.c.b16 %v224, %v223
      %v240 = vpack.c.b16 %v226, %v225
      %v241 = vpack.c.b16 %v228, %v227
      %v242 = vpack.c.b16 %v230, %v229
      %v243 = vpack.c.b16 %v232, %v231
      %v244 = vpack.c.b16 %v234, %v233
      %v245 = vpack.c.b16 %v236, %v235
      %v246 = vpack.c.b16 %v238, %v237
      %v271 = vunpack.c.l.b16 %v191
      %v272 = vunpack.c.l.b16 %v192
      %v273 = vunpack.c.l.b16 %v193
      %v274 = vunpack.c.l.b16 %v194
      %v275 = vunpack.c.l.b16 %v195
      %v276 = vunpack.c.l.b16 %v196
      %v277 = vunpack.c.l.b16 %v197
      %v278 = vunpack.c.l.b16 %v198
      %v279 = vunpack.c.l.b16 %v199
      %v280 = vunpack.c.l.b16 %v200
      %v281 = vunpack.c.l.b16 %v201
      %v282 = vunpack.c.l.b16 %v202
      %v283 = vunpack.c.l.b16 %v203
      %v284 = vunpack.c.l.b16 %v204
      %v285 = vunpack.c.l.b16 %v205
      %v286 = vunpack.c.l.b16 %v206
      %v287 = vpack.c.b16 %v272, %v271
      %v288 = vpack.c.b16 %v274, %v273
      %v289 = vpack.c.b16 %v276, %v275
      %v290 = vpack.c.b16 %v278, %v277
      %v291 = vpack.c.b16 %v280, %v279
      %v292 = vpack.c.b16 %v282, %v281
      %v293 = vpack.c.b16 %v284, %v283
      %v294 = vpack.c.b16 %v286, %v285
      %303 = vmatprep.subr.bf16.mxu0 0
      %304 = vmatpush1.bf16.msra.mxu0 %v294
      %305 = vmatprep.subr.bf16.mxu0 0
      %306 = vmatpush1.bf16.msra.mxu0 %v293
      %307 = vmatprep.subr.bf16.mxu0 0
      %308 = vmatpush1.bf16.msra.mxu0 %v292
      %309 = vmatprep.subr.bf16.mxu0 0
      %310 = vmatpush1.bf16.msra.mxu0 %v291
      %311 = vmatprep.subr.bf16.mxu0 0
      %312 = vmatpush1.bf16.msra.mxu0 %v290
      %313 = vmatprep.subr.bf16.mxu0 0
      %314 = vmatpush1.bf16.msra.mxu0 %v289
      %315 = vmatprep.subr.bf16.mxu0 0
      %316 = vmatpush1.bf16.msra.mxu0 %v288
      %317 = vmatprep.subr.bf16.mxu0 0
      %318 = vmatpush1.bf16.msra.mxu0 %v287
      %319 = vmatprep.subr.bf16.mxu0 0
      %320 = vmatpush2.bf16.msra.mxu0 0
      %321 = vmatprep.subr.bf16.mxu0 0
      %322 = vmatpush2.bf16.msra.mxu0 0
      %323 = vmatprep.subr.bf16.mxu0 0
      %324 = vmatpush2.bf16.msra.mxu0 0
      %325 = vmatprep.subr.bf16.mxu0 0
      %326 = vmatpush2.bf16.msra.mxu0 0
      %327 = vmatprep.subr.bf16.mxu0 0
      %328 = vmatpush2.bf16.msra.mxu0 0
      %329 = vmatprep.subr.bf16.mxu0 0
      %330 = vmatpush2.bf16.msra.mxu0 0
      %331 = vmatprep.subr.bf16.mxu0 0
      %332 = vmatpush2.bf16.msra.mxu0 0
      %333 = vmatprep.subr.bf16.mxu0 0
      %334 = vmatpush2.bf16.msra.mxu0 0
      %335 = vmatprep.mubr.bf16.mxu0 0
      %336 = vmatmul.mubr.bf16.gmra.mxu0 %v239
      %v337 = vpop.f32.mrf.mxu0
      %v338 = vadd.f32 0.0, %v337
      %v339 = vpop.f32.mrf.mxu0
      %v340 = vpop.f32.mrf.mxu0
      %v341 = vadd.f32 0.0, %v340
      %v342 = vpop.f32.mrf.mxu0
      %343 = vmatprep.mubr.bf16.mxu0 0
      %344 = vmatmul.mubr.bf16.gmra.mxu0 %v240
      %v345 = vpop.f32.mrf.mxu0
      %v346 = vadd.f32 0.0, %v345
      %v347 = vpop.f32.mrf.mxu0
      %v348 = vpop.f32.mrf.mxu0
      %v349 = vadd.f32 0.0, %v348
      %v350 = vpop.f32.mrf.mxu0
      %351 = vmatprep.mubr.bf16.mxu0 0
      %352 = vmatmul.mubr.bf16.gmra.mxu0 %v241
      %v353 = vpop.f32.mrf.mxu0
      %v354 = vadd.f32 0.0, %v353
      %v355 = vpop.f32.mrf.mxu0
      %v356 = vpop.f32.mrf.mxu0
      %v357 = vadd.f32 0.0, %v356
      %v358 = vpop.f32.mrf.mxu0
      %359 = vmatprep.mubr.bf16.mxu0 0
      %360 = vmatmul.mubr.bf16.gmra.mxu0 %v242
      %v361 = vpop.f32.mrf.mxu0
      %v362 = vadd.f32 0.0, %v361
      %v363 = vpop.f32.mrf.mxu0
      %v364 = vpop.f32.mrf.mxu0
      %v365 = vadd.f32 0.0, %v364
      %v366 = vpop.f32.mrf.mxu0
      %367 = vmatprep.mubr.bf16.mxu0 0
      %368 = vmatmul.mubr.bf16.gmra.mxu0 %v243
      %v369 = vpop.f32.mrf.mxu0
      %v370 = vadd.f32 0.0, %v369
      %v371 = vpop.f32.mrf.mxu0
      %v372 = vpop.f32.mrf.mxu0
      %v373 = vadd.f32 0.0, %v372
      %v374 = vpop.f32.mrf.mxu0
      %375 = vmatprep.mubr.bf16.mxu0 0
      %376 = vmatmul.mubr.bf16.gmra.mxu0 %v244
      %v377 = vpop.f32.mrf.mxu0
      %v378 = vadd.f32 0.0, %v377
      %v379 = vpop.f32.mrf.mxu0
      %v380 = vpop.f32.mrf.mxu0
      %v381 = vadd.f32 0.0, %v380
      %v382 = vpop.f32.mrf.mxu0
      %383 = vmatprep.mubr.bf16.mxu0 0
      %384 = vmatmul.mubr.bf16.gmra.mxu0 %v245
      %v385 = vpop.f32.mrf.mxu0
      %v386 = vadd.f32 0.0, %v385
      %v387 = vpop.f32.mrf.mxu0
      %v388 = vpop.f32.mrf.mxu0
      %v389 = vadd.f32 0.0, %v388
      %v390 = vpop.f32.mrf.mxu0
      %391 = vmatprep.mubr.bf16.mxu0 0
      %392 = vmatmul.mubr.bf16.gmra.mxu0 %v246
      %v393 = vpop.f32.mrf.mxu0
      %v394 = vadd.f32 0.0, %v393
      %v395 = vpop.f32.mrf.mxu0
      %v396 = vpop.f32.mrf.mxu0
      %v397 = vadd.f32 0.0, %v396
      %v398 = vpop.f32.mrf.mxu0
      %399 = vdwg.mxu0
      %v400 = vmax.f32 %v338, %v354
      %v401 = vmax.f32 %v341, %v357
      %v402 = vmax.f32 %v346, %v362
      %v403 = vmax.f32 %v349, %v365
      %v404 = vmax.f32 %v370, %v386
      %v405 = vmax.f32 %v373, %v389
      %v406 = vmax.f32 %v378, %v394
      %v407 = vmax.f32 %v381, %v397
      %v408 = vmax.f32 %v400, %v404
      %v409 = vmax.f32 %v401, %v405
      %v410 = vmax.f32 %v402, %v406
      %v411 = vmax.f32 %v403, %v407
      %v412 = vld [vmem:[%s2] sm:$0x1]
      %v414 = vlaneseq
      %v415 = vshrl.u32 %v414, 7
      %v416 = vsub.s32 0, %v415
      %v417 = vrot.slane %v412, %v416
      %v419 = vadd.f32 %v408, %v417
      %v420 = vadd.f32 %v409, %v417
      %v421 = vadd.f32 %v410, %v417
      %v422 = vadd.f32 %v411, %v417
      %v423 = vpack.c.bf16 %v420, %v419
      %v424 = vpack.c.bf16 %v422, %v421
      %v427 = vunpack.c.l.b16 %v423
      %v428 = vunpack.c.h.b16 %v423
      %v429 = vunpack.c.l.b16 %v424
      %v430 = vunpack.c.h.b16 %v424
      %v431 = vpack.c.b16 %v427, %v427
      %v432 = vpack.c.b16 %v428, %v428
      %v433 = vpack.c.b16 %v429, %v429
      %v434 = vpack.c.b16 %v430, %v430
      %439 = vst [vmem:[%s172] sm:$0xf] %v431
      %440 = vst [vmem:[%s172 + $0x4] sm:$0xf] %v432
      %441 = vst [vmem:[%s172 + $0x8] sm:$0xf] %v433
      %442 = vst [vmem:[%s172 + $0xc] sm:$0xf] %v434
      %s443 = scalar_lea.vmem %s166, 64
      %v444 = vld [vmem:[%s443] sm:$0xf]
      %v445 = vld [vmem:[%s443 + $0x4] sm:$0xf]
      %v446 = vld [vmem:[%s443 + $0x8] sm:$0xf]
      %v447 = vld [vmem:[%s443 + $0xc] sm:$0xf]
      %v448 = vld [vmem:[%s443 + $0x10] sm:$0xf]
      %v449 = vld [vmem:[%s443 + $0x14] sm:$0xf]
      %v450 = vld [vmem:[%s443 + $0x18] sm:$0xf]
      %v451 = vld [vmem:[%s443 + $0x1c] sm:$0xf]
      %v452 = vld [vmem:[%s443 + $0x20] sm:$0xf]
      %v453 = vld [vmem:[%s443 + $0x24] sm:$0xf]
      %v454 = vld [vmem:[%s443 + $0x28] sm:$0xf]
      %v455 = vld [vmem:[%s443 + $0x2c] sm:$0xf]
      %v456 = vld [vmem:[%s443 + $0x30] sm:$0xf]
      %v457 = vld [vmem:[%s443 + $0x34] sm:$0xf]
      %v458 = vld [vmem:[%s443 + $0x38] sm:$0xf]
      %v459 = vld [vmem:[%s443 + $0x3c] sm:$0xf]
      %v460 = vld [vmem:[%s1] sm:$0xf]
      %v461 = vld [vmem:[%s1 + $0x4] sm:$0xf]
      %v462 = vld [vmem:[%s1 + $0x8] sm:$0xf]
      %v463 = vld [vmem:[%s1 + $0xc] sm:$0xf]
      %v464 = vld [vmem:[%s1 + $0x10] sm:$0xf]
      %v465 = vld [vmem:[%s1 + $0x14] sm:$0xf]
      %v466 = vld [vmem:[%s1 + $0x18] sm:$0xf]
      %v467 = vld [vmem:[%s1 + $0x1c] sm:$0xf]
      %v468 = vld [vmem:[%s1 + $0x20] sm:$0xf]
      %v469 = vld [vmem:[%s1 + $0x24] sm:$0xf]
      %v470 = vld [vmem:[%s1 + $0x28] sm:$0xf]
      %v471 = vld [vmem:[%s1 + $0x2c] sm:$0xf]
      %v472 = vld [vmem:[%s1 + $0x30] sm:$0xf]
      %v473 = vld [vmem:[%s1 + $0x34] sm:$0xf]
      %v474 = vld [vmem:[%s1 + $0x38] sm:$0xf]
      %v475 = vld [vmem:[%s1 + $0x3c] sm:$0xf]
      %v492 = vunpack.c.l.b16 %v444
      %v493 = vunpack.c.l.b16 %v445
      %v494 = vunpack.c.l.b16 %v446
      %v495 = vunpack.c.l.b16 %v447
      %v496 = vunpack.c.l.b16 %v448
      %v497 = vunpack.c.l.b16 %v449
      %v498 = vunpack.c.l.b16 %v450
      %v499 = vunpack.c.l.b16 %v451
      %v500 = vunpack.c.l.b16 %v452
      %v501 = vunpack.c.l.b16 %v453
      %v502 = vunpack.c.l.b16 %v454
      %v503 = vunpack.c.l.b16 %v455
      %v504 = vunpack.c.l.b16 %v456
      %v505 = vunpack.c.l.b16 %v457
      %v506 = vunpack.c.l.b16 %v458
      %v507 = vunpack.c.l.b16 %v459
      %v508 = vpack.c.b16 %v493, %v492
      %v509 = vpack.c.b16 %v495, %v494
      %v510 = vpack.c.b16 %v497, %v496
      %v511 = vpack.c.b16 %v499, %v498
      %v512 = vpack.c.b16 %v501, %v500
      %v513 = vpack.c.b16 %v503, %v502
      %v514 = vpack.c.b16 %v505, %v504
      %v515 = vpack.c.b16 %v507, %v506
      %v540 = vunpack.c.l.b16 %v460
      %v541 = vunpack.c.l.b16 %v461
      %v542 = vunpack.c.l.b16 %v462
      %v543 = vunpack.c.l.b16 %v463
      %v544 = vunpack.c.l.b16 %v464
      %v545 = vunpack.c.l.b16 %v465
      %v546 = vunpack.c.l.b16 %v466
      %v547 = vunpack.c.l.b16 %v467
      %v548 = vunpack.c.l.b16 %v468
      %v549 = vunpack.c.l.b16 %v469
      %v550 = vunpack.c.l.b16 %v470
      %v551 = vunpack.c.l.b16 %v471
      %v552 = vunpack.c.l.b16 %v472
      %v553 = vunpack.c.l.b16 %v473
      %v554 = vunpack.c.l.b16 %v474
      %v555 = vunpack.c.l.b16 %v475
      %v556 = vpack.c.b16 %v541, %v540
      %v557 = vpack.c.b16 %v543, %v542
      %v558 = vpack.c.b16 %v545, %v544
      %v559 = vpack.c.b16 %v547, %v546
      %v560 = vpack.c.b16 %v549, %v548
      %v561 = vpack.c.b16 %v551, %v550
      %v562 = vpack.c.b16 %v553, %v552
      %v563 = vpack.c.b16 %v555, %v554
      %572 = vmatprep.subr.bf16.mxu0 0
      %573 = vmatpush1.bf16.msra.mxu0 %v563
      %574 = vmatprep.subr.bf16.mxu0 0
      %575 = vmatpush1.bf16.msra.mxu0 %v562
      %576 = vmatprep.subr.bf16.mxu0 0
      %577 = vmatpush1.bf16.msra.mxu0 %v561
      %578 = vmatprep.subr.bf16.mxu0 0
      %579 = vmatpush1.bf16.msra.mxu0 %v560
      %580 = vmatprep.subr.bf16.mxu0 0
      %581 = vmatpush1.bf16.msra.mxu0 %v559
      %582 = vmatprep.subr.bf16.mxu0 0
      %583 = vmatpush1.bf16.msra.mxu0 %v558
      %584 = vmatprep.subr.bf16.mxu0 0
      %585 = vmatpush1.bf16.msra.mxu0 %v557
      %586 = vmatprep.subr.bf16.mxu0 0
      %587 = vmatpush1.bf16.msra.mxu0 %v556
      %588 = vmatprep.subr.bf16.mxu0 0
      %589 = vmatpush2.bf16.msra.mxu0 0
      %590 = vmatprep.subr.bf16.mxu0 0
      %591 = vmatpush2.bf16.msra.mxu0 0
      %592 = vmatprep.subr.bf16.mxu0 0
      %593 = vmatpush2.bf16.msra.mxu0 0
      %594 = vmatprep.subr.bf16.mxu0 0
      %595 = vmatpush2.bf16.msra.mxu0 0
      %596 = vmatprep.subr.bf16.mxu0 0
      %597 = vmatpush2.bf16.msra.mxu0 0
      %598 = vmatprep.subr.bf16.mxu0 0
      %599 = vmatpush2.bf16.msra.mxu0 0
      %600 = vmatprep.subr.bf16.mxu0 0
      %601 = vmatpush2.bf16.msra.mxu0 0
      %602 = vmatprep.subr.bf16.mxu0 0
      %603 = vmatpush2.bf16.msra.mxu0 0
      %604 = vmatprep.mubr.bf16.mxu0 0
      %605 = vmatmul.mubr.bf16.gmra.mxu0 %v508
      %v606 = vpop.f32.mrf.mxu0
      %v607 = vadd.f32 0.0, %v606
      %v608 = vpop.f32.mrf.mxu0
      %v609 = vpop.f32.mrf.mxu0
      %v610 = vadd.f32 0.0, %v609
      %v611 = vpop.f32.mrf.mxu0
      %612 = vmatprep.mubr.bf16.mxu0 0
      %613 = vmatmul.mubr.bf16.gmra.mxu0 %v509
      %v614 = vpop.f32.mrf.mxu0
      %v615 = vadd.f32 0.0, %v614
      %v616 = vpop.f32.mrf.mxu0
      %v617 = vpop.f32.mrf.mxu0
      %v618 = vadd.f32 0.0, %v617
      %v619 = vpop.f32.mrf.mxu0
      %620 = vmatprep.mubr.bf16.mxu0 0
      %621 = vmatmul.mubr.bf16.gmra.mxu0 %v510
      %v622 = vpop.f32.mrf.mxu0
      %v623 = vadd.f32 0.0, %v622
      %v624 = vpop.f32.mrf.mxu0
      %v625 = vpop.f32.mrf.mxu0
      %v626 = vadd.f32 0.0, %v625
      %v627 = vpop.f32.mrf.mxu0
      %628 = vmatprep.mubr.bf16.mxu0 0
      %629 = vmatmul.mubr.bf16.gmra.mxu0 %v511
      %v630 = vpop.f32.mrf.mxu0
      %v631 = vadd.f32 0.0, %v630
      %v632 = vpop.f32.mrf.mxu0
      %v633 = vpop.f32.mrf.mxu0
      %v634 = vadd.f32 0.0, %v633
      %v635 = vpop.f32.mrf.mxu0
      %636 = vmatprep.mubr.bf16.mxu0 0
      %637 = vmatmul.mubr.bf16.gmra.mxu0 %v512
      %v638 = vpop.f32.mrf.mxu0
      %v639 = vadd.f32 0.0, %v638
      %v640 = vpop.f32.mrf.mxu0
      %v641 = vpop.f32.mrf.mxu0
      %v642 = vadd.f32 0.0, %v641
      %v643 = vpop.f32.mrf.mxu0
      %644 = vmatprep.mubr.bf16.mxu0 0
      %645 = vmatmul.mubr.bf16.gmra.mxu0 %v513
      %v646 = vpop.f32.mrf.mxu0
      %v647 = vadd.f32 0.0, %v646
      %v648 = vpop.f32.mrf.mxu0
      %v649 = vpop.f32.mrf.mxu0
      %v650 = vadd.f32 0.0, %v649
      %v651 = vpop.f32.mrf.mxu0
      %652 = vmatprep.mubr.bf16.mxu0 0
      %653 = vmatmul.mubr.bf16.gmra.mxu0 %v514
      %v654 = vpop.f32.mrf.mxu0
      %v655 = vadd.f32 0.0, %v654
      %v656 = vpop.f32.mrf.mxu0
      %v657 = vpop.f32.mrf.mxu0
      %v658 = vadd.f32 0.0, %v657
      %v659 = vpop.f32.mrf.mxu0
      %660 = vmatprep.mubr.bf16.mxu0 0
      %661 = vmatmul.mubr.bf16.gmra.mxu0 %v515
      %v662 = vpop.f32.mrf.mxu0
      %v663 = vadd.f32 0.0, %v662
      %v664 = vpop.f32.mrf.mxu0
      %v665 = vpop.f32.mrf.mxu0
      %v666 = vadd.f32 0.0, %v665
      %v667 = vpop.f32.mrf.mxu0
      %668 = vdwg.mxu0
      %v669 = vmax.f32 %v607, %v623
      %v670 = vmax.f32 %v610, %v626
      %v671 = vmax.f32 %v615, %v631
      %v672 = vmax.f32 %v618, %v634
      %v673 = vmax.f32 %v639, %v655
      %v674 = vmax.f32 %v642, %v658
      %v675 = vmax.f32 %v647, %v663
      %v676 = vmax.f32 %v650, %v666
      %v677 = vmax.f32 %v669, %v673
      %v678 = vmax.f32 %v670, %v674
      %v679 = vmax.f32 %v671, %v675
      %v680 = vmax.f32 %v672, %v676
      %v681 = vld [vmem:[%s2] sm:$0x1]
      %v683 = vlaneseq
      %v684 = vshrl.u32 %v683, 7
      %v685 = vsub.s32 0, %v684
      %v686 = vrot.slane %v681, %v685
      %v688 = vadd.f32 %v677, %v686
      %v689 = vadd.f32 %v678, %v686
      %v690 = vadd.f32 %v679, %v686
      %v691 = vadd.f32 %v680, %v686
      %v692 = vpack.c.bf16 %v689, %v688
      %v693 = vpack.c.bf16 %v691, %v690
      %v696 = vunpack.c.l.b16 %v692
      %v697 = vunpack.c.h.b16 %v692
      %v698 = vunpack.c.l.b16 %v693
      %v699 = vunpack.c.h.b16 %v693
      %v700 = vpack.c.b16 %v696, %v696
      %v701 = vpack.c.b16 %v697, %v697
      %v702 = vpack.c.b16 %v698, %v698
      %v703 = vpack.c.b16 %v699, %v699
      %s708 = scalar_lea.vmem %s172, 16
      %709 = vst [vmem:[%s708] sm:$0xf] %v700
      %710 = vst [vmem:[%s708 + $0x4] sm:$0xf] %v701
      %711 = vst [vmem:[%s708 + $0x8] sm:$0xf] %v702
      %712 = vst [vmem:[%s708 + $0xc] sm:$0xf] %v703
      %s713 = scalar_lea.vmem %s166, 128
      %v714 = vld [vmem:[%s713] sm:$0xf]
      %v715 = vld [vmem:[%s713 + $0x4] sm:$0xf]
      %v716 = vld [vmem:[%s713 + $0x8] sm:$0xf]
      %v717 = vld [vmem:[%s713 + $0xc] sm:$0xf]
      %v718 = vld [vmem:[%s713 + $0x10] sm:$0xf]
      %v719 = vld [vmem:[%s713 + $0x14] sm:$0xf]
      %v720 = vld [vmem:[%s713 + $0x18] sm:$0xf]
      %v721 = vld [vmem:[%s713 + $0x1c] sm:$0xf]
      %v722 = vld [vmem:[%s713 + $0x20] sm:$0xf]
      %v723 = vld [vmem:[%s713 + $0x24] sm:$0xf]
      %v724 = vld [vmem:[%s713 + $0x28] sm:$0xf]
      %v725 = vld [vmem:[%s713 + $0x2c] sm:$0xf]
      %v726 = vld [vmem:[%s713 + $0x30] sm:$0xf]
      %v727 = vld [vmem:[%s713 + $0x34] sm:$0xf]
      %v728 = vld [vmem:[%s713 + $0x38] sm:$0xf]
      %v729 = vld [vmem:[%s713 + $0x3c] sm:$0xf]
      %v730 = vld [vmem:[%s1] sm:$0xf]
      %v731 = vld [vmem:[%s1 + $0x4] sm:$0xf]
      %v732 = vld [vmem:[%s1 + $0x8] sm:$0xf]
      %v733 = vld [vmem:[%s1 + $0xc] sm:$0xf]
      %v734 = vld [vmem:[%s1 + $0x10] sm:$0xf]
      %v735 = vld [vmem:[%s1 + $0x14] sm:$0xf]
      %v736 = vld [vmem:[%s1 + $0x18] sm:$0xf]
      %v737 = vld [vmem:[%s1 + $0x1c] sm:$0xf]
      %v738 = vld [vmem:[%s1 + $0x20] sm:$0xf]
      %v739 = vld [vmem:[%s1 + $0x24] sm:$0xf]
      %v740 = vld [vmem:[%s1 + $0x28] sm:$0xf]
      %v741 = vld [vmem:[%s1 + $0x2c] sm:$0xf]
      %v742 = vld [vmem:[%s1 + $0x30] sm:$0xf]
      %v743 = vld [vmem:[%s1 + $0x34] sm:$0xf]
      %v744 = vld [vmem:[%s1 + $0x38] sm:$0xf]
      %v745 = vld [vmem:[%s1 + $0x3c] sm:$0xf]
      %v762 = vunpack.c.l.b16 %v714
      %v763 = vunpack.c.l.b16 %v715
      %v764 = vunpack.c.l.b16 %v716
      %v765 = vunpack.c.l.b16 %v717
      %v766 = vunpack.c.l.b16 %v718
      %v767 = vunpack.c.l.b16 %v719
      %v768 = vunpack.c.l.b16 %v720
      %v769 = vunpack.c.l.b16 %v721
      %v770 = vunpack.c.l.b16 %v722
      %v771 = vunpack.c.l.b16 %v723
      %v772 = vunpack.c.l.b16 %v724
      %v773 = vunpack.c.l.b16 %v725
      %v774 = vunpack.c.l.b16 %v726
      %v775 = vunpack.c.l.b16 %v727
      %v776 = vunpack.c.l.b16 %v728
      %v777 = vunpack.c.l.b16 %v729
      %v778 = vpack.c.b16 %v763, %v762
      %v779 = vpack.c.b16 %v765, %v764
      %v780 = vpack.c.b16 %v767, %v766
      %v781 = vpack.c.b16 %v769, %v768
      %v782 = vpack.c.b16 %v771, %v770
      %v783 = vpack.c.b16 %v773, %v772
      %v784 = vpack.c.b16 %v775, %v774
      %v785 = vpack.c.b16 %v777, %v776
      %v810 = vunpack.c.l.b16 %v730
      %v811 = vunpack.c.l.b16 %v731
      %v812 = vunpack.c.l.b16 %v732
      %v813 = vunpack.c.l.b16 %v733
      %v814 = vunpack.c.l.b16 %v734
      %v815 = vunpack.c.l.b16 %v735
      %v816 = vunpack.c.l.b16 %v736
      %v817 = vunpack.c.l.b16 %v737
      %v818 = vunpack.c.l.b16 %v738
      %v819 = vunpack.c.l.b16 %v739
      %v820 = vunpack.c.l.b16 %v740
      %v821 = vunpack.c.l.b16 %v741
      %v822 = vunpack.c.l.b16 %v742
      %v823 = vunpack.c.l.b16 %v743
      %v824 = vunpack.c.l.b16 %v744
      %v825 = vunpack.c.l.b16 %v745
      %v826 = vpack.c.b16 %v811, %v810
      %v827 = vpack.c.b16 %v813, %v812
      %v828 = vpack.c.b16 %v815, %v814
      %v829 = vpack.c.b16 %v817, %v816
      %v830 = vpack.c.b16 %v819, %v818
      %v831 = vpack.c.b16 %v821, %v820
      %v832 = vpack.c.b16 %v823, %v822
      %v833 = vpack.c.b16 %v825, %v824
      %842 = vmatprep.subr.bf16.mxu0 0
      %843 = vmatpush1.bf16.msra.mxu0 %v833
      %844 = vmatprep.subr.bf16.mxu0 0
      %845 = vmatpush1.bf16.msra.mxu0 %v832
      %846 = vmatprep.subr.bf16.mxu0 0
      %847 = vmatpush1.bf16.msra.mxu0 %v831
      %848 = vmatprep.subr.bf16.mxu0 0
      %849 = vmatpush1.bf16.msra.mxu0 %v830
      %850 = vmatprep.subr.bf16.mxu0 0
      %851 = vmatpush1.bf16.msra.mxu0 %v829
      %852 = vmatprep.subr.bf16.mxu0 0
      %853 = vmatpush1.bf16.msra.mxu0 %v828
      %854 = vmatprep.subr.bf16.mxu0 0
      %855 = vmatpush1.bf16.msra.mxu0 %v827
      %856 = vmatprep.subr.bf16.mxu0 0
      %857 = vmatpush1.bf16.msra.mxu0 %v826
      %858 = vmatprep.subr.bf16.mxu0 0
      %859 = vmatpush2.bf16.msra.mxu0 0
      %860 = vmatprep.subr.bf16.mxu0 0
      %861 = vmatpush2.bf16.msra.mxu0 0
      %862 = vmatprep.subr.bf16.mxu0 0
      %863 = vmatpush2.bf16.msra.mxu0 0
      %864 = vmatprep.subr.bf16.mxu0 0
      %865 = vmatpush2.bf16.msra.mxu0 0
      %866 = vmatprep.subr.bf16.mxu0 0
      %867 = vmatpush2.bf16.msra.mxu0 0
      %868 = vmatprep.subr.bf16.mxu0 0
      %869 = vmatpush2.bf16.msra.mxu0 0
      %870 = vmatprep.subr.bf16.mxu0 0
      %871 = vmatpush2.bf16.msra.mxu0 0
      %872 = vmatprep.subr.bf16.mxu0 0
      %873 = vmatpush2.bf16.msra.mxu0 0
      %874 = vmatprep.mubr.bf16.mxu0 0
      %875 = vmatmul.mubr.bf16.gmra.mxu0 %v778
      %v876 = vpop.f32.mrf.mxu0
      %v877 = vadd.f32 0.0, %v876
      %v878 = vpop.f32.mrf.mxu0
      %v879 = vpop.f32.mrf.mxu0
      %v880 = vadd.f32 0.0, %v879
      %v881 = vpop.f32.mrf.mxu0
      %882 = vmatprep.mubr.bf16.mxu0 0
      %883 = vmatmul.mubr.bf16.gmra.mxu0 %v779
      %v884 = vpop.f32.mrf.mxu0
      %v885 = vadd.f32 0.0, %v884
      %v886 = vpop.f32.mrf.mxu0
      %v887 = vpop.f32.mrf.mxu0
      %v888 = vadd.f32 0.0, %v887
      %v889 = vpop.f32.mrf.mxu0
      %890 = vmatprep.mubr.bf16.mxu0 0
      %891 = vmatmul.mubr.bf16.gmra.mxu0 %v780
      %v892 = vpop.f32.mrf.mxu0
      %v893 = vadd.f32 0.0, %v892
      %v894 = vpop.f32.mrf.mxu0
      %v895 = vpop.f32.mrf.mxu0
      %v896 = vadd.f32 0.0, %v895
      %v897 = vpop.f32.mrf.mxu0
      %898 = vmatprep.mubr.bf16.mxu0 0
      %899 = vmatmul.mubr.bf16.gmra.mxu0 %v781
      %v900 = vpop.f32.mrf.mxu0
      %v901 = vadd.f32 0.0, %v900
      %v902 = vpop.f32.mrf.mxu0
      %v903 = vpop.f32.mrf.mxu0
      %v904 = vadd.f32 0.0, %v903
      %v905 = vpop.f32.mrf.mxu0
      %906 = vmatprep.mubr.bf16.mxu0 0
      %907 = vmatmul.mubr.bf16.gmra.mxu0 %v782
      %v908 = vpop.f32.mrf.mxu0
      %v909 = vadd.f32 0.0, %v908
      %v910 = vpop.f32.mrf.mxu0
      %v911 = vpop.f32.mrf.mxu0
      %v912 = vadd.f32 0.0, %v911
      %v913 = vpop.f32.mrf.mxu0
      %914 = vmatprep.mubr.bf16.mxu0 0
      %915 = vmatmul.mubr.bf16.gmra.mxu0 %v783
      %v916 = vpop.f32.mrf.mxu0
      %v917 = vadd.f32 0.0, %v916
      %v918 = vpop.f32.mrf.mxu0
      %v919 = vpop.f32.mrf.mxu0
      %v920 = vadd.f32 0.0, %v919
      %v921 = vpop.f32.mrf.mxu0
      %922 = vmatprep.mubr.bf16.mxu0 0
      %923 = vmatmul.mubr.bf16.gmra.mxu0 %v784
      %v924 = vpop.f32.mrf.mxu0
      %v925 = vadd.f32 0.0, %v924
      %v926 = vpop.f32.mrf.mxu0
      %v927 = vpop.f32.mrf.mxu0
      %v928 = vadd.f32 0.0, %v927
      %v929 = vpop.f32.mrf.mxu0
      %930 = vmatprep.mubr.bf16.mxu0 0
      %931 = vmatmul.mubr.bf16.gmra.mxu0 %v785
      %v932 = vpop.f32.mrf.mxu0
      %v933 = vadd.f32 0.0, %v932
      %v934 = vpop.f32.mrf.mxu0
      %v935 = vpop.f32.mrf.mxu0
      %v936 = vadd.f32 0.0, %v935
      %v937 = vpop.f32.mrf.mxu0
      %938 = vdwg.mxu0
      %v939 = vmax.f32 %v877, %v893
      %v940 = vmax.f32 %v880, %v896
      %v941 = vmax.f32 %v885, %v901
      %v942 = vmax.f32 %v888, %v904
      %v943 = vmax.f32 %v909, %v925
      %v944 = vmax.f32 %v912, %v928
      %v945 = vmax.f32 %v917, %v933
      %v946 = vmax.f32 %v920, %v936
      %v947 = vmax.f32 %v939, %v943
      %v948 = vmax.f32 %v940, %v944
      %v949 = vmax.f32 %v941, %v945
      %v950 = vmax.f32 %v942, %v946
      %v951 = vld [vmem:[%s2] sm:$0x1]
      %v953 = vlaneseq
      %v954 = vshrl.u32 %v953, 7
      %v955 = vsub.s32 0, %v954
      %v956 = vrot.slane %v951, %v955
      %v958 = vadd.f32 %v947, %v956
      %v959 = vadd.f32 %v948, %v956
      %v960 = vadd.f32 %v949, %v956
      %v961 = vadd.f32 %v950, %v956
      %v962 = vpack.c.bf16 %v959, %v958
      %v963 = vpack.c.bf16 %v961, %v960
      %v966 = vunpack.c.l.b16 %v962
      %v967 = vunpack.c.h.b16 %v962
      %v968 = vunpack.c.l.b16 %v963
      %v969 = vunpack.c.h.b16 %v963
      %v970 = vpack.c.b16 %v966, %v966
      %v971 = vpack.c.b16 %v967, %v967
      %v972 = vpack.c.b16 %v968, %v968
      %v973 = vpack.c.b16 %v969, %v969
      %s978 = scalar_lea.vmem %s172, 32
      %979 = vst [vmem:[%s978] sm:$0xf] %v970
      %980 = vst [vmem:[%s978 + $0x4] sm:$0xf] %v971
      %981 = vst [vmem:[%s978 + $0x8] sm:$0xf] %v972
      %982 = vst [vmem:[%s978 + $0xc] sm:$0xf] %v973
      %s983 = scalar_lea.vmem %s166, 192
      %v984 = vld [vmem:[%s983] sm:$0xf]
      %v985 = vld [vmem:[%s983 + $0x4] sm:$0xf]
      %v986 = vld [vmem:[%s983 + $0x8] sm:$0xf]
      %v987 = vld [vmem:[%s983 + $0xc] sm:$0xf]
      %v988 = vld [vmem:[%s983 + $0x10] sm:$0xf]
      %v989 = vld [vmem:[%s983 + $0x14] sm:$0xf]
      %v990 = vld [vmem:[%s983 + $0x18] sm:$0xf]
      %v991 = vld [vmem:[%s983 + $0x1c] sm:$0xf]
      %v992 = vld [vmem:[%s983 + $0x20] sm:$0xf]
      %v993 = vld [vmem:[%s983 + $0x24] sm:$0xf]
      %v994 = vld [vmem:[%s983 + $0x28] sm:$0xf]
      %v995 = vld [vmem:[%s983 + $0x2c] sm:$0xf]
      %v996 = vld [vmem:[%s983 + $0x30] sm:$0xf]
      %v997 = vld [vmem:[%s983 + $0x34] sm:$0xf]
      %v998 = vld [vmem:[%s983 + $0x38] sm:$0xf]
      %v999 = vld [vmem:[%s983 + $0x3c] sm:$0xf]
      %v1000 = vld [vmem:[%s1] sm:$0xf]
      %v1001 = vld [vmem:[%s1 + $0x4] sm:$0xf]
      %v1002 = vld [vmem:[%s1 + $0x8] sm:$0xf]
      %v1003 = vld [vmem:[%s1 + $0xc] sm:$0xf]
      %v1004 = vld [vmem:[%s1 + $0x10] sm:$0xf]
      %v1005 = vld [vmem:[%s1 + $0x14] sm:$0xf]
      %v1006 = vld [vmem:[%s1 + $0x18] sm:$0xf]
      %v1007 = vld [vmem:[%s1 + $0x1c] sm:$0xf]
      %v1008 = vld [vmem:[%s1 + $0x20] sm:$0xf]
      %v1009 = vld [vmem:[%s1 + $0x24] sm:$0xf]
      %v1010 = vld [vmem:[%s1 + $0x28] sm:$0xf]
      %v1011 = vld [vmem:[%s1 + $0x2c] sm:$0xf]
      %v1012 = vld [vmem:[%s1 + $0x30] sm:$0xf]
      %v1013 = vld [vmem:[%s1 + $0x34] sm:$0xf]
      %v1014 = vld [vmem:[%s1 + $0x38] sm:$0xf]
      %v1015 = vld [vmem:[%s1 + $0x3c] sm:$0xf]
      %v1032 = vunpack.c.l.b16 %v984
      %v1033 = vunpack.c.l.b16 %v985
      %v1034 = vunpack.c.l.b16 %v986
      %v1035 = vunpack.c.l.b16 %v987
      %v1036 = vunpack.c.l.b16 %v988
      %v1037 = vunpack.c.l.b16 %v989
      %v1038 = vunpack.c.l.b16 %v990
      %v1039 = vunpack.c.l.b16 %v991
      %v1040 = vunpack.c.l.b16 %v992
      %v1041 = vunpack.c.l.b16 %v993
      %v1042 = vunpack.c.l.b16 %v994
      %v1043 = vunpack.c.l.b16 %v995
      %v1044 = vunpack.c.l.b16 %v996
      %v1045 = vunpack.c.l.b16 %v997
      %v1046 = vunpack.c.l.b16 %v998
      %v1047 = vunpack.c.l.b16 %v999
      %v1048 = vpack.c.b16 %v1033, %v1032
      %v1049 = vpack.c.b16 %v1035, %v1034
      %v1050 = vpack.c.b16 %v1037, %v1036
      %v1051 = vpack.c.b16 %v1039, %v1038
      %v1052 = vpack.c.b16 %v1041, %v1040
      %v1053 = vpack.c.b16 %v1043, %v1042
      %v1054 = vpack.c.b16 %v1045, %v1044
      %v1055 = vpack.c.b16 %v1047, %v1046
      %v1080 = vunpack.c.l.b16 %v1000
      %v1081 = vunpack.c.l.b16 %v1001
      %v1082 = vunpack.c.l.b16 %v1002
      %v1083 = vunpack.c.l.b16 %v1003
      %v1084 = vunpack.c.l.b16 %v1004
      %v1085 = vunpack.c.l.b16 %v1005
      %v1086 = vunpack.c.l.b16 %v1006
      %v1087 = vunpack.c.l.b16 %v1007
      %v1088 = vunpack.c.l.b16 %v1008
      %v1089 = vunpack.c.l.b16 %v1009
      %v1090 = vunpack.c.l.b16 %v1010
      %v1091 = vunpack.c.l.b16 %v1011
      %v1092 = vunpack.c.l.b16 %v1012
      %v1093 = vunpack.c.l.b16 %v1013
      %v1094 = vunpack.c.l.b16 %v1014
      %v1095 = vunpack.c.l.b16 %v1015
      %v1096 = vpack.c.b16 %v1081, %v1080
      %v1097 = vpack.c.b16 %v1083, %v1082
      %v1098 = vpack.c.b16 %v1085, %v1084
      %v1099 = vpack.c.b16 %v1087, %v1086
      %v1100 = vpack.c.b16 %v1089, %v1088
      %v1101 = vpack.c.b16 %v1091, %v1090
      %v1102 = vpack.c.b16 %v1093, %v1092
      %v1103 = vpack.c.b16 %v1095, %v1094
      %1112 = vmatprep.subr.bf16.mxu0 0
      %1113 = vmatpush1.bf16.msra.mxu0 %v1103
      %1114 = vmatprep.subr.bf16.mxu0 0
      %1115 = vmatpush1.bf16.msra.mxu0 %v1102
      %1116 = vmatprep.subr.bf16.mxu0 0
      %1117 = vmatpush1.bf16.msra.mxu0 %v1101
      %1118 = vmatprep.subr.bf16.mxu0 0
      %1119 = vmatpush1.bf16.msra.mxu0 %v1100
      %1120 = vmatprep.subr.bf16.mxu0 0
      %1121 = vmatpush1.bf16.msra.mxu0 %v1099
      %1122 = vmatprep.subr.bf16.mxu0 0
      %1123 = vmatpush1.bf16.msra.mxu0 %v1098
      %1124 = vmatprep.subr.bf16.mxu0 0
      %1125 = vmatpush1.bf16.msra.mxu0 %v1097
      %1126 = vmatprep.subr.bf16.mxu0 0
      %1127 = vmatpush1.bf16.msra.mxu0 %v1096
      %1128 = vmatprep.subr.bf16.mxu0 0
      %1129 = vmatpush2.bf16.msra.mxu0 0
      %1130 = vmatprep.subr.bf16.mxu0 0
      %1131 = vmatpush2.bf16.msra.mxu0 0
      %1132 = vmatprep.subr.bf16.mxu0 0
      %1133 = vmatpush2.bf16.msra.mxu0 0
      %1134 = vmatprep.subr.bf16.mxu0 0
      %1135 = vmatpush2.bf16.msra.mxu0 0
      %1136 = vmatprep.subr.bf16.mxu0 0
      %1137 = vmatpush2.bf16.msra.mxu0 0
      %1138 = vmatprep.subr.bf16.mxu0 0
      %1139 = vmatpush2.bf16.msra.mxu0 0
      %1140 = vmatprep.subr.bf16.mxu0 0
      %1141 = vmatpush2.bf16.msra.mxu0 0
      %1142 = vmatprep.subr.bf16.mxu0 0
      %1143 = vmatpush2.bf16.msra.mxu0 0
      %1144 = vmatprep.mubr.bf16.mxu0 0
      %1145 = vmatmul.mubr.bf16.gmra.mxu0 %v1048
      %v1146 = vpop.f32.mrf.mxu0
      %v1147 = vadd.f32 0.0, %v1146
      %v1148 = vpop.f32.mrf.mxu0
      %v1149 = vpop.f32.mrf.mxu0
      %v1150 = vadd.f32 0.0, %v1149
      %v1151 = vpop.f32.mrf.mxu0
      %1152 = vmatprep.mubr.bf16.mxu0 0
      %1153 = vmatmul.mubr.bf16.gmra.mxu0 %v1049
      %v1154 = vpop.f32.mrf.mxu0
      %v1155 = vadd.f32 0.0, %v1154
      %v1156 = vpop.f32.mrf.mxu0
      %v1157 = vpop.f32.mrf.mxu0
      %v1158 = vadd.f32 0.0, %v1157
      %v1159 = vpop.f32.mrf.mxu0
      %1160 = vmatprep.mubr.bf16.mxu0 0
      %1161 = vmatmul.mubr.bf16.gmra.mxu0 %v1050
      %v1162 = vpop.f32.mrf.mxu0
      %v1163 = vadd.f32 0.0, %v1162
      %v1164 = vpop.f32.mrf.mxu0
      %v1165 = vpop.f32.mrf.mxu0
      %v1166 = vadd.f32 0.0, %v1165
      %v1167 = vpop.f32.mrf.mxu0
      %1168 = vmatprep.mubr.bf16.mxu0 0
      %1169 = vmatmul.mubr.bf16.gmra.mxu0 %v1051
      %v1170 = vpop.f32.mrf.mxu0
      %v1171 = vadd.f32 0.0, %v1170
      %v1172 = vpop.f32.mrf.mxu0
      %v1173 = vpop.f32.mrf.mxu0
      %v1174 = vadd.f32 0.0, %v1173
      %v1175 = vpop.f32.mrf.mxu0
      %1176 = vmatprep.mubr.bf16.mxu0 0
      %1177 = vmatmul.mubr.bf16.gmra.mxu0 %v1052
      %v1178 = vpop.f32.mrf.mxu0
      %v1179 = vadd.f32 0.0, %v1178
      %v1180 = vpop.f32.mrf.mxu0
      %v1181 = vpop.f32.mrf.mxu0
      %v1182 = vadd.f32 0.0, %v1181
      %v1183 = vpop.f32.mrf.mxu0
      %1184 = vmatprep.mubr.bf16.mxu0 0
      %1185 = vmatmul.mubr.bf16.gmra.mxu0 %v1053
      %v1186 = vpop.f32.mrf.mxu0
      %v1187 = vadd.f32 0.0, %v1186
      %v1188 = vpop.f32.mrf.mxu0
      %v1189 = vpop.f32.mrf.mxu0
      %v1190 = vadd.f32 0.0, %v1189
      %v1191 = vpop.f32.mrf.mxu0
      %1192 = vmatprep.mubr.bf16.mxu0 0
      %1193 = vmatmul.mubr.bf16.gmra.mxu0 %v1054
      %v1194 = vpop.f32.mrf.mxu0
      %v1195 = vadd.f32 0.0, %v1194
      %v1196 = vpop.f32.mrf.mxu0
      %v1197 = vpop.f32.mrf.mxu0
      %v1198 = vadd.f32 0.0, %v1197
      %v1199 = vpop.f32.mrf.mxu0
      %1200 = vmatprep.mubr.bf16.mxu0 0
      %1201 = vmatmul.mubr.bf16.gmra.mxu0 %v1055
      %v1202 = vpop.f32.mrf.mxu0
      %v1203 = vadd.f32 0.0, %v1202
      %v1204 = vpop.f32.mrf.mxu0
      %v1205 = vpop.f32.mrf.mxu0
      %v1206 = vadd.f32 0.0, %v1205
      %v1207 = vpop.f32.mrf.mxu0
      %1208 = vdwg.mxu0
      %v1209 = vmax.f32 %v1147, %v1163
      %v1210 = vmax.f32 %v1150, %v1166
      %v1211 = vmax.f32 %v1155, %v1171
      %v1212 = vmax.f32 %v1158, %v1174
      %v1213 = vmax.f32 %v1179, %v1195
      %v1214 = vmax.f32 %v1182, %v1198
      %v1215 = vmax.f32 %v1187, %v1203
      %v1216 = vmax.f32 %v1190, %v1206
      %v1217 = vmax.f32 %v1209, %v1213
      %v1218 = vmax.f32 %v1210, %v1214
      %v1219 = vmax.f32 %v1211, %v1215
      %v1220 = vmax.f32 %v1212, %v1216
      %v1221 = vld [vmem:[%s2] sm:$0x1]
      %v1223 = vlaneseq
      %v1224 = vshrl.u32 %v1223, 7
      %v1225 = vsub.s32 0, %v1224
      %v1226 = vrot.slane %v1221, %v1225
      %v1228 = vadd.f32 %v1217, %v1226
      %v1229 = vadd.f32 %v1218, %v1226
      %v1230 = vadd.f32 %v1219, %v1226
      %v1231 = vadd.f32 %v1220, %v1226
      %v1232 = vpack.c.bf16 %v1229, %v1228
      %v1233 = vpack.c.bf16 %v1231, %v1230
      %v1236 = vunpack.c.l.b16 %v1232
      %v1237 = vunpack.c.h.b16 %v1232
      %v1238 = vunpack.c.l.b16 %v1233
      %v1239 = vunpack.c.h.b16 %v1233
      %v1240 = vpack.c.b16 %v1236, %v1236
      %v1241 = vpack.c.b16 %v1237, %v1237
      %v1242 = vpack.c.b16 %v1238, %v1238
      %v1243 = vpack.c.b16 %v1239, %v1239
      %s1248 = scalar_lea.vmem %s172, 48
      %1249 = vst [vmem:[%s1248] sm:$0xf] %v1240
      %1250 = vst [vmem:[%s1248 + $0x4] sm:$0xf] %v1241
      %1251 = vst [vmem:[%s1248 + $0x8] sm:$0xf] %v1242
      %1252 = vst [vmem:[%s1248 + $0xc] sm:$0xf] %v1243
      %s1253 = scalar_lea.vmem %s166, 256
      %v1254 = vld [vmem:[%s1253] sm:$0xf]
      %v1255 = vld [vmem:[%s1253 + $0x4] sm:$0xf]
      %v1256 = vld [vmem:[%s1253 + $0x8] sm:$0xf]
      %v1257 = vld [vmem:[%s1253 + $0xc] sm:$0xf]
      %v1258 = vld [vmem:[%s1253 + $0x10] sm:$0xf]
      %v1259 = vld [vmem:[%s1253 + $0x14] sm:$0xf]
      %v1260 = vld [vmem:[%s1253 + $0x18] sm:$0xf]
      %v1261 = vld [vmem:[%s1253 + $0x1c] sm:$0xf]
      %v1262 = vld [vmem:[%s1253 + $0x20] sm:$0xf]
      %v1263 = vld [vmem:[%s1253 + $0x24] sm:$0xf]
      %v1264 = vld [vmem:[%s1253 + $0x28] sm:$0xf]
      %v1265 = vld [vmem:[%s1253 + $0x2c] sm:$0xf]
      %v1266 = vld [vmem:[%s1253 + $0x30] sm:$0xf]
      %v1267 = vld [vmem:[%s1253 + $0x34] sm:$0xf]
      %v1268 = vld [vmem:[%s1253 + $0x38] sm:$0xf]
      %v1269 = vld [vmem:[%s1253 + $0x3c] sm:$0xf]
      %v1270 = vld [vmem:[%s1] sm:$0xf]
      %v1271 = vld [vmem:[%s1 + $0x4] sm:$0xf]
      %v1272 = vld [vmem:[%s1 + $0x8] sm:$0xf]
      %v1273 = vld [vmem:[%s1 + $0xc] sm:$0xf]
      %v1274 = vld [vmem:[%s1 + $0x10] sm:$0xf]
      %v1275 = vld [vmem:[%s1 + $0x14] sm:$0xf]
      %v1276 = vld [vmem:[%s1 + $0x18] sm:$0xf]
      %v1277 = vld [vmem:[%s1 + $0x1c] sm:$0xf]
      %v1278 = vld [vmem:[%s1 + $0x20] sm:$0xf]
      %v1279 = vld [vmem:[%s1 + $0x24] sm:$0xf]
      %v1280 = vld [vmem:[%s1 + $0x28] sm:$0xf]
      %v1281 = vld [vmem:[%s1 + $0x2c] sm:$0xf]
      %v1282 = vld [vmem:[%s1 + $0x30] sm:$0xf]
      %v1283 = vld [vmem:[%s1 + $0x34] sm:$0xf]
      %v1284 = vld [vmem:[%s1 + $0x38] sm:$0xf]
      %v1285 = vld [vmem:[%s1 + $0x3c] sm:$0xf]
      %v1302 = vunpack.c.l.b16 %v1254
      %v1303 = vunpack.c.l.b16 %v1255
      %v1304 = vunpack.c.l.b16 %v1256
      %v1305 = vunpack.c.l.b16 %v1257
      %v1306 = vunpack.c.l.b16 %v1258
      %v1307 = vunpack.c.l.b16 %v1259
      %v1308 = vunpack.c.l.b16 %v1260
      %v1309 = vunpack.c.l.b16 %v1261
      %v1310 = vunpack.c.l.b16 %v1262
      %v1311 = vunpack.c.l.b16 %v1263
      %v1312 = vunpack.c.l.b16 %v1264
      %v1313 = vunpack.c.l.b16 %v1265
      %v1314 = vunpack.c.l.b16 %v1266
      %v1315 = vunpack.c.l.b16 %v1267
      %v1316 = vunpack.c.l.b16 %v1268
      %v1317 = vunpack.c.l.b16 %v1269
      %v1318 = vpack.c.b16 %v1303, %v1302
      %v1319 = vpack.c.b16 %v1305, %v1304
      %v1320 = vpack.c.b16 %v1307, %v1306
      %v1321 = vpack.c.b16 %v1309, %v1308
      %v1322 = vpack.c.b16 %v1311, %v1310
      %v1323 = vpack.c.b16 %v1313, %v1312
      %v1324 = vpack.c.b16 %v1315, %v1314
      %v1325 = vpack.c.b16 %v1317, %v1316
      %v1350 = vunpack.c.l.b16 %v1270
      %v1351 = vunpack.c.l.b16 %v1271
      %v1352 = vunpack.c.l.b16 %v1272
      %v1353 = vunpack.c.l.b16 %v1273
      %v1354 = vunpack.c.l.b16 %v1274
      %v1355 = vunpack.c.l.b16 %v1275
      %v1356 = vunpack.c.l.b16 %v1276
      %v1357 = vunpack.c.l.b16 %v1277
      %v1358 = vunpack.c.l.b16 %v1278
      %v1359 = vunpack.c.l.b16 %v1279
      %v1360 = vunpack.c.l.b16 %v1280
      %v1361 = vunpack.c.l.b16 %v1281
      %v1362 = vunpack.c.l.b16 %v1282
      %v1363 = vunpack.c.l.b16 %v1283
      %v1364 = vunpack.c.l.b16 %v1284
      %v1365 = vunpack.c.l.b16 %v1285
      %v1366 = vpack.c.b16 %v1351, %v1350
      %v1367 = vpack.c.b16 %v1353, %v1352
      %v1368 = vpack.c.b16 %v1355, %v1354
      %v1369 = vpack.c.b16 %v1357, %v1356
      %v1370 = vpack.c.b16 %v1359, %v1358
      %v1371 = vpack.c.b16 %v1361, %v1360
      %v1372 = vpack.c.b16 %v1363, %v1362
      %v1373 = vpack.c.b16 %v1365, %v1364
      %1382 = vmatprep.subr.bf16.mxu0 0
      %1383 = vmatpush1.bf16.msra.mxu0 %v1373
      %1384 = vmatprep.subr.bf16.mxu0 0
      %1385 = vmatpush1.bf16.msra.mxu0 %v1372
      %1386 = vmatprep.subr.bf16.mxu0 0
      %1387 = vmatpush1.bf16.msra.mxu0 %v1371
      %1388 = vmatprep.subr.bf16.mxu0 0
      %1389 = vmatpush1.bf16.msra.mxu0 %v1370
      %1390 = vmatprep.subr.bf16.mxu0 0
      %1391 = vmatpush1.bf16.msra.mxu0 %v1369
      %1392 = vmatprep.subr.bf16.mxu0 0
      %1393 = vmatpush1.bf16.msra.mxu0 %v1368
      %1394 = vmatprep.subr.bf16.mxu0 0
      %1395 = vmatpush1.bf16.msra.mxu0 %v1367
      %1396 = vmatprep.subr.bf16.mxu0 0
      %1397 = vmatpush1.bf16.msra.mxu0 %v1366
      %1398 = vmatprep.subr.bf16.mxu0 0
      %1399 = vmatpush2.bf16.msra.mxu0 0
      %1400 = vmatprep.subr.bf16.mxu0 0
      %1401 = vmatpush2.bf16.msra.mxu0 0
      %1402 = vmatprep.subr.bf16.mxu0 0
      %1403 = vmatpush2.bf16.msra.mxu0 0
      %1404 = vmatprep.subr.bf16.mxu0 0
      %1405 = vmatpush2.bf16.msra.mxu0 0
      %1406 = vmatprep.subr.bf16.mxu0 0
      %1407 = vmatpush2.bf16.msra.mxu0 0
      %1408 = vmatprep.subr.bf16.mxu0 0
      %1409 = vmatpush2.bf16.msra.mxu0 0
      %1410 = vmatprep.subr.bf16.mxu0 0
      %1411 = vmatpush2.bf16.msra.mxu0 0
      %1412 = vmatprep.subr.bf16.mxu0 0
      %1413 = vmatpush2.bf16.msra.mxu0 0
      %1414 = vmatprep.mubr.bf16.mxu0 0
      %1415 = vmatmul.mubr.bf16.gmra.mxu0 %v1318
      %v1416 = vpop.f32.mrf.mxu0
      %v1417 = vadd.f32 0.0, %v1416
      %v1418 = vpop.f32.mrf.mxu0
      %v1419 = vpop.f32.mrf.mxu0
      %v1420 = vadd.f32 0.0, %v1419
      %v1421 = vpop.f32.mrf.mxu0
      %1422 = vmatprep.mubr.bf16.mxu0 0
      %1423 = vmatmul.mubr.bf16.gmra.mxu0 %v1319
      %v1424 = vpop.f32.mrf.mxu0
      %v1425 = vadd.f32 0.0, %v1424
      %v1426 = vpop.f32.mrf.mxu0
      %v1427 = vpop.f32.mrf.mxu0
      %v1428 = vadd.f32 0.0, %v1427
      %v1429 = vpop.f32.mrf.mxu0
      %1430 = vmatprep.mubr.bf16.mxu0 0
      %1431 = vmatmul.mubr.bf16.gmra.mxu0 %v1320
      %v1432 = vpop.f32.mrf.mxu0
      %v1433 = vadd.f32 0.0, %v1432
      %v1434 = vpop.f32.mrf.mxu0
      %v1435 = vpop.f32.mrf.mxu0
      %v1436 = vadd.f32 0.0, %v1435
      %v1437 = vpop.f32.mrf.mxu0
      %1438 = vmatprep.mubr.bf16.mxu0 0
      %1439 = vmatmul.mubr.bf16.gmra.mxu0 %v1321
      %v1440 = vpop.f32.mrf.mxu0
      %v1441 = vadd.f32 0.0, %v1440
      %v1442 = vpop.f32.mrf.mxu0
      %v1443 = vpop.f32.mrf.mxu0
      %v1444 = vadd.f32 0.0, %v1443
      %v1445 = vpop.f32.mrf.mxu0
      %1446 = vmatprep.mubr.bf16.mxu0 0
      %1447 = vmatmul.mubr.bf16.gmra.mxu0 %v1322
      %v1448 = vpop.f32.mrf.mxu0
      %v1449 = vadd.f32 0.0, %v1448
      %v1450 = vpop.f32.mrf.mxu0
      %v1451 = vpop.f32.mrf.mxu0
      %v1452 = vadd.f32 0.0, %v1451
      %v1453 = vpop.f32.mrf.mxu0
      %1454 = vmatprep.mubr.bf16.mxu0 0
      %1455 = vmatmul.mubr.bf16.gmra.mxu0 %v1323
      %v1456 = vpop.f32.mrf.mxu0
      %v1457 = vadd.f32 0.0, %v1456
      %v1458 = vpop.f32.mrf.mxu0
      %v1459 = vpop.f32.mrf.mxu0
      %v1460 = vadd.f32 0.0, %v1459
      %v1461 = vpop.f32.mrf.mxu0
      %1462 = vmatprep.mubr.bf16.mxu0 0
      %1463 = vmatmul.mubr.bf16.gmra.mxu0 %v1324
      %v1464 = vpop.f32.mrf.mxu0
      %v1465 = vadd.f32 0.0, %v1464
      %v1466 = vpop.f32.mrf.mxu0
      %v1467 = vpop.f32.mrf.mxu0
      %v1468 = vadd.f32 0.0, %v1467
      %v1469 = vpop.f32.mrf.mxu0
      %1470 = vmatprep.mubr.bf16.mxu0 0
      %1471 = vmatmul.mubr.bf16.gmra.mxu0 %v1325
      %v1472 = vpop.f32.mrf.mxu0
      %v1473 = vadd.f32 0.0, %v1472
      %v1474 = vpop.f32.mrf.mxu0
      %v1475 = vpop.f32.mrf.mxu0
      %v1476 = vadd.f32 0.0, %v1475
      %v1477 = vpop.f32.mrf.mxu0
      %1478 = vdwg.mxu0
      %v1479 = vmax.f32 %v1417, %v1433
      %v1480 = vmax.f32 %v1420, %v1436
      %v1481 = vmax.f32 %v1425, %v1441
      %v1482 = vmax.f32 %v1428, %v1444
      %v1483 = vmax.f32 %v1449, %v1465
      %v1484 = vmax.f32 %v1452, %v1468
      %v1485 = vmax.f32 %v1457, %v1473
      %v1486 = vmax.f32 %v1460, %v1476
      %v1487 = vmax.f32 %v1479, %v1483
      %v1488 = vmax.f32 %v1480, %v1484
      %v1489 = vmax.f32 %v1481, %v1485
      %v1490 = vmax.f32 %v1482, %v1486
      %v1491 = vld [vmem:[%s2] sm:$0x1]
      %v1493 = vlaneseq
      %v1494 = vshrl.u32 %v1493, 7
      %v1495 = vsub.s32 0, %v1494
      %v1496 = vrot.slane %v1491, %v1495
      %v1498 = vadd.f32 %v1487, %v1496
      %v1499 = vadd.f32 %v1488, %v1496
      %v1500 = vadd.f32 %v1489, %v1496
      %v1501 = vadd.f32 %v1490, %v1496
      %v1502 = vpack.c.bf16 %v1499, %v1498
      %v1503 = vpack.c.bf16 %v1501, %v1500
      %v1506 = vunpack.c.l.b16 %v1502
      %v1507 = vunpack.c.h.b16 %v1502
      %v1508 = vunpack.c.l.b16 %v1503
      %v1509 = vunpack.c.h.b16 %v1503
      %v1510 = vpack.c.b16 %v1506, %v1506
      %v1511 = vpack.c.b16 %v1507, %v1507
      %v1512 = vpack.c.b16 %v1508, %v1508
      %v1513 = vpack.c.b16 %v1509, %v1509
      %s1518 = scalar_lea.vmem %s172, 64
      %1519 = vst [vmem:[%s1518] sm:$0xf] %v1510
      %1520 = vst [vmem:[%s1518 + $0x4] sm:$0xf] %v1511
      %1521 = vst [vmem:[%s1518 + $0x8] sm:$0xf] %v1512
      %1522 = vst [vmem:[%s1518 + $0xc] sm:$0xf] %v1513
      %s1523 = scalar_lea.vmem %s166, 320
      %v1524 = vld [vmem:[%s1523] sm:$0xf]
      %v1525 = vld [vmem:[%s1523 + $0x4] sm:$0xf]
      %v1526 = vld [vmem:[%s1523 + $0x8] sm:$0xf]
      %v1527 = vld [vmem:[%s1523 + $0xc] sm:$0xf]
      %v1528 = vld [vmem:[%s1523 + $0x10] sm:$0xf]
      %v1529 = vld [vmem:[%s1523 + $0x14] sm:$0xf]
      %v1530 = vld [vmem:[%s1523 + $0x18] sm:$0xf]
      %v1531 = vld [vmem:[%s1523 + $0x1c] sm:$0xf]
      %v1532 = vld [vmem:[%s1523 + $0x20] sm:$0xf]
      %v1533 = vld [vmem:[%s1523 + $0x24] sm:$0xf]
      %v1534 = vld [vmem:[%s1523 + $0x28] sm:$0xf]
      %v1535 = vld [vmem:[%s1523 + $0x2c] sm:$0xf]
      %v1536 = vld [vmem:[%s1523 + $0x30] sm:$0xf]
      %v1537 = vld [vmem:[%s1523 + $0x34] sm:$0xf]
      %v1538 = vld [vmem:[%s1523 + $0x38] sm:$0xf]
      %v1539 = vld [vmem:[%s1523 + $0x3c] sm:$0xf]
      %v1540 = vld [vmem:[%s1] sm:$0xf]
      %v1541 = vld [vmem:[%s1 + $0x4] sm:$0xf]
      %v1542 = vld [vmem:[%s1 + $0x8] sm:$0xf]
      %v1543 = vld [vmem:[%s1 + $0xc] sm:$0xf]
      %v1544 = vld [vmem:[%s1 + $0x10] sm:$0xf]
      %v1545 = vld [vmem:[%s1 + $0x14] sm:$0xf]
      %v1546 = vld [vmem:[%s1 + $0x18] sm:$0xf]
      %v1547 = vld [vmem:[%s1 + $0x1c] sm:$0xf]
      %v1548 = vld [vmem:[%s1 + $0x20] sm:$0xf]
      %v1549 = vld [vmem:[%s1 + $0x24] sm:$0xf]
      %v1550 = vld [vmem:[%s1 + $0x28] sm:$0xf]
      %v1551 = vld [vmem:[%s1 + $0x2c] sm:$0xf]
      %v1552 = vld [vmem:[%s1 + $0x30] sm:$0xf]
      %v1553 = vld [vmem:[%s1 + $0x34] sm:$0xf]
      %v1554 = vld [vmem:[%s1 + $0x38] sm:$0xf]
      %v1555 = vld [vmem:[%s1 + $0x3c] sm:$0xf]
      %v1572 = vunpack.c.l.b16 %v1524
      %v1573 = vunpack.c.l.b16 %v1525
      %v1574 = vunpack.c.l.b16 %v1526
      %v1575 = vunpack.c.l.b16 %v1527
      %v1576 = vunpack.c.l.b16 %v1528
      %v1577 = vunpack.c.l.b16 %v1529
      %v1578 = vunpack.c.l.b16 %v1530
      %v1579 = vunpack.c.l.b16 %v1531
      %v1580 = vunpack.c.l.b16 %v1532
      %v1581 = vunpack.c.l.b16 %v1533
      %v1582 = vunpack.c.l.b16 %v1534
      %v1583 = vunpack.c.l.b16 %v1535
      %v1584 = vunpack.c.l.b16 %v1536
      %v1585 = vunpack.c.l.b16 %v1537
      %v1586 = vunpack.c.l.b16 %v1538
      %v1587 = vunpack.c.l.b16 %v1539
      %v1588 = vpack.c.b16 %v1573, %v1572
      %v1589 = vpack.c.b16 %v1575, %v1574
      %v1590 = vpack.c.b16 %v1577, %v1576
      %v1591 = vpack.c.b16 %v1579, %v1578
      %v1592 = vpack.c.b16 %v1581, %v1580
      %v1593 = vpack.c.b16 %v1583, %v1582
      %v1594 = vpack.c.b16 %v1585, %v1584
      %v1595 = vpack.c.b16 %v1587, %v1586
      %v1620 = vunpack.c.l.b16 %v1540
      %v1621 = vunpack.c.l.b16 %v1541
      %v1622 = vunpack.c.l.b16 %v1542
      %v1623 = vunpack.c.l.b16 %v1543
      %v1624 = vunpack.c.l.b16 %v1544
      %v1625 = vunpack.c.l.b16 %v1545
      %v1626 = vunpack.c.l.b16 %v1546
      %v1627 = vunpack.c.l.b16 %v1547
      %v1628 = vunpack.c.l.b16 %v1548
      %v1629 = vunpack.c.l.b16 %v1549
      %v1630 = vunpack.c.l.b16 %v1550
      %v1631 = vunpack.c.l.b16 %v1551
      %v1632 = vunpack.c.l.b16 %v1552
      %v1633 = vunpack.c.l.b16 %v1553
      %v1634 = vunpack.c.l.b16 %v1554
      %v1635 = vunpack.c.l.b16 %v1555
      %v1636 = vpack.c.b16 %v1621, %v1620
      %v1637 = vpack.c.b16 %v1623, %v1622
      %v1638 = vpack.c.b16 %v1625, %v1624
      %v1639 = vpack.c.b16 %v1627, %v1626
      %v1640 = vpack.c.b16 %v1629, %v1628
      %v1641 = vpack.c.b16 %v1631, %v1630
      %v1642 = vpack.c.b16 %v1633, %v1632
      %v1643 = vpack.c.b16 %v1635, %v1634
      %1652 = vmatprep.subr.bf16.mxu0 0
      %1653 = vmatpush1.bf16.msra.mxu0 %v1643
      %1654 = vmatprep.subr.bf16.mxu0 0
      %1655 = vmatpush1.bf16.msra.mxu0 %v1642
      %1656 = vmatprep.subr.bf16.mxu0 0
      %1657 = vmatpush1.bf16.msra.mxu0 %v1641
      %1658 = vmatprep.subr.bf16.mxu0 0
      %1659 = vmatpush1.bf16.msra.mxu0 %v1640
      %1660 = vmatprep.subr.bf16.mxu0 0
      %1661 = vmatpush1.bf16.msra.mxu0 %v1639
      %1662 = vmatprep.subr.bf16.mxu0 0
      %1663 = vmatpush1.bf16.msra.mxu0 %v1638
      %1664 = vmatprep.subr.bf16.mxu0 0
      %1665 = vmatpush1.bf16.msra.mxu0 %v1637
      %1666 = vmatprep.subr.bf16.mxu0 0
      %1667 = vmatpush1.bf16.msra.mxu0 %v1636
      %1668 = vmatprep.subr.bf16.mxu0 0
      %1669 = vmatpush2.bf16.msra.mxu0 0
      %1670 = vmatprep.subr.bf16.mxu0 0
      %1671 = vmatpush2.bf16.msra.mxu0 0
      %1672 = vmatprep.subr.bf16.mxu0 0
      %1673 = vmatpush2.bf16.msra.mxu0 0
      %1674 = vmatprep.subr.bf16.mxu0 0
      %1675 = vmatpush2.bf16.msra.mxu0 0
      %1676 = vmatprep.subr.bf16.mxu0 0
      %1677 = vmatpush2.bf16.msra.mxu0 0
      %1678 = vmatprep.subr.bf16.mxu0 0
      %1679 = vmatpush2.bf16.msra.mxu0 0
      %1680 = vmatprep.subr.bf16.mxu0 0
      %1681 = vmatpush2.bf16.msra.mxu0 0
      %1682 = vmatprep.subr.bf16.mxu0 0
      %1683 = vmatpush2.bf16.msra.mxu0 0
      %1684 = vmatprep.mubr.bf16.mxu0 0
      %1685 = vmatmul.mubr.bf16.gmra.mxu0 %v1588
      %v1686 = vpop.f32.mrf.mxu0
      %v1687 = vadd.f32 0.0, %v1686
      %v1688 = vpop.f32.mrf.mxu0
      %v1689 = vpop.f32.mrf.mxu0
      %v1690 = vadd.f32 0.0, %v1689
      %v1691 = vpop.f32.mrf.mxu0
      %1692 = vmatprep.mubr.bf16.mxu0 0
      %1693 = vmatmul.mubr.bf16.gmra.mxu0 %v1589
      %v1694 = vpop.f32.mrf.mxu0
      %v1695 = vadd.f32 0.0, %v1694
      %v1696 = vpop.f32.mrf.mxu0
      %v1697 = vpop.f32.mrf.mxu0
      %v1698 = vadd.f32 0.0, %v1697
      %v1699 = vpop.f32.mrf.mxu0
      %1700 = vmatprep.mubr.bf16.mxu0 0
      %1701 = vmatmul.mubr.bf16.gmra.mxu0 %v1590
      %v1702 = vpop.f32.mrf.mxu0
      %v1703 = vadd.f32 0.0, %v1702
      %v1704 = vpop.f32.mrf.mxu0
      %v1705 = vpop.f32.mrf.mxu0
      %v1706 = vadd.f32 0.0, %v1705
      %v1707 = vpop.f32.mrf.mxu0
      %1708 = vmatprep.mubr.bf16.mxu0 0
      %1709 = vmatmul.mubr.bf16.gmra.mxu0 %v1591
      %v1710 = vpop.f32.mrf.mxu0
      %v1711 = vadd.f32 0.0, %v1710
      %v1712 = vpop.f32.mrf.mxu0
      %v1713 = vpop.f32.mrf.mxu0
      %v1714 = vadd.f32 0.0, %v1713
      %v1715 = vpop.f32.mrf.mxu0
      %1716 = vmatprep.mubr.bf16.mxu0 0
      %1717 = vmatmul.mubr.bf16.gmra.mxu0 %v1592
      %v1718 = vpop.f32.mrf.mxu0
      %v1719 = vadd.f32 0.0, %v1718
      %v1720 = vpop.f32.mrf.mxu0
      %v1721 = vpop.f32.mrf.mxu0
      %v1722 = vadd.f32 0.0, %v1721
      %v1723 = vpop.f32.mrf.mxu0
      %1724 = vmatprep.mubr.bf16.mxu0 0
      %1725 = vmatmul.mubr.bf16.gmra.mxu0 %v1593
      %v1726 = vpop.f32.mrf.mxu0
      %v1727 = vadd.f32 0.0, %v1726
      %v1728 = vpop.f32.mrf.mxu0
      %v1729 = vpop.f32.mrf.mxu0
      %v1730 = vadd.f32 0.0, %v1729
      %v1731 = vpop.f32.mrf.mxu0
      %1732 = vmatprep.mubr.bf16.mxu0 0
      %1733 = vmatmul.mubr.bf16.gmra.mxu0 %v1594
      %v1734 = vpop.f32.mrf.mxu0
      %v1735 = vadd.f32 0.0, %v1734
      %v1736 = vpop.f32.mrf.mxu0
      %v1737 = vpop.f32.mrf.mxu0
      %v1738 = vadd.f32 0.0, %v1737
      %v1739 = vpop.f32.mrf.mxu0
      %1740 = vmatprep.mubr.bf16.mxu0 0
      %1741 = vmatmul.mubr.bf16.gmra.mxu0 %v1595
      %v1742 = vpop.f32.mrf.mxu0
      %v1743 = vadd.f32 0.0, %v1742
      %v1744 = vpop.f32.mrf.mxu0
      %v1745 = vpop.f32.mrf.mxu0
      %v1746 = vadd.f32 0.0, %v1745
      %v1747 = vpop.f32.mrf.mxu0
      %1748 = vdwg.mxu0
      %v1749 = vmax.f32 %v1687, %v1703
      %v1750 = vmax.f32 %v1690, %v1706
      %v1751 = vmax.f32 %v1695, %v1711
      %v1752 = vmax.f32 %v1698, %v1714
      %v1753 = vmax.f32 %v1719, %v1735
      %v1754 = vmax.f32 %v1722, %v1738
      %v1755 = vmax.f32 %v1727, %v1743
      %v1756 = vmax.f32 %v1730, %v1746
      %v1757 = vmax.f32 %v1749, %v1753
      %v1758 = vmax.f32 %v1750, %v1754
      %v1759 = vmax.f32 %v1751, %v1755
      %v1760 = vmax.f32 %v1752, %v1756
      %v1761 = vld [vmem:[%s2] sm:$0x1]
      %v1763 = vlaneseq
      %v1764 = vshrl.u32 %v1763, 7
      %v1765 = vsub.s32 0, %v1764
      %v1766 = vrot.slane %v1761, %v1765
      %v1768 = vadd.f32 %v1757, %v1766
      %v1769 = vadd.f32 %v1758, %v1766
      %v1770 = vadd.f32 %v1759, %v1766
      %v1771 = vadd.f32 %v1760, %v1766
      %v1772 = vpack.c.bf16 %v1769, %v1768
      %v1773 = vpack.c.bf16 %v1771, %v1770
      %v1776 = vunpack.c.l.b16 %v1772
      %v1777 = vunpack.c.h.b16 %v1772
      %v1778 = vunpack.c.l.b16 %v1773
      %v1779 = vunpack.c.h.b16 %v1773
      %v1780 = vpack.c.b16 %v1776, %v1776
      %v1781 = vpack.c.b16 %v1777, %v1777
      %v1782 = vpack.c.b16 %v1778, %v1778
      %v1783 = vpack.c.b16 %v1779, %v1779
      %s1788 = scalar_lea.vmem %s172, 80
      %1789 = vst [vmem:[%s1788] sm:$0xf] %v1780
      %1790 = vst [vmem:[%s1788 + $0x4] sm:$0xf] %v1781
      %1791 = vst [vmem:[%s1788 + $0x8] sm:$0xf] %v1782
      %1792 = vst [vmem:[%s1788 + $0xc] sm:$0xf] %v1783
      %s1793 = scalar_lea.vmem %s166, 384
      %v1794 = vld [vmem:[%s1793] sm:$0xf]
      %v1795 = vld [vmem:[%s1793 + $0x4] sm:$0xf]
      %v1796 = vld [vmem:[%s1793 + $0x8] sm:$0xf]
      %v1797 = vld [vmem:[%s1793 + $0xc] sm:$0xf]
      %v1798 = vld [vmem:[%s1793 + $0x10] sm:$0xf]
      %v1799 = vld [vmem:[%s1793 + $0x14] sm:$0xf]
      %v1800 = vld [vmem:[%s1793 + $0x18] sm:$0xf]
      %v1801 = vld [vmem:[%s1793 + $0x1c] sm:$0xf]
      %v1802 = vld [vmem:[%s1793 + $0x20] sm:$0xf]
      %v1803 = vld [vmem:[%s1793 + $0x24] sm:$0xf]
      %v1804 = vld [vmem:[%s1793 + $0x28] sm:$0xf]
      %v1805 = vld [vmem:[%s1793 + $0x2c] sm:$0xf]
      %v1806 = vld [vmem:[%s1793 + $0x30] sm:$0xf]
      %v1807 = vld [vmem:[%s1793 + $0x34] sm:$0xf]
      %v1808 = vld [vmem:[%s1793 + $0x38] sm:$0xf]
      %v1809 = vld [vmem:[%s1793 + $0x3c] sm:$0xf]
      %v1810 = vld [vmem:[%s1] sm:$0xf]
      %v1811 = vld [vmem:[%s1 + $0x4] sm:$0xf]
      %v1812 = vld [vmem:[%s1 + $0x8] sm:$0xf]
      %v1813 = vld [vmem:[%s1 + $0xc] sm:$0xf]
      %v1814 = vld [vmem:[%s1 + $0x10] sm:$0xf]
      %v1815 = vld [vmem:[%s1 + $0x14] sm:$0xf]
      %v1816 = vld [vmem:[%s1 + $0x18] sm:$0xf]
      %v1817 = vld [vmem:[%s1 + $0x1c] sm:$0xf]
      %v1818 = vld [vmem:[%s1 + $0x20] sm:$0xf]
      %v1819 = vld [vmem:[%s1 + $0x24] sm:$0xf]
      %v1820 = vld [vmem:[%s1 + $0x28] sm:$0xf]
      %v1821 = vld [vmem:[%s1 + $0x2c] sm:$0xf]
      %v1822 = vld [vmem:[%s1 + $0x30] sm:$0xf]
      %v1823 = vld [vmem:[%s1 + $0x34] sm:$0xf]
      %v1824 = vld [vmem:[%s1 + $0x38] sm:$0xf]
      %v1825 = vld [vmem:[%s1 + $0x3c] sm:$0xf]
      %v1842 = vunpack.c.l.b16 %v1794
      %v1843 = vunpack.c.l.b16 %v1795
      %v1844 = vunpack.c.l.b16 %v1796
      %v1845 = vunpack.c.l.b16 %v1797
      %v1846 = vunpack.c.l.b16 %v1798
      %v1847 = vunpack.c.l.b16 %v1799
      %v1848 = vunpack.c.l.b16 %v1800
      %v1849 = vunpack.c.l.b16 %v1801
      %v1850 = vunpack.c.l.b16 %v1802
      %v1851 = vunpack.c.l.b16 %v1803
      %v1852 = vunpack.c.l.b16 %v1804
      %v1853 = vunpack.c.l.b16 %v1805
      %v1854 = vunpack.c.l.b16 %v1806
      %v1855 = vunpack.c.l.b16 %v1807
      %v1856 = vunpack.c.l.b16 %v1808
      %v1857 = vunpack.c.l.b16 %v1809
      %v1858 = vpack.c.b16 %v1843, %v1842
      %v1859 = vpack.c.b16 %v1845, %v1844
      %v1860 = vpack.c.b16 %v1847, %v1846
      %v1861 = vpack.c.b16 %v1849, %v1848
      %v1862 = vpack.c.b16 %v1851, %v1850
      %v1863 = vpack.c.b16 %v1853, %v1852
      %v1864 = vpack.c.b16 %v1855, %v1854
      %v1865 = vpack.c.b16 %v1857, %v1856
      %v1890 = vunpack.c.l.b16 %v1810
      %v1891 = vunpack.c.l.b16 %v1811
      %v1892 = vunpack.c.l.b16 %v1812
      %v1893 = vunpack.c.l.b16 %v1813
      %v1894 = vunpack.c.l.b16 %v1814
      %v1895 = vunpack.c.l.b16 %v1815
      %v1896 = vunpack.c.l.b16 %v1816
      %v1897 = vunpack.c.l.b16 %v1817
      %v1898 = vunpack.c.l.b16 %v1818
      %v1899 = vunpack.c.l.b16 %v1819
      %v1900 = vunpack.c.l.b16 %v1820
      %v1901 = vunpack.c.l.b16 %v1821
      %v1902 = vunpack.c.l.b16 %v1822
      %v1903 = vunpack.c.l.b16 %v1823
      %v1904 = vunpack.c.l.b16 %v1824
      %v1905 = vunpack.c.l.b16 %v1825
      %v1906 = vpack.c.b16 %v1891, %v1890
      %v1907 = vpack.c.b16 %v1893, %v1892
      %v1908 = vpack.c.b16 %v1895, %v1894
      %v1909 = vpack.c.b16 %v1897, %v1896
      %v1910 = vpack.c.b16 %v1899, %v1898
      %v1911 = vpack.c.b16 %v1901, %v1900
      %v1912 = vpack.c.b16 %v1903, %v1902
      %v1913 = vpack.c.b16 %v1905, %v1904
      %1922 = vmatprep.subr.bf16.mxu0 0
      %1923 = vmatpush1.bf16.msra.mxu0 %v1913
      %1924 = vmatprep.subr.bf16.mxu0 0
      %1925 = vmatpush1.bf16.msra.mxu0 %v1912
      %1926 = vmatprep.subr.bf16.mxu0 0
      %1927 = vmatpush1.bf16.msra.mxu0 %v1911
      %1928 = vmatprep.subr.bf16.mxu0 0
      %1929 = vmatpush1.bf16.msra.mxu0 %v1910
      %1930 = vmatprep.subr.bf16.mxu0 0
      %1931 = vmatpush1.bf16.msra.mxu0 %v1909
      %1932 = vmatprep.subr.bf16.mxu0 0
      %1933 = vmatpush1.bf16.msra.mxu0 %v1908
      %1934 = vmatprep.subr.bf16.mxu0 0
      %1935 = vmatpush1.bf16.msra.mxu0 %v1907
      %1936 = vmatprep.subr.bf16.mxu0 0
      %1937 = vmatpush1.bf16.msra.mxu0 %v1906
      %1938 = vmatprep.subr.bf16.mxu0 0
      %1939 = vmatpush2.bf16.msra.mxu0 0
      %1940 = vmatprep.subr.bf16.mxu0 0
      %1941 = vmatpush2.bf16.msra.mxu0 0
      %1942 = vmatprep.subr.bf16.mxu0 0
      %1943 = vmatpush2.bf16.msra.mxu0 0
      %1944 = vmatprep.subr.bf16.mxu0 0
      %1945 = vmatpush2.bf16.msra.mxu0 0
      %1946 = vmatprep.subr.bf16.mxu0 0
      %1947 = vmatpush2.bf16.msra.mxu0 0
      %1948 = vmatprep.subr.bf16.mxu0 0
      %1949 = vmatpush2.bf16.msra.mxu0 0
      %1950 = vmatprep.subr.bf16.mxu0 0
      %1951 = vmatpush2.bf16.msra.mxu0 0
      %1952 = vmatprep.subr.bf16.mxu0 0
      %1953 = vmatpush2.bf16.msra.mxu0 0
      %1954 = vmatprep.mubr.bf16.mxu0 0
      %1955 = vmatmul.mubr.bf16.gmra.mxu0 %v1858
      %v1956 = vpop.f32.mrf.mxu0
      %v1957 = vadd.f32 0.0, %v1956
      %v1958 = vpop.f32.mrf.mxu0
      %v1959 = vpop.f32.mrf.mxu0
      %v1960 = vadd.f32 0.0, %v1959
      %v1961 = vpop.f32.mrf.mxu0
      %1962 = vmatprep.mubr.bf16.mxu0 0
      %1963 = vmatmul.mubr.bf16.gmra.mxu0 %v1859
      %v1964 = vpop.f32.mrf.mxu0
      %v1965 = vadd.f32 0.0, %v1964
      %v1966 = vpop.f32.mrf.mxu0
      %v1967 = vpop.f32.mrf.mxu0
      %v1968 = vadd.f32 0.0, %v1967
      %v1969 = vpop.f32.mrf.mxu0
      %1970 = vmatprep.mubr.bf16.mxu0 0
      %1971 = vmatmul.mubr.bf16.gmra.mxu0 %v1860
      %v1972 = vpop.f32.mrf.mxu0
      %v1973 = vadd.f32 0.0, %v1972
      %v1974 = vpop.f32.mrf.mxu0
      %v1975 = vpop.f32.mrf.mxu0
      %v1976 = vadd.f32 0.0, %v1975
      %v1977 = vpop.f32.mrf.mxu0
      %1978 = vmatprep.mubr.bf16.mxu0 0
      %1979 = vmatmul.mubr.bf16.gmra.mxu0 %v1861
      %v1980 = vpop.f32.mrf.mxu0
      %v1981 = vadd.f32 0.0, %v1980
      %v1982 = vpop.f32.mrf.mxu0
      %v1983 = vpop.f32.mrf.mxu0
      %v1984 = vadd.f32 0.0, %v1983
      %v1985 = vpop.f32.mrf.mxu0
      %1986 = vmatprep.mubr.bf16.mxu0 0
      %1987 = vmatmul.mubr.bf16.gmra.mxu0 %v1862
      %v1988 = vpop.f32.mrf.mxu0
      %v1989 = vadd.f32 0.0, %v1988
      %v1990 = vpop.f32.mrf.mxu0
      %v1991 = vpop.f32.mrf.mxu0
      %v1992 = vadd.f32 0.0, %v1991
      %v1993 = vpop.f32.mrf.mxu0
      %1994 = vmatprep.mubr.bf16.mxu0 0
      %1995 = vmatmul.mubr.bf16.gmra.mxu0 %v1863
      %v1996 = vpop.f32.mrf.mxu0
      %v1997 = vadd.f32 0.0, %v1996
      %v1998 = vpop.f32.mrf.mxu0
      %v1999 = vpop.f32.mrf.mxu0
      %v2000 = vadd.f32 0.0, %v1999
      %v2001 = vpop.f32.mrf.mxu0
      %2002 = vmatprep.mubr.bf16.mxu0 0
      %2003 = vmatmul.mubr.bf16.gmra.mxu0 %v1864
      %v2004 = vpop.f32.mrf.mxu0
      %v2005 = vadd.f32 0.0, %v2004
      %v2006 = vpop.f32.mrf.mxu0
      %v2007 = vpop.f32.mrf.mxu0
      %v2008 = vadd.f32 0.0, %v2007
      %v2009 = vpop.f32.mrf.mxu0
      %2010 = vmatprep.mubr.bf16.mxu0 0
      %2011 = vmatmul.mubr.bf16.gmra.mxu0 %v1865
      %v2012 = vpop.f32.mrf.mxu0
      %v2013 = vadd.f32 0.0, %v2012
      %v2014 = vpop.f32.mrf.mxu0
      %v2015 = vpop.f32.mrf.mxu0
      %v2016 = vadd.f32 0.0, %v2015
      %v2017 = vpop.f32.mrf.mxu0
      %2018 = vdwg.mxu0
      %v2019 = vmax.f32 %v1957, %v1973
      %v2020 = vmax.f32 %v1960, %v1976
      %v2021 = vmax.f32 %v1965, %v1981
      %v2022 = vmax.f32 %v1968, %v1984
      %v2023 = vmax.f32 %v1989, %v2005
      %v2024 = vmax.f32 %v1992, %v2008
      %v2025 = vmax.f32 %v1997, %v2013
      %v2026 = vmax.f32 %v2000, %v2016
      %v2027 = vmax.f32 %v2019, %v2023
      %v2028 = vmax.f32 %v2020, %v2024
      %v2029 = vmax.f32 %v2021, %v2025
      %v2030 = vmax.f32 %v2022, %v2026
      %v2031 = vld [vmem:[%s2] sm:$0x1]
      %v2033 = vlaneseq
      %v2034 = vshrl.u32 %v2033, 7
      %v2035 = vsub.s32 0, %v2034
      %v2036 = vrot.slane %v2031, %v2035
      %v2038 = vadd.f32 %v2027, %v2036
      %v2039 = vadd.f32 %v2028, %v2036
      %v2040 = vadd.f32 %v2029, %v2036
      %v2041 = vadd.f32 %v2030, %v2036
      %v2042 = vpack.c.bf16 %v2039, %v2038
      %v2043 = vpack.c.bf16 %v2041, %v2040
      %v2046 = vunpack.c.l.b16 %v2042
      %v2047 = vunpack.c.h.b16 %v2042
      %v2048 = vunpack.c.l.b16 %v2043
      %v2049 = vunpack.c.h.b16 %v2043
      %v2050 = vpack.c.b16 %v2046, %v2046
      %v2051 = vpack.c.b16 %v2047, %v2047
      %v2052 = vpack.c.b16 %v2048, %v2048
      %v2053 = vpack.c.b16 %v2049, %v2049
      %s2058 = scalar_lea.vmem %s172, 96
      %2059 = vst [vmem:[%s2058] sm:$0xf] %v2050
      %2060 = vst [vmem:[%s2058 + $0x4] sm:$0xf] %v2051
      %2061 = vst [vmem:[%s2058 + $0x8] sm:$0xf] %v2052
      %2062 = vst [vmem:[%s2058 + $0xc] sm:$0xf] %v2053
      %s2063 = scalar_lea.vmem %s166, 448
      %v2064 = vld [vmem:[%s2063] sm:$0xf]
      %v2065 = vld [vmem:[%s2063 + $0x4] sm:$0xf]
      %v2066 = vld [vmem:[%s2063 + $0x8] sm:$0xf]
      %v2067 = vld [vmem:[%s2063 + $0xc] sm:$0xf]
      %v2068 = vld [vmem:[%s2063 + $0x10] sm:$0xf]
      %v2069 = vld [vmem:[%s2063 + $0x14] sm:$0xf]
      %v2070 = vld [vmem:[%s2063 + $0x18] sm:$0xf]
      %v2071 = vld [vmem:[%s2063 + $0x1c] sm:$0xf]
      %v2072 = vld [vmem:[%s2063 + $0x20] sm:$0xf]
      %v2073 = vld [vmem:[%s2063 + $0x24] sm:$0xf]
      %v2074 = vld [vmem:[%s2063 + $0x28] sm:$0xf]
      %v2075 = vld [vmem:[%s2063 + $0x2c] sm:$0xf]
      %v2076 = vld [vmem:[%s2063 + $0x30] sm:$0xf]
      %v2077 = vld [vmem:[%s2063 + $0x34] sm:$0xf]
      %v2078 = vld [vmem:[%s2063 + $0x38] sm:$0xf]
      %v2079 = vld [vmem:[%s2063 + $0x3c] sm:$0xf]
      %v2080 = vld [vmem:[%s1] sm:$0xf]
      %v2081 = vld [vmem:[%s1 + $0x4] sm:$0xf]
      %v2082 = vld [vmem:[%s1 + $0x8] sm:$0xf]
      %v2083 = vld [vmem:[%s1 + $0xc] sm:$0xf]
      %v2084 = vld [vmem:[%s1 + $0x10] sm:$0xf]
      %v2085 = vld [vmem:[%s1 + $0x14] sm:$0xf]
      %v2086 = vld [vmem:[%s1 + $0x18] sm:$0xf]
      %v2087 = vld [vmem:[%s1 + $0x1c] sm:$0xf]
      %v2088 = vld [vmem:[%s1 + $0x20] sm:$0xf]
      %v2089 = vld [vmem:[%s1 + $0x24] sm:$0xf]
      %v2090 = vld [vmem:[%s1 + $0x28] sm:$0xf]
      %v2091 = vld [vmem:[%s1 + $0x2c] sm:$0xf]
      %v2092 = vld [vmem:[%s1 + $0x30] sm:$0xf]
      %v2093 = vld [vmem:[%s1 + $0x34] sm:$0xf]
      %v2094 = vld [vmem:[%s1 + $0x38] sm:$0xf]
      %v2095 = vld [vmem:[%s1 + $0x3c] sm:$0xf]
      %v2112 = vunpack.c.l.b16 %v2064
      %v2113 = vunpack.c.l.b16 %v2065
      %v2114 = vunpack.c.l.b16 %v2066
      %v2115 = vunpack.c.l.b16 %v2067
      %v2116 = vunpack.c.l.b16 %v2068
      %v2117 = vunpack.c.l.b16 %v2069
      %v2118 = vunpack.c.l.b16 %v2070
      %v2119 = vunpack.c.l.b16 %v2071
      %v2120 = vunpack.c.l.b16 %v2072
      %v2121 = vunpack.c.l.b16 %v2073
      %v2122 = vunpack.c.l.b16 %v2074
      %v2123 = vunpack.c.l.b16 %v2075
      %v2124 = vunpack.c.l.b16 %v2076
      %v2125 = vunpack.c.l.b16 %v2077
      %v2126 = vunpack.c.l.b16 %v2078
      %v2127 = vunpack.c.l.b16 %v2079
      %v2128 = vpack.c.b16 %v2113, %v2112
      %v2129 = vpack.c.b16 %v2115, %v2114
      %v2130 = vpack.c.b16 %v2117, %v2116
      %v2131 = vpack.c.b16 %v2119, %v2118
      %v2132 = vpack.c.b16 %v2121, %v2120
      %v2133 = vpack.c.b16 %v2123, %v2122
      %v2134 = vpack.c.b16 %v2125, %v2124
      %v2135 = vpack.c.b16 %v2127, %v2126
      %v2160 = vunpack.c.l.b16 %v2080
      %v2161 = vunpack.c.l.b16 %v2081
      %v2162 = vunpack.c.l.b16 %v2082
      %v2163 = vunpack.c.l.b16 %v2083
      %v2164 = vunpack.c.l.b16 %v2084
      %v2165 = vunpack.c.l.b16 %v2085
      %v2166 = vunpack.c.l.b16 %v2086
      %v2167 = vunpack.c.l.b16 %v2087
      %v2168 = vunpack.c.l.b16 %v2088
      %v2169 = vunpack.c.l.b16 %v2089
      %v2170 = vunpack.c.l.b16 %v2090
      %v2171 = vunpack.c.l.b16 %v2091
      %v2172 = vunpack.c.l.b16 %v2092
      %v2173 = vunpack.c.l.b16 %v2093
      %v2174 = vunpack.c.l.b16 %v2094
      %v2175 = vunpack.c.l.b16 %v2095
      %v2176 = vpack.c.b16 %v2161, %v2160
      %v2177 = vpack.c.b16 %v2163, %v2162
      %v2178 = vpack.c.b16 %v2165, %v2164
      %v2179 = vpack.c.b16 %v2167, %v2166
      %v2180 = vpack.c.b16 %v2169, %v2168
      %v2181 = vpack.c.b16 %v2171, %v2170
      %v2182 = vpack.c.b16 %v2173, %v2172
      %v2183 = vpack.c.b16 %v2175, %v2174
      %2192 = vmatprep.subr.bf16.mxu0 0
      %2193 = vmatpush1.bf16.msra.mxu0 %v2183
      %2194 = vmatprep.subr.bf16.mxu0 0
      %2195 = vmatpush1.bf16.msra.mxu0 %v2182
      %2196 = vmatprep.subr.bf16.mxu0 0
      %2197 = vmatpush1.bf16.msra.mxu0 %v2181
      %2198 = vmatprep.subr.bf16.mxu0 0
      %2199 = vmatpush1.bf16.msra.mxu0 %v2180
      %2200 = vmatprep.subr.bf16.mxu0 0
      %2201 = vmatpush1.bf16.msra.mxu0 %v2179
      %2202 = vmatprep.subr.bf16.mxu0 0
      %2203 = vmatpush1.bf16.msra.mxu0 %v2178
      %2204 = vmatprep.subr.bf16.mxu0 0
      %2205 = vmatpush1.bf16.msra.mxu0 %v2177
      %2206 = vmatprep.subr.bf16.mxu0 0
      %2207 = vmatpush1.bf16.msra.mxu0 %v2176
      %2208 = vmatprep.subr.bf16.mxu0 0
      %2209 = vmatpush2.bf16.msra.mxu0 0
      %2210 = vmatprep.subr.bf16.mxu0 0
      %2211 = vmatpush2.bf16.msra.mxu0 0
      %2212 = vmatprep.subr.bf16.mxu0 0
      %2213 = vmatpush2.bf16.msra.mxu0 0
      %2214 = vmatprep.subr.bf16.mxu0 0
      %2215 = vmatpush2.bf16.msra.mxu0 0
      %2216 = vmatprep.subr.bf16.mxu0 0
      %2217 = vmatpush2.bf16.msra.mxu0 0
      %2218 = vmatprep.subr.bf16.mxu0 0
      %2219 = vmatpush2.bf16.msra.mxu0 0
      %2220 = vmatprep.subr.bf16.mxu0 0
      %2221 = vmatpush2.bf16.msra.mxu0 0
      %2222 = vmatprep.subr.bf16.mxu0 0
      %2223 = vmatpush2.bf16.msra.mxu0 0
      %2224 = vmatprep.mubr.bf16.mxu0 0
      %2225 = vmatmul.mubr.bf16.gmra.mxu0 %v2128
      %v2226 = vpop.f32.mrf.mxu0
      %v2227 = vadd.f32 0.0, %v2226
      %v2228 = vpop.f32.mrf.mxu0
      %v2229 = vpop.f32.mrf.mxu0
      %v2230 = vadd.f32 0.0, %v2229
      %v2231 = vpop.f32.mrf.mxu0
      %2232 = vmatprep.mubr.bf16.mxu0 0
      %2233 = vmatmul.mubr.bf16.gmra.mxu0 %v2129
      %v2234 = vpop.f32.mrf.mxu0
      %v2235 = vadd.f32 0.0, %v2234
      %v2236 = vpop.f32.mrf.mxu0
      %v2237 = vpop.f32.mrf.mxu0
      %v2238 = vadd.f32 0.0, %v2237
      %v2239 = vpop.f32.mrf.mxu0
      %2240 = vmatprep.mubr.bf16.mxu0 0
      %2241 = vmatmul.mubr.bf16.gmra.mxu0 %v2130
      %v2242 = vpop.f32.mrf.mxu0
      %v2243 = vadd.f32 0.0, %v2242
      %v2244 = vpop.f32.mrf.mxu0
      %v2245 = vpop.f32.mrf.mxu0
      %v2246 = vadd.f32 0.0, %v2245
      %v2247 = vpop.f32.mrf.mxu0
      %2248 = vmatprep.mubr.bf16.mxu0 0
      %2249 = vmatmul.mubr.bf16.gmra.mxu0 %v2131
      %v2250 = vpop.f32.mrf.mxu0
      %v2251 = vadd.f32 0.0, %v2250
      %v2252 = vpop.f32.mrf.mxu0
      %v2253 = vpop.f32.mrf.mxu0
      %v2254 = vadd.f32 0.0, %v2253
      %v2255 = vpop.f32.mrf.mxu0
      %2256 = vmatprep.mubr.bf16.mxu0 0
      %2257 = vmatmul.mubr.bf16.gmra.mxu0 %v2132
      %v2258 = vpop.f32.mrf.mxu0
      %v2259 = vadd.f32 0.0, %v2258
      %v2260 = vpop.f32.mrf.mxu0
      %v2261 = vpop.f32.mrf.mxu0
      %v2262 = vadd.f32 0.0, %v2261
      %v2263 = vpop.f32.mrf.mxu0
      %2264 = vmatprep.mubr.bf16.mxu0 0
      %2265 = vmatmul.mubr.bf16.gmra.mxu0 %v2133
      %v2266 = vpop.f32.mrf.mxu0
      %v2267 = vadd.f32 0.0, %v2266
      %v2268 = vpop.f32.mrf.mxu0
      %v2269 = vpop.f32.mrf.mxu0
      %v2270 = vadd.f32 0.0, %v2269
      %v2271 = vpop.f32.mrf.mxu0
      %2272 = vmatprep.mubr.bf16.mxu0 0
      %2273 = vmatmul.mubr.bf16.gmra.mxu0 %v2134
      %v2274 = vpop.f32.mrf.mxu0
      %v2275 = vadd.f32 0.0, %v2274
      %v2276 = vpop.f32.mrf.mxu0
      %v2277 = vpop.f32.mrf.mxu0
      %v2278 = vadd.f32 0.0, %v2277
      %v2279 = vpop.f32.mrf.mxu0
      %2280 = vmatprep.mubr.bf16.mxu0 0
      %2281 = vmatmul.mubr.bf16.gmra.mxu0 %v2135
      %v2282 = vpop.f32.mrf.mxu0
      %v2283 = vadd.f32 0.0, %v2282
      %v2284 = vpop.f32.mrf.mxu0
      %v2285 = vpop.f32.mrf.mxu0
      %v2286 = vadd.f32 0.0, %v2285
      %v2287 = vpop.f32.mrf.mxu0
      %2288 = vdwg.mxu0
      %v2289 = vmax.f32 %v2227, %v2243
      %v2290 = vmax.f32 %v2230, %v2246
      %v2291 = vmax.f32 %v2235, %v2251
      %v2292 = vmax.f32 %v2238, %v2254
      %v2293 = vmax.f32 %v2259, %v2275
      %v2294 = vmax.f32 %v2262, %v2278
      %v2295 = vmax.f32 %v2267, %v2283
      %v2296 = vmax.f32 %v2270, %v2286
      %v2297 = vmax.f32 %v2289, %v2293
      %v2298 = vmax.f32 %v2290, %v2294
      %v2299 = vmax.f32 %v2291, %v2295
      %v2300 = vmax.f32 %v2292, %v2296
      %v2301 = vld [vmem:[%s2] sm:$0x1]
      %v2303 = vlaneseq
      %v2304 = vshrl.u32 %v2303, 7
      %v2305 = vsub.s32 0, %v2304
      %v2306 = vrot.slane %v2301, %v2305
      %v2308 = vadd.f32 %v2297, %v2306
      %v2309 = vadd.f32 %v2298, %v2306
      %v2310 = vadd.f32 %v2299, %v2306
      %v2311 = vadd.f32 %v2300, %v2306
      %v2312 = vpack.c.bf16 %v2309, %v2308
      %v2313 = vpack.c.bf16 %v2311, %v2310
      %v2316 = vunpack.c.l.b16 %v2312
      %v2317 = vunpack.c.h.b16 %v2312
      %v2318 = vunpack.c.l.b16 %v2313
      %v2319 = vunpack.c.h.b16 %v2313
      %v2320 = vpack.c.b16 %v2316, %v2316
      %v2321 = vpack.c.b16 %v2317, %v2317
      %v2322 = vpack.c.b16 %v2318, %v2318
      %v2323 = vpack.c.b16 %v2319, %v2319
      %s2328 = scalar_lea.vmem %s172, 112
      %2329 = vst [vmem:[%s2328] sm:$0xf] %v2320
      %2330 = vst [vmem:[%s2328 + $0x4] sm:$0xf] %v2321
      %2331 = vst [vmem:[%s2328 + $0x8] sm:$0xf] %v2322
      %2332 = vst [vmem:[%s2328 + $0xc] sm:$0xf] %v2323
      %s2333 = smul.u32 32, %s14
      %p2334 = scmp.lt.s32.totalorder %s2333, 63
      %s2335 = scalar_select %p2334, %s2333, 63
      %s2336 = smul.addr %s2335, 4
      %s2337 = scalar_lea.vmem %s3, %s2336
      // Predicated region
      $region33: #{cifar10_forward.3} parent=31 // pred_check
        %p2338 = pneg %p100
      $region34: #{cifar10_forward.3} parent=31 // pred_check_branch
        %2340 = sbr.rel (%p2338) target = $region36
      $region35: #{cifar10_forward.3} parent=31 // pred_region
        %s2341 = smul.u32 32, %s14
      $region36: #{cifar10_forward.3} parent=31 // pred_fallthru
        _
    $region32: #{cifar10_forward.3} parent=5 // pred_fallthru
      _
    %p2342 = scmp.le.s32.totalorder 2, %s9
    // Predicated region
    $region37: #{cifar10_forward.3} parent=5 // pred_check
      %p2343 = pneg %p2342
    $region38: #{cifar10_forward.3} parent=5 // pred_check_branch
      %2345 = sbr.rel (%p2343) target = $region40
    $region39: #{cifar10_forward.3} parent=5 // pred_region
      %s2346 = ssub.s32 %s9, 2
      // Predicated region
      $region41: #{cifar10_forward.3} parent=39 // pred_check
        %p2347 = pneg %p106
      $region42: #{cifar10_forward.3} parent=39 // pred_check_branch
        %2349 = sbr.rel (%p2347) target = $region44
      $region43: #{cifar10_forward.3} parent=39 // pred_region
        %s2350 = smul.u32 32, %s15
        %p2351 = scmp.lt.s32.totalorder %s2350, 63
        %s2352 = scalar_select %p2351, %s2350, 63
        %s2353 = smul.addr %s2352, 4
        %s2354 = scalar_lea.vmem %s3, %s2353
      $region44: #{cifar10_forward.3} parent=39 // pred_fallthru
        _
    $region40: #{cifar10_forward.3} parent=5 // pred_fallthru
      _
  $region6: #{cifar10_forward.3} parent=0 // loop_footer
    %s13 = sadd.s32 1, %s9
  $region7: #{cifar10_forward.3} parent=0 // loop_footer_branch
    %8 = sbr.rel target = $region3
  $region8: #{cifar10_forward.3} parent=0 // loop_exit
    _

// kernel: cifar10_forward.4
$region0: #{cifar10_forward.4}
  #allocation0 [shape = 'u32[]', space=smem, size = 0x4, offset = 0x4, fixed_abs, tag = 'smem constant byte address 0x4 - core index']
  #allocation1 [shape = 'u32[144,128]{1,0:T(1,128)}', space=vmem, size = 0x12000, scoped, tag = 'internal scratch']
  %s0 = inlined_call_operand.vmem [shape: bf16[512,896], index: 0, kind: input, shape index: {}]
  %s1 = inlined_call_operand.vmem [shape: bf16[896,128], index: 1, kind: input, shape index: {}]
  %s2 = inlined_call_operand.vmem [shape: f32[1,128], index: 2, kind: input, shape index: {}]
  %s3 = inlined_call_operand.vmem [shape: bf16[128,128], index: 3, kind: output, shape index: {}]
  %s4 = sld [smem:[#allocation0]]
  $region45: #{cifar10_forward.4} parent=0
    _
  %s6 = ssub.s32 1, %s4
  %s7 = scalar_select 0, %s6, %s4
  loop: start=0, step=1, limit=4
  $region2: #{cifar10_forward.4} parent=0 // loop_pre_header
    _
  $region3: #{cifar10_forward.4} parent=0 // loop_header
    %s9 = sphi 0, %s13
    %p10 = scmp.ge.s32.totalorder %s9, 4
    %s19 = sphi 0, %s21
    %s22 = sphi 0, %s19
    %s23 = sphi 0, %s22
    %s39 = sphi 0, %s23
    %s43 = sphi 0, %s43
    %s45 = sphi 0, %s43
    %s46 = sphi 0, %s45
    %s60 = sphi 0, %s46
    %s64 = sphi 0, %s64
    %s66 = sphi 0, %s64
    %s67 = sphi 0, %s66
    %s81 = sphi 0, %s67
    %s87 = sphi 0, %s89
    %s90 = sphi 0, %s87
    %s91 = sphi 0, %s90
    %s107 = sphi 0, %s91
  $region4: #{cifar10_forward.4} parent=0 // loop_header_branch
    %12 = sbr.rel (%p10) target = $region8
  $region5: #{cifar10_forward.4} parent=0 // loop_body
    %s14 = ssub.s32 %s9, 1
    %s15 = ssub.s32 %s9, 2
    %s16 = sadd.s32 %s9, 1
    %s17 = ssub.s32 %s9, %s16
    %p18 = scmp.eq.s32.totalorder %s17, 0
    %s20 = sadd.s32 %s19, 1
    %s21 = scalar_select %p18, %s19, %s20
    %p24 = pneg %p18
    %p25 = scmp.eq.s32.totalorder %s9, 1
    %p26 = por %p24, %p25
    %p27 = scmp.ne.s32.totalorder %s19, %s22
    %p28 = scmp.eq.s32.totalorder %s9, 0
    %p29 = por %p27, %p28
    %p30 = scmp.ne.s32.totalorder %s19, %s22
    %p31 = scmp.eq.s32.totalorder %s14, 1
    %p32 = por %p30, %p31
    %p33 = scmp.ne.s32.totalorder %s22, %s23
    %p34 = scmp.eq.s32.totalorder %s14, 0
    %p35 = por %p33, %p34
    %p36 = scmp.ne.s32.totalorder %s22, %s23
    %p37 = scmp.eq.s32.totalorder %s15, 1
    %p38 = por %p36, %p37
    %p40 = scmp.ne.s32.totalorder %s23, %s39
    %p41 = scmp.eq.s32.totalorder %s15, 0
    %p42 = por %p40, %p41
    %s44 = sadd.s32 %s43, 1
    %p47 = scmp.eq.s32.totalorder %s9, 1
    %p48 = scmp.ne.s32.totalorder %s43, %s45
    %p49 = scmp.eq.s32.totalorder %s9, 0
    %p50 = por %p48, %p49
    %p51 = scmp.ne.s32.totalorder %s43, %s45
    %p52 = scmp.eq.s32.totalorder %s14, 1
    %p53 = por %p51, %p52
    %p54 = scmp.ne.s32.totalorder %s45, %s46
    %p55 = scmp.eq.s32.totalorder %s14, 0
    %p56 = por %p54, %p55
    %p57 = scmp.ne.s32.totalorder %s45, %s46
    %p58 = scmp.eq.s32.totalorder %s15, 1
    %p59 = por %p57, %p58
    %p61 = scmp.ne.s32.totalorder %s46, %s60
    %p62 = scmp.eq.s32.totalorder %s15, 0
    %p63 = por %p61, %p62
    %s65 = sadd.s32 %s64, 1
    %p68 = scmp.eq.s32.totalorder %s9, 1
    %p69 = scmp.ne.s32.totalorder %s64, %s66
    %p70 = scmp.eq.s32.totalorder %s9, 0
    %p71 = por %p69, %p70
    %p72 = scmp.ne.s32.totalorder %s64, %s66
    %p73 = scmp.eq.s32.totalorder %s14, 1
    %p74 = por %p72, %p73
    %p75 = scmp.ne.s32.totalorder %s66, %s67
    %p76 = scmp.eq.s32.totalorder %s14, 0
    %p77 = por %p75, %p76
    %p78 = scmp.ne.s32.totalorder %s66, %s67
    %p79 = scmp.eq.s32.totalorder %s15, 1
    %p80 = por %p78, %p79
    %p82 = scmp.ne.s32.totalorder %s67, %s81
    %p83 = scmp.eq.s32.totalorder %s15, 0
    %p84 = por %p82, %p83
    %s85 = ssub.s32 %s9, %s16
    %p86 = scmp.eq.s32.totalorder %s85, 0
    %s88 = sadd.s32 %s87, 1
    %s89 = scalar_select %p86, %s87, %s88
    %p92 = pneg %p86
    %p93 = scmp.eq.s32.totalorder %s9, 1
    %p94 = por %p92, %p93
    %p95 = scmp.ne.s32.totalorder %s87, %s90
    %p96 = scmp.eq.s32.totalorder %s9, 0
    %p97 = por %p95, %p96
    %p98 = scmp.ne.s32.totalorder %s87, %s90
    %p99 = scmp.eq.s32.totalorder %s14, 1
    %p100 = por %p98, %p99
    %p101 = scmp.ne.s32.totalorder %s90, %s91
    %p102 = scmp.eq.s32.totalorder %s14, 0
    %p103 = por %p101, %p102
    %p104 = scmp.ne.s32.totalorder %s90, %s91
    %p105 = scmp.eq.s32.totalorder %s15, 1
    %p106 = por %p104, %p105
    %p108 = scmp.ne.s32.totalorder %s91, %s107
    %p109 = scmp.eq.s32.totalorder %s15, 0
    %p110 = por %p108, %p109
    %p111 = scmp.le.s32.totalorder 1, %s9
    %p112 = scmp.lt.s32.totalorder %s9, 3
    %p113 = pnand %p111, %p112
    %p114 = pneg %p113
    // Predicated region
    $region9: #{cifar10_forward.4} parent=5 // pred_check
      _
    $region10: #{cifar10_forward.4} parent=5 // pred_check_branch
      %116 = sbr.rel (%p113) target = $region12
    $region11: #{cifar10_forward.4} parent=5 // pred_region
      %s117 = ssub.s32 %s9, 1
      // Predicated region
      $region13: #{cifar10_forward.4} parent=11 // pred_check
        %p118 = pneg %p56
      $region14: #{cifar10_forward.4} parent=11 // pred_check_branch
        %120 = sbr.rel (%p118) target = $region16
      $region15: #{cifar10_forward.4} parent=11 // pred_region
        _
      $region16: #{cifar10_forward.4} parent=11 // pred_fallthru
        _
      // Predicated region
      $region17: #{cifar10_forward.4} parent=11 // pred_check
        %p121 = pneg %p77
      $region18: #{cifar10_forward.4} parent=11 // pred_check_branch
        %123 = sbr.rel (%p121) target = $region20
      $region19: #{cifar10_forward.4} parent=11 // pred_region
        _
      $region20: #{cifar10_forward.4} parent=11 // pred_fallthru
        _
    $region12: #{cifar10_forward.4} parent=5 // pred_fallthru
      _
    %p124 = scmp.lt.s32.totalorder %s9, 2
    // Predicated region
    $region21: #{cifar10_forward.4} parent=5 // pred_check
      %p125 = pneg %p124
    $region22: #{cifar10_forward.4} parent=5 // pred_check_branch
      %127 = sbr.rel (%p125) target = $region24
    $region23: #{cifar10_forward.4} parent=5 // pred_region
      // Predicated region
      $region25: #{cifar10_forward.4} parent=23 // pred_check
        %p128 = pneg %p29
      $region26: #{cifar10_forward.4} parent=23 // pred_check_branch
        %130 = sbr.rel (%p128) target = $region28
      $region27: #{cifar10_forward.4} parent=23 // pred_region
        %s131 = smul.u32 32, %s9
        %p132 = scmp.lt.s32.totalorder %s131, 63
        %s133 = scalar_select %p132, %s131, 63
        %s134 = smul.addr %s133, 7
        %s135 = smul.addr %s134, 4
        %s136 = scalar_lea.vmem %s0, %s135
        %s137 = smul.u32 32, %s9
      $region28: #{cifar10_forward.4} parent=23 // pred_fallthru
        _
    $region24: #{cifar10_forward.4} parent=5 // pred_fallthru
      _
    %p138 = scmp.le.s32.totalorder 1, %s9
    %p139 = scmp.lt.s32.totalorder %s9, 3
    %p140 = pnand %p138, %p139
    %p141 = pneg %p140
    // Predicated region
    $region29: #{cifar10_forward.4} parent=5 // pred_check
      _
    $region30: #{cifar10_forward.4} parent=5 // pred_check_branch
      %143 = sbr.rel (%p140) target = $region32
    $region31: #{cifar10_forward.4} parent=5 // pred_region
      %s144 = ssub.s32 %s9, 1
      %s145 = smul.u32 32, %s14
      %p146 = scmp.lt.s32.totalorder %s145, 63
      %s147 = scalar_select %p146, %s145, 63
      %s148 = smul.addr %s147, 7
      %s149 = smul.addr %s148, 4
      %s150 = scalar_lea.vmem %s0, %s149
      %p151 = pneg %p35
      %p152 = pneg %p32
      %p153 = pneg %p56
      %p154 = pneg %p53
      %p155 = pneg %p77
      %p156 = pneg %p74
      %p157 = pneg %p103
      %p158 = pneg %p100
      %s159 = smul.u32 8, %s14
      %p160 = scmp.lt.s32.totalorder %s159, 15
      %s161 = scalar_select %p160, %s159, 15
      %s162 = smul.addr %s161, 4
      %s163 = scalar_lea.vmem %s3, %s162
      %s164 = smul.u32 32, %s14
      %p165 = scmp.lt.s32.totalorder %s164, 63
      %s166 = scalar_select %p165, %s164, 63
      %s167 = smul.addr %s166, 7
      %s168 = smul.addr %s167, 4
      %s169 = scalar_lea.vmem %s0, %s168
      %s170 = smul.u32 32, %s14
      %s171 = smul.u32 8, %s14
      %p172 = scmp.lt.s32.totalorder %s171, 15
      %s173 = scalar_select %p172, %s171, 15
      %s174 = smul.addr %s173, 4
      %s175 = scalar_lea.vmem %s3, %s174
      %s176 = smul.u32 8, %s14
      %s178 = smul.u32 0, 7
      %s179 = smul.addr %s178, 4
      %s180 = scalar_lea.vmem %s169, %s179
      %v181 = vld [vmem:[%s180] sm:$0xff]
      %v182 = vld [vmem:[%s180 + $0x8] sm:$0xff]
      %v183 = vld [vmem:[%s180 + $0x10] sm:$0xff]
      %v184 = vld [vmem:[%s180 + $0x18] sm:$0xf]
      %v185 = vld [vmem:[%s180 + $0x1c] sm:$0xff]
      %v186 = vld [vmem:[%s180 + $0x24] sm:$0xff]
      %v187 = vld [vmem:[%s180 + $0x2c] sm:$0xff]
      %v188 = vld [vmem:[%s180 + $0x34] sm:$0xf]
      %v189 = vld [vmem:[%s180 + $0x38] sm:$0xff]
      %v190 = vld [vmem:[%s180 + $0x40] sm:$0xff]
      %v191 = vld [vmem:[%s180 + $0x48] sm:$0xff]
      %v192 = vld [vmem:[%s180 + $0x50] sm:$0xf]
      %v193 = vld [vmem:[%s180 + $0x54] sm:$0xff]
      %v194 = vld [vmem:[%s180 + $0x5c] sm:$0xff]
      %v195 = vld [vmem:[%s180 + $0x64] sm:$0xff]
      %v196 = vld [vmem:[%s180 + $0x6c] sm:$0xf]
      %v197 = vld [vmem:[%s180 + $0x70] sm:$0xff]
      %v198 = vld [vmem:[%s180 + $0x78] sm:$0xff]
      %v199 = vld [vmem:[%s180 + $0x80] sm:$0xff]
      %v200 = vld [vmem:[%s180 + $0x88] sm:$0xf]
      %v201 = vld [vmem:[%s180 + $0x8c] sm:$0xff]
      %v202 = vld [vmem:[%s180 + $0x94] sm:$0xff]
      %v203 = vld [vmem:[%s180 + $0x9c] sm:$0xff]
      %v204 = vld [vmem:[%s180 + $0xa4] sm:$0xf]
      %v205 = vld [vmem:[%s180 + $0xa8] sm:$0xff]
      %v206 = vld [vmem:[%s180 + $0xb0] sm:$0xff]
      %v207 = vld [vmem:[%s180 + $0xb8] sm:$0xff]
      %v208 = vld [vmem:[%s180 + $0xc0] sm:$0xf]
      %v209 = vld [vmem:[%s180 + $0xc4] sm:$0xff]
      %v210 = vld [vmem:[%s180 + $0xcc] sm:$0xff]
      %v211 = vld [vmem:[%s180 + $0xd4] sm:$0xff]
      %v212 = vld [vmem:[%s180 + $0xdc] sm:$0xf]
      %v213 = vld [vmem:[%s1] sm:$0xf]
      %v214 = vld [vmem:[%s1 + $0x4] sm:$0xf]
      %v215 = vld [vmem:[%s1 + $0x8] sm:$0xf]
      %v216 = vld [vmem:[%s1 + $0xc] sm:$0xf]
      %v217 = vld [vmem:[%s1 + $0x10] sm:$0xf]
      %v218 = vld [vmem:[%s1 + $0x14] sm:$0xf]
      %v219 = vld [vmem:[%s1 + $0x18] sm:$0xf]
      %v220 = vld [vmem:[%s1 + $0x1c] sm:$0xf]
      %v221 = vld [vmem:[%s1 + $0x20] sm:$0xf]
      %v222 = vld [vmem:[%s1 + $0x24] sm:$0xf]
      %v223 = vld [vmem:[%s1 + $0x28] sm:$0xf]
      %v224 = vld [vmem:[%s1 + $0x2c] sm:$0xf]
      %v225 = vld [vmem:[%s1 + $0x30] sm:$0xf]
      %v226 = vld [vmem:[%s1 + $0x34] sm:$0xf]
      %v227 = vld [vmem:[%s1 + $0x38] sm:$0xf]
      %v228 = vld [vmem:[%s1 + $0x3c] sm:$0xf]
      %v229 = vld [vmem:[%s1 + $0x40] sm:$0xf]
      %v230 = vld [vmem:[%s1 + $0x44] sm:$0xf]
      %v231 = vld [vmem:[%s1 + $0x48] sm:$0xf]
      %v232 = vld [vmem:[%s1 + $0x4c] sm:$0xf]
      %v233 = vld [vmem:[%s1 + $0x50] sm:$0xf]
      %v234 = vld [vmem:[%s1 + $0x54] sm:$0xf]
      %v235 = vld [vmem:[%s1 + $0x58] sm:$0xf]
      %v236 = vld [vmem:[%s1 + $0x5c] sm:$0xf]
      %v237 = vld [vmem:[%s1 + $0x60] sm:$0xf]
      %v238 = vld [vmem:[%s1 + $0x64] sm:$0xf]
      %v239 = vld [vmem:[%s1 + $0x68] sm:$0xf]
      %v240 = vld [vmem:[%s1 + $0x6c] sm:$0xf]
      %v241 = vld [vmem:[%s1 + $0x70] sm:$0xf]
      %v242 = vld [vmem:[%s1 + $0x74] sm:$0xf]
      %v243 = vld [vmem:[%s1 + $0x78] sm:$0xf]
      %v244 = vld [vmem:[%s1 + $0x7c] sm:$0xf]
      %v245 = vld [vmem:[%s1 + $0x80] sm:$0xf]
      %v246 = vld [vmem:[%s1 + $0x84] sm:$0xf]
      %v247 = vld [vmem:[%s1 + $0x88] sm:$0xf]
      %v248 = vld [vmem:[%s1 + $0x8c] sm:$0xf]
      %v249 = vld [vmem:[%s1 + $0x90] sm:$0xf]
      %v250 = vld [vmem:[%s1 + $0x94] sm:$0xf]
      %v251 = vld [vmem:[%s1 + $0x98] sm:$0xf]
      %v252 = vld [vmem:[%s1 + $0x9c] sm:$0xf]
      %v253 = vld [vmem:[%s1 + $0xa0] sm:$0xf]
      %v254 = vld [vmem:[%s1 + $0xa4] sm:$0xf]
      %v255 = vld [vmem:[%s1 + $0xa8] sm:$0xf]
      %v256 = vld [vmem:[%s1 + $0xac] sm:$0xf]
      %v257 = vld [vmem:[%s1 + $0xb0] sm:$0xf]
      %v258 = vld [vmem:[%s1 + $0xb4] sm:$0xf]
      %v259 = vld [vmem:[%s1 + $0xb8] sm:$0xf]
      %v260 = vld [vmem:[%s1 + $0xbc] sm:$0xf]
      %v261 = vld [vmem:[%s1 + $0xc0] sm:$0xf]
      %v262 = vld [vmem:[%s1 + $0xc4] sm:$0xf]
      %v263 = vld [vmem:[%s1 + $0xc8] sm:$0xf]
      %v264 = vld [vmem:[%s1 + $0xcc] sm:$0xf]
      %v265 = vld [vmem:[%s1 + $0xd0] sm:$0xf]
      %v266 = vld [vmem:[%s1 + $0xd4] sm:$0xf]
      %v267 = vld [vmem:[%s1 + $0xd8] sm:$0xf]
      %v268 = vld [vmem:[%s1 + $0xdc] sm:$0xf]
      %v269 = vld [vmem:[%s1 + $0xe0] sm:$0xf]
      %v270 = vld [vmem:[%s1 + $0xe4] sm:$0xf]
      %v271 = vld [vmem:[%s1 + $0xe8] sm:$0xf]
      %v272 = vld [vmem:[%s1 + $0xec] sm:$0xf]
      %v273 = vld [vmem:[%s1 + $0xf0] sm:$0xf]
      %v274 = vld [vmem:[%s1 + $0xf4] sm:$0xf]
      %v275 = vld [vmem:[%s1 + $0xf8] sm:$0xf]
      %v276 = vld [vmem:[%s1 + $0xfc] sm:$0xf]
      %v277 = vld [vmem:[%s1 + $0x100] sm:$0xf]
      %v278 = vld [vmem:[%s1 + $0x104] sm:$0xf]
      %v279 = vld [vmem:[%s1 + $0x108] sm:$0xf]
      %v280 = vld [vmem:[%s1 + $0x10c] sm:$0xf]
      %v281 = vld [vmem:[%s1 + $0x110] sm:$0xf]
      %v282 = vld [vmem:[%s1 + $0x114] sm:$0xf]
      %v283 = vld [vmem:[%s1 + $0x118] sm:$0xf]
      %v284 = vld [vmem:[%s1 + $0x11c] sm:$0xf]
      %v285 = vld [vmem:[%s1 + $0x120] sm:$0xf]
      %v286 = vld [vmem:[%s1 + $0x124] sm:$0xf]
      %v287 = vld [vmem:[%s1 + $0x128] sm:$0xf]
      %v288 = vld [vmem:[%s1 + $0x12c] sm:$0xf]
      %v289 = vld [vmem:[%s1 + $0x130] sm:$0xf]
      %v290 = vld [vmem:[%s1 + $0x134] sm:$0xf]
      %v291 = vld [vmem:[%s1 + $0x138] sm:$0xf]
      %v292 = vld [vmem:[%s1 + $0x13c] sm:$0xf]
      %v293 = vld [vmem:[%s1 + $0x140] sm:$0xf]
      %v294 = vld [vmem:[%s1 + $0x144] sm:$0xf]
      %v295 = vld [vmem:[%s1 + $0x148] sm:$0xf]
      %v296 = vld [vmem:[%s1 + $0x14c] sm:$0xf]
      %v297 = vld [vmem:[%s1 + $0x150] sm:$0xf]
      %v298 = vld [vmem:[%s1 + $0x154] sm:$0xf]
      %v299 = vld [vmem:[%s1 + $0x158] sm:$0xf]
      %v300 = vld [vmem:[%s1 + $0x15c] sm:$0xf]
      %v301 = vld [vmem:[%s1 + $0x160] sm:$0xf]
      %v302 = vld [vmem:[%s1 + $0x164] sm:$0xf]
      %v303 = vld [vmem:[%s1 + $0x168] sm:$0xf]
      %v304 = vld [vmem:[%s1 + $0x16c] sm:$0xf]
      %v305 = vld [vmem:[%s1 + $0x170] sm:$0xf]
      %v306 = vld [vmem:[%s1 + $0x174] sm:$0xf]
      %v307 = vld [vmem:[%s1 + $0x178] sm:$0xf]
      %v308 = vld [vmem:[%s1 + $0x17c] sm:$0xf]
      %v309 = vld [vmem:[%s1 + $0x180] sm:$0xf]
      %v310 = vld [vmem:[%s1 + $0x184] sm:$0xf]
      %v311 = vld [vmem:[%s1 + $0x188] sm:$0xf]
      %v312 = vld [vmem:[%s1 + $0x18c] sm:$0xf]
      %v313 = vld [vmem:[%s1 + $0x190] sm:$0xf]
      %v314 = vld [vmem:[%s1 + $0x194] sm:$0xf]
      %v315 = vld [vmem:[%s1 + $0x198] sm:$0xf]
      %v316 = vld [vmem:[%s1 + $0x19c] sm:$0xf]
      %v317 = vld [vmem:[%s1 + $0x1a0] sm:$0xf]
      %v318 = vld [vmem:[%s1 + $0x1a4] sm:$0xf]
      %v319 = vld [vmem:[%s1 + $0x1a8] sm:$0xf]
      %v320 = vld [vmem:[%s1 + $0x1ac] sm:$0xf]
      %v321 = vld [vmem:[%s1 + $0x1b0] sm:$0xf]
      %v322 = vld [vmem:[%s1 + $0x1b4] sm:$0xf]
      %v323 = vld [vmem:[%s1 + $0x1b8] sm:$0xf]
      %v324 = vld [vmem:[%s1 + $0x1bc] sm:$0xf]
      %v357 = vunpack.c.l.b16 %v181
      %v358 = vunpack.c.h.b16 %v181
      %v359 = vunpack.c.l.b16 %v182
      %v360 = vunpack.c.h.b16 %v182
      %v361 = vunpack.c.l.b16 %v183
      %v362 = vunpack.c.h.b16 %v183
      %v363 = vunpack.c.l.b16 %v184
      %v364 = vunpack.c.l.b16 %v185
      %v365 = vunpack.c.h.b16 %v185
      %v366 = vunpack.c.l.b16 %v186
      %v367 = vunpack.c.h.b16 %v186
      %v368 = vunpack.c.l.b16 %v187
      %v369 = vunpack.c.h.b16 %v187
      %v370 = vunpack.c.l.b16 %v188
      %v371 = vunpack.c.l.b16 %v189
      %v372 = vunpack.c.h.b16 %v189
      %v373 = vunpack.c.l.b16 %v190
      %v374 = vunpack.c.h.b16 %v190
      %v375 = vunpack.c.l.b16 %v191
      %v376 = vunpack.c.h.b16 %v191
      %v377 = vunpack.c.l.b16 %v192
      %v378 = vunpack.c.l.b16 %v193
      %v379 = vunpack.c.h.b16 %v193
      %v380 = vunpack.c.l.b16 %v194
      %v381 = vunpack.c.h.b16 %v194
      %v382 = vunpack.c.l.b16 %v195
      %v383 = vunpack.c.h.b16 %v195
      %v384 = vunpack.c.l.b16 %v196
      %v385 = vunpack.c.l.b16 %v197
      %v386 = vunpack.c.h.b16 %v197
      %v387 = vunpack.c.l.b16 %v198
      %v388 = vunpack.c.h.b16 %v198
      %v389 = vunpack.c.l.b16 %v199
      %v390 = vunpack.c.h.b16 %v199
      %v391 = vunpack.c.l.b16 %v200
      %v392 = vunpack.c.l.b16 %v201
      %v393 = vunpack.c.h.b16 %v201
      %v394 = vunpack.c.l.b16 %v202
      %v395 = vunpack.c.h.b16 %v202
      %v396 = vunpack.c.l.b16 %v203
      %v397 = vunpack.c.h.b16 %v203
      %v398 = vunpack.c.l.b16 %v204
      %v399 = vunpack.c.l.b16 %v205
      %v400 = vunpack.c.h.b16 %v205
      %v401 = vunpack.c.l.b16 %v206
      %v402 = vunpack.c.h.b16 %v206
      %v403 = vunpack.c.l.b16 %v207
      %v404 = vunpack.c.h.b16 %v207
      %v405 = vunpack.c.l.b16 %v208
      %v406 = vunpack.c.l.b16 %v209
      %v407 = vunpack.c.h.b16 %v209
      %v408 = vunpack.c.l.b16 %v210
      %v409 = vunpack.c.h.b16 %v210
      %v410 = vunpack.c.l.b16 %v211
      %v411 = vunpack.c.h.b16 %v211
      %v412 = vunpack.c.l.b16 %v212
      %v413 = vpack.c.b16 %v364, %v357
      %v414 = vpack.c.b16 %v365, %v358
      %v415 = vpack.c.b16 %v366, %v359
      %v416 = vpack.c.b16 %v367, %v360
      %v417 = vpack.c.b16 %v368, %v361
      %v418 = vpack.c.b16 %v369, %v362
      %v419 = vpack.c.b16 %v370, %v363
      %v420 = vpack.c.b16 %v378, %v371
      %v421 = vpack.c.b16 %v379, %v372
      %v422 = vpack.c.b16 %v380, %v373
      %v423 = vpack.c.b16 %v381, %v374
      %v424 = vpack.c.b16 %v382, %v375
      %v425 = vpack.c.b16 %v383, %v376
      %v426 = vpack.c.b16 %v384, %v377
      %v427 = vpack.c.b16 %v392, %v385
      %v428 = vpack.c.b16 %v393, %v386
      %v429 = vpack.c.b16 %v394, %v387
      %v430 = vpack.c.b16 %v395, %v388
      %v431 = vpack.c.b16 %v396, %v389
      %v432 = vpack.c.b16 %v397, %v390
      %v433 = vpack.c.b16 %v398, %v391
      %v434 = vpack.c.b16 %v406, %v399
      %v435 = vpack.c.b16 %v407, %v400
      %v436 = vpack.c.b16 %v408, %v401
      %v437 = vpack.c.b16 %v409, %v402
      %v438 = vpack.c.b16 %v410, %v403
      %v439 = vpack.c.b16 %v411, %v404
      %v440 = vpack.c.b16 %v412, %v405
      %v581 = vunpack.c.l.b16 %v213
      %v582 = vunpack.c.l.b16 %v214
      %v583 = vunpack.c.l.b16 %v215
      %v584 = vunpack.c.l.b16 %v216
      %v585 = vunpack.c.l.b16 %v217
      %v586 = vunpack.c.l.b16 %v218
      %v587 = vunpack.c.l.b16 %v219
      %v588 = vunpack.c.l.b16 %v220
      %v589 = vunpack.c.l.b16 %v221
      %v590 = vunpack.c.l.b16 %v222
      %v591 = vunpack.c.l.b16 %v223
      %v592 = vunpack.c.l.b16 %v224
      %v593 = vunpack.c.l.b16 %v225
      %v594 = vunpack.c.l.b16 %v226
      %v595 = vunpack.c.l.b16 %v227
      %v596 = vunpack.c.l.b16 %v228
      %v597 = vunpack.c.l.b16 %v229
      %v598 = vunpack.c.l.b16 %v230
      %v599 = vunpack.c.l.b16 %v231
      %v600 = vunpack.c.l.b16 %v232
      %v601 = vunpack.c.l.b16 %v233
      %v602 = vunpack.c.l.b16 %v234
      %v603 = vunpack.c.l.b16 %v235
      %v604 = vunpack.c.l.b16 %v236
      %v605 = vunpack.c.l.b16 %v237
      %v606 = vunpack.c.l.b16 %v238
      %v607 = vunpack.c.l.b16 %v239
      %v608 = vunpack.c.l.b16 %v240
      %v609 = vunpack.c.l.b16 %v241
      %v610 = vunpack.c.l.b16 %v242
      %v611 = vunpack.c.l.b16 %v243
      %v612 = vunpack.c.l.b16 %v244
      %v613 = vunpack.c.l.b16 %v245
      %v614 = vunpack.c.l.b16 %v246
      %v615 = vunpack.c.l.b16 %v247
      %v616 = vunpack.c.l.b16 %v248
      %v617 = vunpack.c.l.b16 %v249
      %v618 = vunpack.c.l.b16 %v250
      %v619 = vunpack.c.l.b16 %v251
      %v620 = vunpack.c.l.b16 %v252
      %v621 = vunpack.c.l.b16 %v253
      %v622 = vunpack.c.l.b16 %v254
      %v623 = vunpack.c.l.b16 %v255
      %v624 = vunpack.c.l.b16 %v256
      %v625 = vunpack.c.l.b16 %v257
      %v626 = vunpack.c.l.b16 %v258
      %v627 = vunpack.c.l.b16 %v259
      %v628 = vunpack.c.l.b16 %v260
      %v629 = vunpack.c.l.b16 %v261
      %v630 = vunpack.c.l.b16 %v262
      %v631 = vunpack.c.l.b16 %v263
      %v632 = vunpack.c.l.b16 %v264
      %v633 = vunpack.c.l.b16 %v265
      %v634 = vunpack.c.l.b16 %v266
      %v635 = vunpack.c.l.b16 %v267
      %v636 = vunpack.c.l.b16 %v268
      %v637 = vunpack.c.l.b16 %v269
      %v638 = vunpack.c.l.b16 %v270
      %v639 = vunpack.c.l.b16 %v271
      %v640 = vunpack.c.l.b16 %v272
      %v641 = vunpack.c.l.b16 %v273
      %v642 = vunpack.c.l.b16 %v274
      %v643 = vunpack.c.l.b16 %v275
      %v644 = vunpack.c.l.b16 %v276
      %v645 = vunpack.c.l.b16 %v277
      %v646 = vunpack.c.l.b16 %v278
      %v647 = vunpack.c.l.b16 %v279
      %v648 = vunpack.c.l.b16 %v280
      %v649 = vunpack.c.l.b16 %v281
      %v650 = vunpack.c.l.b16 %v282
      %v651 = vunpack.c.l.b16 %v283
      %v652 = vunpack.c.l.b16 %v284
      %v653 = vunpack.c.l.b16 %v285
      %v654 = vunpack.c.l.b16 %v286
      %v655 = vunpack.c.l.b16 %v287
      %v656 = vunpack.c.l.b16 %v288
      %v657 = vunpack.c.l.b16 %v289
      %v658 = vunpack.c.l.b16 %v290
      %v659 = vunpack.c.l.b16 %v291
      %v660 = vunpack.c.l.b16 %v292
      %v661 = vunpack.c.l.b16 %v293
      %v662 = vunpack.c.l.b16 %v294
      %v663 = vunpack.c.l.b16 %v295
      %v664 = vunpack.c.l.b16 %v296
      %v665 = vunpack.c.l.b16 %v297
      %v666 = vunpack.c.l.b16 %v298
      %v667 = vunpack.c.l.b16 %v299
      %v668 = vunpack.c.l.b16 %v300
      %v669 = vunpack.c.l.b16 %v301
      %v670 = vunpack.c.l.b16 %v302
      %v671 = vunpack.c.l.b16 %v303
      %v672 = vunpack.c.l.b16 %v304
      %v673 = vunpack.c.l.b16 %v305
      %v674 = vunpack.c.l.b16 %v306
      %v675 = vunpack.c.l.b16 %v307
      %v676 = vunpack.c.l.b16 %v308
      %v677 = vunpack.c.l.b16 %v309
      %v678 = vunpack.c.l.b16 %v310
      %v679 = vunpack.c.l.b16 %v311
      %v680 = vunpack.c.l.b16 %v312
      %v681 = vunpack.c.l.b16 %v313
      %v682 = vunpack.c.l.b16 %v314
      %v683 = vunpack.c.l.b16 %v315
      %v684 = vunpack.c.l.b16 %v316
      %v685 = vunpack.c.l.b16 %v317
      %v686 = vunpack.c.l.b16 %v318
      %v687 = vunpack.c.l.b16 %v319
      %v688 = vunpack.c.l.b16 %v320
      %v689 = vunpack.c.l.b16 %v321
      %v690 = vunpack.c.l.b16 %v322
      %v691 = vunpack.c.l.b16 %v323
      %v692 = vunpack.c.l.b16 %v324
      %v693 = vpack.c.b16 %v582, %v581
      %v694 = vpack.c.b16 %v584, %v583
      %v695 = vpack.c.b16 %v586, %v585
      %v696 = vpack.c.b16 %v588, %v587
      %v697 = vpack.c.b16 %v590, %v589
      %v698 = vpack.c.b16 %v592, %v591
      %v699 = vpack.c.b16 %v594, %v593
      %v700 = vpack.c.b16 %v596, %v595
      %v701 = vpack.c.b16 %v598, %v597
      %v702 = vpack.c.b16 %v600, %v599
      %v703 = vpack.c.b16 %v602, %v601
      %v704 = vpack.c.b16 %v604, %v603
      %v705 = vpack.c.b16 %v606, %v605
      %v706 = vpack.c.b16 %v608, %v607
      %v707 = vpack.c.b16 %v610, %v609
      %v708 = vpack.c.b16 %v612, %v611
      %v709 = vpack.c.b16 %v614, %v613
      %v710 = vpack.c.b16 %v616, %v615
      %v711 = vpack.c.b16 %v618, %v617
      %v712 = vpack.c.b16 %v620, %v619
      %v713 = vpack.c.b16 %v622, %v621
      %v714 = vpack.c.b16 %v624, %v623
      %v715 = vpack.c.b16 %v626, %v625
      %v716 = vpack.c.b16 %v628, %v627
      %v717 = vpack.c.b16 %v630, %v629
      %v718 = vpack.c.b16 %v632, %v631
      %v719 = vpack.c.b16 %v634, %v633
      %v720 = vpack.c.b16 %v636, %v635
      %v721 = vpack.c.b16 %v638, %v637
      %v722 = vpack.c.b16 %v640, %v639
      %v723 = vpack.c.b16 %v642, %v641
      %v724 = vpack.c.b16 %v644, %v643
      %v725 = vpack.c.b16 %v646, %v645
      %v726 = vpack.c.b16 %v648, %v647
      %v727 = vpack.c.b16 %v650, %v649
      %v728 = vpack.c.b16 %v652, %v651
      %v729 = vpack.c.b16 %v654, %v653
      %v730 = vpack.c.b16 %v656, %v655
      %v731 = vpack.c.b16 %v658, %v657
      %v732 = vpack.c.b16 %v660, %v659
      %v733 = vpack.c.b16 %v662, %v661
      %v734 = vpack.c.b16 %v664, %v663
      %v735 = vpack.c.b16 %v666, %v665
      %v736 = vpack.c.b16 %v668, %v667
      %v737 = vpack.c.b16 %v670, %v669
      %v738 = vpack.c.b16 %v672, %v671
      %v739 = vpack.c.b16 %v674, %v673
      %v740 = vpack.c.b16 %v676, %v675
      %v741 = vpack.c.b16 %v678, %v677
      %v742 = vpack.c.b16 %v680, %v679
      %v743 = vpack.c.b16 %v682, %v681
      %v744 = vpack.c.b16 %v684, %v683
      %v745 = vpack.c.b16 %v686, %v685
      %v746 = vpack.c.b16 %v688, %v687
      %v747 = vpack.c.b16 %v690, %v689
      %v748 = vpack.c.b16 %v692, %v691
      %805 = vmatprep.subr.bf16.mxu0 0
      %806 = vmatpush1.bf16.msra.mxu0 %v700
      %807 = vmatprep.subr.bf16.mxu0 0
      %808 = vmatpush1.bf16.msra.mxu0 %v699
      %809 = vmatprep.subr.bf16.mxu0 0
      %810 = vmatpush1.bf16.msra.mxu0 %v698
      %811 = vmatprep.subr.bf16.mxu0 0
      %812 = vmatpush1.bf16.msra.mxu0 %v697
      %813 = vmatprep.subr.bf16.mxu0 0
      %814 = vmatpush1.bf16.msra.mxu0 %v696
      %815 = vmatprep.subr.bf16.mxu0 0
      %816 = vmatpush1.bf16.msra.mxu0 %v695
      %817 = vmatprep.subr.bf16.mxu0 0
      %818 = vmatpush1.bf16.msra.mxu0 %v694
      %819 = vmatprep.subr.bf16.mxu0 0
      %820 = vmatpush1.bf16.msra.mxu0 %v693
      %821 = vmatprep.subr.bf16.mxu0 0
      %822 = vmatpush2.bf16.msra.mxu0 %v708
      %823 = vmatprep.subr.bf16.mxu0 0
      %824 = vmatpush2.bf16.msra.mxu0 %v707
      %825 = vmatprep.subr.bf16.mxu0 0
      %826 = vmatpush2.bf16.msra.mxu0 %v706
      %827 = vmatprep.subr.bf16.mxu0 0
      %828 = vmatpush2.bf16.msra.mxu0 %v705
      %829 = vmatprep.subr.bf16.mxu0 0
      %830 = vmatpush2.bf16.msra.mxu0 %v704
      %831 = vmatprep.subr.bf16.mxu0 0
      %832 = vmatpush2.bf16.msra.mxu0 %v703
      %833 = vmatprep.subr.bf16.mxu0 0
      %834 = vmatpush2.bf16.msra.mxu0 %v702
      %835 = vmatprep.subr.bf16.mxu0 0
      %836 = vmatpush2.bf16.msra.mxu0 %v701
      %837 = vmatprep.mubr.bf16.mxu0 %v414
      %838 = vmatmul.mubr.bf16.gmra.mxu0 %v413
      %v839 = vpop.f32.mrf.mxu0
      %v840 = vadd.f32 0.0, %v839
      %v841 = vpop.f32.mrf.mxu0
      %v842 = vpop.f32.mrf.mxu0
      %v843 = vadd.f32 0.0, %v842
      %v844 = vpop.f32.mrf.mxu0
      %845 = vmatprep.mubr.bf16.mxu0 %v421
      %846 = vmatmul.mubr.bf16.gmra.mxu0 %v420
      %v847 = vpop.f32.mrf.mxu0
      %v848 = vadd.f32 0.0, %v847
      %v849 = vpop.f32.mrf.mxu0
      %v850 = vpop.f32.mrf.mxu0
      %v851 = vadd.f32 0.0, %v850
      %v852 = vpop.f32.mrf.mxu0
      %853 = vmatprep.mubr.bf16.mxu0 %v428
      %854 = vmatmul.mubr.bf16.gmra.mxu0 %v427
      %v855 = vpop.f32.mrf.mxu0
      %v856 = vadd.f32 0.0, %v855
      %v857 = vpop.f32.mrf.mxu0
      %v858 = vpop.f32.mrf.mxu0
      %v859 = vadd.f32 0.0, %v858
      %v860 = vpop.f32.mrf.mxu0
      %861 = vmatprep.mubr.bf16.mxu0 %v435
      %862 = vmatmul.mubr.bf16.gmra.mxu0 %v434
      %v863 = vpop.f32.mrf.mxu0
      %v864 = vadd.f32 0.0, %v863
      %v865 = vpop.f32.mrf.mxu0
      %v866 = vpop.f32.mrf.mxu0
      %v867 = vadd.f32 0.0, %v866
      %v868 = vpop.f32.mrf.mxu0
      %869 = vdwg.mxu0
      %870 = vmatprep.subr.bf16.mxu0 0
      %871 = vmatpush1.bf16.msra.mxu0 %v716
      %872 = vmatprep.subr.bf16.mxu0 0
      %873 = vmatpush1.bf16.msra.mxu0 %v715
      %874 = vmatprep.subr.bf16.mxu0 0
      %875 = vmatpush1.bf16.msra.mxu0 %v714
      %876 = vmatprep.subr.bf16.mxu0 0
      %877 = vmatpush1.bf16.msra.mxu0 %v713
      %878 = vmatprep.subr.bf16.mxu0 0
      %879 = vmatpush1.bf16.msra.mxu0 %v712
      %880 = vmatprep.subr.bf16.mxu0 0
      %881 = vmatpush1.bf16.msra.mxu0 %v711
      %882 = vmatprep.subr.bf16.mxu0 0
      %883 = vmatpush1.bf16.msra.mxu0 %v710
      %884 = vmatprep.subr.bf16.mxu0 0
      %885 = vmatpush1.bf16.msra.mxu0 %v709
      %886 = vmatprep.subr.bf16.mxu0 0
      %887 = vmatpush2.bf16.msra.mxu0 %v724
      %888 = vmatprep.subr.bf16.mxu0 0
      %889 = vmatpush2.bf16.msra.mxu0 %v723
      %890 = vmatprep.subr.bf16.mxu0 0
      %891 = vmatpush2.bf16.msra.mxu0 %v722
      %892 = vmatprep.subr.bf16.mxu0 0
      %893 = vmatpush2.bf16.msra.mxu0 %v721
      %894 = vmatprep.subr.bf16.mxu0 0
      %895 = vmatpush2.bf16.msra.mxu0 %v720
      %896 = vmatprep.subr.bf16.mxu0 0
      %897 = vmatpush2.bf16.msra.mxu0 %v719
      %898 = vmatprep.subr.bf16.mxu0 0
      %899 = vmatpush2.bf16.msra.mxu0 %v718
      %900 = vmatprep.subr.bf16.mxu0 0
      %901 = vmatpush2.bf16.msra.mxu0 %v717
      %902 = vmatprep.mubr.bf16.mxu0 %v416
      %903 = vmatmul.mubr.bf16.gmra.mxu0 %v415
      %v904 = vpop.f32.mrf.mxu0
      %v905 = vadd.f32 %v840, %v904
      %v906 = vpop.f32.mrf.mxu0
      %v907 = vpop.f32.mrf.mxu0
      %v908 = vadd.f32 %v843, %v907
      %v909 = vpop.f32.mrf.mxu0
      %910 = vmatprep.mubr.bf16.mxu0 %v423
      %911 = vmatmul.mubr.bf16.gmra.mxu0 %v422
      %v912 = vpop.f32.mrf.mxu0
      %v913 = vadd.f32 %v848, %v912
      %v914 = vpop.f32.mrf.mxu0
      %v915 = vpop.f32.mrf.mxu0
      %v916 = vadd.f32 %v851, %v915
      %v917 = vpop.f32.mrf.mxu0
      %918 = vmatprep.mubr.bf16.mxu0 %v430
      %919 = vmatmul.mubr.bf16.gmra.mxu0 %v429
      %v920 = vpop.f32.mrf.mxu0
      %v921 = vadd.f32 %v856, %v920
      %v922 = vpop.f32.mrf.mxu0
      %v923 = vpop.f32.mrf.mxu0
      %v924 = vadd.f32 %v859, %v923
      %v925 = vpop.f32.mrf.mxu0
      %926 = vmatprep.mubr.bf16.mxu0 %v437
      %927 = vmatmul.mubr.bf16.gmra.mxu0 %v436
      %v928 = vpop.f32.mrf.mxu0
      %v929 = vadd.f32 %v864, %v928
      %v930 = vpop.f32.mrf.mxu0
      %v931 = vpop.f32.mrf.mxu0
      %v932 = vadd.f32 %v867, %v931
      %v933 = vpop.f32.mrf.mxu0
      %934 = vdwg.mxu0
      %935 = vmatprep.subr.bf16.mxu0 0
      %936 = vmatpush1.bf16.msra.mxu0 %v732
      %937 = vmatprep.subr.bf16.mxu0 0
      %938 = vmatpush1.bf16.msra.mxu0 %v731
      %939 = vmatprep.subr.bf16.mxu0 0
      %940 = vmatpush1.bf16.msra.mxu0 %v730
      %941 = vmatprep.subr.bf16.mxu0 0
      %942 = vmatpush1.bf16.msra.mxu0 %v729
      %943 = vmatprep.subr.bf16.mxu0 0
      %944 = vmatpush1.bf16.msra.mxu0 %v728
      %945 = vmatprep.subr.bf16.mxu0 0
      %946 = vmatpush1.bf16.msra.mxu0 %v727
      %947 = vmatprep.subr.bf16.mxu0 0
      %948 = vmatpush1.bf16.msra.mxu0 %v726
      %949 = vmatprep.subr.bf16.mxu0 0
      %950 = vmatpush1.bf16.msra.mxu0 %v725
      %951 = vmatprep.subr.bf16.mxu0 0
      %952 = vmatpush2.bf16.msra.mxu0 %v740
      %953 = vmatprep.subr.bf16.mxu0 0
      %954 = vmatpush2.bf16.msra.mxu0 %v739
      %955 = vmatprep.subr.bf16.mxu0 0
      %956 = vmatpush2.bf16.msra.mxu0 %v738
      %957 = vmatprep.subr.bf16.mxu0 0
      %958 = vmatpush2.bf16.msra.mxu0 %v737
      %959 = vmatprep.subr.bf16.mxu0 0
      %960 = vmatpush2.bf16.msra.mxu0 %v736
      %961 = vmatprep.subr.bf16.mxu0 0
      %962 = vmatpush2.bf16.msra.mxu0 %v735
      %963 = vmatprep.subr.bf16.mxu0 0
      %964 = vmatpush2.bf16.msra.mxu0 %v734
      %965 = vmatprep.subr.bf16.mxu0 0
      %966 = vmatpush2.bf16.msra.mxu0 %v733
      %967 = vmatprep.mubr.bf16.mxu0 %v418
      %968 = vmatmul.mubr.bf16.gmra.mxu0 %v417
      %v969 = vpop.f32.mrf.mxu0
      %v970 = vadd.f32 %v905, %v969
      %v971 = vpop.f32.mrf.mxu0
      %v972 = vpop.f32.mrf.mxu0
      %v973 = vadd.f32 %v908, %v972
      %v974 = vpop.f32.mrf.mxu0
      %975 = vmatprep.mubr.bf16.mxu0 %v425
      %976 = vmatmul.mubr.bf16.gmra.mxu0 %v424
      %v977 = vpop.f32.mrf.mxu0
      %v978 = vadd.f32 %v913, %v977
      %v979 = vpop.f32.mrf.mxu0
      %v980 = vpop.f32.mrf.mxu0
      %v981 = vadd.f32 %v916, %v980
      %v982 = vpop.f32.mrf.mxu0
      %983 = vmatprep.mubr.bf16.mxu0 %v432
      %984 = vmatmul.mubr.bf16.gmra.mxu0 %v431
      %v985 = vpop.f32.mrf.mxu0
      %v986 = vadd.f32 %v921, %v985
      %v987 = vpop.f32.mrf.mxu0
      %v988 = vpop.f32.mrf.mxu0
      %v989 = vadd.f32 %v924, %v988
      %v990 = vpop.f32.mrf.mxu0
      %991 = vmatprep.mubr.bf16.mxu0 %v439
      %992 = vmatmul.mubr.bf16.gmra.mxu0 %v438
      %v993 = vpop.f32.mrf.mxu0
      %v994 = vadd.f32 %v929, %v993
      %v995 = vpop.f32.mrf.mxu0
      %v996 = vpop.f32.mrf.mxu0
      %v997 = vadd.f32 %v932, %v996
      %v998 = vpop.f32.mrf.mxu0
      %999 = vdwg.mxu0
      %1000 = vmatprep.subr.bf16.mxu0 0
      %1001 = vmatpush1.bf16.msra.mxu0 %v748
      %1002 = vmatprep.subr.bf16.mxu0 0
      %1003 = vmatpush1.bf16.msra.mxu0 %v747
      %1004 = vmatprep.subr.bf16.mxu0 0
      %1005 = vmatpush1.bf16.msra.mxu0 %v746
      %1006 = vmatprep.subr.bf16.mxu0 0
      %1007 = vmatpush1.bf16.msra.mxu0 %v745
      %1008 = vmatprep.subr.bf16.mxu0 0
      %1009 = vmatpush1.bf16.msra.mxu0 %v744
      %1010 = vmatprep.subr.bf16.mxu0 0
      %1011 = vmatpush1.bf16.msra.mxu0 %v743
      %1012 = vmatprep.subr.bf16.mxu0 0
      %1013 = vmatpush1.bf16.msra.mxu0 %v742
      %1014 = vmatprep.subr.bf16.mxu0 0
      %1015 = vmatpush1.bf16.msra.mxu0 %v741
      %1016 = vmatprep.subr.bf16.mxu0 0
      %1017 = vmatpush2.bf16.msra.mxu0 0
      %1018 = vmatprep.subr.bf16.mxu0 0
      %1019 = vmatpush2.bf16.msra.mxu0 0
      %1020 = vmatprep.subr.bf16.mxu0 0
      %1021 = vmatpush2.bf16.msra.mxu0 0
      %1022 = vmatprep.subr.bf16.mxu0 0
      %1023 = vmatpush2.bf16.msra.mxu0 0
      %1024 = vmatprep.subr.bf16.mxu0 0
      %1025 = vmatpush2.bf16.msra.mxu0 0
      %1026 = vmatprep.subr.bf16.mxu0 0
      %1027 = vmatpush2.bf16.msra.mxu0 0
      %1028 = vmatprep.subr.bf16.mxu0 0
      %1029 = vmatpush2.bf16.msra.mxu0 0
      %1030 = vmatprep.subr.bf16.mxu0 0
      %1031 = vmatpush2.bf16.msra.mxu0 0
      %1032 = vmatprep.mubr.bf16.mxu0 0
      %1033 = vmatmul.mubr.bf16.gmra.mxu0 %v419
      %v1034 = vpop.f32.mrf.mxu0
      %v1035 = vadd.f32 %v970, %v1034
      %v1036 = vpop.f32.mrf.mxu0
      %v1037 = vpop.f32.mrf.mxu0
      %v1038 = vadd.f32 %v973, %v1037
      %v1039 = vpop.f32.mrf.mxu0
      %1040 = vmatprep.mubr.bf16.mxu0 0
      %1041 = vmatmul.mubr.bf16.gmra.mxu0 %v426
      %v1042 = vpop.f32.mrf.mxu0
      %v1043 = vadd.f32 %v978, %v1042
      %v1044 = vpop.f32.mrf.mxu0
      %v1045 = vpop.f32.mrf.mxu0
      %v1046 = vadd.f32 %v981, %v1045
      %v1047 = vpop.f32.mrf.mxu0
      %1048 = vmatprep.mubr.bf16.mxu0 0
      %1049 = vmatmul.mubr.bf16.gmra.mxu0 %v433
      %v1050 = vpop.f32.mrf.mxu0
      %v1051 = vadd.f32 %v986, %v1050
      %v1052 = vpop.f32.mrf.mxu0
      %v1053 = vpop.f32.mrf.mxu0
      %v1054 = vadd.f32 %v989, %v1053
      %v1055 = vpop.f32.mrf.mxu0
      %1056 = vmatprep.mubr.bf16.mxu0 0
      %1057 = vmatmul.mubr.bf16.gmra.mxu0 %v440
      %v1058 = vpop.f32.mrf.mxu0
      %v1059 = vadd.f32 %v994, %v1058
      %v1060 = vpop.f32.mrf.mxu0
      %v1061 = vpop.f32.mrf.mxu0
      %v1062 = vadd.f32 %v997, %v1061
      %v1063 = vpop.f32.mrf.mxu0
      %1064 = vdwg.mxu0
      %v1065 = vmax.f32 %v1035, %v1043
      %v1066 = vmax.f32 %v1038, %v1046
      %v1067 = vmax.f32 %v1051, %v1059
      %v1068 = vmax.f32 %v1054, %v1062
      %v1069 = vmax.f32 %v1065, %v1067
      %v1070 = vmax.f32 %v1066, %v1068
      %v1071 = vld [vmem:[%s2] sm:$0x1]
      %v1073 = vlaneseq
      %v1074 = vshrl.u32 %v1073, 7
      %v1075 = vsub.s32 0, %v1074
      %v1076 = vrot.slane %v1071, %v1075
      %v1078 = vadd.f32 %v1069, %v1076
      %v1079 = vadd.f32 %v1070, %v1076
      %v1080 = vpack.c.bf16 %v1079, %v1078
      %v1082 = vunpack.c.l.b16 %v1080
      %v1083 = vunpack.c.h.b16 %v1080
      %v1084 = vpack.c.b16 %v1082, %v1082
      %v1085 = vpack.c.b16 %v1083, %v1083
      %1088 = vst [vmem:[%s175] sm:$0xf] %v1084
      %1089 = vst [vmem:[%s175 + $0x4] sm:$0xf] %v1085
      %s1090 = smul.u32 8, 7
      %s1091 = smul.addr %s1090, 4
      %s1092 = scalar_lea.vmem %s169, %s1091
      %v1093 = vld [vmem:[%s1092] sm:$0xff]
      %v1094 = vld [vmem:[%s1092 + $0x8] sm:$0xff]
      %v1095 = vld [vmem:[%s1092 + $0x10] sm:$0xff]
      %v1096 = vld [vmem:[%s1092 + $0x18] sm:$0xf]
      %v1097 = vld [vmem:[%s1092 + $0x1c] sm:$0xff]
      %v1098 = vld [vmem:[%s1092 + $0x24] sm:$0xff]
      %v1099 = vld [vmem:[%s1092 + $0x2c] sm:$0xff]
      %v1100 = vld [vmem:[%s1092 + $0x34] sm:$0xf]
      %v1101 = vld [vmem:[%s1092 + $0x38] sm:$0xff]
      %v1102 = vld [vmem:[%s1092 + $0x40] sm:$0xff]
      %v1103 = vld [vmem:[%s1092 + $0x48] sm:$0xff]
      %v1104 = vld [vmem:[%s1092 + $0x50] sm:$0xf]
      %v1105 = vld [vmem:[%s1092 + $0x54] sm:$0xff]
      %v1106 = vld [vmem:[%s1092 + $0x5c] sm:$0xff]
      %v1107 = vld [vmem:[%s1092 + $0x64] sm:$0xff]
      %v1108 = vld [vmem:[%s1092 + $0x6c] sm:$0xf]
      %v1109 = vld [vmem:[%s1092 + $0x70] sm:$0xff]
      %v1110 = vld [vmem:[%s1092 + $0x78] sm:$0xff]
      %v1111 = vld [vmem:[%s1092 + $0x80] sm:$0xff]
      %v1112 = vld [vmem:[%s1092 + $0x88] sm:$0xf]
      %v1113 = vld [vmem:[%s1092 + $0x8c] sm:$0xff]
      %v1114 = vld [vmem:[%s1092 + $0x94] sm:$0xff]
      %v1115 = vld [vmem:[%s1092 + $0x9c] sm:$0xff]
      %v1116 = vld [vmem:[%s1092 + $0xa4] sm:$0xf]
      %v1117 = vld [vmem:[%s1092 + $0xa8] sm:$0xff]
      %v1118 = vld [vmem:[%s1092 + $0xb0] sm:$0xff]
      %v1119 = vld [vmem:[%s1092 + $0xb8] sm:$0xff]
      %v1120 = vld [vmem:[%s1092 + $0xc0] sm:$0xf]
      %v1121 = vld [vmem:[%s1092 + $0xc4] sm:$0xff]
      %v1122 = vld [vmem:[%s1092 + $0xcc] sm:$0xff]
      %v1123 = vld [vmem:[%s1092 + $0xd4] sm:$0xff]
      %v1124 = vld [vmem:[%s1092 + $0xdc] sm:$0xf]
      %v1125 = vld [vmem:[%s1] sm:$0xf]
      %v1126 = vld [vmem:[%s1 + $0x4] sm:$0xf]
      %v1127 = vld [vmem:[%s1 + $0x8] sm:$0xf]
      %v1128 = vld [vmem:[%s1 + $0xc] sm:$0xf]
      %v1129 = vld [vmem:[%s1 + $0x10] sm:$0xf]
      %v1130 = vld [vmem:[%s1 + $0x14] sm:$0xf]
      %v1131 = vld [vmem:[%s1 + $0x18] sm:$0xf]
      %v1132 = vld [vmem:[%s1 + $0x1c] sm:$0xf]
      %v1133 = vld [vmem:[%s1 + $0x20] sm:$0xf]
      %v1134 = vld [vmem:[%s1 + $0x24] sm:$0xf]
      %v1135 = vld [vmem:[%s1 + $0x28] sm:$0xf]
      %v1136 = vld [vmem:[%s1 + $0x2c] sm:$0xf]
      %v1137 = vld [vmem:[%s1 + $0x30] sm:$0xf]
      %v1138 = vld [vmem:[%s1 + $0x34] sm:$0xf]
      %v1139 = vld [vmem:[%s1 + $0x38] sm:$0xf]
      %v1140 = vld [vmem:[%s1 + $0x3c] sm:$0xf]
      %v1141 = vld [vmem:[%s1 + $0x40] sm:$0xf]
      %v1142 = vld [vmem:[%s1 + $0x44] sm:$0xf]
      %v1143 = vld [vmem:[%s1 + $0x48] sm:$0xf]
      %v1144 = vld [vmem:[%s1 + $0x4c] sm:$0xf]
      %v1145 = vld [vmem:[%s1 + $0x50] sm:$0xf]
      %v1146 = vld [vmem:[%s1 + $0x54] sm:$0xf]
      %v1147 = vld [vmem:[%s1 + $0x58] sm:$0xf]
      %v1148 = vld [vmem:[%s1 + $0x5c] sm:$0xf]
      %v1149 = vld [vmem:[%s1 + $0x60] sm:$0xf]
      %v1150 = vld [vmem:[%s1 + $0x64] sm:$0xf]
      %v1151 = vld [vmem:[%s1 + $0x68] sm:$0xf]
      %v1152 = vld [vmem:[%s1 + $0x6c] sm:$0xf]
      %v1153 = vld [vmem:[%s1 + $0x70] sm:$0xf]
      %v1154 = vld [vmem:[%s1 + $0x74] sm:$0xf]
      %v1155 = vld [vmem:[%s1 + $0x78] sm:$0xf]
      %v1156 = vld [vmem:[%s1 + $0x7c] sm:$0xf]
      %v1157 = vld [vmem:[%s1 + $0x80] sm:$0xf]
      %v1158 = vld [vmem:[%s1 + $0x84] sm:$0xf]
      %v1159 = vld [vmem:[%s1 + $0x88] sm:$0xf]
      %v1160 = vld [vmem:[%s1 + $0x8c] sm:$0xf]
      %v1161 = vld [vmem:[%s1 + $0x90] sm:$0xf]
      %v1162 = vld [vmem:[%s1 + $0x94] sm:$0xf]
      %v1163 = vld [vmem:[%s1 + $0x98] sm:$0xf]
      %v1164 = vld [vmem:[%s1 + $0x9c] sm:$0xf]
      %v1165 = vld [vmem:[%s1 + $0xa0] sm:$0xf]
      %v1166 = vld [vmem:[%s1 + $0xa4] sm:$0xf]
      %v1167 = vld [vmem:[%s1 + $0xa8] sm:$0xf]
      %v1168 = vld [vmem:[%s1 + $0xac] sm:$0xf]
      %v1169 = vld [vmem:[%s1 + $0xb0] sm:$0xf]
      %v1170 = vld [vmem:[%s1 + $0xb4] sm:$0xf]
      %v1171 = vld [vmem:[%s1 + $0xb8] sm:$0xf]
      %v1172 = vld [vmem:[%s1 + $0xbc] sm:$0xf]
      %v1173 = vld [vmem:[%s1 + $0xc0] sm:$0xf]
      %v1174 = vld [vmem:[%s1 + $0xc4] sm:$0xf]
      %v1175 = vld [vmem:[%s1 + $0xc8] sm:$0xf]
      %v1176 = vld [vmem:[%s1 + $0xcc] sm:$0xf]
      %v1177 = vld [vmem:[%s1 + $0xd0] sm:$0xf]
      %v1178 = vld [vmem:[%s1 + $0xd4] sm:$0xf]
      %v1179 = vld [vmem:[%s1 + $0xd8] sm:$0xf]
      %v1180 = vld [vmem:[%s1 + $0xdc] sm:$0xf]
      %v1181 = vld [vmem:[%s1 + $0xe0] sm:$0xf]
      %v1182 = vld [vmem:[%s1 + $0xe4] sm:$0xf]
      %v1183 = vld [vmem:[%s1 + $0xe8] sm:$0xf]
      %v1184 = vld [vmem:[%s1 + $0xec] sm:$0xf]
      %v1185 = vld [vmem:[%s1 + $0xf0] sm:$0xf]
      %v1186 = vld [vmem:[%s1 + $0xf4] sm:$0xf]
      %v1187 = vld [vmem:[%s1 + $0xf8] sm:$0xf]
      %v1188 = vld [vmem:[%s1 + $0xfc] sm:$0xf]
      %v1189 = vld [vmem:[%s1 + $0x100] sm:$0xf]
      %v1190 = vld [vmem:[%s1 + $0x104] sm:$0xf]
      %v1191 = vld [vmem:[%s1 + $0x108] sm:$0xf]
      %v1192 = vld [vmem:[%s1 + $0x10c] sm:$0xf]
      %v1193 = vld [vmem:[%s1 + $0x110] sm:$0xf]
      %v1194 = vld [vmem:[%s1 + $0x114] sm:$0xf]
      %v1195 = vld [vmem:[%s1 + $0x118] sm:$0xf]
      %v1196 = vld [vmem:[%s1 + $0x11c] sm:$0xf]
      %v1197 = vld [vmem:[%s1 + $0x120] sm:$0xf]
      %v1198 = vld [vmem:[%s1 + $0x124] sm:$0xf]
      %v1199 = vld [vmem:[%s1 + $0x128] sm:$0xf]
      %v1200 = vld [vmem:[%s1 + $0x12c] sm:$0xf]
      %v1201 = vld [vmem:[%s1 + $0x130] sm:$0xf]
      %v1202 = vld [vmem:[%s1 + $0x134] sm:$0xf]
      %v1203 = vld [vmem:[%s1 + $0x138] sm:$0xf]
      %v1204 = vld [vmem:[%s1 + $0x13c] sm:$0xf]
      %v1205 = vld [vmem:[%s1 + $0x140] sm:$0xf]
      %v1206 = vld [vmem:[%s1 + $0x144] sm:$0xf]
      %v1207 = vld [vmem:[%s1 + $0x148] sm:$0xf]
      %v1208 = vld [vmem:[%s1 + $0x14c] sm:$0xf]
      %v1209 = vld [vmem:[%s1 + $0x150] sm:$0xf]
      %v1210 = vld [vmem:[%s1 + $0x154] sm:$0xf]
      %v1211 = vld [vmem:[%s1 + $0x158] sm:$0xf]
      %v1212 = vld [vmem:[%s1 + $0x15c] sm:$0xf]
      %v1213 = vld [vmem:[%s1 + $0x160] sm:$0xf]
      %v1214 = vld [vmem:[%s1 + $0x164] sm:$0xf]
      %v1215 = vld [vmem:[%s1 + $0x168] sm:$0xf]
      %v1216 = vld [vmem:[%s1 + $0x16c] sm:$0xf]
      %v1217 = vld [vmem:[%s1 + $0x170] sm:$0xf]
      %v1218 = vld [vmem:[%s1 + $0x174] sm:$0xf]
      %v1219 = vld [vmem:[%s1 + $0x178] sm:$0xf]
      %v1220 = vld [vmem:[%s1 + $0x17c] sm:$0xf]
      %v1221 = vld [vmem:[%s1 + $0x180] sm:$0xf]
      %v1222 = vld [vmem:[%s1 + $0x184] sm:$0xf]
      %v1223 = vld [vmem:[%s1 + $0x188] sm:$0xf]
      %v1224 = vld [vmem:[%s1 + $0x18c] sm:$0xf]
      %v1225 = vld [vmem:[%s1 + $0x190] sm:$0xf]
      %v1226 = vld [vmem:[%s1 + $0x194] sm:$0xf]
      %v1227 = vld [vmem:[%s1 + $0x198] sm:$0xf]
      %v1228 = vld [vmem:[%s1 + $0x19c] sm:$0xf]
      %v1229 = vld [vmem:[%s1 + $0x1a0] sm:$0xf]
      %v1230 = vld [vmem:[%s1 + $0x1a4] sm:$0xf]
      %v1231 = vld [vmem:[%s1 + $0x1a8] sm:$0xf]
      %v1232 = vld [vmem:[%s1 + $0x1ac] sm:$0xf]
      %v1233 = vld [vmem:[%s1 + $0x1b0] sm:$0xf]
      %v1234 = vld [vmem:[%s1 + $0x1b4] sm:$0xf]
      %v1235 = vld [vmem:[%s1 + $0x1b8] sm:$0xf]
      %v1236 = vld [vmem:[%s1 + $0x1bc] sm:$0xf]
      %v1269 = vunpack.c.l.b16 %v1093
      %v1270 = vunpack.c.h.b16 %v1093
      %v1271 = vunpack.c.l.b16 %v1094
      %v1272 = vunpack.c.h.b16 %v1094
      %v1273 = vunpack.c.l.b16 %v1095
      %v1274 = vunpack.c.h.b16 %v1095
      %v1275 = vunpack.c.l.b16 %v1096
      %v1276 = vunpack.c.l.b16 %v1097
      %v1277 = vunpack.c.h.b16 %v1097
      %v1278 = vunpack.c.l.b16 %v1098
      %v1279 = vunpack.c.h.b16 %v1098
      %v1280 = vunpack.c.l.b16 %v1099
      %v1281 = vunpack.c.h.b16 %v1099
      %v1282 = vunpack.c.l.b16 %v1100
      %v1283 = vunpack.c.l.b16 %v1101
      %v1284 = vunpack.c.h.b16 %v1101
      %v1285 = vunpack.c.l.b16 %v1102
      %v1286 = vunpack.c.h.b16 %v1102
      %v1287 = vunpack.c.l.b16 %v1103
      %v1288 = vunpack.c.h.b16 %v1103
      %v1289 = vunpack.c.l.b16 %v1104
      %v1290 = vunpack.c.l.b16 %v1105
      %v1291 = vunpack.c.h.b16 %v1105
      %v1292 = vunpack.c.l.b16 %v1106
      %v1293 = vunpack.c.h.b16 %v1106
      %v1294 = vunpack.c.l.b16 %v1107
      %v1295 = vunpack.c.h.b16 %v1107
      %v1296 = vunpack.c.l.b16 %v1108
      %v1297 = vunpack.c.l.b16 %v1109
      %v1298 = vunpack.c.h.b16 %v1109
      %v1299 = vunpack.c.l.b16 %v1110
      %v1300 = vunpack.c.h.b16 %v1110
      %v1301 = vunpack.c.l.b16 %v1111
      %v1302 = vunpack.c.h.b16 %v1111
      %v1303 = vunpack.c.l.b16 %v1112
      %v1304 = vunpack.c.l.b16 %v1113
      %v1305 = vunpack.c.h.b16 %v1113
      %v1306 = vunpack.c.l.b16 %v1114
      %v1307 = vunpack.c.h.b16 %v1114
      %v1308 = vunpack.c.l.b16 %v1115
      %v1309 = vunpack.c.h.b16 %v1115
      %v1310 = vunpack.c.l.b16 %v1116
      %v1311 = vunpack.c.l.b16 %v1117
      %v1312 = vunpack.c.h.b16 %v1117
      %v1313 = vunpack.c.l.b16 %v1118
      %v1314 = vunpack.c.h.b16 %v1118
      %v1315 = vunpack.c.l.b16 %v1119
      %v1316 = vunpack.c.h.b16 %v1119
      %v1317 = vunpack.c.l.b16 %v1120
      %v1318 = vunpack.c.l.b16 %v1121
      %v1319 = vunpack.c.h.b16 %v1121
      %v1320 = vunpack.c.l.b16 %v1122
      %v1321 = vunpack.c.h.b16 %v1122
      %v1322 = vunpack.c.l.b16 %v1123
      %v1323 = vunpack.c.h.b16 %v1123
      %v1324 = vunpack.c.l.b16 %v1124
      %v1325 = vpack.c.b16 %v1276, %v1269
      %v1326 = vpack.c.b16 %v1277, %v1270
      %v1327 = vpack.c.b16 %v1278, %v1271
      %v1328 = vpack.c.b16 %v1279, %v1272
      %v1329 = vpack.c.b16 %v1280, %v1273
      %v1330 = vpack.c.b16 %v1281, %v1274
      %v1331 = vpack.c.b16 %v1282, %v1275
      %v1332 = vpack.c.b16 %v1290, %v1283
      %v1333 = vpack.c.b16 %v1291, %v1284
      %v1334 = vpack.c.b16 %v1292, %v1285
      %v1335 = vpack.c.b16 %v1293, %v1286
      %v1336 = vpack.c.b16 %v1294, %v1287
      %v1337 = vpack.c.b16 %v1295, %v1288
      %v1338 = vpack.c.b16 %v1296, %v1289
      %v1339 = vpack.c.b16 %v1304, %v1297
      %v1340 = vpack.c.b16 %v1305, %v1298
      %v1341 = vpack.c.b16 %v1306, %v1299
      %v1342 = vpack.c.b16 %v1307, %v1300
      %v1343 = vpack.c.b16 %v1308, %v1301
      %v1344 = vpack.c.b16 %v1309, %v1302
      %v1345 = vpack.c.b16 %v1310, %v1303
      %v1346 = vpack.c.b16 %v1318, %v1311
      %v1347 = vpack.c.b16 %v1319, %v1312
      %v1348 = vpack.c.b16 %v1320, %v1313
      %v1349 = vpack.c.b16 %v1321, %v1314
      %v1350 = vpack.c.b16 %v1322, %v1315
      %v1351 = vpack.c.b16 %v1323, %v1316
      %v1352 = vpack.c.b16 %v1324, %v1317
      %v1493 = vunpack.c.l.b16 %v1125
      %v1494 = vunpack.c.l.b16 %v1126
      %v1495 = vunpack.c.l.b16 %v1127
      %v1496 = vunpack.c.l.b16 %v1128
      %v1497 = vunpack.c.l.b16 %v1129
      %v1498 = vunpack.c.l.b16 %v1130
      %v1499 = vunpack.c.l.b16 %v1131
      %v1500 = vunpack.c.l.b16 %v1132
      %v1501 = vunpack.c.l.b16 %v1133
      %v1502 = vunpack.c.l.b16 %v1134
      %v1503 = vunpack.c.l.b16 %v1135
      %v1504 = vunpack.c.l.b16 %v1136
      %v1505 = vunpack.c.l.b16 %v1137
      %v1506 = vunpack.c.l.b16 %v1138
      %v1507 = vunpack.c.l.b16 %v1139
      %v1508 = vunpack.c.l.b16 %v1140
      %v1509 = vunpack.c.l.b16 %v1141
      %v1510 = vunpack.c.l.b16 %v1142
      %v1511 = vunpack.c.l.b16 %v1143
      %v1512 = vunpack.c.l.b16 %v1144
      %v1513 = vunpack.c.l.b16 %v1145
      %v1514 = vunpack.c.l.b16 %v1146
      %v1515 = vunpack.c.l.b16 %v1147
      %v1516 = vunpack.c.l.b16 %v1148
      %v1517 = vunpack.c.l.b16 %v1149
      %v1518 = vunpack.c.l.b16 %v1150
      %v1519 = vunpack.c.l.b16 %v1151
      %v1520 = vunpack.c.l.b16 %v1152
      %v1521 = vunpack.c.l.b16 %v1153
      %v1522 = vunpack.c.l.b16 %v1154
      %v1523 = vunpack.c.l.b16 %v1155
      %v1524 = vunpack.c.l.b16 %v1156
      %v1525 = vunpack.c.l.b16 %v1157
      %v1526 = vunpack.c.l.b16 %v1158
      %v1527 = vunpack.c.l.b16 %v1159
      %v1528 = vunpack.c.l.b16 %v1160
      %v1529 = vunpack.c.l.b16 %v1161
      %v1530 = vunpack.c.l.b16 %v1162
      %v1531 = vunpack.c.l.b16 %v1163
      %v1532 = vunpack.c.l.b16 %v1164
      %v1533 = vunpack.c.l.b16 %v1165
      %v1534 = vunpack.c.l.b16 %v1166
      %v1535 = vunpack.c.l.b16 %v1167
      %v1536 = vunpack.c.l.b16 %v1168
      %v1537 = vunpack.c.l.b16 %v1169
      %v1538 = vunpack.c.l.b16 %v1170
      %v1539 = vunpack.c.l.b16 %v1171
      %v1540 = vunpack.c.l.b16 %v1172
      %v1541 = vunpack.c.l.b16 %v1173
      %v1542 = vunpack.c.l.b16 %v1174
      %v1543 = vunpack.c.l.b16 %v1175
      %v1544 = vunpack.c.l.b16 %v1176
      %v1545 = vunpack.c.l.b16 %v1177
      %v1546 = vunpack.c.l.b16 %v1178
      %v1547 = vunpack.c.l.b16 %v1179
      %v1548 = vunpack.c.l.b16 %v1180
      %v1549 = vunpack.c.l.b16 %v1181
      %v1550 = vunpack.c.l.b16 %v1182
      %v1551 = vunpack.c.l.b16 %v1183
      %v1552 = vunpack.c.l.b16 %v1184
      %v1553 = vunpack.c.l.b16 %v1185
      %v1554 = vunpack.c.l.b16 %v1186
      %v1555 = vunpack.c.l.b16 %v1187
      %v1556 = vunpack.c.l.b16 %v1188
      %v1557 = vunpack.c.l.b16 %v1189
      %v1558 = vunpack.c.l.b16 %v1190
      %v1559 = vunpack.c.l.b16 %v1191
      %v1560 = vunpack.c.l.b16 %v1192
      %v1561 = vunpack.c.l.b16 %v1193
      %v1562 = vunpack.c.l.b16 %v1194
      %v1563 = vunpack.c.l.b16 %v1195
      %v1564 = vunpack.c.l.b16 %v1196
      %v1565 = vunpack.c.l.b16 %v1197
      %v1566 = vunpack.c.l.b16 %v1198
      %v1567 = vunpack.c.l.b16 %v1199
      %v1568 = vunpack.c.l.b16 %v1200
      %v1569 = vunpack.c.l.b16 %v1201
      %v1570 = vunpack.c.l.b16 %v1202
      %v1571 = vunpack.c.l.b16 %v1203
      %v1572 = vunpack.c.l.b16 %v1204
      %v1573 = vunpack.c.l.b16 %v1205
      %v1574 = vunpack.c.l.b16 %v1206
      %v1575 = vunpack.c.l.b16 %v1207
      %v1576 = vunpack.c.l.b16 %v1208
      %v1577 = vunpack.c.l.b16 %v1209
      %v1578 = vunpack.c.l.b16 %v1210
      %v1579 = vunpack.c.l.b16 %v1211
      %v1580 = vunpack.c.l.b16 %v1212
      %v1581 = vunpack.c.l.b16 %v1213
      %v1582 = vunpack.c.l.b16 %v1214
      %v1583 = vunpack.c.l.b16 %v1215
      %v1584 = vunpack.c.l.b16 %v1216
      %v1585 = vunpack.c.l.b16 %v1217
      %v1586 = vunpack.c.l.b16 %v1218
      %v1587 = vunpack.c.l.b16 %v1219
      %v1588 = vunpack.c.l.b16 %v1220
      %v1589 = vunpack.c.l.b16 %v1221
      %v1590 = vunpack.c.l.b16 %v1222
      %v1591 = vunpack.c.l.b16 %v1223
      %v1592 = vunpack.c.l.b16 %v1224
      %v1593 = vunpack.c.l.b16 %v1225
      %v1594 = vunpack.c.l.b16 %v1226
      %v1595 = vunpack.c.l.b16 %v1227
      %v1596 = vunpack.c.l.b16 %v1228
      %v1597 = vunpack.c.l.b16 %v1229
      %v1598 = vunpack.c.l.b16 %v1230
      %v1599 = vunpack.c.l.b16 %v1231
      %v1600 = vunpack.c.l.b16 %v1232
      %v1601 = vunpack.c.l.b16 %v1233
      %v1602 = vunpack.c.l.b16 %v1234
      %v1603 = vunpack.c.l.b16 %v1235
      %v1604 = vunpack.c.l.b16 %v1236
      %v1605 = vpack.c.b16 %v1494, %v1493
      %v1606 = vpack.c.b16 %v1496, %v1495
      %v1607 = vpack.c.b16 %v1498, %v1497
      %v1608 = vpack.c.b16 %v1500, %v1499
      %v1609 = vpack.c.b16 %v1502, %v1501
      %v1610 = vpack.c.b16 %v1504, %v1503
      %v1611 = vpack.c.b16 %v1506, %v1505
      %v1612 = vpack.c.b16 %v1508, %v1507
      %v1613 = vpack.c.b16 %v1510, %v1509
      %v1614 = vpack.c.b16 %v1512, %v1511
      %v1615 = vpack.c.b16 %v1514, %v1513
      %v1616 = vpack.c.b16 %v1516, %v1515
      %v1617 = vpack.c.b16 %v1518, %v1517
      %v1618 = vpack.c.b16 %v1520, %v1519
      %v1619 = vpack.c.b16 %v1522, %v1521
      %v1620 = vpack.c.b16 %v1524, %v1523
      %v1621 = vpack.c.b16 %v1526, %v1525
      %v1622 = vpack.c.b16 %v1528, %v1527
      %v1623 = vpack.c.b16 %v1530, %v1529
      %v1624 = vpack.c.b16 %v1532, %v1531
      %v1625 = vpack.c.b16 %v1534, %v1533
      %v1626 = vpack.c.b16 %v1536, %v1535
      %v1627 = vpack.c.b16 %v1538, %v1537
      %v1628 = vpack.c.b16 %v1540, %v1539
      %v1629 = vpack.c.b16 %v1542, %v1541
      %v1630 = vpack.c.b16 %v1544, %v1543
      %v1631 = vpack.c.b16 %v1546, %v1545
      %v1632 = vpack.c.b16 %v1548, %v1547
      %v1633 = vpack.c.b16 %v1550, %v1549
      %v1634 = vpack.c.b16 %v1552, %v1551
      %v1635 = vpack.c.b16 %v1554, %v1553
      %v1636 = vpack.c.b16 %v1556, %v1555
      %v1637 = vpack.c.b16 %v1558, %v1557
      %v1638 = vpack.c.b16 %v1560, %v1559
      %v1639 = vpack.c.b16 %v1562, %v1561
      %v1640 = vpack.c.b16 %v1564, %v1563
      %v1641 = vpack.c.b16 %v1566, %v1565
      %v1642 = vpack.c.b16 %v1568, %v1567
      %v1643 = vpack.c.b16 %v1570, %v1569
      %v1644 = vpack.c.b16 %v1572, %v1571
      %v1645 = vpack.c.b16 %v1574, %v1573
      %v1646 = vpack.c.b16 %v1576, %v1575
      %v1647 = vpack.c.b16 %v1578, %v1577
      %v1648 = vpack.c.b16 %v1580, %v1579
      %v1649 = vpack.c.b16 %v1582, %v1581
      %v1650 = vpack.c.b16 %v1584, %v1583
      %v1651 = vpack.c.b16 %v1586, %v1585
      %v1652 = vpack.c.b16 %v1588, %v1587
      %v1653 = vpack.c.b16 %v1590, %v1589
      %v1654 = vpack.c.b16 %v1592, %v1591
      %v1655 = vpack.c.b16 %v1594, %v1593
      %v1656 = vpack.c.b16 %v1596, %v1595
      %v1657 = vpack.c.b16 %v1598, %v1597
      %v1658 = vpack.c.b16 %v1600, %v1599
      %v1659 = vpack.c.b16 %v1602, %v1601
      %v1660 = vpack.c.b16 %v1604, %v1603
      %1717 = vmatprep.subr.bf16.mxu0 0
      %1718 = vmatpush1.bf16.msra.mxu0 %v1612
      %1719 = vmatprep.subr.bf16.mxu0 0
      %1720 = vmatpush1.bf16.msra.mxu0 %v1611
      %1721 = vmatprep.subr.bf16.mxu0 0
      %1722 = vmatpush1.bf16.msra.mxu0 %v1610
      %1723 = vmatprep.subr.bf16.mxu0 0
      %1724 = vmatpush1.bf16.msra.mxu0 %v1609
      %1725 = vmatprep.subr.bf16.mxu0 0
      %1726 = vmatpush1.bf16.msra.mxu0 %v1608
      %1727 = vmatprep.subr.bf16.mxu0 0
      %1728 = vmatpush1.bf16.msra.mxu0 %v1607
      %1729 = vmatprep.subr.bf16.mxu0 0
      %1730 = vmatpush1.bf16.msra.mxu0 %v1606
      %1731 = vmatprep.subr.bf16.mxu0 0
      %1732 = vmatpush1.bf16.msra.mxu0 %v1605
      %1733 = vmatprep.subr.bf16.mxu0 0
      %1734 = vmatpush2.bf16.msra.mxu0 %v1620
      %1735 = vmatprep.subr.bf16.mxu0 0
      %1736 = vmatpush2.bf16.msra.mxu0 %v1619
      %1737 = vmatprep.subr.bf16.mxu0 0
      %1738 = vmatpush2.bf16.msra.mxu0 %v1618
      %1739 = vmatprep.subr.bf16.mxu0 0
      %1740 = vmatpush2.bf16.msra.mxu0 %v1617
      %1741 = vmatprep.subr.bf16.mxu0 0
      %1742 = vmatpush2.bf16.msra.mxu0 %v1616
      %1743 = vmatprep.subr.bf16.mxu0 0
      %1744 = vmatpush2.bf16.msra.mxu0 %v1615
      %1745 = vmatprep.subr.bf16.mxu0 0
      %1746 = vmatpush2.bf16.msra.mxu0 %v1614
      %1747 = vmatprep.subr.bf16.mxu0 0
      %1748 = vmatpush2.bf16.msra.mxu0 %v1613
      %1749 = vmatprep.mubr.bf16.mxu0 %v1326
      %1750 = vmatmul.mubr.bf16.gmra.mxu0 %v1325
      %v1751 = vpop.f32.mrf.mxu0
      %v1752 = vadd.f32 0.0, %v1751
      %v1753 = vpop.f32.mrf.mxu0
      %v1754 = vpop.f32.mrf.mxu0
      %v1755 = vadd.f32 0.0, %v1754
      %v1756 = vpop.f32.mrf.mxu0
      %1757 = vmatprep.mubr.bf16.mxu0 %v1333
      %1758 = vmatmul.mubr.bf16.gmra.mxu0 %v1332
      %v1759 = vpop.f32.mrf.mxu0
      %v1760 = vadd.f32 0.0, %v1759
      %v1761 = vpop.f32.mrf.mxu0
      %v1762 = vpop.f32.mrf.mxu0
      %v1763 = vadd.f32 0.0, %v1762
      %v1764 = vpop.f32.mrf.mxu0
      %1765 = vmatprep.mubr.bf16.mxu0 %v1340
      %1766 = vmatmul.mubr.bf16.gmra.mxu0 %v1339
      %v1767 = vpop.f32.mrf.mxu0
      %v1768 = vadd.f32 0.0, %v1767
      %v1769 = vpop.f32.mrf.mxu0
      %v1770 = vpop.f32.mrf.mxu0
      %v1771 = vadd.f32 0.0, %v1770
      %v1772 = vpop.f32.mrf.mxu0
      %1773 = vmatprep.mubr.bf16.mxu0 %v1347
      %1774 = vmatmul.mubr.bf16.gmra.mxu0 %v1346
      %v1775 = vpop.f32.mrf.mxu0
      %v1776 = vadd.f32 0.0, %v1775
      %v1777 = vpop.f32.mrf.mxu0
      %v1778 = vpop.f32.mrf.mxu0
      %v1779 = vadd.f32 0.0, %v1778
      %v1780 = vpop.f32.mrf.mxu0
      %1781 = vdwg.mxu0
      %1782 = vmatprep.subr.bf16.mxu0 0
      %1783 = vmatpush1.bf16.msra.mxu0 %v1628
      %1784 = vmatprep.subr.bf16.mxu0 0
      %1785 = vmatpush1.bf16.msra.mxu0 %v1627
      %1786 = vmatprep.subr.bf16.mxu0 0
      %1787 = vmatpush1.bf16.msra.mxu0 %v1626
      %1788 = vmatprep.subr.bf16.mxu0 0
      %1789 = vmatpush1.bf16.msra.mxu0 %v1625
      %1790 = vmatprep.subr.bf16.mxu0 0
      %1791 = vmatpush1.bf16.msra.mxu0 %v1624
      %1792 = vmatprep.subr.bf16.mxu0 0
      %1793 = vmatpush1.bf16.msra.mxu0 %v1623
      %1794 = vmatprep.subr.bf16.mxu0 0
      %1795 = vmatpush1.bf16.msra.mxu0 %v1622
      %1796 = vmatprep.subr.bf16.mxu0 0
      %1797 = vmatpush1.bf16.msra.mxu0 %v1621
      %1798 = vmatprep.subr.bf16.mxu0 0
      %1799 = vmatpush2.bf16.msra.mxu0 %v1636
      %1800 = vmatprep.subr.bf16.mxu0 0
      %1801 = vmatpush2.bf16.msra.mxu0 %v1635
      %1802 = vmatprep.subr.bf16.mxu0 0
      %1803 = vmatpush2.bf16.msra.mxu0 %v1634
      %1804 = vmatprep.subr.bf16.mxu0 0
      %1805 = vmatpush2.bf16.msra.mxu0 %v1633
      %1806 = vmatprep.subr.bf16.mxu0 0
      %1807 = vmatpush2.bf16.msra.mxu0 %v1632
      %1808 = vmatprep.subr.bf16.mxu0 0
      %1809 = vmatpush2.bf16.msra.mxu0 %v1631
      %1810 = vmatprep.subr.bf16.mxu0 0
      %1811 = vmatpush2.bf16.msra.mxu0 %v1630
      %1812 = vmatprep.subr.bf16.mxu0 0
      %1813 = vmatpush2.bf16.msra.mxu0 %v1629
      %1814 = vmatprep.mubr.bf16.mxu0 %v1328
      %1815 = vmatmul.mubr.bf16.gmra.mxu0 %v1327
      %v1816 = vpop.f32.mrf.mxu0
      %v1817 = vadd.f32 %v1752, %v1816
      %v1818 = vpop.f32.mrf.mxu0
      %v1819 = vpop.f32.mrf.mxu0
      %v1820 = vadd.f32 %v1755, %v1819
      %v1821 = vpop.f32.mrf.mxu0
      %1822 = vmatprep.mubr.bf16.mxu0 %v1335
      %1823 = vmatmul.mubr.bf16.gmra.mxu0 %v1334
      %v1824 = vpop.f32.mrf.mxu0
      %v1825 = vadd.f32 %v1760, %v1824
      %v1826 = vpop.f32.mrf.mxu0
      %v1827 = vpop.f32.mrf.mxu0
      %v1828 = vadd.f32 %v1763, %v1827
      %v1829 = vpop.f32.mrf.mxu0
      %1830 = vmatprep.mubr.bf16.mxu0 %v1342
      %1831 = vmatmul.mubr.bf16.gmra.mxu0 %v1341
      %v1832 = vpop.f32.mrf.mxu0
      %v1833 = vadd.f32 %v1768, %v1832
      %v1834 = vpop.f32.mrf.mxu0
      %v1835 = vpop.f32.mrf.mxu0
      %v1836 = vadd.f32 %v1771, %v1835
      %v1837 = vpop.f32.mrf.mxu0
      %1838 = vmatprep.mubr.bf16.mxu0 %v1349
      %1839 = vmatmul.mubr.bf16.gmra.mxu0 %v1348
      %v1840 = vpop.f32.mrf.mxu0
      %v1841 = vadd.f32 %v1776, %v1840
      %v1842 = vpop.f32.mrf.mxu0
      %v1843 = vpop.f32.mrf.mxu0
      %v1844 = vadd.f32 %v1779, %v1843
      %v1845 = vpop.f32.mrf.mxu0
      %1846 = vdwg.mxu0
      %1847 = vmatprep.subr.bf16.mxu0 0
      %1848 = vmatpush1.bf16.msra.mxu0 %v1644
      %1849 = vmatprep.subr.bf16.mxu0 0
      %1850 = vmatpush1.bf16.msra.mxu0 %v1643
      %1851 = vmatprep.subr.bf16.mxu0 0
      %1852 = vmatpush1.bf16.msra.mxu0 %v1642
      %1853 = vmatprep.subr.bf16.mxu0 0
      %1854 = vmatpush1.bf16.msra.mxu0 %v1641
      %1855 = vmatprep.subr.bf16.mxu0 0
      %1856 = vmatpush1.bf16.msra.mxu0 %v1640
      %1857 = vmatprep.subr.bf16.mxu0 0
      %1858 = vmatpush1.bf16.msra.mxu0 %v1639
      %1859 = vmatprep.subr.bf16.mxu0 0
      %1860 = vmatpush1.bf16.msra.mxu0 %v1638
      %1861 = vmatprep.subr.bf16.mxu0 0
      %1862 = vmatpush1.bf16.msra.mxu0 %v1637
      %1863 = vmatprep.subr.bf16.mxu0 0
      %1864 = vmatpush2.bf16.msra.mxu0 %v1652
      %1865 = vmatprep.subr.bf16.mxu0 0
      %1866 = vmatpush2.bf16.msra.mxu0 %v1651
      %1867 = vmatprep.subr.bf16.mxu0 0
      %1868 = vmatpush2.bf16.msra.mxu0 %v1650
      %1869 = vmatprep.subr.bf16.mxu0 0
      %1870 = vmatpush2.bf16.msra.mxu0 %v1649
      %1871 = vmatprep.subr.bf16.mxu0 0
      %1872 = vmatpush2.bf16.msra.mxu0 %v1648
      %1873 = vmatprep.subr.bf16.mxu0 0
      %1874 = vmatpush2.bf16.msra.mxu0 %v1647
      %1875 = vmatprep.subr.bf16.mxu0 0
      %1876 = vmatpush2.bf16.msra.mxu0 %v1646
      %1877 = vmatprep.subr.bf16.mxu0 0
      %1878 = vmatpush2.bf16.msra.mxu0 %v1645
      %1879 = vmatprep.mubr.bf16.mxu0 %v1330
      %1880 = vmatmul.mubr.bf16.gmra.mxu0 %v1329
      %v1881 = vpop.f32.mrf.mxu0
      %v1882 = vadd.f32 %v1817, %v1881
      %v1883 = vpop.f32.mrf.mxu0
      %v1884 = vpop.f32.mrf.mxu0
      %v1885 = vadd.f32 %v1820, %v1884
      %v1886 = vpop.f32.mrf.mxu0
      %1887 = vmatprep.mubr.bf16.mxu0 %v1337
      %1888 = vmatmul.mubr.bf16.gmra.mxu0 %v1336
      %v1889 = vpop.f32.mrf.mxu0
      %v1890 = vadd.f32 %v1825, %v1889
      %v1891 = vpop.f32.mrf.mxu0
      %v1892 = vpop.f32.mrf.mxu0
      %v1893 = vadd.f32 %v1828, %v1892
      %v1894 = vpop.f32.mrf.mxu0
      %1895 = vmatprep.mubr.bf16.mxu0 %v1344
      %1896 = vmatmul.mubr.bf16.gmra.mxu0 %v1343
      %v1897 = vpop.f32.mrf.mxu0
      %v1898 = vadd.f32 %v1833, %v1897
      %v1899 = vpop.f32.mrf.mxu0
      %v1900 = vpop.f32.mrf.mxu0
      %v1901 = vadd.f32 %v1836, %v1900
      %v1902 = vpop.f32.mrf.mxu0
      %1903 = vmatprep.mubr.bf16.mxu0 %v1351
      %1904 = vmatmul.mubr.bf16.gmra.mxu0 %v1350
      %v1905 = vpop.f32.mrf.mxu0
      %v1906 = vadd.f32 %v1841, %v1905
      %v1907 = vpop.f32.mrf.mxu0
      %v1908 = vpop.f32.mrf.mxu0
      %v1909 = vadd.f32 %v1844, %v1908
      %v1910 = vpop.f32.mrf.mxu0
      %1911 = vdwg.mxu0
      %1912 = vmatprep.subr.bf16.mxu0 0
      %1913 = vmatpush1.bf16.msra.mxu0 %v1660
      %1914 = vmatprep.subr.bf16.mxu0 0
      %1915 = vmatpush1.bf16.msra.mxu0 %v1659
      %1916 = vmatprep.subr.bf16.mxu0 0
      %1917 = vmatpush1.bf16.msra.mxu0 %v1658
      %1918 = vmatprep.subr.bf16.mxu0 0
      %1919 = vmatpush1.bf16.msra.mxu0 %v1657
      %1920 = vmatprep.subr.bf16.mxu0 0
      %1921 = vmatpush1.bf16.msra.mxu0 %v1656
      %1922 = vmatprep.subr.bf16.mxu0 0
      %1923 = vmatpush1.bf16.msra.mxu0 %v1655
      %1924 = vmatprep.subr.bf16.mxu0 0
      %1925 = vmatpush1.bf16.msra.mxu0 %v1654
      %1926 = vmatprep.subr.bf16.mxu0 0
      %1927 = vmatpush1.bf16.msra.mxu0 %v1653
      %1928 = vmatprep.subr.bf16.mxu0 0
      %1929 = vmatpush2.bf16.msra.mxu0 0
      %1930 = vmatprep.subr.bf16.mxu0 0
      %1931 = vmatpush2.bf16.msra.mxu0 0
      %1932 = vmatprep.subr.bf16.mxu0 0
      %1933 = vmatpush2.bf16.msra.mxu0 0
      %1934 = vmatprep.subr.bf16.mxu0 0
      %1935 = vmatpush2.bf16.msra.mxu0 0
      %1936 = vmatprep.subr.bf16.mxu0 0
      %1937 = vmatpush2.bf16.msra.mxu0 0
      %1938 = vmatprep.subr.bf16.mxu0 0
      %1939 = vmatpush2.bf16.msra.mxu0 0
      %1940 = vmatprep.subr.bf16.mxu0 0
      %1941 = vmatpush2.bf16.msra.mxu0 0
      %1942 = vmatprep.subr.bf16.mxu0 0
      %1943 = vmatpush2.bf16.msra.mxu0 0
      %1944 = vmatprep.mubr.bf16.mxu0 0
      %1945 = vmatmul.mubr.bf16.gmra.mxu0 %v1331
      %v1946 = vpop.f32.mrf.mxu0
      %v1947 = vadd.f32 %v1882, %v1946
      %v1948 = vpop.f32.mrf.mxu0
      %v1949 = vpop.f32.mrf.mxu0
      %v1950 = vadd.f32 %v1885, %v1949
      %v1951 = vpop.f32.mrf.mxu0
      %1952 = vmatprep.mubr.bf16.mxu0 0
      %1953 = vmatmul.mubr.bf16.gmra.mxu0 %v1338
      %v1954 = vpop.f32.mrf.mxu0
      %v1955 = vadd.f32 %v1890, %v1954
      %v1956 = vpop.f32.mrf.mxu0
      %v1957 = vpop.f32.mrf.mxu0
      %v1958 = vadd.f32 %v1893, %v1957
      %v1959 = vpop.f32.mrf.mxu0
      %1960 = vmatprep.mubr.bf16.mxu0 0
      %1961 = vmatmul.mubr.bf16.gmra.mxu0 %v1345
      %v1962 = vpop.f32.mrf.mxu0
      %v1963 = vadd.f32 %v1898, %v1962
      %v1964 = vpop.f32.mrf.mxu0
      %v1965 = vpop.f32.mrf.mxu0
      %v1966 = vadd.f32 %v1901, %v1965
      %v1967 = vpop.f32.mrf.mxu0
      %1968 = vmatprep.mubr.bf16.mxu0 0
      %1969 = vmatmul.mubr.bf16.gmra.mxu0 %v1352
      %v1970 = vpop.f32.mrf.mxu0
      %v1971 = vadd.f32 %v1906, %v1970
      %v1972 = vpop.f32.mrf.mxu0
      %v1973 = vpop.f32.mrf.mxu0
      %v1974 = vadd.f32 %v1909, %v1973
      %v1975 = vpop.f32.mrf.mxu0
      %1976 = vdwg.mxu0
      %v1977 = vmax.f32 %v1947, %v1955
      %v1978 = vmax.f32 %v1950, %v1958
      %v1979 = vmax.f32 %v1963, %v1971
      %v1980 = vmax.f32 %v1966, %v1974
      %v1981 = vmax.f32 %v1977, %v1979
      %v1982 = vmax.f32 %v1978, %v1980
      %v1983 = vld [vmem:[%s2] sm:$0x1]
      %v1985 = vlaneseq
      %v1986 = vshrl.u32 %v1985, 7
      %v1987 = vsub.s32 0, %v1986
      %v1988 = vrot.slane %v1983, %v1987
      %v1990 = vadd.f32 %v1981, %v1988
      %v1991 = vadd.f32 %v1982, %v1988
      %v1992 = vpack.c.bf16 %v1991, %v1990
      %v1994 = vunpack.c.l.b16 %v1992
      %v1995 = vunpack.c.h.b16 %v1992
      %v1996 = vpack.c.b16 %v1994, %v1994
      %v1997 = vpack.c.b16 %v1995, %v1995
      %s2000 = scalar_lea.vmem %s175, 8
      %2001 = vst [vmem:[%s2000] sm:$0xf] %v1996
      %2002 = vst [vmem:[%s2000 + $0x4] sm:$0xf] %v1997
      %s2003 = smul.u32 16, 7
      %s2004 = smul.addr %s2003, 4
      %s2005 = scalar_lea.vmem %s169, %s2004
      %v2006 = vld [vmem:[%s2005] sm:$0xff]
      %v2007 = vld [vmem:[%s2005 + $0x8] sm:$0xff]
      %v2008 = vld [vmem:[%s2005 + $0x10] sm:$0xff]
      %v2009 = vld [vmem:[%s2005 + $0x18] sm:$0xf]
      %v2010 = vld [vmem:[%s2005 + $0x1c] sm:$0xff]
      %v2011 = vld [vmem:[%s2005 + $0x24] sm:$0xff]
      %v2012 = vld [vmem:[%s2005 + $0x2c] sm:$0xff]
      %v2013 = vld [vmem:[%s2005 + $0x34] sm:$0xf]
      %v2014 = vld [vmem:[%s2005 + $0x38] sm:$0xff]
      %v2015 = vld [vmem:[%s2005 + $0x40] sm:$0xff]
      %v2016 = vld [vmem:[%s2005 + $0x48] sm:$0xff]
      %v2017 = vld [vmem:[%s2005 + $0x50] sm:$0xf]
      %v2018 = vld [vmem:[%s2005 + $0x54] sm:$0xff]
      %v2019 = vld [vmem:[%s2005 + $0x5c] sm:$0xff]
      %v2020 = vld [vmem:[%s2005 + $0x64] sm:$0xff]
      %v2021 = vld [vmem:[%s2005 + $0x6c] sm:$0xf]
      %v2022 = vld [vmem:[%s2005 + $0x70] sm:$0xff]
      %v2023 = vld [vmem:[%s2005 + $0x78] sm:$0xff]
      %v2024 = vld [vmem:[%s2005 + $0x80] sm:$0xff]
      %v2025 = vld [vmem:[%s2005 + $0x88] sm:$0xf]
      %v2026 = vld [vmem:[%s2005 + $0x8c] sm:$0xff]
      %v2027 = vld [vmem:[%s2005 + $0x94] sm:$0xff]
      %v2028 = vld [vmem:[%s2005 + $0x9c] sm:$0xff]
      %v2029 = vld [vmem:[%s2005 + $0xa4] sm:$0xf]
      %v2030 = vld [vmem:[%s2005 + $0xa8] sm:$0xff]
      %v2031 = vld [vmem:[%s2005 + $0xb0] sm:$0xff]
      %v2032 = vld [vmem:[%s2005 + $0xb8] sm:$0xff]
      %v2033 = vld [vmem:[%s2005 + $0xc0] sm:$0xf]
      %v2034 = vld [vmem:[%s2005 + $0xc4] sm:$0xff]
      %v2035 = vld [vmem:[%s2005 + $0xcc] sm:$0xff]
      %v2036 = vld [vmem:[%s2005 + $0xd4] sm:$0xff]
      %v2037 = vld [vmem:[%s2005 + $0xdc] sm:$0xf]
      %v2038 = vld [vmem:[%s1] sm:$0xf]
      %v2039 = vld [vmem:[%s1 + $0x4] sm:$0xf]
      %v2040 = vld [vmem:[%s1 + $0x8] sm:$0xf]
      %v2041 = vld [vmem:[%s1 + $0xc] sm:$0xf]
      %v2042 = vld [vmem:[%s1 + $0x10] sm:$0xf]
      %v2043 = vld [vmem:[%s1 + $0x14] sm:$0xf]
      %v2044 = vld [vmem:[%s1 + $0x18] sm:$0xf]
      %v2045 = vld [vmem:[%s1 + $0x1c] sm:$0xf]
      %v2046 = vld [vmem:[%s1 + $0x20] sm:$0xf]
      %v2047 = vld [vmem:[%s1 + $0x24] sm:$0xf]
      %v2048 = vld [vmem:[%s1 + $0x28] sm:$0xf]
      %v2049 = vld [vmem:[%s1 + $0x2c] sm:$0xf]
      %v2050 = vld [vmem:[%s1 + $0x30] sm:$0xf]
      %v2051 = vld [vmem:[%s1 + $0x34] sm:$0xf]
      %v2052 = vld [vmem:[%s1 + $0x38] sm:$0xf]
      %v2053 = vld [vmem:[%s1 + $0x3c] sm:$0xf]
      %v2054 = vld [vmem:[%s1 + $0x40] sm:$0xf]
      %v2055 = vld [vmem:[%s1 + $0x44] sm:$0xf]
      %v2056 = vld [vmem:[%s1 + $0x48] sm:$0xf]
      %v2057 = vld [vmem:[%s1 + $0x4c] sm:$0xf]
      %v2058 = vld [vmem:[%s1 + $0x50] sm:$0xf]
      %v2059 = vld [vmem:[%s1 + $0x54] sm:$0xf]
      %v2060 = vld [vmem:[%s1 + $0x58] sm:$0xf]
      %v2061 = vld [vmem:[%s1 + $0x5c] sm:$0xf]
      %v2062 = vld [vmem:[%s1 + $0x60] sm:$0xf]
      %v2063 = vld [vmem:[%s1 + $0x64] sm:$0xf]
      %v2064 = vld [vmem:[%s1 + $0x68] sm:$0xf]
      %v2065 = vld [vmem:[%s1 + $0x6c] sm:$0xf]
      %v2066 = vld [vmem:[%s1 + $0x70] sm:$0xf]
      %v2067 = vld [vmem:[%s1 + $0x74] sm:$0xf]
      %v2068 = vld [vmem:[%s1 + $0x78] sm:$0xf]
      %v2069 = vld [vmem:[%s1 + $0x7c] sm:$0xf]
      %v2070 = vld [vmem:[%s1 + $0x80] sm:$0xf]
      %v2071 = vld [vmem:[%s1 + $0x84] sm:$0xf]
      %v2072 = vld [vmem:[%s1 + $0x88] sm:$0xf]
      %v2073 = vld [vmem:[%s1 + $0x8c] sm:$0xf]
      %v2074 = vld [vmem:[%s1 + $0x90] sm:$0xf]
      %v2075 = vld [vmem:[%s1 + $0x94] sm:$0xf]
      %v2076 = vld [vmem:[%s1 + $0x98] sm:$0xf]
      %v2077 = vld [vmem:[%s1 + $0x9c] sm:$0xf]
      %v2078 = vld [vmem:[%s1 + $0xa0] sm:$0xf]
      %v2079 = vld [vmem:[%s1 + $0xa4] sm:$0xf]
      %v2080 = vld [vmem:[%s1 + $0xa8] sm:$0xf]
      %v2081 = vld [vmem:[%s1 + $0xac] sm:$0xf]
      %v2082 = vld [vmem:[%s1 + $0xb0] sm:$0xf]
      %v2083 = vld [vmem:[%s1 + $0xb4] sm:$0xf]
      %v2084 = vld [vmem:[%s1 + $0xb8] sm:$0xf]
      %v2085 = vld [vmem:[%s1 + $0xbc] sm:$0xf]
      %v2086 = vld [vmem:[%s1 + $0xc0] sm:$0xf]
      %v2087 = vld [vmem:[%s1 + $0xc4] sm:$0xf]
      %v2088 = vld [vmem:[%s1 + $0xc8] sm:$0xf]
      %v2089 = vld [vmem:[%s1 + $0xcc] sm:$0xf]
      %v2090 = vld [vmem:[%s1 + $0xd0] sm:$0xf]
      %v2091 = vld [vmem:[%s1 + $0xd4] sm:$0xf]
      %v2092 = vld [vmem:[%s1 + $0xd8] sm:$0xf]
      %v2093 = vld [vmem:[%s1 + $0xdc] sm:$0xf]
      %v2094 = vld [vmem:[%s1 + $0xe0] sm:$0xf]
      %v2095 = vld [vmem:[%s1 + $0xe4] sm:$0xf]
      %v2096 = vld [vmem:[%s1 + $0xe8] sm:$0xf]
      %v2097 = vld [vmem:[%s1 + $0xec] sm:$0xf]
      %v2098 = vld [vmem:[%s1 + $0xf0] sm:$0xf]
      %v2099 = vld [vmem:[%s1 + $0xf4] sm:$0xf]
      %v2100 = vld [vmem:[%s1 + $0xf8] sm:$0xf]
      %v2101 = vld [vmem:[%s1 + $0xfc] sm:$0xf]
      %v2102 = vld [vmem:[%s1 + $0x100] sm:$0xf]
      %v2103 = vld [vmem:[%s1 + $0x104] sm:$0xf]
      %v2104 = vld [vmem:[%s1 + $0x108] sm:$0xf]
      %v2105 = vld [vmem:[%s1 + $0x10c] sm:$0xf]
      %v2106 = vld [vmem:[%s1 + $0x110] sm:$0xf]
      %v2107 = vld [vmem:[%s1 + $0x114] sm:$0xf]
      %v2108 = vld [vmem:[%s1 + $0x118] sm:$0xf]
      %v2109 = vld [vmem:[%s1 + $0x11c] sm:$0xf]
      %v2110 = vld [vmem:[%s1 + $0x120] sm:$0xf]
      %v2111 = vld [vmem:[%s1 + $0x124] sm:$0xf]
      %v2112 = vld [vmem:[%s1 + $0x128] sm:$0xf]
      %v2113 = vld [vmem:[%s1 + $0x12c] sm:$0xf]
      %v2114 = vld [vmem:[%s1 + $0x130] sm:$0xf]
      %v2115 = vld [vmem:[%s1 + $0x134] sm:$0xf]
      %v2116 = vld [vmem:[%s1 + $0x138] sm:$0xf]
      %v2117 = vld [vmem:[%s1 + $0x13c] sm:$0xf]
      %v2118 = vld [vmem:[%s1 + $0x140] sm:$0xf]
      %v2119 = vld [vmem:[%s1 + $0x144] sm:$0xf]
      %v2120 = vld [vmem:[%s1 + $0x148] sm:$0xf]
      %v2121 = vld [vmem:[%s1 + $0x14c] sm:$0xf]
      %v2122 = vld [vmem:[%s1 + $0x150] sm:$0xf]
      %v2123 = vld [vmem:[%s1 + $0x154] sm:$0xf]
      %v2124 = vld [vmem:[%s1 + $0x158] sm:$0xf]
      %v2125 = vld [vmem:[%s1 + $0x15c] sm:$0xf]
      %v2126 = vld [vmem:[%s1 + $0x160] sm:$0xf]
      %v2127 = vld [vmem:[%s1 + $0x164] sm:$0xf]
      %v2128 = vld [vmem:[%s1 + $0x168] sm:$0xf]
      %v2129 = vld [vmem:[%s1 + $0x16c] sm:$0xf]
      %v2130 = vld [vmem:[%s1 + $0x170] sm:$0xf]
      %v2131 = vld [vmem:[%s1 + $0x174] sm:$0xf]
      %v2132 = vld [vmem:[%s1 + $0x178] sm:$0xf]
      %v2133 = vld [vmem:[%s1 + $0x17c] sm:$0xf]
      %v2134 = vld [vmem:[%s1 + $0x180] sm:$0xf]
      %v2135 = vld [vmem:[%s1 + $0x184] sm:$0xf]
      %v2136 = vld [vmem:[%s1 + $0x188] sm:$0xf]
      %v2137 = vld [vmem:[%s1 + $0x18c] sm:$0xf]
      %v2138 = vld [vmem:[%s1 + $0x190] sm:$0xf]
      %v2139 = vld [vmem:[%s1 + $0x194] sm:$0xf]
      %v2140 = vld [vmem:[%s1 + $0x198] sm:$0xf]
      %v2141 = vld [vmem:[%s1 + $0x19c] sm:$0xf]
      %v2142 = vld [vmem:[%s1 + $0x1a0] sm:$0xf]
      %v2143 = vld [vmem:[%s1 + $0x1a4] sm:$0xf]
      %v2144 = vld [vmem:[%s1 + $0x1a8] sm:$0xf]
      %v2145 = vld [vmem:[%s1 + $0x1ac] sm:$0xf]
      %v2146 = vld [vmem:[%s1 + $0x1b0] sm:$0xf]
      %v2147 = vld [vmem:[%s1 + $0x1b4] sm:$0xf]
      %v2148 = vld [vmem:[%s1 + $0x1b8] sm:$0xf]
      %v2149 = vld [vmem:[%s1 + $0x1bc] sm:$0xf]
      %v2182 = vunpack.c.l.b16 %v2006
      %v2183 = vunpack.c.h.b16 %v2006
      %v2184 = vunpack.c.l.b16 %v2007
      %v2185 = vunpack.c.h.b16 %v2007
      %v2186 = vunpack.c.l.b16 %v2008
      %v2187 = vunpack.c.h.b16 %v2008
      %v2188 = vunpack.c.l.b16 %v2009
      %v2189 = vunpack.c.l.b16 %v2010
      %v2190 = vunpack.c.h.b16 %v2010
      %v2191 = vunpack.c.l.b16 %v2011
      %v2192 = vunpack.c.h.b16 %v2011
      %v2193 = vunpack.c.l.b16 %v2012
      %v2194 = vunpack.c.h.b16 %v2012
      %v2195 = vunpack.c.l.b16 %v2013
      %v2196 = vunpack.c.l.b16 %v2014
      %v2197 = vunpack.c.h.b16 %v2014
      %v2198 = vunpack.c.l.b16 %v2015
      %v2199 = vunpack.c.h.b16 %v2015
      %v2200 = vunpack.c.l.b16 %v2016
      %v2201 = vunpack.c.h.b16 %v2016
      %v2202 = vunpack.c.l.b16 %v2017
      %v2203 = vunpack.c.l.b16 %v2018
      %v2204 = vunpack.c.h.b16 %v2018
      %v2205 = vunpack.c.l.b16 %v2019
      %v2206 = vunpack.c.h.b16 %v2019
      %v2207 = vunpack.c.l.b16 %v2020
      %v2208 = vunpack.c.h.b16 %v2020
      %v2209 = vunpack.c.l.b16 %v2021
      %v2210 = vunpack.c.l.b16 %v2022
      %v2211 = vunpack.c.h.b16 %v2022
      %v2212 = vunpack.c.l.b16 %v2023
      %v2213 = vunpack.c.h.b16 %v2023
      %v2214 = vunpack.c.l.b16 %v2024
      %v2215 = vunpack.c.h.b16 %v2024
      %v2216 = vunpack.c.l.b16 %v2025
      %v2217 = vunpack.c.l.b16 %v2026
      %v2218 = vunpack.c.h.b16 %v2026
      %v2219 = vunpack.c.l.b16 %v2027
      %v2220 = vunpack.c.h.b16 %v2027
      %v2221 = vunpack.c.l.b16 %v2028
      %v2222 = vunpack.c.h.b16 %v2028
      %v2223 = vunpack.c.l.b16 %v2029
      %v2224 = vunpack.c.l.b16 %v2030
      %v2225 = vunpack.c.h.b16 %v2030
      %v2226 = vunpack.c.l.b16 %v2031
      %v2227 = vunpack.c.h.b16 %v2031
      %v2228 = vunpack.c.l.b16 %v2032
      %v2229 = vunpack.c.h.b16 %v2032
      %v2230 = vunpack.c.l.b16 %v2033
      %v2231 = vunpack.c.l.b16 %v2034
      %v2232 = vunpack.c.h.b16 %v2034
      %v2233 = vunpack.c.l.b16 %v2035
      %v2234 = vunpack.c.h.b16 %v2035
      %v2235 = vunpack.c.l.b16 %v2036
      %v2236 = vunpack.c.h.b16 %v2036
      %v2237 = vunpack.c.l.b16 %v2037
      %v2238 = vpack.c.b16 %v2189, %v2182
      %v2239 = vpack.c.b16 %v2190, %v2183
      %v2240 = vpack.c.b16 %v2191, %v2184
      %v2241 = vpack.c.b16 %v2192, %v2185
      %v2242 = vpack.c.b16 %v2193, %v2186
      %v2243 = vpack.c.b16 %v2194, %v2187
      %v2244 = vpack.c.b16 %v2195, %v2188
      %v2245 = vpack.c.b16 %v2203, %v2196
      %v2246 = vpack.c.b16 %v2204, %v2197
      %v2247 = vpack.c.b16 %v2205, %v2198
      %v2248 = vpack.c.b16 %v2206, %v2199
      %v2249 = vpack.c.b16 %v2207, %v2200
      %v2250 = vpack.c.b16 %v2208, %v2201
      %v2251 = vpack.c.b16 %v2209, %v2202
      %v2252 = vpack.c.b16 %v2217, %v2210
      %v2253 = vpack.c.b16 %v2218, %v2211
      %v2254 = vpack.c.b16 %v2219, %v2212
      %v2255 = vpack.c.b16 %v2220, %v2213
      %v2256 = vpack.c.b16 %v2221, %v2214
      %v2257 = vpack.c.b16 %v2222, %v2215
      %v2258 = vpack.c.b16 %v2223, %v2216
      %v2259 = vpack.c.b16 %v2231, %v2224
      %v2260 = vpack.c.b16 %v2232, %v2225
      %v2261 = vpack.c.b16 %v2233, %v2226
      %v2262 = vpack.c.b16 %v2234, %v2227
      %v2263 = vpack.c.b16 %v2235, %v2228
      %v2264 = vpack.c.b16 %v2236, %v2229
      %v2265 = vpack.c.b16 %v2237, %v2230
      %v2406 = vunpack.c.l.b16 %v2038
      %v2407 = vunpack.c.l.b16 %v2039
      %v2408 = vunpack.c.l.b16 %v2040
      %v2409 = vunpack.c.l.b16 %v2041
      %v2410 = vunpack.c.l.b16 %v2042
      %v2411 = vunpack.c.l.b16 %v2043
      %v2412 = vunpack.c.l.b16 %v2044
      %v2413 = vunpack.c.l.b16 %v2045
      %v2414 = vunpack.c.l.b16 %v2046
      %v2415 = vunpack.c.l.b16 %v2047
      %v2416 = vunpack.c.l.b16 %v2048
      %v2417 = vunpack.c.l.b16 %v2049
      %v2418 = vunpack.c.l.b16 %v2050
      %v2419 = vunpack.c.l.b16 %v2051
      %v2420 = vunpack.c.l.b16 %v2052
      %v2421 = vunpack.c.l.b16 %v2053
      %v2422 = vunpack.c.l.b16 %v2054
      %v2423 = vunpack.c.l.b16 %v2055
      %v2424 = vunpack.c.l.b16 %v2056
      %v2425 = vunpack.c.l.b16 %v2057
      %v2426 = vunpack.c.l.b16 %v2058
      %v2427 = vunpack.c.l.b16 %v2059
      %v2428 = vunpack.c.l.b16 %v2060
      %v2429 = vunpack.c.l.b16 %v2061
      %v2430 = vunpack.c.l.b16 %v2062
      %v2431 = vunpack.c.l.b16 %v2063
      %v2432 = vunpack.c.l.b16 %v2064
      %v2433 = vunpack.c.l.b16 %v2065
      %v2434 = vunpack.c.l.b16 %v2066
      %v2435 = vunpack.c.l.b16 %v2067
      %v2436 = vunpack.c.l.b16 %v2068
      %v2437 = vunpack.c.l.b16 %v2069
      %v2438 = vunpack.c.l.b16 %v2070
      %v2439 = vunpack.c.l.b16 %v2071
      %v2440 = vunpack.c.l.b16 %v2072
      %v2441 = vunpack.c.l.b16 %v2073
      %v2442 = vunpack.c.l.b16 %v2074
      %v2443 = vunpack.c.l.b16 %v2075
      %v2444 = vunpack.c.l.b16 %v2076
      %v2445 = vunpack.c.l.b16 %v2077
      %v2446 = vunpack.c.l.b16 %v2078
      %v2447 = vunpack.c.l.b16 %v2079
      %v2448 = vunpack.c.l.b16 %v2080
      %v2449 = vunpack.c.l.b16 %v2081
      %v2450 = vunpack.c.l.b16 %v2082
      %v2451 = vunpack.c.l.b16 %v2083
      %v2452 = vunpack.c.l.b16 %v2084
      %v2453 = vunpack.c.l.b16 %v2085
      %v2454 = vunpack.c.l.b16 %v2086
      %v2455 = vunpack.c.l.b16 %v2087
      %v2456 = vunpack.c.l.b16 %v2088
      %v2457 = vunpack.c.l.b16 %v2089
      %v2458 = vunpack.c.l.b16 %v2090
      %v2459 = vunpack.c.l.b16 %v2091
      %v2460 = vunpack.c.l.b16 %v2092
      %v2461 = vunpack.c.l.b16 %v2093
      %v2462 = vunpack.c.l.b16 %v2094
      %v2463 = vunpack.c.l.b16 %v2095
      %v2464 = vunpack.c.l.b16 %v2096
      %v2465 = vunpack.c.l.b16 %v2097
      %v2466 = vunpack.c.l.b16 %v2098
      %v2467 = vunpack.c.l.b16 %v2099
      %v2468 = vunpack.c.l.b16 %v2100
      %v2469 = vunpack.c.l.b16 %v2101
      %v2470 = vunpack.c.l.b16 %v2102
      %v2471 = vunpack.c.l.b16 %v2103
      %v2472 = vunpack.c.l.b16 %v2104
      %v2473 = vunpack.c.l.b16 %v2105
      %v2474 = vunpack.c.l.b16 %v2106
      %v2475 = vunpack.c.l.b16 %v2107
      %v2476 = vunpack.c.l.b16 %v2108
      %v2477 = vunpack.c.l.b16 %v2109
      %v2478 = vunpack.c.l.b16 %v2110
      %v2479 = vunpack.c.l.b16 %v2111
      %v2480 = vunpack.c.l.b16 %v2112
      %v2481 = vunpack.c.l.b16 %v2113
      %v2482 = vunpack.c.l.b16 %v2114
      %v2483 = vunpack.c.l.b16 %v2115
      %v2484 = vunpack.c.l.b16 %v2116
      %v2485 = vunpack.c.l.b16 %v2117
      %v2486 = vunpack.c.l.b16 %v2118
      %v2487 = vunpack.c.l.b16 %v2119
      %v2488 = vunpack.c.l.b16 %v2120
      %v2489 = vunpack.c.l.b16 %v2121
      %v2490 = vunpack.c.l.b16 %v2122
      %v2491 = vunpack.c.l.b16 %v2123
      %v2492 = vunpack.c.l.b16 %v2124
      %v2493 = vunpack.c.l.b16 %v2125
      %v2494 = vunpack.c.l.b16 %v2126
      %v2495 = vunpack.c.l.b16 %v2127
      %v2496 = vunpack.c.l.b16 %v2128
      %v2497 = vunpack.c.l.b16 %v2129
      %v2498 = vunpack.c.l.b16 %v2130
      %v2499 = vunpack.c.l.b16 %v2131
      %v2500 = vunpack.c.l.b16 %v2132
      %v2501 = vunpack.c.l.b16 %v2133
      %v2502 = vunpack.c.l.b16 %v2134
      %v2503 = vunpack.c.l.b16 %v2135
      %v2504 = vunpack.c.l.b16 %v2136
      %v2505 = vunpack.c.l.b16 %v2137
      %v2506 = vunpack.c.l.b16 %v2138
      %v2507 = vunpack.c.l.b16 %v2139
      %v2508 = vunpack.c.l.b16 %v2140
      %v2509 = vunpack.c.l.b16 %v2141
      %v2510 = vunpack.c.l.b16 %v2142
      %v2511 = vunpack.c.l.b16 %v2143
      %v2512 = vunpack.c.l.b16 %v2144
      %v2513 = vunpack.c.l.b16 %v2145
      %v2514 = vunpack.c.l.b16 %v2146
      %v2515 = vunpack.c.l.b16 %v2147
      %v2516 = vunpack.c.l.b16 %v2148
      %v2517 = vunpack.c.l.b16 %v2149
      %v2518 = vpack.c.b16 %v2407, %v2406
      %v2519 = vpack.c.b16 %v2409, %v2408
      %v2520 = vpack.c.b16 %v2411, %v2410
      %v2521 = vpack.c.b16 %v2413, %v2412
      %v2522 = vpack.c.b16 %v2415, %v2414
      %v2523 = vpack.c.b16 %v2417, %v2416
      %v2524 = vpack.c.b16 %v2419, %v2418
      %v2525 = vpack.c.b16 %v2421, %v2420
      %v2526 = vpack.c.b16 %v2423, %v2422
      %v2527 = vpack.c.b16 %v2425, %v2424
      %v2528 = vpack.c.b16 %v2427, %v2426
      %v2529 = vpack.c.b16 %v2429, %v2428
      %v2530 = vpack.c.b16 %v2431, %v2430
      %v2531 = vpack.c.b16 %v2433, %v2432
      %v2532 = vpack.c.b16 %v2435, %v2434
      %v2533 = vpack.c.b16 %v2437, %v2436
      %v2534 = vpack.c.b16 %v2439, %v2438
      %v2535 = vpack.c.b16 %v2441, %v2440
      %v2536 = vpack.c.b16 %v2443, %v2442
      %v2537 = vpack.c.b16 %v2445, %v2444
      %v2538 = vpack.c.b16 %v2447, %v2446
      %v2539 = vpack.c.b16 %v2449, %v2448
      %v2540 = vpack.c.b16 %v2451, %v2450
      %v2541 = vpack.c.b16 %v2453, %v2452
      %v2542 = vpack.c.b16 %v2455, %v2454
      %v2543 = vpack.c.b16 %v2457, %v2456
      %v2544 = vpack.c.b16 %v2459, %v2458
      %v2545 = vpack.c.b16 %v2461, %v2460
      %v2546 = vpack.c.b16 %v2463, %v2462
      %v2547 = vpack.c.b16 %v2465, %v2464
      %v2548 = vpack.c.b16 %v2467, %v2466
      %v2549 = vpack.c.b16 %v2469, %v2468
      %v2550 = vpack.c.b16 %v2471, %v2470
      %v2551 = vpack.c.b16 %v2473, %v2472
      %v2552 = vpack.c.b16 %v2475, %v2474
      %v2553 = vpack.c.b16 %v2477, %v2476
      %v2554 = vpack.c.b16 %v2479, %v2478
      %v2555 = vpack.c.b16 %v2481, %v2480
      %v2556 = vpack.c.b16 %v2483, %v2482
      %v2557 = vpack.c.b16 %v2485, %v2484
      %v2558 = vpack.c.b16 %v2487, %v2486
      %v2559 = vpack.c.b16 %v2489, %v2488
      %v2560 = vpack.c.b16 %v2491, %v2490
      %v2561 = vpack.c.b16 %v2493, %v2492
      %v2562 = vpack.c.b16 %v2495, %v2494
      %v2563 = vpack.c.b16 %v2497, %v2496
      %v2564 = vpack.c.b16 %v2499, %v2498
      %v2565 = vpack.c.b16 %v2501, %v2500
      %v2566 = vpack.c.b16 %v2503, %v2502
      %v2567 = vpack.c.b16 %v2505, %v2504
      %v2568 = vpack.c.b16 %v2507, %v2506
      %v2569 = vpack.c.b16 %v2509, %v2508
      %v2570 = vpack.c.b16 %v2511, %v2510
      %v2571 = vpack.c.b16 %v2513, %v2512
      %v2572 = vpack.c.b16 %v2515, %v2514
      %v2573 = vpack.c.b16 %v2517, %v2516
      %2630 = vmatprep.subr.bf16.mxu0 0
      %2631 = vmatpush1.bf16.msra.mxu0 %v2525
      %2632 = vmatprep.subr.bf16.mxu0 0
      %2633 = vmatpush1.bf16.msra.mxu0 %v2524
      %2634 = vmatprep.subr.bf16.mxu0 0
      %2635 = vmatpush1.bf16.msra.mxu0 %v2523
      %2636 = vmatprep.subr.bf16.mxu0 0
      %2637 = vmatpush1.bf16.msra.mxu0 %v2522
      %2638 = vmatprep.subr.bf16.mxu0 0
      %2639 = vmatpush1.bf16.msra.mxu0 %v2521
      %2640 = vmatprep.subr.bf16.mxu0 0
      %2641 = vmatpush1.bf16.msra.mxu0 %v2520
      %2642 = vmatprep.subr.bf16.mxu0 0
      %2643 = vmatpush1.bf16.msra.mxu0 %v2519
      %2644 = vmatprep.subr.bf16.mxu0 0
      %2645 = vmatpush1.bf16.msra.mxu0 %v2518
      %2646 = vmatprep.subr.bf16.mxu0 0
      %2647 = vmatpush2.bf16.msra.mxu0 %v2533
      %2648 = vmatprep.subr.bf16.mxu0 0
      %2649 = vmatpush2.bf16.msra.mxu0 %v2532
      %2650 = vmatprep.subr.bf16.mxu0 0
      %2651 = vmatpush2.bf16.msra.mxu0 %v2531
      %2652 = vmatprep.subr.bf16.mxu0 0
      %2653 = vmatpush2.bf16.msra.mxu0 %v2530
      %2654 = vmatprep.subr.bf16.mxu0 0
      %2655 = vmatpush2.bf16.msra.mxu0 %v2529
      %2656 = vmatprep.subr.bf16.mxu0 0
      %2657 = vmatpush2.bf16.msra.mxu0 %v2528
      %2658 = vmatprep.subr.bf16.mxu0 0
      %2659 = vmatpush2.bf16.msra.mxu0 %v2527
      %2660 = vmatprep.subr.bf16.mxu0 0
      %2661 = vmatpush2.bf16.msra.mxu0 %v2526
      %2662 = vmatprep.mubr.bf16.mxu0 %v2239
      %2663 = vmatmul.mubr.bf16.gmra.mxu0 %v2238
      %v2664 = vpop.f32.mrf.mxu0
      %v2665 = vadd.f32 0.0, %v2664
      %v2666 = vpop.f32.mrf.mxu0
      %v2667 = vpop.f32.mrf.mxu0
      %v2668 = vadd.f32 0.0, %v2667
      %v2669 = vpop.f32.mrf.mxu0
      %2670 = vmatprep.mubr.bf16.mxu0 %v2246
      %2671 = vmatmul.mubr.bf16.gmra.mxu0 %v2245
      %v2672 = vpop.f32.mrf.mxu0
      %v2673 = vadd.f32 0.0, %v2672
      %v2674 = vpop.f32.mrf.mxu0
      %v2675 = vpop.f32.mrf.mxu0
      %v2676 = vadd.f32 0.0, %v2675
      %v2677 = vpop.f32.mrf.mxu0
      %2678 = vmatprep.mubr.bf16.mxu0 %v2253
      %2679 = vmatmul.mubr.bf16.gmra.mxu0 %v2252
      %v2680 = vpop.f32.mrf.mxu0
      %v2681 = vadd.f32 0.0, %v2680
      %v2682 = vpop.f32.mrf.mxu0
      %v2683 = vpop.f32.mrf.mxu0
      %v2684 = vadd.f32 0.0, %v2683
      %v2685 = vpop.f32.mrf.mxu0
      %2686 = vmatprep.mubr.bf16.mxu0 %v2260
      %2687 = vmatmul.mubr.bf16.gmra.mxu0 %v2259
      %v2688 = vpop.f32.mrf.mxu0
      %v2689 = vadd.f32 0.0, %v2688
      %v2690 = vpop.f32.mrf.mxu0
      %v2691 = vpop.f32.mrf.mxu0
      %v2692 = vadd.f32 0.0, %v2691
      %v2693 = vpop.f32.mrf.mxu0
      %2694 = vdwg.mxu0
      %2695 = vmatprep.subr.bf16.mxu0 0
      %2696 = vmatpush1.bf16.msra.mxu0 %v2541
      %2697 = vmatprep.subr.bf16.mxu0 0
      %2698 = vmatpush1.bf16.msra.mxu0 %v2540
      %2699 = vmatprep.subr.bf16.mxu0 0
      %2700 = vmatpush1.bf16.msra.mxu0 %v2539
      %2701 = vmatprep.subr.bf16.mxu0 0
      %2702 = vmatpush1.bf16.msra.mxu0 %v2538
      %2703 = vmatprep.subr.bf16.mxu0 0
      %2704 = vmatpush1.bf16.msra.mxu0 %v2537
      %2705 = vmatprep.subr.bf16.mxu0 0
      %2706 = vmatpush1.bf16.msra.mxu0 %v2536
      %2707 = vmatprep.subr.bf16.mxu0 0
      %2708 = vmatpush1.bf16.msra.mxu0 %v2535
      %2709 = vmatprep.subr.bf16.mxu0 0
      %2710 = vmatpush1.bf16.msra.mxu0 %v2534
      %2711 = vmatprep.subr.bf16.mxu0 0
      %2712 = vmatpush2.bf16.msra.mxu0 %v2549
      %2713 = vmatprep.subr.bf16.mxu0 0
      %2714 = vmatpush2.bf16.msra.mxu0 %v2548
      %2715 = vmatprep.subr.bf16.mxu0 0
      %2716 = vmatpush2.bf16.msra.mxu0 %v2547
      %2717 = vmatprep.subr.bf16.mxu0 0
      %2718 = vmatpush2.bf16.msra.mxu0 %v2546
      %2719 = vmatprep.subr.bf16.mxu0 0
      %2720 = vmatpush2.bf16.msra.mxu0 %v2545
      %2721 = vmatprep.subr.bf16.mxu0 0
      %2722 = vmatpush2.bf16.msra.mxu0 %v2544
      %2723 = vmatprep.subr.bf16.mxu0 0
      %2724 = vmatpush2.bf16.msra.mxu0 %v2543
      %2725 = vmatprep.subr.bf16.mxu0 0
      %2726 = vmatpush2.bf16.msra.mxu0 %v2542
      %2727 = vmatprep.mubr.bf16.mxu0 %v2241
      %2728 = vmatmul.mubr.bf16.gmra.mxu0 %v2240
      %v2729 = vpop.f32.mrf.mxu0
      %v2730 = vadd.f32 %v2665, %v2729
      %v2731 = vpop.f32.mrf.mxu0
      %v2732 = vpop.f32.mrf.mxu0
      %v2733 = vadd.f32 %v2668, %v2732
      %v2734 = vpop.f32.mrf.mxu0
      %2735 = vmatprep.mubr.bf16.mxu0 %v2248
      %2736 = vmatmul.mubr.bf16.gmra.mxu0 %v2247
      %v2737 = vpop.f32.mrf.mxu0
      %v2738 = vadd.f32 %v2673, %v2737
      %v2739 = vpop.f32.mrf.mxu0
      %v2740 = vpop.f32.mrf.mxu0
      %v2741 = vadd.f32 %v2676, %v2740
      %v2742 = vpop.f32.mrf.mxu0
      %2743 = vmatprep.mubr.bf16.mxu0 %v2255
      %2744 = vmatmul.mubr.bf16.gmra.mxu0 %v2254
      %v2745 = vpop.f32.mrf.mxu0
      %v2746 = vadd.f32 %v2681, %v2745
      %v2747 = vpop.f32.mrf.mxu0
      %v2748 = vpop.f32.mrf.mxu0
      %v2749 = vadd.f32 %v2684, %v2748
      %v2750 = vpop.f32.mrf.mxu0
      %2751 = vmatprep.mubr.bf16.mxu0 %v2262
      %2752 = vmatmul.mubr.bf16.gmra.mxu0 %v2261
      %v2753 = vpop.f32.mrf.mxu0
      %v2754 = vadd.f32 %v2689, %v2753
      %v2755 = vpop.f32.mrf.mxu0
      %v2756 = vpop.f32.mrf.mxu0
      %v2757 = vadd.f32 %v2692, %v2756
      %v2758 = vpop.f32.mrf.mxu0
      %2759 = vdwg.mxu0
      %2760 = vmatprep.subr.bf16.mxu0 0
      %2761 = vmatpush1.bf16.msra.mxu0 %v2557
      %2762 = vmatprep.subr.bf16.mxu0 0
      %2763 = vmatpush1.bf16.msra.mxu0 %v2556
      %2764 = vmatprep.subr.bf16.mxu0 0
      %2765 = vmatpush1.bf16.msra.mxu0 %v2555
      %2766 = vmatprep.subr.bf16.mxu0 0
      %2767 = vmatpush1.bf16.msra.mxu0 %v2554
      %2768 = vmatprep.subr.bf16.mxu0 0
      %2769 = vmatpush1.bf16.msra.mxu0 %v2553
      %2770 = vmatprep.subr.bf16.mxu0 0
      %2771 = vmatpush1.bf16.msra.mxu0 %v2552
      %2772 = vmatprep.subr.bf16.mxu0 0
      %2773 = vmatpush1.bf16.msra.mxu0 %v2551
      %2774 = vmatprep.subr.bf16.mxu0 0
      %2775 = vmatpush1.bf16.msra.mxu0 %v2550
      %2776 = vmatprep.subr.bf16.mxu0 0
      %2777 = vmatpush2.bf16.msra.mxu0 %v2565
      %2778 = vmatprep.subr.bf16.mxu0 0
      %2779 = vmatpush2.bf16.msra.mxu0 %v2564
      %2780 = vmatprep.subr.bf16.mxu0 0
      %2781 = vmatpush2.bf16.msra.mxu0 %v2563
      %2782 = vmatprep.subr.bf16.mxu0 0
      %2783 = vmatpush2.bf16.msra.mxu0 %v2562
      %2784 = vmatprep.subr.bf16.mxu0 0
      %2785 = vmatpush2.bf16.msra.mxu0 %v2561
      %2786 = vmatprep.subr.bf16.mxu0 0
      %2787 = vmatpush2.bf16.msra.mxu0 %v2560
      %2788 = vmatprep.subr.bf16.mxu0 0
      %2789 = vmatpush2.bf16.msra.mxu0 %v2559
      %2790 = vmatprep.subr.bf16.mxu0 0
      %2791 = vmatpush2.bf16.msra.mxu0 %v2558
      %2792 = vmatprep.mubr.bf16.mxu0 %v2243
      %2793 = vmatmul.mubr.bf16.gmra.mxu0 %v2242
      %v2794 = vpop.f32.mrf.mxu0
      %v2795 = vadd.f32 %v2730, %v2794
      %v2796 = vpop.f32.mrf.mxu0
      %v2797 = vpop.f32.mrf.mxu0
      %v2798 = vadd.f32 %v2733, %v2797
      %v2799 = vpop.f32.mrf.mxu0
      %2800 = vmatprep.mubr.bf16.mxu0 %v2250
      %2801 = vmatmul.mubr.bf16.gmra.mxu0 %v2249
      %v2802 = vpop.f32.mrf.mxu0
      %v2803 = vadd.f32 %v2738, %v2802
      %v2804 = vpop.f32.mrf.mxu0
      %v2805 = vpop.f32.mrf.mxu0
      %v2806 = vadd.f32 %v2741, %v2805
      %v2807 = vpop.f32.mrf.mxu0
      %2808 = vmatprep.mubr.bf16.mxu0 %v2257
      %2809 = vmatmul.mubr.bf16.gmra.mxu0 %v2256
      %v2810 = vpop.f32.mrf.mxu0
      %v2811 = vadd.f32 %v2746, %v2810
      %v2812 = vpop.f32.mrf.mxu0
      %v2813 = vpop.f32.mrf.mxu0
      %v2814 = vadd.f32 %v2749, %v2813
      %v2815 = vpop.f32.mrf.mxu0
      %2816 = vmatprep.mubr.bf16.mxu0 %v2264
      %2817 = vmatmul.mubr.bf16.gmra.mxu0 %v2263
      %v2818 = vpop.f32.mrf.mxu0
      %v2819 = vadd.f32 %v2754, %v2818
      %v2820 = vpop.f32.mrf.mxu0
      %v2821 = vpop.f32.mrf.mxu0
      %v2822 = vadd.f32 %v2757, %v2821
      %v2823 = vpop.f32.mrf.mxu0
      %2824 = vdwg.mxu0
      %2825 = vmatprep.subr.bf16.mxu0 0
      %2826 = vmatpush1.bf16.msra.mxu0 %v2573
      %2827 = vmatprep.subr.bf16.mxu0 0
      %2828 = vmatpush1.bf16.msra.mxu0 %v2572
      %2829 = vmatprep.subr.bf16.mxu0 0
      %2830 = vmatpush1.bf16.msra.mxu0 %v2571
      %2831 = vmatprep.subr.bf16.mxu0 0
      %2832 = vmatpush1.bf16.msra.mxu0 %v2570
      %2833 = vmatprep.subr.bf16.mxu0 0
      %2834 = vmatpush1.bf16.msra.mxu0 %v2569
      %2835 = vmatprep.subr.bf16.mxu0 0
      %2836 = vmatpush1.bf16.msra.mxu0 %v2568
      %2837 = vmatprep.subr.bf16.mxu0 0
      %2838 = vmatpush1.bf16.msra.mxu0 %v2567
      %2839 = vmatprep.subr.bf16.mxu0 0
      %2840 = vmatpush1.bf16.msra.mxu0 %v2566
      %2841 = vmatprep.subr.bf16.mxu0 0
      %2842 = vmatpush2.bf16.msra.mxu0 0
      %2843 = vmatprep.subr.bf16.mxu0 0
      %2844 = vmatpush2.bf16.msra.mxu0 0
      %2845 = vmatprep.subr.bf16.mxu0 0
      %2846 = vmatpush2.bf16.msra.mxu0 0
      %2847 = vmatprep.subr.bf16.mxu0 0
      %2848 = vmatpush2.bf16.msra.mxu0 0
      %2849 = vmatprep.subr.bf16.mxu0 0
      %2850 = vmatpush2.bf16.msra.mxu0 0
      %2851 = vmatprep.subr.bf16.mxu0 0
      %2852 = vmatpush2.bf16.msra.mxu0 0
      %2853 = vmatprep.subr.bf16.mxu0 0
      %2854 = vmatpush2.bf16.msra.mxu0 0
      %2855 = vmatprep.subr.bf16.mxu0 0
      %2856 = vmatpush2.bf16.msra.mxu0 0
      %2857 = vmatprep.mubr.bf16.mxu0 0
      %2858 = vmatmul.mubr.bf16.gmra.mxu0 %v2244
      %v2859 = vpop.f32.mrf.mxu0
      %v2860 = vadd.f32 %v2795, %v2859
      %v2861 = vpop.f32.mrf.mxu0
      %v2862 = vpop.f32.mrf.mxu0
      %v2863 = vadd.f32 %v2798, %v2862
      %v2864 = vpop.f32.mrf.mxu0
      %2865 = vmatprep.mubr.bf16.mxu0 0
      %2866 = vmatmul.mubr.bf16.gmra.mxu0 %v2251
      %v2867 = vpop.f32.mrf.mxu0
      %v2868 = vadd.f32 %v2803, %v2867
      %v2869 = vpop.f32.mrf.mxu0
      %v2870 = vpop.f32.mrf.mxu0
      %v2871 = vadd.f32 %v2806, %v2870
      %v2872 = vpop.f32.mrf.mxu0
      %2873 = vmatprep.mubr.bf16.mxu0 0
      %2874 = vmatmul.mubr.bf16.gmra.mxu0 %v2258
      %v2875 = vpop.f32.mrf.mxu0
      %v2876 = vadd.f32 %v2811, %v2875
      %v2877 = vpop.f32.mrf.mxu0
      %v2878 = vpop.f32.mrf.mxu0
      %v2879 = vadd.f32 %v2814, %v2878
      %v2880 = vpop.f32.mrf.mxu0
      %2881 = vmatprep.mubr.bf16.mxu0 0
      %2882 = vmatmul.mubr.bf16.gmra.mxu0 %v2265
      %v2883 = vpop.f32.mrf.mxu0
      %v2884 = vadd.f32 %v2819, %v2883
      %v2885 = vpop.f32.mrf.mxu0
      %v2886 = vpop.f32.mrf.mxu0
      %v2887 = vadd.f32 %v2822, %v2886
      %v2888 = vpop.f32.mrf.mxu0
      %2889 = vdwg.mxu0
      %v2890 = vmax.f32 %v2860, %v2868
      %v2891 = vmax.f32 %v2863, %v2871
      %v2892 = vmax.f32 %v2876, %v2884
      %v2893 = vmax.f32 %v2879, %v2887
      %v2894 = vmax.f32 %v2890, %v2892
      %v2895 = vmax.f32 %v2891, %v2893
      %v2896 = vld [vmem:[%s2] sm:$0x1]
      %v2898 = vlaneseq
      %v2899 = vshrl.u32 %v2898, 7
      %v2900 = vsub.s32 0, %v2899
      %v2901 = vrot.slane %v2896, %v2900
      %v2903 = vadd.f32 %v2894, %v2901
      %v2904 = vadd.f32 %v2895, %v2901
      %v2905 = vpack.c.bf16 %v2904, %v2903
      %v2907 = vunpack.c.l.b16 %v2905
      %v2908 = vunpack.c.h.b16 %v2905
      %v2909 = vpack.c.b16 %v2907, %v2907
      %v2910 = vpack.c.b16 %v2908, %v2908
      %s2913 = scalar_lea.vmem %s175, 16
      %2914 = vst [vmem:[%s2913] sm:$0xf] %v2909
      %2915 = vst [vmem:[%s2913 + $0x4] sm:$0xf] %v2910
      %s2916 = smul.u32 24, 7
      %s2917 = smul.addr %s2916, 4
      %s2918 = scalar_lea.vmem %s169, %s2917
      %v2919 = vld [vmem:[%s2918] sm:$0xff]
      %v2920 = vld [vmem:[%s2918 + $0x8] sm:$0xff]
      %v2921 = vld [vmem:[%s2918 + $0x10] sm:$0xff]
      %v2922 = vld [vmem:[%s2918 + $0x18] sm:$0xf]
      %v2923 = vld [vmem:[%s2918 + $0x1c] sm:$0xff]
      %v2924 = vld [vmem:[%s2918 + $0x24] sm:$0xff]
      %v2925 = vld [vmem:[%s2918 + $0x2c] sm:$0xff]
      %v2926 = vld [vmem:[%s2918 + $0x34] sm:$0xf]
      %v2927 = vld [vmem:[%s2918 + $0x38] sm:$0xff]
      %v2928 = vld [vmem:[%s2918 + $0x40] sm:$0xff]
      %v2929 = vld [vmem:[%s2918 + $0x48] sm:$0xff]
      %v2930 = vld [vmem:[%s2918 + $0x50] sm:$0xf]
      %v2931 = vld [vmem:[%s2918 + $0x54] sm:$0xff]
      %v2932 = vld [vmem:[%s2918 + $0x5c] sm:$0xff]
      %v2933 = vld [vmem:[%s2918 + $0x64] sm:$0xff]
      %v2934 = vld [vmem:[%s2918 + $0x6c] sm:$0xf]
      %v2935 = vld [vmem:[%s2918 + $0x70] sm:$0xff]
      %v2936 = vld [vmem:[%s2918 + $0x78] sm:$0xff]
      %v2937 = vld [vmem:[%s2918 + $0x80] sm:$0xff]
      %v2938 = vld [vmem:[%s2918 + $0x88] sm:$0xf]
      %v2939 = vld [vmem:[%s2918 + $0x8c] sm:$0xff]
      %v2940 = vld [vmem:[%s2918 + $0x94] sm:$0xff]
      %v2941 = vld [vmem:[%s2918 + $0x9c] sm:$0xff]
      %v2942 = vld [vmem:[%s2918 + $0xa4] sm:$0xf]
      %v2943 = vld [vmem:[%s2918 + $0xa8] sm:$0xff]
      %v2944 = vld [vmem:[%s2918 + $0xb0] sm:$0xff]
      %v2945 = vld [vmem:[%s2918 + $0xb8] sm:$0xff]
      %v2946 = vld [vmem:[%s2918 + $0xc0] sm:$0xf]
      %v2947 = vld [vmem:[%s2918 + $0xc4] sm:$0xff]
      %v2948 = vld [vmem:[%s2918 + $0xcc] sm:$0xff]
      %v2949 = vld [vmem:[%s2918 + $0xd4] sm:$0xff]
      %v2950 = vld [vmem:[%s2918 + $0xdc] sm:$0xf]
      %v2951 = vld [vmem:[%s1] sm:$0xf]
      %v2952 = vld [vmem:[%s1 + $0x4] sm:$0xf]
      %v2953 = vld [vmem:[%s1 + $0x8] sm:$0xf]
      %v2954 = vld [vmem:[%s1 + $0xc] sm:$0xf]
      %v2955 = vld [vmem:[%s1 + $0x10] sm:$0xf]
      %v2956 = vld [vmem:[%s1 + $0x14] sm:$0xf]
      %v2957 = vld [vmem:[%s1 + $0x18] sm:$0xf]
      %v2958 = vld [vmem:[%s1 + $0x1c] sm:$0xf]
      %v2959 = vld [vmem:[%s1 + $0x20] sm:$0xf]
      %v2960 = vld [vmem:[%s1 + $0x24] sm:$0xf]
      %v2961 = vld [vmem:[%s1 + $0x28] sm:$0xf]
      %v2962 = vld [vmem:[%s1 + $0x2c] sm:$0xf]
      %v2963 = vld [vmem:[%s1 + $0x30] sm:$0xf]
      %v2964 = vld [vmem:[%s1 + $0x34] sm:$0xf]
      %v2965 = vld [vmem:[%s1 + $0x38] sm:$0xf]
      %v2966 = vld [vmem:[%s1 + $0x3c] sm:$0xf]
      %v2967 = vld [vmem:[%s1 + $0x40] sm:$0xf]
      %v2968 = vld [vmem:[%s1 + $0x44] sm:$0xf]
      %v2969 = vld [vmem:[%s1 + $0x48] sm:$0xf]
      %v2970 = vld [vmem:[%s1 + $0x4c] sm:$0xf]
      %v2971 = vld [vmem:[%s1 + $0x50] sm:$0xf]
      %v2972 = vld [vmem:[%s1 + $0x54] sm:$0xf]
      %v2973 = vld [vmem:[%s1 + $0x58] sm:$0xf]
      %v2974 = vld [vmem:[%s1 + $0x5c] sm:$0xf]
      %v2975 = vld [vmem:[%s1 + $0x60] sm:$0xf]
      %v2976 = vld [vmem:[%s1 + $0x64] sm:$0xf]
      %v2977 = vld [vmem:[%s1 + $0x68] sm:$0xf]
      %v2978 = vld [vmem:[%s1 + $0x6c] sm:$0xf]
      %v2979 = vld [vmem:[%s1 + $0x70] sm:$0xf]
      %v2980 = vld [vmem:[%s1 + $0x74] sm:$0xf]
      %v2981 = vld [vmem:[%s1 + $0x78] sm:$0xf]
      %v2982 = vld [vmem:[%s1 + $0x7c] sm:$0xf]
      %v2983 = vld [vmem:[%s1 + $0x80] sm:$0xf]
      %v2984 = vld [vmem:[%s1 + $0x84] sm:$0xf]
      %v2985 = vld [vmem:[%s1 + $0x88] sm:$0xf]
      %v2986 = vld [vmem:[%s1 + $0x8c] sm:$0xf]
      %v2987 = vld [vmem:[%s1 + $0x90] sm:$0xf]
      %v2988 = vld [vmem:[%s1 + $0x94] sm:$0xf]
      %v2989 = vld [vmem:[%s1 + $0x98] sm:$0xf]
      %v2990 = vld [vmem:[%s1 + $0x9c] sm:$0xf]
      %v2991 = vld [vmem:[%s1 + $0xa0] sm:$0xf]
      %v2992 = vld [vmem:[%s1 + $0xa4] sm:$0xf]
      %v2993 = vld [vmem:[%s1 + $0xa8] sm:$0xf]
      %v2994 = vld [vmem:[%s1 + $0xac] sm:$0xf]
      %v2995 = vld [vmem:[%s1 + $0xb0] sm:$0xf]
      %v2996 = vld [vmem:[%s1 + $0xb4] sm:$0xf]
      %v2997 = vld [vmem:[%s1 + $0xb8] sm:$0xf]
      %v2998 = vld [vmem:[%s1 + $0xbc] sm:$0xf]
      %v2999 = vld [vmem:[%s1 + $0xc0] sm:$0xf]
      %v3000 = vld [vmem:[%s1 + $0xc4] sm:$0xf]
      %v3001 = vld [vmem:[%s1 + $0xc8] sm:$0xf]
      %v3002 = vld [vmem:[%s1 + $0xcc] sm:$0xf]
      %v3003 = vld [vmem:[%s1 + $0xd0] sm:$0xf]
      %v3004 = vld [vmem:[%s1 + $0xd4] sm:$0xf]
      %v3005 = vld [vmem:[%s1 + $0xd8] sm:$0xf]
      %v3006 = vld [vmem:[%s1 + $0xdc] sm:$0xf]
      %v3007 = vld [vmem:[%s1 + $0xe0] sm:$0xf]
      %v3008 = vld [vmem:[%s1 + $0xe4] sm:$0xf]
      %v3009 = vld [vmem:[%s1 + $0xe8] sm:$0xf]
      %v3010 = vld [vmem:[%s1 + $0xec] sm:$0xf]
      %v3011 = vld [vmem:[%s1 + $0xf0] sm:$0xf]
      %v3012 = vld [vmem:[%s1 + $0xf4] sm:$0xf]
      %v3013 = vld [vmem:[%s1 + $0xf8] sm:$0xf]
      %v3014 = vld [vmem:[%s1 + $0xfc] sm:$0xf]
      %v3015 = vld [vmem:[%s1 + $0x100] sm:$0xf]
      %v3016 = vld [vmem:[%s1 + $0x104] sm:$0xf]
      %v3017 = vld [vmem:[%s1 + $0x108] sm:$0xf]
      %v3018 = vld [vmem:[%s1 + $0x10c] sm:$0xf]
      %v3019 = vld [vmem:[%s1 + $0x110] sm:$0xf]
      %v3020 = vld [vmem:[%s1 + $0x114] sm:$0xf]
      %v3021 = vld [vmem:[%s1 + $0x118] sm:$0xf]
      %v3022 = vld [vmem:[%s1 + $0x11c] sm:$0xf]
      %v3023 = vld [vmem:[%s1 + $0x120] sm:$0xf]
      %v3024 = vld [vmem:[%s1 + $0x124] sm:$0xf]
      %v3025 = vld [vmem:[%s1 + $0x128] sm:$0xf]
      %v3026 = vld [vmem:[%s1 + $0x12c] sm:$0xf]
      %v3027 = vld [vmem:[%s1 + $0x130] sm:$0xf]
      %v3028 = vld [vmem:[%s1 + $0x134] sm:$0xf]
      %v3029 = vld [vmem:[%s1 + $0x138] sm:$0xf]
      %v3030 = vld [vmem:[%s1 + $0x13c] sm:$0xf]
      %v3031 = vld [vmem:[%s1 + $0x140] sm:$0xf]
      %v3032 = vld [vmem:[%s1 + $0x144] sm:$0xf]
      %v3033 = vld [vmem:[%s1 + $0x148] sm:$0xf]
      %v3034 = vld [vmem:[%s1 + $0x14c] sm:$0xf]
      %v3035 = vld [vmem:[%s1 + $0x150] sm:$0xf]
      %v3036 = vld [vmem:[%s1 + $0x154] sm:$0xf]
      %v3037 = vld [vmem:[%s1 + $0x158] sm:$0xf]
      %v3038 = vld [vmem:[%s1 + $0x15c] sm:$0xf]
      %v3039 = vld [vmem:[%s1 + $0x160] sm:$0xf]
      %v3040 = vld [vmem:[%s1 + $0x164] sm:$0xf]
      %v3041 = vld [vmem:[%s1 + $0x168] sm:$0xf]
      %v3042 = vld [vmem:[%s1 + $0x16c] sm:$0xf]
      %v3043 = vld [vmem:[%s1 + $0x170] sm:$0xf]
      %v3044 = vld [vmem:[%s1 + $0x174] sm:$0xf]
      %v3045 = vld [vmem:[%s1 + $0x178] sm:$0xf]
      %v3046 = vld [vmem:[%s1 + $0x17c] sm:$0xf]
      %v3047 = vld [vmem:[%s1 + $0x180] sm:$0xf]
      %v3048 = vld [vmem:[%s1 + $0x184] sm:$0xf]
      %v3049 = vld [vmem:[%s1 + $0x188] sm:$0xf]
      %v3050 = vld [vmem:[%s1 + $0x18c] sm:$0xf]
      %v3051 = vld [vmem:[%s1 + $0x190] sm:$0xf]
      %v3052 = vld [vmem:[%s1 + $0x194] sm:$0xf]
      %v3053 = vld [vmem:[%s1 + $0x198] sm:$0xf]
      %v3054 = vld [vmem:[%s1 + $0x19c] sm:$0xf]
      %v3055 = vld [vmem:[%s1 + $0x1a0] sm:$0xf]
      %v3056 = vld [vmem:[%s1 + $0x1a4] sm:$0xf]
      %v3057 = vld [vmem:[%s1 + $0x1a8] sm:$0xf]
      %v3058 = vld [vmem:[%s1 + $0x1ac] sm:$0xf]
      %v3059 = vld [vmem:[%s1 + $0x1b0] sm:$0xf]
      %v3060 = vld [vmem:[%s1 + $0x1b4] sm:$0xf]
      %v3061 = vld [vmem:[%s1 + $0x1b8] sm:$0xf]
      %v3062 = vld [vmem:[%s1 + $0x1bc] sm:$0xf]
      %v3095 = vunpack.c.l.b16 %v2919
      %v3096 = vunpack.c.h.b16 %v2919
      %v3097 = vunpack.c.l.b16 %v2920
      %v3098 = vunpack.c.h.b16 %v2920
      %v3099 = vunpack.c.l.b16 %v2921
      %v3100 = vunpack.c.h.b16 %v2921
      %v3101 = vunpack.c.l.b16 %v2922
      %v3102 = vunpack.c.l.b16 %v2923
      %v3103 = vunpack.c.h.b16 %v2923
      %v3104 = vunpack.c.l.b16 %v2924
      %v3105 = vunpack.c.h.b16 %v2924
      %v3106 = vunpack.c.l.b16 %v2925
      %v3107 = vunpack.c.h.b16 %v2925
      %v3108 = vunpack.c.l.b16 %v2926
      %v3109 = vunpack.c.l.b16 %v2927
      %v3110 = vunpack.c.h.b16 %v2927
      %v3111 = vunpack.c.l.b16 %v2928
      %v3112 = vunpack.c.h.b16 %v2928
      %v3113 = vunpack.c.l.b16 %v2929
      %v3114 = vunpack.c.h.b16 %v2929
      %v3115 = vunpack.c.l.b16 %v2930
      %v3116 = vunpack.c.l.b16 %v2931
      %v3117 = vunpack.c.h.b16 %v2931
      %v3118 = vunpack.c.l.b16 %v2932
      %v3119 = vunpack.c.h.b16 %v2932
      %v3120 = vunpack.c.l.b16 %v2933
      %v3121 = vunpack.c.h.b16 %v2933
      %v3122 = vunpack.c.l.b16 %v2934
      %v3123 = vunpack.c.l.b16 %v2935
      %v3124 = vunpack.c.h.b16 %v2935
      %v3125 = vunpack.c.l.b16 %v2936
      %v3126 = vunpack.c.h.b16 %v2936
      %v3127 = vunpack.c.l.b16 %v2937
      %v3128 = vunpack.c.h.b16 %v2937
      %v3129 = vunpack.c.l.b16 %v2938
      %v3130 = vunpack.c.l.b16 %v2939
      %v3131 = vunpack.c.h.b16 %v2939
      %v3132 = vunpack.c.l.b16 %v2940
      %v3133 = vunpack.c.h.b16 %v2940
      %v3134 = vunpack.c.l.b16 %v2941
      %v3135 = vunpack.c.h.b16 %v2941
      %v3136 = vunpack.c.l.b16 %v2942
      %v3137 = vunpack.c.l.b16 %v2943
      %v3138 = vunpack.c.h.b16 %v2943
      %v3139 = vunpack.c.l.b16 %v2944
      %v3140 = vunpack.c.h.b16 %v2944
      %v3141 = vunpack.c.l.b16 %v2945
      %v3142 = vunpack.c.h.b16 %v2945
      %v3143 = vunpack.c.l.b16 %v2946
      %v3144 = vunpack.c.l.b16 %v2947
      %v3145 = vunpack.c.h.b16 %v2947
      %v3146 = vunpack.c.l.b16 %v2948
      %v3147 = vunpack.c.h.b16 %v2948
      %v3148 = vunpack.c.l.b16 %v2949
      %v3149 = vunpack.c.h.b16 %v2949
      %v3150 = vunpack.c.l.b16 %v2950
      %v3151 = vpack.c.b16 %v3102, %v3095
      %v3152 = vpack.c.b16 %v3103, %v3096
      %v3153 = vpack.c.b16 %v3104, %v3097
      %v3154 = vpack.c.b16 %v3105, %v3098
      %v3155 = vpack.c.b16 %v3106, %v3099
      %v3156 = vpack.c.b16 %v3107, %v3100
      %v3157 = vpack.c.b16 %v3108, %v3101
      %v3158 = vpack.c.b16 %v3116, %v3109
      %v3159 = vpack.c.b16 %v3117, %v3110
      %v3160 = vpack.c.b16 %v3118, %v3111
      %v3161 = vpack.c.b16 %v3119, %v3112
      %v3162 = vpack.c.b16 %v3120, %v3113
      %v3163 = vpack.c.b16 %v3121, %v3114
      %v3164 = vpack.c.b16 %v3122, %v3115
      %v3165 = vpack.c.b16 %v3130, %v3123
      %v3166 = vpack.c.b16 %v3131, %v3124
      %v3167 = vpack.c.b16 %v3132, %v3125
      %v3168 = vpack.c.b16 %v3133, %v3126
      %v3169 = vpack.c.b16 %v3134, %v3127
      %v3170 = vpack.c.b16 %v3135, %v3128
      %v3171 = vpack.c.b16 %v3136, %v3129
      %v3172 = vpack.c.b16 %v3144, %v3137
      %v3173 = vpack.c.b16 %v3145, %v3138
      %v3174 = vpack.c.b16 %v3146, %v3139
      %v3175 = vpack.c.b16 %v3147, %v3140
      %v3176 = vpack.c.b16 %v3148, %v3141
      %v3177 = vpack.c.b16 %v3149, %v3142
      %v3178 = vpack.c.b16 %v3150, %v3143
      %v3319 = vunpack.c.l.b16 %v2951
      %v3320 = vunpack.c.l.b16 %v2952
      %v3321 = vunpack.c.l.b16 %v2953
      %v3322 = vunpack.c.l.b16 %v2954
      %v3323 = vunpack.c.l.b16 %v2955
      %v3324 = vunpack.c.l.b16 %v2956
      %v3325 = vunpack.c.l.b16 %v2957
      %v3326 = vunpack.c.l.b16 %v2958
      %v3327 = vunpack.c.l.b16 %v2959
      %v3328 = vunpack.c.l.b16 %v2960
      %v3329 = vunpack.c.l.b16 %v2961
      %v3330 = vunpack.c.l.b16 %v2962
      %v3331 = vunpack.c.l.b16 %v2963
      %v3332 = vunpack.c.l.b16 %v2964
      %v3333 = vunpack.c.l.b16 %v2965
      %v3334 = vunpack.c.l.b16 %v2966
      %v3335 = vunpack.c.l.b16 %v2967
      %v3336 = vunpack.c.l.b16 %v2968
      %v3337 = vunpack.c.l.b16 %v2969
      %v3338 = vunpack.c.l.b16 %v2970
      %v3339 = vunpack.c.l.b16 %v2971
      %v3340 = vunpack.c.l.b16 %v2972
      %v3341 = vunpack.c.l.b16 %v2973
      %v3342 = vunpack.c.l.b16 %v2974
      %v3343 = vunpack.c.l.b16 %v2975
      %v3344 = vunpack.c.l.b16 %v2976
      %v3345 = vunpack.c.l.b16 %v2977
      %v3346 = vunpack.c.l.b16 %v2978
      %v3347 = vunpack.c.l.b16 %v2979
      %v3348 = vunpack.c.l.b16 %v2980
      %v3349 = vunpack.c.l.b16 %v2981
      %v3350 = vunpack.c.l.b16 %v2982
      %v3351 = vunpack.c.l.b16 %v2983
      %v3352 = vunpack.c.l.b16 %v2984
      %v3353 = vunpack.c.l.b16 %v2985
      %v3354 = vunpack.c.l.b16 %v2986
      %v3355 = vunpack.c.l.b16 %v2987
      %v3356 = vunpack.c.l.b16 %v2988
      %v3357 = vunpack.c.l.b16 %v2989
      %v3358 = vunpack.c.l.b16 %v2990
      %v3359 = vunpack.c.l.b16 %v2991
      %v3360 = vunpack.c.l.b16 %v2992
      %v3361 = vunpack.c.l.b16 %v2993
      %v3362 = vunpack.c.l.b16 %v2994
      %v3363 = vunpack.c.l.b16 %v2995
      %v3364 = vunpack.c.l.b16 %v2996
      %v3365 = vunpack.c.l.b16 %v2997
      %v3366 = vunpack.c.l.b16 %v2998
      %v3367 = vunpack.c.l.b16 %v2999
      %v3368 = vunpack.c.l.b16 %v3000
      %v3369 = vunpack.c.l.b16 %v3001
      %v3370 = vunpack.c.l.b16 %v3002
      %v3371 = vunpack.c.l.b16 %v3003
      %v3372 = vunpack.c.l.b16 %v3004
      %v3373 = vunpack.c.l.b16 %v3005
      %v3374 = vunpack.c.l.b16 %v3006
      %v3375 = vunpack.c.l.b16 %v3007
      %v3376 = vunpack.c.l.b16 %v3008
      %v3377 = vunpack.c.l.b16 %v3009
      %v3378 = vunpack.c.l.b16 %v3010
      %v3379 = vunpack.c.l.b16 %v3011
      %v3380 = vunpack.c.l.b16 %v3012
      %v3381 = vunpack.c.l.b16 %v3013
      %v3382 = vunpack.c.l.b16 %v3014
      %v3383 = vunpack.c.l.b16 %v3015
      %v3384 = vunpack.c.l.b16 %v3016
      %v3385 = vunpack.c.l.b16 %v3017
      %v3386 = vunpack.c.l.b16 %v3018
      %v3387 = vunpack.c.l.b16 %v3019
      %v3388 = vunpack.c.l.b16 %v3020
      %v3389 = vunpack.c.l.b16 %v3021
      %v3390 = vunpack.c.l.b16 %v3022
      %v3391 = vunpack.c.l.b16 %v3023
      %v3392 = vunpack.c.l.b16 %v3024
      %v3393 = vunpack.c.l.b16 %v3025
      %v3394 = vunpack.c.l.b16 %v3026
      %v3395 = vunpack.c.l.b16 %v3027
      %v3396 = vunpack.c.l.b16 %v3028
      %v3397 = vunpack.c.l.b16 %v3029
      %v3398 = vunpack.c.l.b16 %v3030
      %v3399 = vunpack.c.l.b16 %v3031
      %v3400 = vunpack.c.l.b16 %v3032
      %v3401 = vunpack.c.l.b16 %v3033
      %v3402 = vunpack.c.l.b16 %v3034
      %v3403 = vunpack.c.l.b16 %v3035
      %v3404 = vunpack.c.l.b16 %v3036
      %v3405 = vunpack.c.l.b16 %v3037
      %v3406 = vunpack.c.l.b16 %v3038
      %v3407 = vunpack.c.l.b16 %v3039
      %v3408 = vunpack.c.l.b16 %v3040
      %v3409 = vunpack.c.l.b16 %v3041
      %v3410 = vunpack.c.l.b16 %v3042
      %v3411 = vunpack.c.l.b16 %v3043
      %v3412 = vunpack.c.l.b16 %v3044
      %v3413 = vunpack.c.l.b16 %v3045
      %v3414 = vunpack.c.l.b16 %v3046
      %v3415 = vunpack.c.l.b16 %v3047
      %v3416 = vunpack.c.l.b16 %v3048
      %v3417 = vunpack.c.l.b16 %v3049
      %v3418 = vunpack.c.l.b16 %v3050
      %v3419 = vunpack.c.l.b16 %v3051
      %v3420 = vunpack.c.l.b16 %v3052
      %v3421 = vunpack.c.l.b16 %v3053
      %v3422 = vunpack.c.l.b16 %v3054
      %v3423 = vunpack.c.l.b16 %v3055
      %v3424 = vunpack.c.l.b16 %v3056
      %v3425 = vunpack.c.l.b16 %v3057
      %v3426 = vunpack.c.l.b16 %v3058
      %v3427 = vunpack.c.l.b16 %v3059
      %v3428 = vunpack.c.l.b16 %v3060
      %v3429 = vunpack.c.l.b16 %v3061
      %v3430 = vunpack.c.l.b16 %v3062
      %v3431 = vpack.c.b16 %v3320, %v3319
      %v3432 = vpack.c.b16 %v3322, %v3321
      %v3433 = vpack.c.b16 %v3324, %v3323
      %v3434 = vpack.c.b16 %v3326, %v3325
      %v3435 = vpack.c.b16 %v3328, %v3327
      %v3436 = vpack.c.b16 %v3330, %v3329
      %v3437 = vpack.c.b16 %v3332, %v3331
      %v3438 = vpack.c.b16 %v3334, %v3333
      %v3439 = vpack.c.b16 %v3336, %v3335
      %v3440 = vpack.c.b16 %v3338, %v3337
      %v3441 = vpack.c.b16 %v3340, %v3339
      %v3442 = vpack.c.b16 %v3342, %v3341
      %v3443 = vpack.c.b16 %v3344, %v3343
      %v3444 = vpack.c.b16 %v3346, %v3345
      %v3445 = vpack.c.b16 %v3348, %v3347
      %v3446 = vpack.c.b16 %v3350, %v3349
      %v3447 = vpack.c.b16 %v3352, %v3351
      %v3448 = vpack.c.b16 %v3354, %v3353
      %v3449 = vpack.c.b16 %v3356, %v3355
      %v3450 = vpack.c.b16 %v3358, %v3357
      %v3451 = vpack.c.b16 %v3360, %v3359
      %v3452 = vpack.c.b16 %v3362, %v3361
      %v3453 = vpack.c.b16 %v3364, %v3363
      %v3454 = vpack.c.b16 %v3366, %v3365
      %v3455 = vpack.c.b16 %v3368, %v3367
      %v3456 = vpack.c.b16 %v3370, %v3369
      %v3457 = vpack.c.b16 %v3372, %v3371
      %v3458 = vpack.c.b16 %v3374, %v3373
      %v3459 = vpack.c.b16 %v3376, %v3375
      %v3460 = vpack.c.b16 %v3378, %v3377
      %v3461 = vpack.c.b16 %v3380, %v3379
      %v3462 = vpack.c.b16 %v3382, %v3381
      %v3463 = vpack.c.b16 %v3384, %v3383
      %v3464 = vpack.c.b16 %v3386, %v3385
      %v3465 = vpack.c.b16 %v3388, %v3387
      %v3466 = vpack.c.b16 %v3390, %v3389
      %v3467 = vpack.c.b16 %v3392, %v3391
      %v3468 = vpack.c.b16 %v3394, %v3393
      %v3469 = vpack.c.b16 %v3396, %v3395
      %v3470 = vpack.c.b16 %v3398, %v3397
      %v3471 = vpack.c.b16 %v3400, %v3399
      %v3472 = vpack.c.b16 %v3402, %v3401
      %v3473 = vpack.c.b16 %v3404, %v3403
      %v3474 = vpack.c.b16 %v3406, %v3405
      %v3475 = vpack.c.b16 %v3408, %v3407
      %v3476 = vpack.c.b16 %v3410, %v3409
      %v3477 = vpack.c.b16 %v3412, %v3411
      %v3478 = vpack.c.b16 %v3414, %v3413
      %v3479 = vpack.c.b16 %v3416, %v3415
      %v3480 = vpack.c.b16 %v3418, %v3417
      %v3481 = vpack.c.b16 %v3420, %v3419
      %v3482 = vpack.c.b16 %v3422, %v3421
      %v3483 = vpack.c.b16 %v3424, %v3423
      %v3484 = vpack.c.b16 %v3426, %v3425
      %v3485 = vpack.c.b16 %v3428, %v3427
      %v3486 = vpack.c.b16 %v3430, %v3429
      %3543 = vmatprep.subr.bf16.mxu0 0
      %3544 = vmatpush1.bf16.msra.mxu0 %v3438
      %3545 = vmatprep.subr.bf16.mxu0 0
      %3546 = vmatpush1.bf16.msra.mxu0 %v3437
      %3547 = vmatprep.subr.bf16.mxu0 0
      %3548 = vmatpush1.bf16.msra.mxu0 %v3436
      %3549 = vmatprep.subr.bf16.mxu0 0
      %3550 = vmatpush1.bf16.msra.mxu0 %v3435
      %3551 = vmatprep.subr.bf16.mxu0 0
      %3552 = vmatpush1.bf16.msra.mxu0 %v3434
      %3553 = vmatprep.subr.bf16.mxu0 0
      %3554 = vmatpush1.bf16.msra.mxu0 %v3433
      %3555 = vmatprep.subr.bf16.mxu0 0
      %3556 = vmatpush1.bf16.msra.mxu0 %v3432
      %3557 = vmatprep.subr.bf16.mxu0 0
      %3558 = vmatpush1.bf16.msra.mxu0 %v3431
      %3559 = vmatprep.subr.bf16.mxu0 0
      %3560 = vmatpush2.bf16.msra.mxu0 %v3446
      %3561 = vmatprep.subr.bf16.mxu0 0
      %3562 = vmatpush2.bf16.msra.mxu0 %v3445
      %3563 = vmatprep.subr.bf16.mxu0 0
      %3564 = vmatpush2.bf16.msra.mxu0 %v3444
      %3565 = vmatprep.subr.bf16.mxu0 0
      %3566 = vmatpush2.bf16.msra.mxu0 %v3443
      %3567 = vmatprep.subr.bf16.mxu0 0
      %3568 = vmatpush2.bf16.msra.mxu0 %v3442
      %3569 = vmatprep.subr.bf16.mxu0 0
      %3570 = vmatpush2.bf16.msra.mxu0 %v3441
      %3571 = vmatprep.subr.bf16.mxu0 0
      %3572 = vmatpush2.bf16.msra.mxu0 %v3440
      %3573 = vmatprep.subr.bf16.mxu0 0
      %3574 = vmatpush2.bf16.msra.mxu0 %v3439
      %3575 = vmatprep.mubr.bf16.mxu0 %v3152
      %3576 = vmatmul.mubr.bf16.gmra.mxu0 %v3151
      %v3577 = vpop.f32.mrf.mxu0
      %v3578 = vadd.f32 0.0, %v3577
      %v3579 = vpop.f32.mrf.mxu0
      %v3580 = vpop.f32.mrf.mxu0
      %v3581 = vadd.f32 0.0, %v3580
      %v3582 = vpop.f32.mrf.mxu0
      %3583 = vmatprep.mubr.bf16.mxu0 %v3159
      %3584 = vmatmul.mubr.bf16.gmra.mxu0 %v3158
      %v3585 = vpop.f32.mrf.mxu0
      %v3586 = vadd.f32 0.0, %v3585
      %v3587 = vpop.f32.mrf.mxu0
      %v3588 = vpop.f32.mrf.mxu0
      %v3589 = vadd.f32 0.0, %v3588
      %v3590 = vpop.f32.mrf.mxu0
      %3591 = vmatprep.mubr.bf16.mxu0 %v3166
      %3592 = vmatmul.mubr.bf16.gmra.mxu0 %v3165
      %v3593 = vpop.f32.mrf.mxu0
      %v3594 = vadd.f32 0.0, %v3593
      %v3595 = vpop.f32.mrf.mxu0
      %v3596 = vpop.f32.mrf.mxu0
      %v3597 = vadd.f32 0.0, %v3596
      %v3598 = vpop.f32.mrf.mxu0
      %3599 = vmatprep.mubr.bf16.mxu0 %v3173
      %3600 = vmatmul.mubr.bf16.gmra.mxu0 %v3172
      %v3601 = vpop.f32.mrf.mxu0
      %v3602 = vadd.f32 0.0, %v3601
      %v3603 = vpop.f32.mrf.mxu0
      %v3604 = vpop.f32.mrf.mxu0
      %v3605 = vadd.f32 0.0, %v3604
      %v3606 = vpop.f32.mrf.mxu0
      %3607 = vdwg.mxu0
      %3608 = vmatprep.subr.bf16.mxu0 0
      %3609 = vmatpush1.bf16.msra.mxu0 %v3454
      %3610 = vmatprep.subr.bf16.mxu0 0
      %3611 = vmatpush1.bf16.msra.mxu0 %v3453
      %3612 = vmatprep.subr.bf16.mxu0 0
      %3613 = vmatpush1.bf16.msra.mxu0 %v3452
      %3614 = vmatprep.subr.bf16.mxu0 0
      %3615 = vmatpush1.bf16.msra.mxu0 %v3451
      %3616 = vmatprep.subr.bf16.mxu0 0
      %3617 = vmatpush1.bf16.msra.mxu0 %v3450
      %3618 = vmatprep.subr.bf16.mxu0 0
      %3619 = vmatpush1.bf16.msra.mxu0 %v3449
      %3620 = vmatprep.subr.bf16.mxu0 0
      %3621 = vmatpush1.bf16.msra.mxu0 %v3448
      %3622 = vmatprep.subr.bf16.mxu0 0
      %3623 = vmatpush1.bf16.msra.mxu0 %v3447
      %3624 = vmatprep.subr.bf16.mxu0 0
      %3625 = vmatpush2.bf16.msra.mxu0 %v3462
      %3626 = vmatprep.subr.bf16.mxu0 0
      %3627 = vmatpush2.bf16.msra.mxu0 %v3461
      %3628 = vmatprep.subr.bf16.mxu0 0
      %3629 = vmatpush2.bf16.msra.mxu0 %v3460
      %3630 = vmatprep.subr.bf16.mxu0 0
      %3631 = vmatpush2.bf16.msra.mxu0 %v3459
      %3632 = vmatprep.subr.bf16.mxu0 0
      %3633 = vmatpush2.bf16.msra.mxu0 %v3458
      %3634 = vmatprep.subr.bf16.mxu0 0
      %3635 = vmatpush2.bf16.msra.mxu0 %v3457
      %3636 = vmatprep.subr.bf16.mxu0 0
      %3637 = vmatpush2.bf16.msra.mxu0 %v3456
      %3638 = vmatprep.subr.bf16.mxu0 0
      %3639 = vmatpush2.bf16.msra.mxu0 %v3455
      %3640 = vmatprep.mubr.bf16.mxu0 %v3154
      %3641 = vmatmul.mubr.bf16.gmra.mxu0 %v3153
      %v3642 = vpop.f32.mrf.mxu0
      %v3643 = vadd.f32 %v3578, %v3642
      %v3644 = vpop.f32.mrf.mxu0
      %v3645 = vpop.f32.mrf.mxu0
      %v3646 = vadd.f32 %v3581, %v3645
      %v3647 = vpop.f32.mrf.mxu0
      %3648 = vmatprep.mubr.bf16.mxu0 %v3161
      %3649 = vmatmul.mubr.bf16.gmra.mxu0 %v3160
      %v3650 = vpop.f32.mrf.mxu0
      %v3651 = vadd.f32 %v3586, %v3650
      %v3652 = vpop.f32.mrf.mxu0
      %v3653 = vpop.f32.mrf.mxu0
      %v3654 = vadd.f32 %v3589, %v3653
      %v3655 = vpop.f32.mrf.mxu0
      %3656 = vmatprep.mubr.bf16.mxu0 %v3168
      %3657 = vmatmul.mubr.bf16.gmra.mxu0 %v3167
      %v3658 = vpop.f32.mrf.mxu0
      %v3659 = vadd.f32 %v3594, %v3658
      %v3660 = vpop.f32.mrf.mxu0
      %v3661 = vpop.f32.mrf.mxu0
      %v3662 = vadd.f32 %v3597, %v3661
      %v3663 = vpop.f32.mrf.mxu0
      %3664 = vmatprep.mubr.bf16.mxu0 %v3175
      %3665 = vmatmul.mubr.bf16.gmra.mxu0 %v3174
      %v3666 = vpop.f32.mrf.mxu0
      %v3667 = vadd.f32 %v3602, %v3666
      %v3668 = vpop.f32.mrf.mxu0
      %v3669 = vpop.f32.mrf.mxu0
      %v3670 = vadd.f32 %v3605, %v3669
      %v3671 = vpop.f32.mrf.mxu0
      %3672 = vdwg.mxu0
      %3673 = vmatprep.subr.bf16.mxu0 0
      %3674 = vmatpush1.bf16.msra.mxu0 %v3470
      %3675 = vmatprep.subr.bf16.mxu0 0
      %3676 = vmatpush1.bf16.msra.mxu0 %v3469
      %3677 = vmatprep.subr.bf16.mxu0 0
      %3678 = vmatpush1.bf16.msra.mxu0 %v3468
      %3679 = vmatprep.subr.bf16.mxu0 0
      %3680 = vmatpush1.bf16.msra.mxu0 %v3467
      %3681 = vmatprep.subr.bf16.mxu0 0
      %3682 = vmatpush1.bf16.msra.mxu0 %v3466
      %3683 = vmatprep.subr.bf16.mxu0 0
      %3684 = vmatpush1.bf16.msra.mxu0 %v3465
      %3685 = vmatprep.subr.bf16.mxu0 0
      %3686 = vmatpush1.bf16.msra.mxu0 %v3464
      %3687 = vmatprep.subr.bf16.mxu0 0
      %3688 = vmatpush1.bf16.msra.mxu0 %v3463
      %3689 = vmatprep.subr.bf16.mxu0 0
      %3690 = vmatpush2.bf16.msra.mxu0 %v3478
      %3691 = vmatprep.subr.bf16.mxu0 0
      %3692 = vmatpush2.bf16.msra.mxu0 %v3477
      %3693 = vmatprep.subr.bf16.mxu0 0
      %3694 = vmatpush2.bf16.msra.mxu0 %v3476
      %3695 = vmatprep.subr.bf16.mxu0 0
      %3696 = vmatpush2.bf16.msra.mxu0 %v3475
      %3697 = vmatprep.subr.bf16.mxu0 0
      %3698 = vmatpush2.bf16.msra.mxu0 %v3474
      %3699 = vmatprep.subr.bf16.mxu0 0
      %3700 = vmatpush2.bf16.msra.mxu0 %v3473
      %3701 = vmatprep.subr.bf16.mxu0 0
      %3702 = vmatpush2.bf16.msra.mxu0 %v3472
      %3703 = vmatprep.subr.bf16.mxu0 0
      %3704 = vmatpush2.bf16.msra.mxu0 %v3471
      %3705 = vmatprep.mubr.bf16.mxu0 %v3156
      %3706 = vmatmul.mubr.bf16.gmra.mxu0 %v3155
      %v3707 = vpop.f32.mrf.mxu0
      %v3708 = vadd.f32 %v3643, %v3707
      %v3709 = vpop.f32.mrf.mxu0
      %v3710 = vpop.f32.mrf.mxu0
      %v3711 = vadd.f32 %v3646, %v3710
      %v3712 = vpop.f32.mrf.mxu0
      %3713 = vmatprep.mubr.bf16.mxu0 %v3163
      %3714 = vmatmul.mubr.bf16.gmra.mxu0 %v3162
      %v3715 = vpop.f32.mrf.mxu0
      %v3716 = vadd.f32 %v3651, %v3715
      %v3717 = vpop.f32.mrf.mxu0
      %v3718 = vpop.f32.mrf.mxu0
      %v3719 = vadd.f32 %v3654, %v3718
      %v3720 = vpop.f32.mrf.mxu0
      %3721 = vmatprep.mubr.bf16.mxu0 %v3170
      %3722 = vmatmul.mubr.bf16.gmra.mxu0 %v3169
      %v3723 = vpop.f32.mrf.mxu0
      %v3724 = vadd.f32 %v3659, %v3723
      %v3725 = vpop.f32.mrf.mxu0
      %v3726 = vpop.f32.mrf.mxu0
      %v3727 = vadd.f32 %v3662, %v3726
      %v3728 = vpop.f32.mrf.mxu0
      %3729 = vmatprep.mubr.bf16.mxu0 %v3177
      %3730 = vmatmul.mubr.bf16.gmra.mxu0 %v3176
      %v3731 = vpop.f32.mrf.mxu0
      %v3732 = vadd.f32 %v3667, %v3731
      %v3733 = vpop.f32.mrf.mxu0
      %v3734 = vpop.f32.mrf.mxu0
      %v3735 = vadd.f32 %v3670, %v3734
      %v3736 = vpop.f32.mrf.mxu0
      %3737 = vdwg.mxu0
      %3738 = vmatprep.subr.bf16.mxu0 0
      %3739 = vmatpush1.bf16.msra.mxu0 %v3486
      %3740 = vmatprep.subr.bf16.mxu0 0
      %3741 = vmatpush1.bf16.msra.mxu0 %v3485
      %3742 = vmatprep.subr.bf16.mxu0 0
      %3743 = vmatpush1.bf16.msra.mxu0 %v3484
      %3744 = vmatprep.subr.bf16.mxu0 0
      %3745 = vmatpush1.bf16.msra.mxu0 %v3483
      %3746 = vmatprep.subr.bf16.mxu0 0
      %3747 = vmatpush1.bf16.msra.mxu0 %v3482
      %3748 = vmatprep.subr.bf16.mxu0 0
      %3749 = vmatpush1.bf16.msra.mxu0 %v3481
      %3750 = vmatprep.subr.bf16.mxu0 0
      %3751 = vmatpush1.bf16.msra.mxu0 %v3480
      %3752 = vmatprep.subr.bf16.mxu0 0
      %3753 = vmatpush1.bf16.msra.mxu0 %v3479
      %3754 = vmatprep.subr.bf16.mxu0 0
      %3755 = vmatpush2.bf16.msra.mxu0 0
      %3756 = vmatprep.subr.bf16.mxu0 0
      %3757 = vmatpush2.bf16.msra.mxu0 0
      %3758 = vmatprep.subr.bf16.mxu0 0
      %3759 = vmatpush2.bf16.msra.mxu0 0
      %3760 = vmatprep.subr.bf16.mxu0 0
      %3761 = vmatpush2.bf16.msra.mxu0 0
      %3762 = vmatprep.subr.bf16.mxu0 0
      %3763 = vmatpush2.bf16.msra.mxu0 0
      %3764 = vmatprep.subr.bf16.mxu0 0
      %3765 = vmatpush2.bf16.msra.mxu0 0
      %3766 = vmatprep.subr.bf16.mxu0 0
      %3767 = vmatpush2.bf16.msra.mxu0 0
      %3768 = vmatprep.subr.bf16.mxu0 0
      %3769 = vmatpush2.bf16.msra.mxu0 0
      %3770 = vmatprep.mubr.bf16.mxu0 0
      %3771 = vmatmul.mubr.bf16.gmra.mxu0 %v3157
      %v3772 = vpop.f32.mrf.mxu0
      %v3773 = vadd.f32 %v3708, %v3772
      %v3774 = vpop.f32.mrf.mxu0
      %v3775 = vpop.f32.mrf.mxu0
      %v3776 = vadd.f32 %v3711, %v3775
      %v3777 = vpop.f32.mrf.mxu0
      %3778 = vmatprep.mubr.bf16.mxu0 0
      %3779 = vmatmul.mubr.bf16.gmra.mxu0 %v3164
      %v3780 = vpop.f32.mrf.mxu0
      %v3781 = vadd.f32 %v3716, %v3780
      %v3782 = vpop.f32.mrf.mxu0
      %v3783 = vpop.f32.mrf.mxu0
      %v3784 = vadd.f32 %v3719, %v3783
      %v3785 = vpop.f32.mrf.mxu0
      %3786 = vmatprep.mubr.bf16.mxu0 0
      %3787 = vmatmul.mubr.bf16.gmra.mxu0 %v3171
      %v3788 = vpop.f32.mrf.mxu0
      %v3789 = vadd.f32 %v3724, %v3788
      %v3790 = vpop.f32.mrf.mxu0
      %v3791 = vpop.f32.mrf.mxu0
      %v3792 = vadd.f32 %v3727, %v3791
      %v3793 = vpop.f32.mrf.mxu0
      %3794 = vmatprep.mubr.bf16.mxu0 0
      %3795 = vmatmul.mubr.bf16.gmra.mxu0 %v3178
      %v3796 = vpop.f32.mrf.mxu0
      %v3797 = vadd.f32 %v3732, %v3796
      %v3798 = vpop.f32.mrf.mxu0
      %v3799 = vpop.f32.mrf.mxu0
      %v3800 = vadd.f32 %v3735, %v3799
      %v3801 = vpop.f32.mrf.mxu0
      %3802 = vdwg.mxu0
      %v3803 = vmax.f32 %v3773, %v3781
      %v3804 = vmax.f32 %v3776, %v3784
      %v3805 = vmax.f32 %v3789, %v3797
      %v3806 = vmax.f32 %v3792, %v3800
      %v3807 = vmax.f32 %v3803, %v3805
      %v3808 = vmax.f32 %v3804, %v3806
      %v3809 = vld [vmem:[%s2] sm:$0x1]
      %v3811 = vlaneseq
      %v3812 = vshrl.u32 %v3811, 7
      %v3813 = vsub.s32 0, %v3812
      %v3814 = vrot.slane %v3809, %v3813
      %v3816 = vadd.f32 %v3807, %v3814
      %v3817 = vadd.f32 %v3808, %v3814
      %v3818 = vpack.c.bf16 %v3817, %v3816
      %v3820 = vunpack.c.l.b16 %v3818
      %v3821 = vunpack.c.h.b16 %v3818
      %v3822 = vpack.c.b16 %v3820, %v3820
      %v3823 = vpack.c.b16 %v3821, %v3821
      %s3826 = scalar_lea.vmem %s175, 24
      %3827 = vst [vmem:[%s3826] sm:$0xf] %v3822
      %3828 = vst [vmem:[%s3826 + $0x4] sm:$0xf] %v3823
      %s3829 = smul.u32 8, %s14
      %p3830 = scmp.lt.s32.totalorder %s3829, 15
      %s3831 = scalar_select %p3830, %s3829, 15
      %s3832 = smul.addr %s3831, 4
      %s3833 = scalar_lea.vmem %s3, %s3832
      // Predicated region
      $region33: #{cifar10_forward.4} parent=31 // pred_check
        %p3834 = pneg %p100
      $region34: #{cifar10_forward.4} parent=31 // pred_check_branch
        %3836 = sbr.rel (%p3834) target = $region36
      $region35: #{cifar10_forward.4} parent=31 // pred_region
        %s3837 = smul.u32 8, %s14
      $region36: #{cifar10_forward.4} parent=31 // pred_fallthru
        _
    $region32: #{cifar10_forward.4} parent=5 // pred_fallthru
      _
    %p3838 = scmp.le.s32.totalorder 2, %s9
    // Predicated region
    $region37: #{cifar10_forward.4} parent=5 // pred_check
      %p3839 = pneg %p3838
    $region38: #{cifar10_forward.4} parent=5 // pred_check_branch
      %3841 = sbr.rel (%p3839) target = $region40
    $region39: #{cifar10_forward.4} parent=5 // pred_region
      %s3842 = ssub.s32 %s9, 2
      // Predicated region
      $region41: #{cifar10_forward.4} parent=39 // pred_check
        %p3843 = pneg %p106
      $region42: #{cifar10_forward.4} parent=39 // pred_check_branch
        %3845 = sbr.rel (%p3843) target = $region44
      $region43: #{cifar10_forward.4} parent=39 // pred_region
        %s3846 = smul.u32 8, %s15
        %p3847 = scmp.lt.s32.totalorder %s3846, 15
        %s3848 = scalar_select %p3847, %s3846, 15
        %s3849 = smul.addr %s3848, 4
        %s3850 = scalar_lea.vmem %s3, %s3849
      $region44: #{cifar10_forward.4} parent=39 // pred_fallthru
        _
    $region40: #{cifar10_forward.4} parent=5 // pred_fallthru
      _
  $region6: #{cifar10_forward.4} parent=0 // loop_footer
    %s13 = sadd.s32 1, %s9
  $region7: #{cifar10_forward.4} parent=0 // loop_footer_branch
    %8 = sbr.rel target = $region3
  $region8: #{cifar10_forward.4} parent=0 // loop_exit
    _

// kernel: cifar10_forward.5
$region0: #{cifar10_forward.5}
  #allocation0 [shape = 'u32[]', space=smem, size = 0x4, offset = 0x4, fixed_abs, tag = 'smem constant byte address 0x4 - core index']
  #allocation1 [shape = 'u32[144,128]{1,0:T(1,128)}', space=vmem, size = 0x12000, scoped, tag = 'internal scratch']
  %s0 = inlined_call_operand.vmem [shape: bf16[128,896], index: 0, kind: input, shape index: {}]
  %s1 = inlined_call_operand.vmem [shape: bf16[896,128], index: 1, kind: input, shape index: {}]
  %s2 = inlined_call_operand.vmem [shape: f32[1,128], index: 2, kind: input, shape index: {}]
  %s3 = inlined_call_operand.vmem [shape: bf16[2048,128], index: 3, kind: input, shape index: {}]
  %s4 = inlined_call_operand.vmem [shape: f32[1,128], index: 4, kind: input, shape index: {}]
  %s5 = inlined_call_operand.hbm [shape: f32[2,128], index: 5, kind: output, shape index: {}]
  %s6 = sld [smem:[#allocation0]]
  $region30: #{cifar10_forward.5} parent=0
    _
  %s8 = ssub.s32 1, %s6
  %s9 = scalar_select 0, %s8, %s6
  $region1: #{cifar10_forward.5} parent=0
    #allocation2 [shape = 'u8[1024]{0}', space=vmem, size = 0x400, scoped, tag = 'output window, operand 0, single buffered']
    #allocation3 [shape = 's32[1]{0}', space=sflag, size = 0x4, scoped, tag = 'scoped memory for cifar10_forward.5']
    %10 = vsyncpa [#allocation3], 0
    // Predicated region
    $region2: #{cifar10_forward.5} parent=1 // pred_check
      _
    $region3: #{cifar10_forward.5} parent=1 // pred_check_branch
      %12 = sbr.rel (0) target = $region5
    $region4: #{cifar10_forward.5} parent=1 // pred_region
      _
    $region5: #{cifar10_forward.5} parent=1 // pred_fallthru
      _
    // Predicated region
    $region6: #{cifar10_forward.5} parent=1 // pred_check
      _
    $region7: #{cifar10_forward.5} parent=1 // pred_check_branch
      %14 = sbr.rel (0) target = $region9
    $region8: #{cifar10_forward.5} parent=1 // pred_region
      _
    $region9: #{cifar10_forward.5} parent=1 // pred_fallthru
      _
    // Predicated region
    $region10: #{cifar10_forward.5} parent=1 // pred_check
      _
    $region11: #{cifar10_forward.5} parent=1 // pred_check_branch
      %16 = sbr.rel (0) target = $region13
    $region12: #{cifar10_forward.5} parent=1 // pred_region
      _
    $region13: #{cifar10_forward.5} parent=1 // pred_fallthru
      _
    // Predicated region
    $region14: #{cifar10_forward.5} parent=1 // pred_check
      _
    $region15: #{cifar10_forward.5} parent=1 // pred_check_branch
      %18 = sbr.rel (0) target = $region17
    $region16: #{cifar10_forward.5} parent=1 // pred_region
      _
    $region17: #{cifar10_forward.5} parent=1 // pred_fallthru
      _
    // Predicated region
    $region18: #{cifar10_forward.5} parent=1 // pred_check
      _
    $region19: #{cifar10_forward.5} parent=1 // pred_check_branch
      %20 = sbr.rel (0) target = $region21
    $region20: #{cifar10_forward.5} parent=1 // pred_region
      _
    $region21: #{cifar10_forward.5} parent=1 // pred_fallthru
      _
    %v22 = vld [vmem:[%s0] sm:$0xff]
    %v23 = vld [vmem:[%s0 + $0x8] sm:$0xff]
    %v24 = vld [vmem:[%s0 + $0x10] sm:$0xff]
    %v25 = vld [vmem:[%s0 + $0x18] sm:$0xf]
    %v26 = vld [vmem:[%s0 + $0x1c] sm:$0xff]
    %v27 = vld [vmem:[%s0 + $0x24] sm:$0xff]
    %v28 = vld [vmem:[%s0 + $0x2c] sm:$0xff]
    %v29 = vld [vmem:[%s0 + $0x34] sm:$0xf]
    %v30 = vld [vmem:[%s0 + $0x38] sm:$0xff]
    %v31 = vld [vmem:[%s0 + $0x40] sm:$0xff]
    %v32 = vld [vmem:[%s0 + $0x48] sm:$0xff]
    %v33 = vld [vmem:[%s0 + $0x50] sm:$0xf]
    %v34 = vld [vmem:[%s0 + $0x54] sm:$0xff]
    %v35 = vld [vmem:[%s0 + $0x5c] sm:$0xff]
    %v36 = vld [vmem:[%s0 + $0x64] sm:$0xff]
    %v37 = vld [vmem:[%s0 + $0x6c] sm:$0xf]
    %v38 = vld [vmem:[%s1] sm:$0xf]
    %v39 = vld [vmem:[%s1 + $0x4] sm:$0xf]
    %v40 = vld [vmem:[%s1 + $0x8] sm:$0xf]
    %v41 = vld [vmem:[%s1 + $0xc] sm:$0xf]
    %v42 = vld [vmem:[%s1 + $0x10] sm:$0xf]
    %v43 = vld [vmem:[%s1 + $0x14] sm:$0xf]
    %v44 = vld [vmem:[%s1 + $0x18] sm:$0xf]
    %v45 = vld [vmem:[%s1 + $0x1c] sm:$0xf]
    %v46 = vld [vmem:[%s1 + $0x20] sm:$0xf]
    %v47 = vld [vmem:[%s1 + $0x24] sm:$0xf]
    %v48 = vld [vmem:[%s1 + $0x28] sm:$0xf]
    %v49 = vld [vmem:[%s1 + $0x2c] sm:$0xf]
    %v50 = vld [vmem:[%s1 + $0x30] sm:$0xf]
    %v51 = vld [vmem:[%s1 + $0x34] sm:$0xf]
    %v52 = vld [vmem:[%s1 + $0x38] sm:$0xf]
    %v53 = vld [vmem:[%s1 + $0x3c] sm:$0xf]
    %v54 = vld [vmem:[%s1 + $0x40] sm:$0xf]
    %v55 = vld [vmem:[%s1 + $0x44] sm:$0xf]
    %v56 = vld [vmem:[%s1 + $0x48] sm:$0xf]
    %v57 = vld [vmem:[%s1 + $0x4c] sm:$0xf]
    %v58 = vld [vmem:[%s1 + $0x50] sm:$0xf]
    %v59 = vld [vmem:[%s1 + $0x54] sm:$0xf]
    %v60 = vld [vmem:[%s1 + $0x58] sm:$0xf]
    %v61 = vld [vmem:[%s1 + $0x5c] sm:$0xf]
    %v62 = vld [vmem:[%s1 + $0x60] sm:$0xf]
    %v63 = vld [vmem:[%s1 + $0x64] sm:$0xf]
    %v64 = vld [vmem:[%s1 + $0x68] sm:$0xf]
    %v65 = vld [vmem:[%s1 + $0x6c] sm:$0xf]
    %v66 = vld [vmem:[%s1 + $0x70] sm:$0xf]
    %v67 = vld [vmem:[%s1 + $0x74] sm:$0xf]
    %v68 = vld [vmem:[%s1 + $0x78] sm:$0xf]
    %v69 = vld [vmem:[%s1 + $0x7c] sm:$0xf]
    %v70 = vld [vmem:[%s1 + $0x80] sm:$0xf]
    %v71 = vld [vmem:[%s1 + $0x84] sm:$0xf]
    %v72 = vld [vmem:[%s1 + $0x88] sm:$0xf]
    %v73 = vld [vmem:[%s1 + $0x8c] sm:$0xf]
    %v74 = vld [vmem:[%s1 + $0x90] sm:$0xf]
    %v75 = vld [vmem:[%s1 + $0x94] sm:$0xf]
    %v76 = vld [vmem:[%s1 + $0x98] sm:$0xf]
    %v77 = vld [vmem:[%s1 + $0x9c] sm:$0xf]
    %v78 = vld [vmem:[%s1 + $0xa0] sm:$0xf]
    %v79 = vld [vmem:[%s1 + $0xa4] sm:$0xf]
    %v80 = vld [vmem:[%s1 + $0xa8] sm:$0xf]
    %v81 = vld [vmem:[%s1 + $0xac] sm:$0xf]
    %v82 = vld [vmem:[%s1 + $0xb0] sm:$0xf]
    %v83 = vld [vmem:[%s1 + $0xb4] sm:$0xf]
    %v84 = vld [vmem:[%s1 + $0xb8] sm:$0xf]
    %v85 = vld [vmem:[%s1 + $0xbc] sm:$0xf]
    %v86 = vld [vmem:[%s1 + $0xc0] sm:$0xf]
    %v87 = vld [vmem:[%s1 + $0xc4] sm:$0xf]
    %v88 = vld [vmem:[%s1 + $0xc8] sm:$0xf]
    %v89 = vld [vmem:[%s1 + $0xcc] sm:$0xf]
    %v90 = vld [vmem:[%s1 + $0xd0] sm:$0xf]
    %v91 = vld [vmem:[%s1 + $0xd4] sm:$0xf]
    %v92 = vld [vmem:[%s1 + $0xd8] sm:$0xf]
    %v93 = vld [vmem:[%s1 + $0xdc] sm:$0xf]
    %v94 = vld [vmem:[%s1 + $0xe0] sm:$0xf]
    %v95 = vld [vmem:[%s1 + $0xe4] sm:$0xf]
    %v96 = vld [vmem:[%s1 + $0xe8] sm:$0xf]
    %v97 = vld [vmem:[%s1 + $0xec] sm:$0xf]
    %v98 = vld [vmem:[%s1 + $0xf0] sm:$0xf]
    %v99 = vld [vmem:[%s1 + $0xf4] sm:$0xf]
    %v100 = vld [vmem:[%s1 + $0xf8] sm:$0xf]
    %v101 = vld [vmem:[%s1 + $0xfc] sm:$0xf]
    %v102 = vld [vmem:[%s1 + $0x100] sm:$0xf]
    %v103 = vld [vmem:[%s1 + $0x104] sm:$0xf]
    %v104 = vld [vmem:[%s1 + $0x108] sm:$0xf]
    %v105 = vld [vmem:[%s1 + $0x10c] sm:$0xf]
    %v106 = vld [vmem:[%s1 + $0x110] sm:$0xf]
    %v107 = vld [vmem:[%s1 + $0x114] sm:$0xf]
    %v108 = vld [vmem:[%s1 + $0x118] sm:$0xf]
    %v109 = vld [vmem:[%s1 + $0x11c] sm:$0xf]
    %v110 = vld [vmem:[%s1 + $0x120] sm:$0xf]
    %v111 = vld [vmem:[%s1 + $0x124] sm:$0xf]
    %v112 = vld [vmem:[%s1 + $0x128] sm:$0xf]
    %v113 = vld [vmem:[%s1 + $0x12c] sm:$0xf]
    %v114 = vld [vmem:[%s1 + $0x130] sm:$0xf]
    %v115 = vld [vmem:[%s1 + $0x134] sm:$0xf]
    %v116 = vld [vmem:[%s1 + $0x138] sm:$0xf]
    %v117 = vld [vmem:[%s1 + $0x13c] sm:$0xf]
    %v118 = vld [vmem:[%s1 + $0x140] sm:$0xf]
    %v119 = vld [vmem:[%s1 + $0x144] sm:$0xf]
    %v120 = vld [vmem:[%s1 + $0x148] sm:$0xf]
    %v121 = vld [vmem:[%s1 + $0x14c] sm:$0xf]
    %v122 = vld [vmem:[%s1 + $0x150] sm:$0xf]
    %v123 = vld [vmem:[%s1 + $0x154] sm:$0xf]
    %v124 = vld [vmem:[%s1 + $0x158] sm:$0xf]
    %v125 = vld [vmem:[%s1 + $0x15c] sm:$0xf]
    %v126 = vld [vmem:[%s1 + $0x160] sm:$0xf]
    %v127 = vld [vmem:[%s1 + $0x164] sm:$0xf]
    %v128 = vld [vmem:[%s1 + $0x168] sm:$0xf]
    %v129 = vld [vmem:[%s1 + $0x16c] sm:$0xf]
    %v130 = vld [vmem:[%s1 + $0x170] sm:$0xf]
    %v131 = vld [vmem:[%s1 + $0x174] sm:$0xf]
    %v132 = vld [vmem:[%s1 + $0x178] sm:$0xf]
    %v133 = vld [vmem:[%s1 + $0x17c] sm:$0xf]
    %v134 = vld [vmem:[%s1 + $0x180] sm:$0xf]
    %v135 = vld [vmem:[%s1 + $0x184] sm:$0xf]
    %v136 = vld [vmem:[%s1 + $0x188] sm:$0xf]
    %v137 = vld [vmem:[%s1 + $0x18c] sm:$0xf]
    %v138 = vld [vmem:[%s1 + $0x190] sm:$0xf]
    %v139 = vld [vmem:[%s1 + $0x194] sm:$0xf]
    %v140 = vld [vmem:[%s1 + $0x198] sm:$0xf]
    %v141 = vld [vmem:[%s1 + $0x19c] sm:$0xf]
    %v142 = vld [vmem:[%s1 + $0x1a0] sm:$0xf]
    %v143 = vld [vmem:[%s1 + $0x1a4] sm:$0xf]
    %v144 = vld [vmem:[%s1 + $0x1a8] sm:$0xf]
    %v145 = vld [vmem:[%s1 + $0x1ac] sm:$0xf]
    %v146 = vld [vmem:[%s1 + $0x1b0] sm:$0xf]
    %v147 = vld [vmem:[%s1 + $0x1b4] sm:$0xf]
    %v148 = vld [vmem:[%s1 + $0x1b8] sm:$0xf]
    %v149 = vld [vmem:[%s1 + $0x1bc] sm:$0xf]
    %v166 = vunpack.c.l.b16 %v22
    %v167 = vunpack.c.h.b16 %v22
    %v168 = vunpack.c.l.b16 %v23
    %v169 = vunpack.c.h.b16 %v23
    %v170 = vunpack.c.l.b16 %v24
    %v171 = vunpack.c.h.b16 %v24
    %v172 = vunpack.c.l.b16 %v25
    %v173 = vunpack.c.l.b16 %v26
    %v174 = vunpack.c.h.b16 %v26
    %v175 = vunpack.c.l.b16 %v27
    %v176 = vunpack.c.h.b16 %v27
    %v177 = vunpack.c.l.b16 %v28
    %v178 = vunpack.c.h.b16 %v28
    %v179 = vunpack.c.l.b16 %v29
    %v180 = vunpack.c.l.b16 %v30
    %v181 = vunpack.c.h.b16 %v30
    %v182 = vunpack.c.l.b16 %v31
    %v183 = vunpack.c.h.b16 %v31
    %v184 = vunpack.c.l.b16 %v32
    %v185 = vunpack.c.h.b16 %v32
    %v186 = vunpack.c.l.b16 %v33
    %v187 = vunpack.c.l.b16 %v34
    %v188 = vunpack.c.h.b16 %v34
    %v189 = vunpack.c.l.b16 %v35
    %v190 = vunpack.c.h.b16 %v35
    %v191 = vunpack.c.l.b16 %v36
    %v192 = vunpack.c.h.b16 %v36
    %v193 = vunpack.c.l.b16 %v37
    %v194 = vpack.c.b16 %v173, %v166
    %v195 = vpack.c.b16 %v174, %v167
    %v196 = vpack.c.b16 %v175, %v168
    %v197 = vpack.c.b16 %v176, %v169
    %v198 = vpack.c.b16 %v177, %v170
    %v199 = vpack.c.b16 %v178, %v171
    %v200 = vpack.c.b16 %v179, %v172
    %v201 = vpack.c.b16 %v187, %v180
    %v202 = vpack.c.b16 %v188, %v181
    %v203 = vpack.c.b16 %v189, %v182
    %v204 = vpack.c.b16 %v190, %v183
    %v205 = vpack.c.b16 %v191, %v184
    %v206 = vpack.c.b16 %v192, %v185
    %v207 = vpack.c.b16 %v193, %v186
    %v334 = vunpack.c.l.b16 %v38
    %v335 = vunpack.c.l.b16 %v39
    %v336 = vunpack.c.l.b16 %v40
    %v337 = vunpack.c.l.b16 %v41
    %v338 = vunpack.c.l.b16 %v42
    %v339 = vunpack.c.l.b16 %v43
    %v340 = vunpack.c.l.b16 %v44
    %v341 = vunpack.c.l.b16 %v45
    %v342 = vunpack.c.l.b16 %v46
    %v343 = vunpack.c.l.b16 %v47
    %v344 = vunpack.c.l.b16 %v48
    %v345 = vunpack.c.l.b16 %v49
    %v346 = vunpack.c.l.b16 %v50
    %v347 = vunpack.c.l.b16 %v51
    %v348 = vunpack.c.l.b16 %v52
    %v349 = vunpack.c.l.b16 %v53
    %v350 = vunpack.c.l.b16 %v54
    %v351 = vunpack.c.l.b16 %v55
    %v352 = vunpack.c.l.b16 %v56
    %v353 = vunpack.c.l.b16 %v57
    %v354 = vunpack.c.l.b16 %v58
    %v355 = vunpack.c.l.b16 %v59
    %v356 = vunpack.c.l.b16 %v60
    %v357 = vunpack.c.l.b16 %v61
    %v358 = vunpack.c.l.b16 %v62
    %v359 = vunpack.c.l.b16 %v63
    %v360 = vunpack.c.l.b16 %v64
    %v361 = vunpack.c.l.b16 %v65
    %v362 = vunpack.c.l.b16 %v66
    %v363 = vunpack.c.l.b16 %v67
    %v364 = vunpack.c.l.b16 %v68
    %v365 = vunpack.c.l.b16 %v69
    %v366 = vunpack.c.l.b16 %v70
    %v367 = vunpack.c.l.b16 %v71
    %v368 = vunpack.c.l.b16 %v72
    %v369 = vunpack.c.l.b16 %v73
    %v370 = vunpack.c.l.b16 %v74
    %v371 = vunpack.c.l.b16 %v75
    %v372 = vunpack.c.l.b16 %v76
    %v373 = vunpack.c.l.b16 %v77
    %v374 = vunpack.c.l.b16 %v78
    %v375 = vunpack.c.l.b16 %v79
    %v376 = vunpack.c.l.b16 %v80
    %v377 = vunpack.c.l.b16 %v81
    %v378 = vunpack.c.l.b16 %v82
    %v379 = vunpack.c.l.b16 %v83
    %v380 = vunpack.c.l.b16 %v84
    %v381 = vunpack.c.l.b16 %v85
    %v382 = vunpack.c.l.b16 %v86
    %v383 = vunpack.c.l.b16 %v87
    %v384 = vunpack.c.l.b16 %v88
    %v385 = vunpack.c.l.b16 %v89
    %v386 = vunpack.c.l.b16 %v90
    %v387 = vunpack.c.l.b16 %v91
    %v388 = vunpack.c.l.b16 %v92
    %v389 = vunpack.c.l.b16 %v93
    %v390 = vunpack.c.l.b16 %v94
    %v391 = vunpack.c.l.b16 %v95
    %v392 = vunpack.c.l.b16 %v96
    %v393 = vunpack.c.l.b16 %v97
    %v394 = vunpack.c.l.b16 %v98
    %v395 = vunpack.c.l.b16 %v99
    %v396 = vunpack.c.l.b16 %v100
    %v397 = vunpack.c.l.b16 %v101
    %v398 = vunpack.c.l.b16 %v102
    %v399 = vunpack.c.l.b16 %v103
    %v400 = vunpack.c.l.b16 %v104
    %v401 = vunpack.c.l.b16 %v105
    %v402 = vunpack.c.l.b16 %v106
    %v403 = vunpack.c.l.b16 %v107
    %v404 = vunpack.c.l.b16 %v108
    %v405 = vunpack.c.l.b16 %v109
    %v406 = vunpack.c.l.b16 %v110
    %v407 = vunpack.c.l.b16 %v111
    %v408 = vunpack.c.l.b16 %v112
    %v409 = vunpack.c.l.b16 %v113
    %v410 = vunpack.c.l.b16 %v114
    %v411 = vunpack.c.l.b16 %v115
    %v412 = vunpack.c.l.b16 %v116
    %v413 = vunpack.c.l.b16 %v117
    %v414 = vunpack.c.l.b16 %v118
    %v415 = vunpack.c.l.b16 %v119
    %v416 = vunpack.c.l.b16 %v120
    %v417 = vunpack.c.l.b16 %v121
    %v418 = vunpack.c.l.b16 %v122
    %v419 = vunpack.c.l.b16 %v123
    %v420 = vunpack.c.l.b16 %v124
    %v421 = vunpack.c.l.b16 %v125
    %v422 = vunpack.c.l.b16 %v126
    %v423 = vunpack.c.l.b16 %v127
    %v424 = vunpack.c.l.b16 %v128
    %v425 = vunpack.c.l.b16 %v129
    %v426 = vunpack.c.l.b16 %v130
    %v427 = vunpack.c.l.b16 %v131
    %v428 = vunpack.c.l.b16 %v132
    %v429 = vunpack.c.l.b16 %v133
    %v430 = vunpack.c.l.b16 %v134
    %v431 = vunpack.c.l.b16 %v135
    %v432 = vunpack.c.l.b16 %v136
    %v433 = vunpack.c.l.b16 %v137
    %v434 = vunpack.c.l.b16 %v138
    %v435 = vunpack.c.l.b16 %v139
    %v436 = vunpack.c.l.b16 %v140
    %v437 = vunpack.c.l.b16 %v141
    %v438 = vunpack.c.l.b16 %v142
    %v439 = vunpack.c.l.b16 %v143
    %v440 = vunpack.c.l.b16 %v144
    %v441 = vunpack.c.l.b16 %v145
    %v442 = vunpack.c.l.b16 %v146
    %v443 = vunpack.c.l.b16 %v147
    %v444 = vunpack.c.l.b16 %v148
    %v445 = vunpack.c.l.b16 %v149
    %v446 = vpack.c.b16 %v335, %v334
    %v447 = vpack.c.b16 %v337, %v336
    %v448 = vpack.c.b16 %v339, %v338
    %v449 = vpack.c.b16 %v341, %v340
    %v450 = vpack.c.b16 %v343, %v342
    %v451 = vpack.c.b16 %v345, %v344
    %v452 = vpack.c.b16 %v347, %v346
    %v453 = vpack.c.b16 %v349, %v348
    %v454 = vpack.c.b16 %v351, %v350
    %v455 = vpack.c.b16 %v353, %v352
    %v456 = vpack.c.b16 %v355, %v354
    %v457 = vpack.c.b16 %v357, %v356
    %v458 = vpack.c.b16 %v359, %v358
    %v459 = vpack.c.b16 %v361, %v360
    %v460 = vpack.c.b16 %v363, %v362
    %v461 = vpack.c.b16 %v365, %v364
    %v462 = vpack.c.b16 %v367, %v366
    %v463 = vpack.c.b16 %v369, %v368
    %v464 = vpack.c.b16 %v371, %v370
    %v465 = vpack.c.b16 %v373, %v372
    %v466 = vpack.c.b16 %v375, %v374
    %v467 = vpack.c.b16 %v377, %v376
    %v468 = vpack.c.b16 %v379, %v378
    %v469 = vpack.c.b16 %v381, %v380
    %v470 = vpack.c.b16 %v383, %v382
    %v471 = vpack.c.b16 %v385, %v384
    %v472 = vpack.c.b16 %v387, %v386
    %v473 = vpack.c.b16 %v389, %v388
    %v474 = vpack.c.b16 %v391, %v390
    %v475 = vpack.c.b16 %v393, %v392
    %v476 = vpack.c.b16 %v395, %v394
    %v477 = vpack.c.b16 %v397, %v396
    %v478 = vpack.c.b16 %v399, %v398
    %v479 = vpack.c.b16 %v401, %v400
    %v480 = vpack.c.b16 %v403, %v402
    %v481 = vpack.c.b16 %v405, %v404
    %v482 = vpack.c.b16 %v407, %v406
    %v483 = vpack.c.b16 %v409, %v408
    %v484 = vpack.c.b16 %v411, %v410
    %v485 = vpack.c.b16 %v413, %v412
    %v486 = vpack.c.b16 %v415, %v414
    %v487 = vpack.c.b16 %v417, %v416
    %v488 = vpack.c.b16 %v419, %v418
    %v489 = vpack.c.b16 %v421, %v420
    %v490 = vpack.c.b16 %v423, %v422
    %v491 = vpack.c.b16 %v425, %v424
    %v492 = vpack.c.b16 %v427, %v426
    %v493 = vpack.c.b16 %v429, %v428
    %v494 = vpack.c.b16 %v431, %v430
    %v495 = vpack.c.b16 %v433, %v432
    %v496 = vpack.c.b16 %v435, %v434
    %v497 = vpack.c.b16 %v437, %v436
    %v498 = vpack.c.b16 %v439, %v438
    %v499 = vpack.c.b16 %v441, %v440
    %v500 = vpack.c.b16 %v443, %v442
    %v501 = vpack.c.b16 %v445, %v444
    %558 = vmatprep.subr.bf16.mxu0 0
    %559 = vmatpush1.bf16.msra.mxu0 %v453
    %560 = vmatprep.subr.bf16.mxu0 0
    %561 = vmatpush1.bf16.msra.mxu0 %v452
    %562 = vmatprep.subr.bf16.mxu0 0
    %563 = vmatpush1.bf16.msra.mxu0 %v451
    %564 = vmatprep.subr.bf16.mxu0 0
    %565 = vmatpush1.bf16.msra.mxu0 %v450
    %566 = vmatprep.subr.bf16.mxu0 0
    %567 = vmatpush1.bf16.msra.mxu0 %v449
    %568 = vmatprep.subr.bf16.mxu0 0
    %569 = vmatpush1.bf16.msra.mxu0 %v448
    %570 = vmatprep.subr.bf16.mxu0 0
    %571 = vmatpush1.bf16.msra.mxu0 %v447
    %572 = vmatprep.subr.bf16.mxu0 0
    %573 = vmatpush1.bf16.msra.mxu0 %v446
    %574 = vmatprep.subr.bf16.mxu0 0
    %575 = vmatpush2.bf16.msra.mxu0 %v461
    %576 = vmatprep.subr.bf16.mxu0 0
    %577 = vmatpush2.bf16.msra.mxu0 %v460
    %578 = vmatprep.subr.bf16.mxu0 0
    %579 = vmatpush2.bf16.msra.mxu0 %v459
    %580 = vmatprep.subr.bf16.mxu0 0
    %581 = vmatpush2.bf16.msra.mxu0 %v458
    %582 = vmatprep.subr.bf16.mxu0 0
    %583 = vmatpush2.bf16.msra.mxu0 %v457
    %584 = vmatprep.subr.bf16.mxu0 0
    %585 = vmatpush2.bf16.msra.mxu0 %v456
    %586 = vmatprep.subr.bf16.mxu0 0
    %587 = vmatpush2.bf16.msra.mxu0 %v455
    %588 = vmatprep.subr.bf16.mxu0 0
    %589 = vmatpush2.bf16.msra.mxu0 %v454
    %590 = vmatprep.mubr.bf16.mxu0 %v195
    %591 = vmatmul.mubr.bf16.gmra.mxu0 %v194
    %v592 = vpop.f32.mrf.mxu0
    %v593 = vadd.f32 0.0, %v592
    %v594 = vpop.f32.mrf.mxu0
    %v595 = vpop.f32.mrf.mxu0
    %v596 = vadd.f32 0.0, %v595
    %v597 = vpop.f32.mrf.mxu0
    %598 = vmatprep.mubr.bf16.mxu0 %v202
    %599 = vmatmul.mubr.bf16.gmra.mxu0 %v201
    %v600 = vpop.f32.mrf.mxu0
    %v601 = vadd.f32 0.0, %v600
    %v602 = vpop.f32.mrf.mxu0
    %v603 = vpop.f32.mrf.mxu0
    %v604 = vadd.f32 0.0, %v603
    %v605 = vpop.f32.mrf.mxu0
    %606 = vdwg.mxu0
    %607 = vmatprep.subr.bf16.mxu0 0
    %608 = vmatpush1.bf16.msra.mxu0 %v469
    %609 = vmatprep.subr.bf16.mxu0 0
    %610 = vmatpush1.bf16.msra.mxu0 %v468
    %611 = vmatprep.subr.bf16.mxu0 0
    %612 = vmatpush1.bf16.msra.mxu0 %v467
    %613 = vmatprep.subr.bf16.mxu0 0
    %614 = vmatpush1.bf16.msra.mxu0 %v466
    %615 = vmatprep.subr.bf16.mxu0 0
    %616 = vmatpush1.bf16.msra.mxu0 %v465
    %617 = vmatprep.subr.bf16.mxu0 0
    %618 = vmatpush1.bf16.msra.mxu0 %v464
    %619 = vmatprep.subr.bf16.mxu0 0
    %620 = vmatpush1.bf16.msra.mxu0 %v463
    %621 = vmatprep.subr.bf16.mxu0 0
    %622 = vmatpush1.bf16.msra.mxu0 %v462
    %623 = vmatprep.subr.bf16.mxu0 0
    %624 = vmatpush2.bf16.msra.mxu0 %v477
    %625 = vmatprep.subr.bf16.mxu0 0
    %626 = vmatpush2.bf16.msra.mxu0 %v476
    %627 = vmatprep.subr.bf16.mxu0 0
    %628 = vmatpush2.bf16.msra.mxu0 %v475
    %629 = vmatprep.subr.bf16.mxu0 0
    %630 = vmatpush2.bf16.msra.mxu0 %v474
    %631 = vmatprep.subr.bf16.mxu0 0
    %632 = vmatpush2.bf16.msra.mxu0 %v473
    %633 = vmatprep.subr.bf16.mxu0 0
    %634 = vmatpush2.bf16.msra.mxu0 %v472
    %635 = vmatprep.subr.bf16.mxu0 0
    %636 = vmatpush2.bf16.msra.mxu0 %v471
    %637 = vmatprep.subr.bf16.mxu0 0
    %638 = vmatpush2.bf16.msra.mxu0 %v470
    %639 = vmatprep.mubr.bf16.mxu0 %v197
    %640 = vmatmul.mubr.bf16.gmra.mxu0 %v196
    %v641 = vpop.f32.mrf.mxu0
    %v642 = vadd.f32 %v593, %v641
    %v643 = vpop.f32.mrf.mxu0
    %v644 = vpop.f32.mrf.mxu0
    %v645 = vadd.f32 %v596, %v644
    %v646 = vpop.f32.mrf.mxu0
    %647 = vmatprep.mubr.bf16.mxu0 %v204
    %648 = vmatmul.mubr.bf16.gmra.mxu0 %v203
    %v649 = vpop.f32.mrf.mxu0
    %v650 = vadd.f32 %v601, %v649
    %v651 = vpop.f32.mrf.mxu0
    %v652 = vpop.f32.mrf.mxu0
    %v653 = vadd.f32 %v604, %v652
    %v654 = vpop.f32.mrf.mxu0
    %655 = vdwg.mxu0
    %656 = vmatprep.subr.bf16.mxu0 0
    %657 = vmatpush1.bf16.msra.mxu0 %v485
    %658 = vmatprep.subr.bf16.mxu0 0
    %659 = vmatpush1.bf16.msra.mxu0 %v484
    %660 = vmatprep.subr.bf16.mxu0 0
    %661 = vmatpush1.bf16.msra.mxu0 %v483
    %662 = vmatprep.subr.bf16.mxu0 0
    %663 = vmatpush1.bf16.msra.mxu0 %v482
    %664 = vmatprep.subr.bf16.mxu0 0
    %665 = vmatpush1.bf16.msra.mxu0 %v481
    %666 = vmatprep.subr.bf16.mxu0 0
    %667 = vmatpush1.bf16.msra.mxu0 %v480
    %668 = vmatprep.subr.bf16.mxu0 0
    %669 = vmatpush1.bf16.msra.mxu0 %v479
    %670 = vmatprep.subr.bf16.mxu0 0
    %671 = vmatpush1.bf16.msra.mxu0 %v478
    %672 = vmatprep.subr.bf16.mxu0 0
    %673 = vmatpush2.bf16.msra.mxu0 %v493
    %674 = vmatprep.subr.bf16.mxu0 0
    %675 = vmatpush2.bf16.msra.mxu0 %v492
    %676 = vmatprep.subr.bf16.mxu0 0
    %677 = vmatpush2.bf16.msra.mxu0 %v491
    %678 = vmatprep.subr.bf16.mxu0 0
    %679 = vmatpush2.bf16.msra.mxu0 %v490
    %680 = vmatprep.subr.bf16.mxu0 0
    %681 = vmatpush2.bf16.msra.mxu0 %v489
    %682 = vmatprep.subr.bf16.mxu0 0
    %683 = vmatpush2.bf16.msra.mxu0 %v488
    %684 = vmatprep.subr.bf16.mxu0 0
    %685 = vmatpush2.bf16.msra.mxu0 %v487
    %686 = vmatprep.subr.bf16.mxu0 0
    %687 = vmatpush2.bf16.msra.mxu0 %v486
    %688 = vmatprep.mubr.bf16.mxu0 %v199
    %689 = vmatmul.mubr.bf16.gmra.mxu0 %v198
    %v690 = vpop.f32.mrf.mxu0
    %v691 = vadd.f32 %v642, %v690
    %v692 = vpop.f32.mrf.mxu0
    %v693 = vpop.f32.mrf.mxu0
    %v694 = vadd.f32 %v645, %v693
    %v695 = vpop.f32.mrf.mxu0
    %696 = vmatprep.mubr.bf16.mxu0 %v206
    %697 = vmatmul.mubr.bf16.gmra.mxu0 %v205
    %v698 = vpop.f32.mrf.mxu0
    %v699 = vadd.f32 %v650, %v698
    %v700 = vpop.f32.mrf.mxu0
    %v701 = vpop.f32.mrf.mxu0
    %v702 = vadd.f32 %v653, %v701
    %v703 = vpop.f32.mrf.mxu0
    %704 = vdwg.mxu0
    %705 = vmatprep.subr.bf16.mxu0 0
    %706 = vmatpush1.bf16.msra.mxu0 %v501
    %707 = vmatprep.subr.bf16.mxu0 0
    %708 = vmatpush1.bf16.msra.mxu0 %v500
    %709 = vmatprep.subr.bf16.mxu0 0
    %710 = vmatpush1.bf16.msra.mxu0 %v499
    %711 = vmatprep.subr.bf16.mxu0 0
    %712 = vmatpush1.bf16.msra.mxu0 %v498
    %713 = vmatprep.subr.bf16.mxu0 0
    %714 = vmatpush1.bf16.msra.mxu0 %v497
    %715 = vmatprep.subr.bf16.mxu0 0
    %716 = vmatpush1.bf16.msra.mxu0 %v496
    %717 = vmatprep.subr.bf16.mxu0 0
    %718 = vmatpush1.bf16.msra.mxu0 %v495
    %719 = vmatprep.subr.bf16.mxu0 0
    %720 = vmatpush1.bf16.msra.mxu0 %v494
    %721 = vmatprep.subr.bf16.mxu0 0
    %722 = vmatpush2.bf16.msra.mxu0 0
    %723 = vmatprep.subr.bf16.mxu0 0
    %724 = vmatpush2.bf16.msra.mxu0 0
    %725 = vmatprep.subr.bf16.mxu0 0
    %726 = vmatpush2.bf16.msra.mxu0 0
    %727 = vmatprep.subr.bf16.mxu0 0
    %728 = vmatpush2.bf16.msra.mxu0 0
    %729 = vmatprep.subr.bf16.mxu0 0
    %730 = vmatpush2.bf16.msra.mxu0 0
    %731 = vmatprep.subr.bf16.mxu0 0
    %732 = vmatpush2.bf16.msra.mxu0 0
    %733 = vmatprep.subr.bf16.mxu0 0
    %734 = vmatpush2.bf16.msra.mxu0 0
    %735 = vmatprep.subr.bf16.mxu0 0
    %736 = vmatpush2.bf16.msra.mxu0 0
    %737 = vmatprep.mubr.bf16.mxu0 0
    %738 = vmatmul.mubr.bf16.gmra.mxu0 %v200
    %v739 = vpop.f32.mrf.mxu0
    %v740 = vadd.f32 %v691, %v739
    %v741 = vpop.f32.mrf.mxu0
    %v742 = vpop.f32.mrf.mxu0
    %v743 = vadd.f32 %v694, %v742
    %v744 = vpop.f32.mrf.mxu0
    %745 = vmatprep.mubr.bf16.mxu0 0
    %746 = vmatmul.mubr.bf16.gmra.mxu0 %v207
    %v747 = vpop.f32.mrf.mxu0
    %v748 = vadd.f32 %v699, %v747
    %v749 = vpop.f32.mrf.mxu0
    %v750 = vpop.f32.mrf.mxu0
    %v751 = vadd.f32 %v702, %v750
    %v752 = vpop.f32.mrf.mxu0
    %753 = vdwg.mxu0
    %v754 = vmax.f32 %v740, %v743
    %v755 = vmax.f32 %v748, %v751
    %v756 = vmax.f32 %v754, %v755
    %v757 = vld [vmem:[%s2] sm:$0x1]
    %v759 = vlaneseq
    %v760 = vshrl.u32 %v759, 7
    %v761 = vsub.s32 0, %v760
    %v762 = vrot.slane %v757, %v761
    %v764 = vadd.f32 %v756, %v762
    %v765 = vpack.c.bf16 %v764, %v764
    %v766 = vld [vmem:[%s3] sm:$0xf]
    %v767 = vld [vmem:[%s3 + $0x4] sm:$0xf]
    %v768 = vld [vmem:[%s3 + $0x8] sm:$0xf]
    %v769 = vld [vmem:[%s3 + $0xc] sm:$0xf]
    %v770 = vld [vmem:[%s3 + $0x10] sm:$0xf]
    %v771 = vld [vmem:[%s3 + $0x14] sm:$0xf]
    %v772 = vld [vmem:[%s3 + $0x18] sm:$0xf]
    %v773 = vld [vmem:[%s3 + $0x1c] sm:$0xf]
    %v774 = vld [vmem:[%s3 + $0x20] sm:$0xf]
    %v775 = vld [vmem:[%s3 + $0x24] sm:$0xf]
    %v776 = vld [vmem:[%s3 + $0x28] sm:$0xf]
    %v777 = vld [vmem:[%s3 + $0x2c] sm:$0xf]
    %v778 = vld [vmem:[%s3 + $0x30] sm:$0xf]
    %v779 = vld [vmem:[%s3 + $0x34] sm:$0xf]
    %v780 = vld [vmem:[%s3 + $0x38] sm:$0xf]
    %v781 = vld [vmem:[%s3 + $0x3c] sm:$0xf]
    %v782 = vld [vmem:[%s3 + $0x40] sm:$0xf]
    %v783 = vld [vmem:[%s3 + $0x44] sm:$0xf]
    %v784 = vld [vmem:[%s3 + $0x48] sm:$0xf]
    %v785 = vld [vmem:[%s3 + $0x4c] sm:$0xf]
    %v786 = vld [vmem:[%s3 + $0x50] sm:$0xf]
    %v787 = vld [vmem:[%s3 + $0x54] sm:$0xf]
    %v788 = vld [vmem:[%s3 + $0x58] sm:$0xf]
    %v789 = vld [vmem:[%s3 + $0x5c] sm:$0xf]
    %v790 = vld [vmem:[%s3 + $0x60] sm:$0xf]
    %v791 = vld [vmem:[%s3 + $0x64] sm:$0xf]
    %v792 = vld [vmem:[%s3 + $0x68] sm:$0xf]
    %v793 = vld [vmem:[%s3 + $0x6c] sm:$0xf]
    %v794 = vld [vmem:[%s3 + $0x70] sm:$0xf]
    %v795 = vld [vmem:[%s3 + $0x74] sm:$0xf]
    %v796 = vld [vmem:[%s3 + $0x78] sm:$0xf]
    %v797 = vld [vmem:[%s3 + $0x7c] sm:$0xf]
    %v799 = vrot.slane %v765, 1
    %v817 = vunpack.c.l.b16 %v782
    %v818 = vunpack.c.l.b16 %v783
    %v819 = vunpack.c.l.b16 %v784
    %v820 = vunpack.c.l.b16 %v785
    %v821 = vunpack.c.l.b16 %v786
    %v822 = vunpack.c.l.b16 %v787
    %v823 = vunpack.c.l.b16 %v788
    %v824 = vunpack.c.l.b16 %v789
    %v825 = vunpack.c.l.b16 %v790
    %v826 = vunpack.c.l.b16 %v791
    %v827 = vunpack.c.l.b16 %v792
    %v828 = vunpack.c.l.b16 %v793
    %v829 = vunpack.c.l.b16 %v794
    %v830 = vunpack.c.l.b16 %v795
    %v831 = vunpack.c.l.b16 %v796
    %v832 = vunpack.c.l.b16 %v797
    %v833 = vpack.c.b16 %v818, %v817
    %v834 = vpack.c.b16 %v820, %v819
    %v835 = vpack.c.b16 %v822, %v821
    %v836 = vpack.c.b16 %v824, %v823
    %v837 = vpack.c.b16 %v826, %v825
    %v838 = vpack.c.b16 %v828, %v827
    %v839 = vpack.c.b16 %v830, %v829
    %v840 = vpack.c.b16 %v832, %v831
    %849 = vmatprep.subr.bf16.mxu0 0
    %850 = vmatpush1.bf16.msra.mxu0 %v840
    %851 = vmatprep.subr.bf16.mxu0 0
    %852 = vmatpush1.bf16.msra.mxu0 %v839
    %853 = vmatprep.subr.bf16.mxu0 0
    %854 = vmatpush1.bf16.msra.mxu0 %v838
    %855 = vmatprep.subr.bf16.mxu0 0
    %856 = vmatpush1.bf16.msra.mxu0 %v837
    %857 = vmatprep.subr.bf16.mxu0 0
    %858 = vmatpush1.bf16.msra.mxu0 %v836
    %859 = vmatprep.subr.bf16.mxu0 0
    %860 = vmatpush1.bf16.msra.mxu0 %v835
    %861 = vmatprep.subr.bf16.mxu0 0
    %862 = vmatpush1.bf16.msra.mxu0 %v834
    %863 = vmatprep.subr.bf16.mxu0 0
    %864 = vmatpush1.bf16.msra.mxu0 %v833
    %865 = vmatprep.subr.bf16.mxu0 0
    %866 = vmatpush2.bf16.msra.mxu0 0
    %867 = vmatprep.subr.bf16.mxu0 0
    %868 = vmatpush2.bf16.msra.mxu0 0
    %869 = vmatprep.subr.bf16.mxu0 0
    %870 = vmatpush2.bf16.msra.mxu0 0
    %871 = vmatprep.subr.bf16.mxu0 0
    %872 = vmatpush2.bf16.msra.mxu0 0
    %873 = vmatprep.subr.bf16.mxu0 0
    %874 = vmatpush2.bf16.msra.mxu0 0
    %875 = vmatprep.subr.bf16.mxu0 0
    %876 = vmatpush2.bf16.msra.mxu0 0
    %877 = vmatprep.subr.bf16.mxu0 0
    %878 = vmatpush2.bf16.msra.mxu0 0
    %879 = vmatprep.subr.bf16.mxu0 0
    %880 = vmatpush2.bf16.msra.mxu0 0
    %881 = vmatprep.mubr.bf16.mxu0 0
    %882 = vmatmul.mubr.bf16.gmra.mxu0 %v799
    %v883 = vpop.f32.mrf.mxu0
    %v884 = vadd.f32 0.0, %v883
    %v885 = vpop.f32.mrf.mxu0
    %v886 = vpop.f32.mrf.mxu0
    %v887 = vpop.f32.mrf.mxu0
    %888 = vdwg.mxu0
    %v905 = vunpack.c.l.b16 %v766
    %v906 = vunpack.c.l.b16 %v767
    %v907 = vunpack.c.l.b16 %v768
    %v908 = vunpack.c.l.b16 %v769
    %v909 = vunpack.c.l.b16 %v770
    %v910 = vunpack.c.l.b16 %v771
    %v911 = vunpack.c.l.b16 %v772
    %v912 = vunpack.c.l.b16 %v773
    %v913 = vunpack.c.l.b16 %v774
    %v914 = vunpack.c.l.b16 %v775
    %v915 = vunpack.c.l.b16 %v776
    %v916 = vunpack.c.l.b16 %v777
    %v917 = vunpack.c.l.b16 %v778
    %v918 = vunpack.c.l.b16 %v779
    %v919 = vunpack.c.l.b16 %v780
    %v920 = vunpack.c.l.b16 %v781
    %v921 = vpack.c.b16 %v906, %v905
    %v922 = vpack.c.b16 %v908, %v907
    %v923 = vpack.c.b16 %v910, %v909
    %v924 = vpack.c.b16 %v912, %v911
    %v925 = vpack.c.b16 %v914, %v913
    %v926 = vpack.c.b16 %v916, %v915
    %v927 = vpack.c.b16 %v918, %v917
    %v928 = vpack.c.b16 %v920, %v919
    %937 = vmatprep.subr.bf16.mxu0 0
    %938 = vmatpush1.bf16.msra.mxu0 %v928
    %939 = vmatprep.subr.bf16.mxu0 0
    %940 = vmatpush1.bf16.msra.mxu0 %v927
    %941 = vmatprep.subr.bf16.mxu0 0
    %942 = vmatpush1.bf16.msra.mxu0 %v926
    %943 = vmatprep.subr.bf16.mxu0 0
    %944 = vmatpush1.bf16.msra.mxu0 %v925
    %945 = vmatprep.subr.bf16.mxu0 0
    %946 = vmatpush1.bf16.msra.mxu0 %v924
    %947 = vmatprep.subr.bf16.mxu0 0
    %948 = vmatpush1.bf16.msra.mxu0 %v923
    %949 = vmatprep.subr.bf16.mxu0 0
    %950 = vmatpush1.bf16.msra.mxu0 %v922
    %951 = vmatprep.subr.bf16.mxu0 0
    %952 = vmatpush1.bf16.msra.mxu0 %v921
    %953 = vmatprep.subr.bf16.mxu0 0
    %954 = vmatpush2.bf16.msra.mxu0 0
    %955 = vmatprep.subr.bf16.mxu0 0
    %956 = vmatpush2.bf16.msra.mxu0 0
    %957 = vmatprep.subr.bf16.mxu0 0
    %958 = vmatpush2.bf16.msra.mxu0 0
    %959 = vmatprep.subr.bf16.mxu0 0
    %960 = vmatpush2.bf16.msra.mxu0 0
    %961 = vmatprep.subr.bf16.mxu0 0
    %962 = vmatpush2.bf16.msra.mxu0 0
    %963 = vmatprep.subr.bf16.mxu0 0
    %964 = vmatpush2.bf16.msra.mxu0 0
    %965 = vmatprep.subr.bf16.mxu0 0
    %966 = vmatpush2.bf16.msra.mxu0 0
    %967 = vmatprep.subr.bf16.mxu0 0
    %968 = vmatpush2.bf16.msra.mxu0 0
    %969 = vmatprep.mubr.bf16.mxu0 0
    %970 = vmatmul.mubr.bf16.gmra.mxu0 %v765
    %v971 = vpop.f32.mrf.mxu0
    %v972 = vadd.f32 %v884, %v971
    %v973 = vpop.f32.mrf.mxu0
    %v974 = vpop.f32.mrf.mxu0
    %v975 = vpop.f32.mrf.mxu0
    %976 = vdwg.mxu0
    %v977 = vld [vmem:[%s3 + $0x80] sm:$0xf]
    %v978 = vld [vmem:[%s3 + $0x84] sm:$0xf]
    %v979 = vld [vmem:[%s3 + $0x88] sm:$0xf]
    %v980 = vld [vmem:[%s3 + $0x8c] sm:$0xf]
    %v981 = vld [vmem:[%s3 + $0x90] sm:$0xf]
    %v982 = vld [vmem:[%s3 + $0x94] sm:$0xf]
    %v983 = vld [vmem:[%s3 + $0x98] sm:$0xf]
    %v984 = vld [vmem:[%s3 + $0x9c] sm:$0xf]
    %v985 = vld [vmem:[%s3 + $0xa0] sm:$0xf]
    %v986 = vld [vmem:[%s3 + $0xa4] sm:$0xf]
    %v987 = vld [vmem:[%s3 + $0xa8] sm:$0xf]
    %v988 = vld [vmem:[%s3 + $0xac] sm:$0xf]
    %v989 = vld [vmem:[%s3 + $0xb0] sm:$0xf]
    %v990 = vld [vmem:[%s3 + $0xb4] sm:$0xf]
    %v991 = vld [vmem:[%s3 + $0xb8] sm:$0xf]
    %v992 = vld [vmem:[%s3 + $0xbc] sm:$0xf]
    %v993 = vrot.slane %v765, 2
    %v1011 = vunpack.c.l.b16 %v977
    %v1012 = vunpack.c.l.b16 %v978
    %v1013 = vunpack.c.l.b16 %v979
    %v1014 = vunpack.c.l.b16 %v980
    %v1015 = vunpack.c.l.b16 %v981
    %v1016 = vunpack.c.l.b16 %v982
    %v1017 = vunpack.c.l.b16 %v983
    %v1018 = vunpack.c.l.b16 %v984
    %v1019 = vunpack.c.l.b16 %v985
    %v1020 = vunpack.c.l.b16 %v986
    %v1021 = vunpack.c.l.b16 %v987
    %v1022 = vunpack.c.l.b16 %v988
    %v1023 = vunpack.c.l.b16 %v989
    %v1024 = vunpack.c.l.b16 %v990
    %v1025 = vunpack.c.l.b16 %v991
    %v1026 = vunpack.c.l.b16 %v992
    %v1027 = vpack.c.b16 %v1012, %v1011
    %v1028 = vpack.c.b16 %v1014, %v1013
    %v1029 = vpack.c.b16 %v1016, %v1015
    %v1030 = vpack.c.b16 %v1018, %v1017
    %v1031 = vpack.c.b16 %v1020, %v1019
    %v1032 = vpack.c.b16 %v1022, %v1021
    %v1033 = vpack.c.b16 %v1024, %v1023
    %v1034 = vpack.c.b16 %v1026, %v1025
    %1043 = vmatprep.subr.bf16.mxu0 0
    %1044 = vmatpush1.bf16.msra.mxu0 %v1034
    %1045 = vmatprep.subr.bf16.mxu0 0
    %1046 = vmatpush1.bf16.msra.mxu0 %v1033
    %1047 = vmatprep.subr.bf16.mxu0 0
    %1048 = vmatpush1.bf16.msra.mxu0 %v1032
    %1049 = vmatprep.subr.bf16.mxu0 0
    %1050 = vmatpush1.bf16.msra.mxu0 %v1031
    %1051 = vmatprep.subr.bf16.mxu0 0
    %1052 = vmatpush1.bf16.msra.mxu0 %v1030
    %1053 = vmatprep.subr.bf16.mxu0 0
    %1054 = vmatpush1.bf16.msra.mxu0 %v1029
    %1055 = vmatprep.subr.bf16.mxu0 0
    %1056 = vmatpush1.bf16.msra.mxu0 %v1028
    %1057 = vmatprep.subr.bf16.mxu0 0
    %1058 = vmatpush1.bf16.msra.mxu0 %v1027
    %1059 = vmatprep.subr.bf16.mxu0 0
    %1060 = vmatpush2.bf16.msra.mxu0 0
    %1061 = vmatprep.subr.bf16.mxu0 0
    %1062 = vmatpush2.bf16.msra.mxu0 0
    %1063 = vmatprep.subr.bf16.mxu0 0
    %1064 = vmatpush2.bf16.msra.mxu0 0
    %1065 = vmatprep.subr.bf16.mxu0 0
    %1066 = vmatpush2.bf16.msra.mxu0 0
    %1067 = vmatprep.subr.bf16.mxu0 0
    %1068 = vmatpush2.bf16.msra.mxu0 0
    %1069 = vmatprep.subr.bf16.mxu0 0
    %1070 = vmatpush2.bf16.msra.mxu0 0
    %1071 = vmatprep.subr.bf16.mxu0 0
    %1072 = vmatpush2.bf16.msra.mxu0 0
    %1073 = vmatprep.subr.bf16.mxu0 0
    %1074 = vmatpush2.bf16.msra.mxu0 0
    %1075 = vmatprep.mubr.bf16.mxu0 0
    %1076 = vmatmul.mubr.bf16.gmra.mxu0 %v993
    %v1077 = vpop.f32.mrf.mxu0
    %v1078 = vadd.f32 0.0, %v1077
    %v1079 = vpop.f32.mrf.mxu0
    %v1080 = vpop.f32.mrf.mxu0
    %v1081 = vpop.f32.mrf.mxu0
    %1082 = vdwg.mxu0
    %v1083 = vadd.f32 %v972, %v1078
    %v1084 = vld [vmem:[%s3 + $0xc0] sm:$0xf]
    %v1085 = vld [vmem:[%s3 + $0xc4] sm:$0xf]
    %v1086 = vld [vmem:[%s3 + $0xc8] sm:$0xf]
    %v1087 = vld [vmem:[%s3 + $0xcc] sm:$0xf]
    %v1088 = vld [vmem:[%s3 + $0xd0] sm:$0xf]
    %v1089 = vld [vmem:[%s3 + $0xd4] sm:$0xf]
    %v1090 = vld [vmem:[%s3 + $0xd8] sm:$0xf]
    %v1091 = vld [vmem:[%s3 + $0xdc] sm:$0xf]
    %v1092 = vld [vmem:[%s3 + $0xe0] sm:$0xf]
    %v1093 = vld [vmem:[%s3 + $0xe4] sm:$0xf]
    %v1094 = vld [vmem:[%s3 + $0xe8] sm:$0xf]
    %v1095 = vld [vmem:[%s3 + $0xec] sm:$0xf]
    %v1096 = vld [vmem:[%s3 + $0xf0] sm:$0xf]
    %v1097 = vld [vmem:[%s3 + $0xf4] sm:$0xf]
    %v1098 = vld [vmem:[%s3 + $0xf8] sm:$0xf]
    %v1099 = vld [vmem:[%s3 + $0xfc] sm:$0xf]
    %v1100 = vrot.slane %v765, 3
    %v1118 = vunpack.c.l.b16 %v1084
    %v1119 = vunpack.c.l.b16 %v1085
    %v1120 = vunpack.c.l.b16 %v1086
    %v1121 = vunpack.c.l.b16 %v1087
    %v1122 = vunpack.c.l.b16 %v1088
    %v1123 = vunpack.c.l.b16 %v1089
    %v1124 = vunpack.c.l.b16 %v1090
    %v1125 = vunpack.c.l.b16 %v1091
    %v1126 = vunpack.c.l.b16 %v1092
    %v1127 = vunpack.c.l.b16 %v1093
    %v1128 = vunpack.c.l.b16 %v1094
    %v1129 = vunpack.c.l.b16 %v1095
    %v1130 = vunpack.c.l.b16 %v1096
    %v1131 = vunpack.c.l.b16 %v1097
    %v1132 = vunpack.c.l.b16 %v1098
    %v1133 = vunpack.c.l.b16 %v1099
    %v1134 = vpack.c.b16 %v1119, %v1118
    %v1135 = vpack.c.b16 %v1121, %v1120
    %v1136 = vpack.c.b16 %v1123, %v1122
    %v1137 = vpack.c.b16 %v1125, %v1124
    %v1138 = vpack.c.b16 %v1127, %v1126
    %v1139 = vpack.c.b16 %v1129, %v1128
    %v1140 = vpack.c.b16 %v1131, %v1130
    %v1141 = vpack.c.b16 %v1133, %v1132
    %1150 = vmatprep.subr.bf16.mxu0 0
    %1151 = vmatpush1.bf16.msra.mxu0 %v1141
    %1152 = vmatprep.subr.bf16.mxu0 0
    %1153 = vmatpush1.bf16.msra.mxu0 %v1140
    %1154 = vmatprep.subr.bf16.mxu0 0
    %1155 = vmatpush1.bf16.msra.mxu0 %v1139
    %1156 = vmatprep.subr.bf16.mxu0 0
    %1157 = vmatpush1.bf16.msra.mxu0 %v1138
    %1158 = vmatprep.subr.bf16.mxu0 0
    %1159 = vmatpush1.bf16.msra.mxu0 %v1137
    %1160 = vmatprep.subr.bf16.mxu0 0
    %1161 = vmatpush1.bf16.msra.mxu0 %v1136
    %1162 = vmatprep.subr.bf16.mxu0 0
    %1163 = vmatpush1.bf16.msra.mxu0 %v1135
    %1164 = vmatprep.subr.bf16.mxu0 0
    %1165 = vmatpush1.bf16.msra.mxu0 %v1134
    %1166 = vmatprep.subr.bf16.mxu0 0
    %1167 = vmatpush2.bf16.msra.mxu0 0
    %1168 = vmatprep.subr.bf16.mxu0 0
    %1169 = vmatpush2.bf16.msra.mxu0 0
    %1170 = vmatprep.subr.bf16.mxu0 0
    %1171 = vmatpush2.bf16.msra.mxu0 0
    %1172 = vmatprep.subr.bf16.mxu0 0
    %1173 = vmatpush2.bf16.msra.mxu0 0
    %1174 = vmatprep.subr.bf16.mxu0 0
    %1175 = vmatpush2.bf16.msra.mxu0 0
    %1176 = vmatprep.subr.bf16.mxu0 0
    %1177 = vmatpush2.bf16.msra.mxu0 0
    %1178 = vmatprep.subr.bf16.mxu0 0
    %1179 = vmatpush2.bf16.msra.mxu0 0
    %1180 = vmatprep.subr.bf16.mxu0 0
    %1181 = vmatpush2.bf16.msra.mxu0 0
    %1182 = vmatprep.mubr.bf16.mxu0 0
    %1183 = vmatmul.mubr.bf16.gmra.mxu0 %v1100
    %v1184 = vpop.f32.mrf.mxu0
    %v1185 = vadd.f32 0.0, %v1184
    %v1186 = vpop.f32.mrf.mxu0
    %v1187 = vpop.f32.mrf.mxu0
    %v1188 = vpop.f32.mrf.mxu0
    %1189 = vdwg.mxu0
    %v1190 = vadd.f32 %v1083, %v1185
    %v1191 = vld [vmem:[%s0 + $0x70] sm:$0xff]
    %v1192 = vld [vmem:[%s0 + $0x78] sm:$0xff]
    %v1193 = vld [vmem:[%s0 + $0x80] sm:$0xff]
    %v1194 = vld [vmem:[%s0 + $0x88] sm:$0xf]
    %v1195 = vld [vmem:[%s0 + $0x8c] sm:$0xff]
    %v1196 = vld [vmem:[%s0 + $0x94] sm:$0xff]
    %v1197 = vld [vmem:[%s0 + $0x9c] sm:$0xff]
    %v1198 = vld [vmem:[%s0 + $0xa4] sm:$0xf]
    %v1199 = vld [vmem:[%s0 + $0xa8] sm:$0xff]
    %v1200 = vld [vmem:[%s0 + $0xb0] sm:$0xff]
    %v1201 = vld [vmem:[%s0 + $0xb8] sm:$0xff]
    %v1202 = vld [vmem:[%s0 + $0xc0] sm:$0xf]
    %v1203 = vld [vmem:[%s0 + $0xc4] sm:$0xff]
    %v1204 = vld [vmem:[%s0 + $0xcc] sm:$0xff]
    %v1205 = vld [vmem:[%s0 + $0xd4] sm:$0xff]
    %v1206 = vld [vmem:[%s0 + $0xdc] sm:$0xf]
    %v1223 = vunpack.c.l.b16 %v1191
    %v1224 = vunpack.c.h.b16 %v1191
    %v1225 = vunpack.c.l.b16 %v1192
    %v1226 = vunpack.c.h.b16 %v1192
    %v1227 = vunpack.c.l.b16 %v1193
    %v1228 = vunpack.c.h.b16 %v1193
    %v1229 = vunpack.c.l.b16 %v1194
    %v1230 = vunpack.c.l.b16 %v1195
    %v1231 = vunpack.c.h.b16 %v1195
    %v1232 = vunpack.c.l.b16 %v1196
    %v1233 = vunpack.c.h.b16 %v1196
    %v1234 = vunpack.c.l.b16 %v1197
    %v1235 = vunpack.c.h.b16 %v1197
    %v1236 = vunpack.c.l.b16 %v1198
    %v1237 = vunpack.c.l.b16 %v1199
    %v1238 = vunpack.c.h.b16 %v1199
    %v1239 = vunpack.c.l.b16 %v1200
    %v1240 = vunpack.c.h.b16 %v1200
    %v1241 = vunpack.c.l.b16 %v1201
    %v1242 = vunpack.c.h.b16 %v1201
    %v1243 = vunpack.c.l.b16 %v1202
    %v1244 = vunpack.c.l.b16 %v1203
    %v1245 = vunpack.c.h.b16 %v1203
    %v1246 = vunpack.c.l.b16 %v1204
    %v1247 = vunpack.c.h.b16 %v1204
    %v1248 = vunpack.c.l.b16 %v1205
    %v1249 = vunpack.c.h.b16 %v1205
    %v1250 = vunpack.c.l.b16 %v1206
    %v1251 = vpack.c.b16 %v1230, %v1223
    %v1252 = vpack.c.b16 %v1231, %v1224
    %v1253 = vpack.c.b16 %v1232, %v1225
    %v1254 = vpack.c.b16 %v1233, %v1226
    %v1255 = vpack.c.b16 %v1234, %v1227
    %v1256 = vpack.c.b16 %v1235, %v1228
    %v1257 = vpack.c.b16 %v1236, %v1229
    %v1258 = vpack.c.b16 %v1244, %v1237
    %v1259 = vpack.c.b16 %v1245, %v1238
    %v1260 = vpack.c.b16 %v1246, %v1239
    %v1261 = vpack.c.b16 %v1247, %v1240
    %v1262 = vpack.c.b16 %v1248, %v1241
    %v1263 = vpack.c.b16 %v1249, %v1242
    %v1264 = vpack.c.b16 %v1250, %v1243
    %1279 = vmatprep.subr.bf16.mxu0 0
    %1280 = vmatpush1.bf16.msra.mxu0 %v453
    %1281 = vmatprep.subr.bf16.mxu0 0
    %1282 = vmatpush1.bf16.msra.mxu0 %v452
    %1283 = vmatprep.subr.bf16.mxu0 0
    %1284 = vmatpush1.bf16.msra.mxu0 %v451
    %1285 = vmatprep.subr.bf16.mxu0 0
    %1286 = vmatpush1.bf16.msra.mxu0 %v450
    %1287 = vmatprep.subr.bf16.mxu0 0
    %1288 = vmatpush1.bf16.msra.mxu0 %v449
    %1289 = vmatprep.subr.bf16.mxu0 0
    %1290 = vmatpush1.bf16.msra.mxu0 %v448
    %1291 = vmatprep.subr.bf16.mxu0 0
    %1292 = vmatpush1.bf16.msra.mxu0 %v447
    %1293 = vmatprep.subr.bf16.mxu0 0
    %1294 = vmatpush1.bf16.msra.mxu0 %v446
    %1295 = vmatprep.subr.bf16.mxu0 0
    %1296 = vmatpush2.bf16.msra.mxu0 %v461
    %1297 = vmatprep.subr.bf16.mxu0 0
    %1298 = vmatpush2.bf16.msra.mxu0 %v460
    %1299 = vmatprep.subr.bf16.mxu0 0
    %1300 = vmatpush2.bf16.msra.mxu0 %v459
    %1301 = vmatprep.subr.bf16.mxu0 0
    %1302 = vmatpush2.bf16.msra.mxu0 %v458
    %1303 = vmatprep.subr.bf16.mxu0 0
    %1304 = vmatpush2.bf16.msra.mxu0 %v457
    %1305 = vmatprep.subr.bf16.mxu0 0
    %1306 = vmatpush2.bf16.msra.mxu0 %v456
    %1307 = vmatprep.subr.bf16.mxu0 0
    %1308 = vmatpush2.bf16.msra.mxu0 %v455
    %1309 = vmatprep.subr.bf16.mxu0 0
    %1310 = vmatpush2.bf16.msra.mxu0 %v454
    %1311 = vmatprep.mubr.bf16.mxu0 %v1252
    %1312 = vmatmul.mubr.bf16.gmra.mxu0 %v1251
    %v1313 = vpop.f32.mrf.mxu0
    %v1314 = vadd.f32 0.0, %v1313
    %v1315 = vpop.f32.mrf.mxu0
    %v1316 = vpop.f32.mrf.mxu0
    %v1317 = vadd.f32 0.0, %v1316
    %v1318 = vpop.f32.mrf.mxu0
    %1319 = vmatprep.mubr.bf16.mxu0 %v1259
    %1320 = vmatmul.mubr.bf16.gmra.mxu0 %v1258
    %v1321 = vpop.f32.mrf.mxu0
    %v1322 = vadd.f32 0.0, %v1321
    %v1323 = vpop.f32.mrf.mxu0
    %v1324 = vpop.f32.mrf.mxu0
    %v1325 = vadd.f32 0.0, %v1324
    %v1326 = vpop.f32.mrf.mxu0
    %1327 = vdwg.mxu0
    %1328 = vmatprep.subr.bf16.mxu0 0
    %1329 = vmatpush1.bf16.msra.mxu0 %v469
    %1330 = vmatprep.subr.bf16.mxu0 0
    %1331 = vmatpush1.bf16.msra.mxu0 %v468
    %1332 = vmatprep.subr.bf16.mxu0 0
    %1333 = vmatpush1.bf16.msra.mxu0 %v467
    %1334 = vmatprep.subr.bf16.mxu0 0
    %1335 = vmatpush1.bf16.msra.mxu0 %v466
    %1336 = vmatprep.subr.bf16.mxu0 0
    %1337 = vmatpush1.bf16.msra.mxu0 %v465
    %1338 = vmatprep.subr.bf16.mxu0 0
    %1339 = vmatpush1.bf16.msra.mxu0 %v464
    %1340 = vmatprep.subr.bf16.mxu0 0
    %1341 = vmatpush1.bf16.msra.mxu0 %v463
    %1342 = vmatprep.subr.bf16.mxu0 0
    %1343 = vmatpush1.bf16.msra.mxu0 %v462
    %1344 = vmatprep.subr.bf16.mxu0 0
    %1345 = vmatpush2.bf16.msra.mxu0 %v477
    %1346 = vmatprep.subr.bf16.mxu0 0
    %1347 = vmatpush2.bf16.msra.mxu0 %v476
    %1348 = vmatprep.subr.bf16.mxu0 0
    %1349 = vmatpush2.bf16.msra.mxu0 %v475
    %1350 = vmatprep.subr.bf16.mxu0 0
    %1351 = vmatpush2.bf16.msra.mxu0 %v474
    %1352 = vmatprep.subr.bf16.mxu0 0
    %1353 = vmatpush2.bf16.msra.mxu0 %v473
    %1354 = vmatprep.subr.bf16.mxu0 0
    %1355 = vmatpush2.bf16.msra.mxu0 %v472
    %1356 = vmatprep.subr.bf16.mxu0 0
    %1357 = vmatpush2.bf16.msra.mxu0 %v471
    %1358 = vmatprep.subr.bf16.mxu0 0
    %1359 = vmatpush2.bf16.msra.mxu0 %v470
    %1360 = vmatprep.mubr.bf16.mxu0 %v1254
    %1361 = vmatmul.mubr.bf16.gmra.mxu0 %v1253
    %v1362 = vpop.f32.mrf.mxu0
    %v1363 = vadd.f32 %v1314, %v1362
    %v1364 = vpop.f32.mrf.mxu0
    %v1365 = vpop.f32.mrf.mxu0
    %v1366 = vadd.f32 %v1317, %v1365
    %v1367 = vpop.f32.mrf.mxu0
    %1368 = vmatprep.mubr.bf16.mxu0 %v1261
    %1369 = vmatmul.mubr.bf16.gmra.mxu0 %v1260
    %v1370 = vpop.f32.mrf.mxu0
    %v1371 = vadd.f32 %v1322, %v1370
    %v1372 = vpop.f32.mrf.mxu0
    %v1373 = vpop.f32.mrf.mxu0
    %v1374 = vadd.f32 %v1325, %v1373
    %v1375 = vpop.f32.mrf.mxu0
    %1376 = vdwg.mxu0
    %1377 = vmatprep.subr.bf16.mxu0 0
    %1378 = vmatpush1.bf16.msra.mxu0 %v485
    %1379 = vmatprep.subr.bf16.mxu0 0
    %1380 = vmatpush1.bf16.msra.mxu0 %v484
    %1381 = vmatprep.subr.bf16.mxu0 0
    %1382 = vmatpush1.bf16.msra.mxu0 %v483
    %1383 = vmatprep.subr.bf16.mxu0 0
    %1384 = vmatpush1.bf16.msra.mxu0 %v482
    %1385 = vmatprep.subr.bf16.mxu0 0
    %1386 = vmatpush1.bf16.msra.mxu0 %v481
    %1387 = vmatprep.subr.bf16.mxu0 0
    %1388 = vmatpush1.bf16.msra.mxu0 %v480
    %1389 = vmatprep.subr.bf16.mxu0 0
    %1390 = vmatpush1.bf16.msra.mxu0 %v479
    %1391 = vmatprep.subr.bf16.mxu0 0
    %1392 = vmatpush1.bf16.msra.mxu0 %v478
    %1393 = vmatprep.subr.bf16.mxu0 0
    %1394 = vmatpush2.bf16.msra.mxu0 %v493
    %1395 = vmatprep.subr.bf16.mxu0 0
    %1396 = vmatpush2.bf16.msra.mxu0 %v492
    %1397 = vmatprep.subr.bf16.mxu0 0
    %1398 = vmatpush2.bf16.msra.mxu0 %v491
    %1399 = vmatprep.subr.bf16.mxu0 0
    %1400 = vmatpush2.bf16.msra.mxu0 %v490
    %1401 = vmatprep.subr.bf16.mxu0 0
    %1402 = vmatpush2.bf16.msra.mxu0 %v489
    %1403 = vmatprep.subr.bf16.mxu0 0
    %1404 = vmatpush2.bf16.msra.mxu0 %v488
    %1405 = vmatprep.subr.bf16.mxu0 0
    %1406 = vmatpush2.bf16.msra.mxu0 %v487
    %1407 = vmatprep.subr.bf16.mxu0 0
    %1408 = vmatpush2.bf16.msra.mxu0 %v486
    %1409 = vmatprep.mubr.bf16.mxu0 %v1256
    %1410 = vmatmul.mubr.bf16.gmra.mxu0 %v1255
    %v1411 = vpop.f32.mrf.mxu0
    %v1412 = vadd.f32 %v1363, %v1411
    %v1413 = vpop.f32.mrf.mxu0
    %v1414 = vpop.f32.mrf.mxu0
    %v1415 = vadd.f32 %v1366, %v1414
    %v1416 = vpop.f32.mrf.mxu0
    %1417 = vmatprep.mubr.bf16.mxu0 %v1263
    %1418 = vmatmul.mubr.bf16.gmra.mxu0 %v1262
    %v1419 = vpop.f32.mrf.mxu0
    %v1420 = vadd.f32 %v1371, %v1419
    %v1421 = vpop.f32.mrf.mxu0
    %v1422 = vpop.f32.mrf.mxu0
    %v1423 = vadd.f32 %v1374, %v1422
    %v1424 = vpop.f32.mrf.mxu0
    %1425 = vdwg.mxu0
    %1426 = vmatprep.subr.bf16.mxu0 0
    %1427 = vmatpush1.bf16.msra.mxu0 %v501
    %1428 = vmatprep.subr.bf16.mxu0 0
    %1429 = vmatpush1.bf16.msra.mxu0 %v500
    %1430 = vmatprep.subr.bf16.mxu0 0
    %1431 = vmatpush1.bf16.msra.mxu0 %v499
    %1432 = vmatprep.subr.bf16.mxu0 0
    %1433 = vmatpush1.bf16.msra.mxu0 %v498
    %1434 = vmatprep.subr.bf16.mxu0 0
    %1435 = vmatpush1.bf16.msra.mxu0 %v497
    %1436 = vmatprep.subr.bf16.mxu0 0
    %1437 = vmatpush1.bf16.msra.mxu0 %v496
    %1438 = vmatprep.subr.bf16.mxu0 0
    %1439 = vmatpush1.bf16.msra.mxu0 %v495
    %1440 = vmatprep.subr.bf16.mxu0 0
    %1441 = vmatpush1.bf16.msra.mxu0 %v494
    %1442 = vmatprep.subr.bf16.mxu0 0
    %1443 = vmatpush2.bf16.msra.mxu0 0
    %1444 = vmatprep.subr.bf16.mxu0 0
    %1445 = vmatpush2.bf16.msra.mxu0 0
    %1446 = vmatprep.subr.bf16.mxu0 0
    %1447 = vmatpush2.bf16.msra.mxu0 0
    %1448 = vmatprep.subr.bf16.mxu0 0
    %1449 = vmatpush2.bf16.msra.mxu0 0
    %1450 = vmatprep.subr.bf16.mxu0 0
    %1451 = vmatpush2.bf16.msra.mxu0 0
    %1452 = vmatprep.subr.bf16.mxu0 0
    %1453 = vmatpush2.bf16.msra.mxu0 0
    %1454 = vmatprep.subr.bf16.mxu0 0
    %1455 = vmatpush2.bf16.msra.mxu0 0
    %1456 = vmatprep.subr.bf16.mxu0 0
    %1457 = vmatpush2.bf16.msra.mxu0 0
    %1458 = vmatprep.mubr.bf16.mxu0 0
    %1459 = vmatmul.mubr.bf16.gmra.mxu0 %v1257
    %v1460 = vpop.f32.mrf.mxu0
    %v1461 = vadd.f32 %v1412, %v1460
    %v1462 = vpop.f32.mrf.mxu0
    %v1463 = vpop.f32.mrf.mxu0
    %v1464 = vadd.f32 %v1415, %v1463
    %v1465 = vpop.f32.mrf.mxu0
    %1466 = vmatprep.mubr.bf16.mxu0 0
    %1467 = vmatmul.mubr.bf16.gmra.mxu0 %v1264
    %v1468 = vpop.f32.mrf.mxu0
    %v1469 = vadd.f32 %v1420, %v1468
    %v1470 = vpop.f32.mrf.mxu0
    %v1471 = vpop.f32.mrf.mxu0
    %v1472 = vadd.f32 %v1423, %v1471
    %v1473 = vpop.f32.mrf.mxu0
    %1474 = vdwg.mxu0
    %v1475 = vmax.f32 %v1461, %v1464
    %v1476 = vmax.f32 %v1469, %v1472
    %v1477 = vmax.f32 %v1475, %v1476
    %v1478 = vadd.f32 %v1477, %v762
    %v1479 = vpack.c.bf16 %v1478, %v1478
    %v1480 = vld [vmem:[%s3 + $0x100] sm:$0xf]
    %v1481 = vld [vmem:[%s3 + $0x104] sm:$0xf]
    %v1482 = vld [vmem:[%s3 + $0x108] sm:$0xf]
    %v1483 = vld [vmem:[%s3 + $0x10c] sm:$0xf]
    %v1484 = vld [vmem:[%s3 + $0x110] sm:$0xf]
    %v1485 = vld [vmem:[%s3 + $0x114] sm:$0xf]
    %v1486 = vld [vmem:[%s3 + $0x118] sm:$0xf]
    %v1487 = vld [vmem:[%s3 + $0x11c] sm:$0xf]
    %v1488 = vld [vmem:[%s3 + $0x120] sm:$0xf]
    %v1489 = vld [vmem:[%s3 + $0x124] sm:$0xf]
    %v1490 = vld [vmem:[%s3 + $0x128] sm:$0xf]
    %v1491 = vld [vmem:[%s3 + $0x12c] sm:$0xf]
    %v1492 = vld [vmem:[%s3 + $0x130] sm:$0xf]
    %v1493 = vld [vmem:[%s3 + $0x134] sm:$0xf]
    %v1494 = vld [vmem:[%s3 + $0x138] sm:$0xf]
    %v1495 = vld [vmem:[%s3 + $0x13c] sm:$0xf]
    %v1512 = vunpack.c.l.b16 %v1480
    %v1513 = vunpack.c.l.b16 %v1481
    %v1514 = vunpack.c.l.b16 %v1482
    %v1515 = vunpack.c.l.b16 %v1483
    %v1516 = vunpack.c.l.b16 %v1484
    %v1517 = vunpack.c.l.b16 %v1485
    %v1518 = vunpack.c.l.b16 %v1486
    %v1519 = vunpack.c.l.b16 %v1487
    %v1520 = vunpack.c.l.b16 %v1488
    %v1521 = vunpack.c.l.b16 %v1489
    %v1522 = vunpack.c.l.b16 %v1490
    %v1523 = vunpack.c.l.b16 %v1491
    %v1524 = vunpack.c.l.b16 %v1492
    %v1525 = vunpack.c.l.b16 %v1493
    %v1526 = vunpack.c.l.b16 %v1494
    %v1527 = vunpack.c.l.b16 %v1495
    %v1528 = vpack.c.b16 %v1513, %v1512
    %v1529 = vpack.c.b16 %v1515, %v1514
    %v1530 = vpack.c.b16 %v1517, %v1516
    %v1531 = vpack.c.b16 %v1519, %v1518
    %v1532 = vpack.c.b16 %v1521, %v1520
    %v1533 = vpack.c.b16 %v1523, %v1522
    %v1534 = vpack.c.b16 %v1525, %v1524
    %v1535 = vpack.c.b16 %v1527, %v1526
    %1544 = vmatprep.subr.bf16.mxu0 0
    %1545 = vmatpush1.bf16.msra.mxu0 %v1535
    %1546 = vmatprep.subr.bf16.mxu0 0
    %1547 = vmatpush1.bf16.msra.mxu0 %v1534
    %1548 = vmatprep.subr.bf16.mxu0 0
    %1549 = vmatpush1.bf16.msra.mxu0 %v1533
    %1550 = vmatprep.subr.bf16.mxu0 0
    %1551 = vmatpush1.bf16.msra.mxu0 %v1532
    %1552 = vmatprep.subr.bf16.mxu0 0
    %1553 = vmatpush1.bf16.msra.mxu0 %v1531
    %1554 = vmatprep.subr.bf16.mxu0 0
    %1555 = vmatpush1.bf16.msra.mxu0 %v1530
    %1556 = vmatprep.subr.bf16.mxu0 0
    %1557 = vmatpush1.bf16.msra.mxu0 %v1529
    %1558 = vmatprep.subr.bf16.mxu0 0
    %1559 = vmatpush1.bf16.msra.mxu0 %v1528
    %1560 = vmatprep.subr.bf16.mxu0 0
    %1561 = vmatpush2.bf16.msra.mxu0 0
    %1562 = vmatprep.subr.bf16.mxu0 0
    %1563 = vmatpush2.bf16.msra.mxu0 0
    %1564 = vmatprep.subr.bf16.mxu0 0
    %1565 = vmatpush2.bf16.msra.mxu0 0
    %1566 = vmatprep.subr.bf16.mxu0 0
    %1567 = vmatpush2.bf16.msra.mxu0 0
    %1568 = vmatprep.subr.bf16.mxu0 0
    %1569 = vmatpush2.bf16.msra.mxu0 0
    %1570 = vmatprep.subr.bf16.mxu0 0
    %1571 = vmatpush2.bf16.msra.mxu0 0
    %1572 = vmatprep.subr.bf16.mxu0 0
    %1573 = vmatpush2.bf16.msra.mxu0 0
    %1574 = vmatprep.subr.bf16.mxu0 0
    %1575 = vmatpush2.bf16.msra.mxu0 0
    %1576 = vmatprep.mubr.bf16.mxu0 0
    %1577 = vmatmul.mubr.bf16.gmra.mxu0 %v1479
    %v1578 = vpop.f32.mrf.mxu0
    %v1579 = vadd.f32 0.0, %v1578
    %v1580 = vpop.f32.mrf.mxu0
    %v1581 = vpop.f32.mrf.mxu0
    %v1582 = vpop.f32.mrf.mxu0
    %1583 = vdwg.mxu0
    %v1584 = vadd.f32 %v1190, %v1579
    %v1585 = vld [vmem:[%s3 + $0x140] sm:$0xf]
    %v1586 = vld [vmem:[%s3 + $0x144] sm:$0xf]
    %v1587 = vld [vmem:[%s3 + $0x148] sm:$0xf]
    %v1588 = vld [vmem:[%s3 + $0x14c] sm:$0xf]
    %v1589 = vld [vmem:[%s3 + $0x150] sm:$0xf]
    %v1590 = vld [vmem:[%s3 + $0x154] sm:$0xf]
    %v1591 = vld [vmem:[%s3 + $0x158] sm:$0xf]
    %v1592 = vld [vmem:[%s3 + $0x15c] sm:$0xf]
    %v1593 = vld [vmem:[%s3 + $0x160] sm:$0xf]
    %v1594 = vld [vmem:[%s3 + $0x164] sm:$0xf]
    %v1595 = vld [vmem:[%s3 + $0x168] sm:$0xf]
    %v1596 = vld [vmem:[%s3 + $0x16c] sm:$0xf]
    %v1597 = vld [vmem:[%s3 + $0x170] sm:$0xf]
    %v1598 = vld [vmem:[%s3 + $0x174] sm:$0xf]
    %v1599 = vld [vmem:[%s3 + $0x178] sm:$0xf]
    %v1600 = vld [vmem:[%s3 + $0x17c] sm:$0xf]
    %v1602 = vrot.slane %v1479, 1
    %v1620 = vunpack.c.l.b16 %v1585
    %v1621 = vunpack.c.l.b16 %v1586
    %v1622 = vunpack.c.l.b16 %v1587
    %v1623 = vunpack.c.l.b16 %v1588
    %v1624 = vunpack.c.l.b16 %v1589
    %v1625 = vunpack.c.l.b16 %v1590
    %v1626 = vunpack.c.l.b16 %v1591
    %v1627 = vunpack.c.l.b16 %v1592
    %v1628 = vunpack.c.l.b16 %v1593
    %v1629 = vunpack.c.l.b16 %v1594
    %v1630 = vunpack.c.l.b16 %v1595
    %v1631 = vunpack.c.l.b16 %v1596
    %v1632 = vunpack.c.l.b16 %v1597
    %v1633 = vunpack.c.l.b16 %v1598
    %v1634 = vunpack.c.l.b16 %v1599
    %v1635 = vunpack.c.l.b16 %v1600
    %v1636 = vpack.c.b16 %v1621, %v1620
    %v1637 = vpack.c.b16 %v1623, %v1622
    %v1638 = vpack.c.b16 %v1625, %v1624
    %v1639 = vpack.c.b16 %v1627, %v1626
    %v1640 = vpack.c.b16 %v1629, %v1628
    %v1641 = vpack.c.b16 %v1631, %v1630
    %v1642 = vpack.c.b16 %v1633, %v1632
    %v1643 = vpack.c.b16 %v1635, %v1634
    %1652 = vmatprep.subr.bf16.mxu0 0
    %1653 = vmatpush1.bf16.msra.mxu0 %v1643
    %1654 = vmatprep.subr.bf16.mxu0 0
    %1655 = vmatpush1.bf16.msra.mxu0 %v1642
    %1656 = vmatprep.subr.bf16.mxu0 0
    %1657 = vmatpush1.bf16.msra.mxu0 %v1641
    %1658 = vmatprep.subr.bf16.mxu0 0
    %1659 = vmatpush1.bf16.msra.mxu0 %v1640
    %1660 = vmatprep.subr.bf16.mxu0 0
    %1661 = vmatpush1.bf16.msra.mxu0 %v1639
    %1662 = vmatprep.subr.bf16.mxu0 0
    %1663 = vmatpush1.bf16.msra.mxu0 %v1638
    %1664 = vmatprep.subr.bf16.mxu0 0
    %1665 = vmatpush1.bf16.msra.mxu0 %v1637
    %1666 = vmatprep.subr.bf16.mxu0 0
    %1667 = vmatpush1.bf16.msra.mxu0 %v1636
    %1668 = vmatprep.subr.bf16.mxu0 0
    %1669 = vmatpush2.bf16.msra.mxu0 0
    %1670 = vmatprep.subr.bf16.mxu0 0
    %1671 = vmatpush2.bf16.msra.mxu0 0
    %1672 = vmatprep.subr.bf16.mxu0 0
    %1673 = vmatpush2.bf16.msra.mxu0 0
    %1674 = vmatprep.subr.bf16.mxu0 0
    %1675 = vmatpush2.bf16.msra.mxu0 0
    %1676 = vmatprep.subr.bf16.mxu0 0
    %1677 = vmatpush2.bf16.msra.mxu0 0
    %1678 = vmatprep.subr.bf16.mxu0 0
    %1679 = vmatpush2.bf16.msra.mxu0 0
    %1680 = vmatprep.subr.bf16.mxu0 0
    %1681 = vmatpush2.bf16.msra.mxu0 0
    %1682 = vmatprep.subr.bf16.mxu0 0
    %1683 = vmatpush2.bf16.msra.mxu0 0
    %1684 = vmatprep.mubr.bf16.mxu0 0
    %1685 = vmatmul.mubr.bf16.gmra.mxu0 %v1602
    %v1686 = vpop.f32.mrf.mxu0
    %v1687 = vadd.f32 0.0, %v1686
    %v1688 = vpop.f32.mrf.mxu0
    %v1689 = vpop.f32.mrf.mxu0
    %v1690 = vpop.f32.mrf.mxu0
    %1691 = vdwg.mxu0
    %v1692 = vadd.f32 %v1584, %v1687
    %v1693 = vld [vmem:[%s3 + $0x180] sm:$0xf]
    %v1694 = vld [vmem:[%s3 + $0x184] sm:$0xf]
    %v1695 = vld [vmem:[%s3 + $0x188] sm:$0xf]
    %v1696 = vld [vmem:[%s3 + $0x18c] sm:$0xf]
    %v1697 = vld [vmem:[%s3 + $0x190] sm:$0xf]
    %v1698 = vld [vmem:[%s3 + $0x194] sm:$0xf]
    %v1699 = vld [vmem:[%s3 + $0x198] sm:$0xf]
    %v1700 = vld [vmem:[%s3 + $0x19c] sm:$0xf]
    %v1701 = vld [vmem:[%s3 + $0x1a0] sm:$0xf]
    %v1702 = vld [vmem:[%s3 + $0x1a4] sm:$0xf]
    %v1703 = vld [vmem:[%s3 + $0x1a8] sm:$0xf]
    %v1704 = vld [vmem:[%s3 + $0x1ac] sm:$0xf]
    %v1705 = vld [vmem:[%s3 + $0x1b0] sm:$0xf]
    %v1706 = vld [vmem:[%s3 + $0x1b4] sm:$0xf]
    %v1707 = vld [vmem:[%s3 + $0x1b8] sm:$0xf]
    %v1708 = vld [vmem:[%s3 + $0x1bc] sm:$0xf]
    %v1709 = vrot.slane %v1479, 2
    %v1727 = vunpack.c.l.b16 %v1693
    %v1728 = vunpack.c.l.b16 %v1694
    %v1729 = vunpack.c.l.b16 %v1695
    %v1730 = vunpack.c.l.b16 %v1696
    %v1731 = vunpack.c.l.b16 %v1697
    %v1732 = vunpack.c.l.b16 %v1698
    %v1733 = vunpack.c.l.b16 %v1699
    %v1734 = vunpack.c.l.b16 %v1700
    %v1735 = vunpack.c.l.b16 %v1701
    %v1736 = vunpack.c.l.b16 %v1702
    %v1737 = vunpack.c.l.b16 %v1703
    %v1738 = vunpack.c.l.b16 %v1704
    %v1739 = vunpack.c.l.b16 %v1705
    %v1740 = vunpack.c.l.b16 %v1706
    %v1741 = vunpack.c.l.b16 %v1707
    %v1742 = vunpack.c.l.b16 %v1708
    %v1743 = vpack.c.b16 %v1728, %v1727
    %v1744 = vpack.c.b16 %v1730, %v1729
    %v1745 = vpack.c.b16 %v1732, %v1731
    %v1746 = vpack.c.b16 %v1734, %v1733
    %v1747 = vpack.c.b16 %v1736, %v1735
    %v1748 = vpack.c.b16 %v1738, %v1737
    %v1749 = vpack.c.b16 %v1740, %v1739
    %v1750 = vpack.c.b16 %v1742, %v1741
    %1759 = vmatprep.subr.bf16.mxu0 0
    %1760 = vmatpush1.bf16.msra.mxu0 %v1750
    %1761 = vmatprep.subr.bf16.mxu0 0
    %1762 = vmatpush1.bf16.msra.mxu0 %v1749
    %1763 = vmatprep.subr.bf16.mxu0 0
    %1764 = vmatpush1.bf16.msra.mxu0 %v1748
    %1765 = vmatprep.subr.bf16.mxu0 0
    %1766 = vmatpush1.bf16.msra.mxu0 %v1747
    %1767 = vmatprep.subr.bf16.mxu0 0
    %1768 = vmatpush1.bf16.msra.mxu0 %v1746
    %1769 = vmatprep.subr.bf16.mxu0 0
    %1770 = vmatpush1.bf16.msra.mxu0 %v1745
    %1771 = vmatprep.subr.bf16.mxu0 0
    %1772 = vmatpush1.bf16.msra.mxu0 %v1744
    %1773 = vmatprep.subr.bf16.mxu0 0
    %1774 = vmatpush1.bf16.msra.mxu0 %v1743
    %1775 = vmatprep.subr.bf16.mxu0 0
    %1776 = vmatpush2.bf16.msra.mxu0 0
    %1777 = vmatprep.subr.bf16.mxu0 0
    %1778 = vmatpush2.bf16.msra.mxu0 0
    %1779 = vmatprep.subr.bf16.mxu0 0
    %1780 = vmatpush2.bf16.msra.mxu0 0
    %1781 = vmatprep.subr.bf16.mxu0 0
    %1782 = vmatpush2.bf16.msra.mxu0 0
    %1783 = vmatprep.subr.bf16.mxu0 0
    %1784 = vmatpush2.bf16.msra.mxu0 0
    %1785 = vmatprep.subr.bf16.mxu0 0
    %1786 = vmatpush2.bf16.msra.mxu0 0
    %1787 = vmatprep.subr.bf16.mxu0 0
    %1788 = vmatpush2.bf16.msra.mxu0 0
    %1789 = vmatprep.subr.bf16.mxu0 0
    %1790 = vmatpush2.bf16.msra.mxu0 0
    %1791 = vmatprep.mubr.bf16.mxu0 0
    %1792 = vmatmul.mubr.bf16.gmra.mxu0 %v1709
    %v1793 = vpop.f32.mrf.mxu0
    %v1794 = vadd.f32 0.0, %v1793
    %v1795 = vpop.f32.mrf.mxu0
    %v1796 = vpop.f32.mrf.mxu0
    %v1797 = vpop.f32.mrf.mxu0
    %1798 = vdwg.mxu0
    %v1799 = vadd.f32 %v1692, %v1794
    %v1800 = vld [vmem:[%s3 + $0x1c0] sm:$0xf]
    %v1801 = vld [vmem:[%s3 + $0x1c4] sm:$0xf]
    %v1802 = vld [vmem:[%s3 + $0x1c8] sm:$0xf]
    %v1803 = vld [vmem:[%s3 + $0x1cc] sm:$0xf]
    %v1804 = vld [vmem:[%s3 + $0x1d0] sm:$0xf]
    %v1805 = vld [vmem:[%s3 + $0x1d4] sm:$0xf]
    %v1806 = vld [vmem:[%s3 + $0x1d8] sm:$0xf]
    %v1807 = vld [vmem:[%s3 + $0x1dc] sm:$0xf]
    %v1808 = vld [vmem:[%s3 + $0x1e0] sm:$0xf]
    %v1809 = vld [vmem:[%s3 + $0x1e4] sm:$0xf]
    %v1810 = vld [vmem:[%s3 + $0x1e8] sm:$0xf]
    %v1811 = vld [vmem:[%s3 + $0x1ec] sm:$0xf]
    %v1812 = vld [vmem:[%s3 + $0x1f0] sm:$0xf]
    %v1813 = vld [vmem:[%s3 + $0x1f4] sm:$0xf]
    %v1814 = vld [vmem:[%s3 + $0x1f8] sm:$0xf]
    %v1815 = vld [vmem:[%s3 + $0x1fc] sm:$0xf]
    %v1816 = vrot.slane %v1479, 3
    %v1834 = vunpack.c.l.b16 %v1800
    %v1835 = vunpack.c.l.b16 %v1801
    %v1836 = vunpack.c.l.b16 %v1802
    %v1837 = vunpack.c.l.b16 %v1803
    %v1838 = vunpack.c.l.b16 %v1804
    %v1839 = vunpack.c.l.b16 %v1805
    %v1840 = vunpack.c.l.b16 %v1806
    %v1841 = vunpack.c.l.b16 %v1807
    %v1842 = vunpack.c.l.b16 %v1808
    %v1843 = vunpack.c.l.b16 %v1809
    %v1844 = vunpack.c.l.b16 %v1810
    %v1845 = vunpack.c.l.b16 %v1811
    %v1846 = vunpack.c.l.b16 %v1812
    %v1847 = vunpack.c.l.b16 %v1813
    %v1848 = vunpack.c.l.b16 %v1814
    %v1849 = vunpack.c.l.b16 %v1815
    %v1850 = vpack.c.b16 %v1835, %v1834
    %v1851 = vpack.c.b16 %v1837, %v1836
    %v1852 = vpack.c.b16 %v1839, %v1838
    %v1853 = vpack.c.b16 %v1841, %v1840
    %v1854 = vpack.c.b16 %v1843, %v1842
    %v1855 = vpack.c.b16 %v1845, %v1844
    %v1856 = vpack.c.b16 %v1847, %v1846
    %v1857 = vpack.c.b16 %v1849, %v1848
    %1866 = vmatprep.subr.bf16.mxu0 0
    %1867 = vmatpush1.bf16.msra.mxu0 %v1857
    %1868 = vmatprep.subr.bf16.mxu0 0
    %1869 = vmatpush1.bf16.msra.mxu0 %v1856
    %1870 = vmatprep.subr.bf16.mxu0 0
    %1871 = vmatpush1.bf16.msra.mxu0 %v1855
    %1872 = vmatprep.subr.bf16.mxu0 0
    %1873 = vmatpush1.bf16.msra.mxu0 %v1854
    %1874 = vmatprep.subr.bf16.mxu0 0
    %1875 = vmatpush1.bf16.msra.mxu0 %v1853
    %1876 = vmatprep.subr.bf16.mxu0 0
    %1877 = vmatpush1.bf16.msra.mxu0 %v1852
    %1878 = vmatprep.subr.bf16.mxu0 0
    %1879 = vmatpush1.bf16.msra.mxu0 %v1851
    %1880 = vmatprep.subr.bf16.mxu0 0
    %1881 = vmatpush1.bf16.msra.mxu0 %v1850
    %1882 = vmatprep.subr.bf16.mxu0 0
    %1883 = vmatpush2.bf16.msra.mxu0 0
    %1884 = vmatprep.subr.bf16.mxu0 0
    %1885 = vmatpush2.bf16.msra.mxu0 0
    %1886 = vmatprep.subr.bf16.mxu0 0
    %1887 = vmatpush2.bf16.msra.mxu0 0
    %1888 = vmatprep.subr.bf16.mxu0 0
    %1889 = vmatpush2.bf16.msra.mxu0 0
    %1890 = vmatprep.subr.bf16.mxu0 0
    %1891 = vmatpush2.bf16.msra.mxu0 0
    %1892 = vmatprep.subr.bf16.mxu0 0
    %1893 = vmatpush2.bf16.msra.mxu0 0
    %1894 = vmatprep.subr.bf16.mxu0 0
    %1895 = vmatpush2.bf16.msra.mxu0 0
    %1896 = vmatprep.subr.bf16.mxu0 0
    %1897 = vmatpush2.bf16.msra.mxu0 0
    %1898 = vmatprep.mubr.bf16.mxu0 0
    %1899 = vmatmul.mubr.bf16.gmra.mxu0 %v1816
    %v1900 = vpop.f32.mrf.mxu0
    %v1901 = vadd.f32 0.0, %v1900
    %v1902 = vpop.f32.mrf.mxu0
    %v1903 = vpop.f32.mrf.mxu0
    %v1904 = vpop.f32.mrf.mxu0
    %1905 = vdwg.mxu0
    %v1906 = vadd.f32 %v1799, %v1901
    %v1907 = vld [vmem:[%s0 + $0xe0] sm:$0xff]
    %v1908 = vld [vmem:[%s0 + $0xe8] sm:$0xff]
    %v1909 = vld [vmem:[%s0 + $0xf0] sm:$0xff]
    %v1910 = vld [vmem:[%s0 + $0xf8] sm:$0xf]
    %v1911 = vld [vmem:[%s0 + $0xfc] sm:$0xff]
    %v1912 = vld [vmem:[%s0 + $0x104] sm:$0xff]
    %v1913 = vld [vmem:[%s0 + $0x10c] sm:$0xff]
    %v1914 = vld [vmem:[%s0 + $0x114] sm:$0xf]
    %v1915 = vld [vmem:[%s0 + $0x118] sm:$0xff]
    %v1916 = vld [vmem:[%s0 + $0x120] sm:$0xff]
    %v1917 = vld [vmem:[%s0 + $0x128] sm:$0xff]
    %v1918 = vld [vmem:[%s0 + $0x130] sm:$0xf]
    %v1919 = vld [vmem:[%s0 + $0x134] sm:$0xff]
    %v1920 = vld [vmem:[%s0 + $0x13c] sm:$0xff]
    %v1921 = vld [vmem:[%s0 + $0x144] sm:$0xff]
    %v1922 = vld [vmem:[%s0 + $0x14c] sm:$0xf]
    %v1939 = vunpack.c.l.b16 %v1907
    %v1940 = vunpack.c.h.b16 %v1907
    %v1941 = vunpack.c.l.b16 %v1908
    %v1942 = vunpack.c.h.b16 %v1908
    %v1943 = vunpack.c.l.b16 %v1909
    %v1944 = vunpack.c.h.b16 %v1909
    %v1945 = vunpack.c.l.b16 %v1910
    %v1946 = vunpack.c.l.b16 %v1911
    %v1947 = vunpack.c.h.b16 %v1911
    %v1948 = vunpack.c.l.b16 %v1912
    %v1949 = vunpack.c.h.b16 %v1912
    %v1950 = vunpack.c.l.b16 %v1913
    %v1951 = vunpack.c.h.b16 %v1913
    %v1952 = vunpack.c.l.b16 %v1914
    %v1953 = vunpack.c.l.b16 %v1915
    %v1954 = vunpack.c.h.b16 %v1915
    %v1955 = vunpack.c.l.b16 %v1916
    %v1956 = vunpack.c.h.b16 %v1916
    %v1957 = vunpack.c.l.b16 %v1917
    %v1958 = vunpack.c.h.b16 %v1917
    %v1959 = vunpack.c.l.b16 %v1918
    %v1960 = vunpack.c.l.b16 %v1919
    %v1961 = vunpack.c.h.b16 %v1919
    %v1962 = vunpack.c.l.b16 %v1920
    %v1963 = vunpack.c.h.b16 %v1920
    %v1964 = vunpack.c.l.b16 %v1921
    %v1965 = vunpack.c.h.b16 %v1921
    %v1966 = vunpack.c.l.b16 %v1922
    %v1967 = vpack.c.b16 %v1946, %v1939
    %v1968 = vpack.c.b16 %v1947, %v1940
    %v1969 = vpack.c.b16 %v1948, %v1941
    %v1970 = vpack.c.b16 %v1949, %v1942
    %v1971 = vpack.c.b16 %v1950, %v1943
    %v1972 = vpack.c.b16 %v1951, %v1944
    %v1973 = vpack.c.b16 %v1952, %v1945
    %v1974 = vpack.c.b16 %v1960, %v1953
    %v1975 = vpack.c.b16 %v1961, %v1954
    %v1976 = vpack.c.b16 %v1962, %v1955
    %v1977 = vpack.c.b16 %v1963, %v1956
    %v1978 = vpack.c.b16 %v1964, %v1957
    %v1979 = vpack.c.b16 %v1965, %v1958
    %v1980 = vpack.c.b16 %v1966, %v1959
    %1995 = vmatprep.subr.bf16.mxu0 0
    %1996 = vmatpush1.bf16.msra.mxu0 %v453
    %1997 = vmatprep.subr.bf16.mxu0 0
    %1998 = vmatpush1.bf16.msra.mxu0 %v452
    %1999 = vmatprep.subr.bf16.mxu0 0
    %2000 = vmatpush1.bf16.msra.mxu0 %v451
    %2001 = vmatprep.subr.bf16.mxu0 0
    %2002 = vmatpush1.bf16.msra.mxu0 %v450
    %2003 = vmatprep.subr.bf16.mxu0 0
    %2004 = vmatpush1.bf16.msra.mxu0 %v449
    %2005 = vmatprep.subr.bf16.mxu0 0
    %2006 = vmatpush1.bf16.msra.mxu0 %v448
    %2007 = vmatprep.subr.bf16.mxu0 0
    %2008 = vmatpush1.bf16.msra.mxu0 %v447
    %2009 = vmatprep.subr.bf16.mxu0 0
    %2010 = vmatpush1.bf16.msra.mxu0 %v446
    %2011 = vmatprep.subr.bf16.mxu0 0
    %2012 = vmatpush2.bf16.msra.mxu0 %v461
    %2013 = vmatprep.subr.bf16.mxu0 0
    %2014 = vmatpush2.bf16.msra.mxu0 %v460
    %2015 = vmatprep.subr.bf16.mxu0 0
    %2016 = vmatpush2.bf16.msra.mxu0 %v459
    %2017 = vmatprep.subr.bf16.mxu0 0
    %2018 = vmatpush2.bf16.msra.mxu0 %v458
    %2019 = vmatprep.subr.bf16.mxu0 0
    %2020 = vmatpush2.bf16.msra.mxu0 %v457
    %2021 = vmatprep.subr.bf16.mxu0 0
    %2022 = vmatpush2.bf16.msra.mxu0 %v456
    %2023 = vmatprep.subr.bf16.mxu0 0
    %2024 = vmatpush2.bf16.msra.mxu0 %v455
    %2025 = vmatprep.subr.bf16.mxu0 0
    %2026 = vmatpush2.bf16.msra.mxu0 %v454
    %2027 = vmatprep.mubr.bf16.mxu0 %v1968
    %2028 = vmatmul.mubr.bf16.gmra.mxu0 %v1967
    %v2029 = vpop.f32.mrf.mxu0
    %v2030 = vadd.f32 0.0, %v2029
    %v2031 = vpop.f32.mrf.mxu0
    %v2032 = vpop.f32.mrf.mxu0
    %v2033 = vadd.f32 0.0, %v2032
    %v2034 = vpop.f32.mrf.mxu0
    %2035 = vmatprep.mubr.bf16.mxu0 %v1975
    %2036 = vmatmul.mubr.bf16.gmra.mxu0 %v1974
    %v2037 = vpop.f32.mrf.mxu0
    %v2038 = vadd.f32 0.0, %v2037
    %v2039 = vpop.f32.mrf.mxu0
    %v2040 = vpop.f32.mrf.mxu0
    %v2041 = vadd.f32 0.0, %v2040
    %v2042 = vpop.f32.mrf.mxu0
    %2043 = vdwg.mxu0
    %2044 = vmatprep.subr.bf16.mxu0 0
    %2045 = vmatpush1.bf16.msra.mxu0 %v469
    %2046 = vmatprep.subr.bf16.mxu0 0
    %2047 = vmatpush1.bf16.msra.mxu0 %v468
    %2048 = vmatprep.subr.bf16.mxu0 0
    %2049 = vmatpush1.bf16.msra.mxu0 %v467
    %2050 = vmatprep.subr.bf16.mxu0 0
    %2051 = vmatpush1.bf16.msra.mxu0 %v466
    %2052 = vmatprep.subr.bf16.mxu0 0
    %2053 = vmatpush1.bf16.msra.mxu0 %v465
    %2054 = vmatprep.subr.bf16.mxu0 0
    %2055 = vmatpush1.bf16.msra.mxu0 %v464
    %2056 = vmatprep.subr.bf16.mxu0 0
    %2057 = vmatpush1.bf16.msra.mxu0 %v463
    %2058 = vmatprep.subr.bf16.mxu0 0
    %2059 = vmatpush1.bf16.msra.mxu0 %v462
    %2060 = vmatprep.subr.bf16.mxu0 0
    %2061 = vmatpush2.bf16.msra.mxu0 %v477
    %2062 = vmatprep.subr.bf16.mxu0 0
    %2063 = vmatpush2.bf16.msra.mxu0 %v476
    %2064 = vmatprep.subr.bf16.mxu0 0
    %2065 = vmatpush2.bf16.msra.mxu0 %v475
    %2066 = vmatprep.subr.bf16.mxu0 0
    %2067 = vmatpush2.bf16.msra.mxu0 %v474
    %2068 = vmatprep.subr.bf16.mxu0 0
    %2069 = vmatpush2.bf16.msra.mxu0 %v473
    %2070 = vmatprep.subr.bf16.mxu0 0
    %2071 = vmatpush2.bf16.msra.mxu0 %v472
    %2072 = vmatprep.subr.bf16.mxu0 0
    %2073 = vmatpush2.bf16.msra.mxu0 %v471
    %2074 = vmatprep.subr.bf16.mxu0 0
    %2075 = vmatpush2.bf16.msra.mxu0 %v470
    %2076 = vmatprep.mubr.bf16.mxu0 %v1970
    %2077 = vmatmul.mubr.bf16.gmra.mxu0 %v1969
    %v2078 = vpop.f32.mrf.mxu0
    %v2079 = vadd.f32 %v2030, %v2078
    %v2080 = vpop.f32.mrf.mxu0
    %v2081 = vpop.f32.mrf.mxu0
    %v2082 = vadd.f32 %v2033, %v2081
    %v2083 = vpop.f32.mrf.mxu0
    %2084 = vmatprep.mubr.bf16.mxu0 %v1977
    %2085 = vmatmul.mubr.bf16.gmra.mxu0 %v1976
    %v2086 = vpop.f32.mrf.mxu0
    %v2087 = vadd.f32 %v2038, %v2086
    %v2088 = vpop.f32.mrf.mxu0
    %v2089 = vpop.f32.mrf.mxu0
    %v2090 = vadd.f32 %v2041, %v2089
    %v2091 = vpop.f32.mrf.mxu0
    %2092 = vdwg.mxu0
    %2093 = vmatprep.subr.bf16.mxu0 0
    %2094 = vmatpush1.bf16.msra.mxu0 %v485
    %2095 = vmatprep.subr.bf16.mxu0 0
    %2096 = vmatpush1.bf16.msra.mxu0 %v484
    %2097 = vmatprep.subr.bf16.mxu0 0
    %2098 = vmatpush1.bf16.msra.mxu0 %v483
    %2099 = vmatprep.subr.bf16.mxu0 0
    %2100 = vmatpush1.bf16.msra.mxu0 %v482
    %2101 = vmatprep.subr.bf16.mxu0 0
    %2102 = vmatpush1.bf16.msra.mxu0 %v481
    %2103 = vmatprep.subr.bf16.mxu0 0
    %2104 = vmatpush1.bf16.msra.mxu0 %v480
    %2105 = vmatprep.subr.bf16.mxu0 0
    %2106 = vmatpush1.bf16.msra.mxu0 %v479
    %2107 = vmatprep.subr.bf16.mxu0 0
    %2108 = vmatpush1.bf16.msra.mxu0 %v478
    %2109 = vmatprep.subr.bf16.mxu0 0
    %2110 = vmatpush2.bf16.msra.mxu0 %v493
    %2111 = vmatprep.subr.bf16.mxu0 0
    %2112 = vmatpush2.bf16.msra.mxu0 %v492
    %2113 = vmatprep.subr.bf16.mxu0 0
    %2114 = vmatpush2.bf16.msra.mxu0 %v491
    %2115 = vmatprep.subr.bf16.mxu0 0
    %2116 = vmatpush2.bf16.msra.mxu0 %v490
    %2117 = vmatprep.subr.bf16.mxu0 0
    %2118 = vmatpush2.bf16.msra.mxu0 %v489
    %2119 = vmatprep.subr.bf16.mxu0 0
    %2120 = vmatpush2.bf16.msra.mxu0 %v488
    %2121 = vmatprep.subr.bf16.mxu0 0
    %2122 = vmatpush2.bf16.msra.mxu0 %v487
    %2123 = vmatprep.subr.bf16.mxu0 0
    %2124 = vmatpush2.bf16.msra.mxu0 %v486
    %2125 = vmatprep.mubr.bf16.mxu0 %v1972
    %2126 = vmatmul.mubr.bf16.gmra.mxu0 %v1971
    %v2127 = vpop.f32.mrf.mxu0
    %v2128 = vadd.f32 %v2079, %v2127
    %v2129 = vpop.f32.mrf.mxu0
    %v2130 = vpop.f32.mrf.mxu0
    %v2131 = vadd.f32 %v2082, %v2130
    %v2132 = vpop.f32.mrf.mxu0
    %2133 = vmatprep.mubr.bf16.mxu0 %v1979
    %2134 = vmatmul.mubr.bf16.gmra.mxu0 %v1978
    %v2135 = vpop.f32.mrf.mxu0
    %v2136 = vadd.f32 %v2087, %v2135
    %v2137 = vpop.f32.mrf.mxu0
    %v2138 = vpop.f32.mrf.mxu0
    %v2139 = vadd.f32 %v2090, %v2138
    %v2140 = vpop.f32.mrf.mxu0
    %2141 = vdwg.mxu0
    %2142 = vmatprep.subr.bf16.mxu0 0
    %2143 = vmatpush1.bf16.msra.mxu0 %v501
    %2144 = vmatprep.subr.bf16.mxu0 0
    %2145 = vmatpush1.bf16.msra.mxu0 %v500
    %2146 = vmatprep.subr.bf16.mxu0 0
    %2147 = vmatpush1.bf16.msra.mxu0 %v499
    %2148 = vmatprep.subr.bf16.mxu0 0
    %2149 = vmatpush1.bf16.msra.mxu0 %v498
    %2150 = vmatprep.subr.bf16.mxu0 0
    %2151 = vmatpush1.bf16.msra.mxu0 %v497
    %2152 = vmatprep.subr.bf16.mxu0 0
    %2153 = vmatpush1.bf16.msra.mxu0 %v496
    %2154 = vmatprep.subr.bf16.mxu0 0
    %2155 = vmatpush1.bf16.msra.mxu0 %v495
    %2156 = vmatprep.subr.bf16.mxu0 0
    %2157 = vmatpush1.bf16.msra.mxu0 %v494
    %2158 = vmatprep.subr.bf16.mxu0 0
    %2159 = vmatpush2.bf16.msra.mxu0 0
    %2160 = vmatprep.subr.bf16.mxu0 0
    %2161 = vmatpush2.bf16.msra.mxu0 0
    %2162 = vmatprep.subr.bf16.mxu0 0
    %2163 = vmatpush2.bf16.msra.mxu0 0
    %2164 = vmatprep.subr.bf16.mxu0 0
    %2165 = vmatpush2.bf16.msra.mxu0 0
    %2166 = vmatprep.subr.bf16.mxu0 0
    %2167 = vmatpush2.bf16.msra.mxu0 0
    %2168 = vmatprep.subr.bf16.mxu0 0
    %2169 = vmatpush2.bf16.msra.mxu0 0
    %2170 = vmatprep.subr.bf16.mxu0 0
    %2171 = vmatpush2.bf16.msra.mxu0 0
    %2172 = vmatprep.subr.bf16.mxu0 0
    %2173 = vmatpush2.bf16.msra.mxu0 0
    %2174 = vmatprep.mubr.bf16.mxu0 0
    %2175 = vmatmul.mubr.bf16.gmra.mxu0 %v1973
    %v2176 = vpop.f32.mrf.mxu0
    %v2177 = vadd.f32 %v2128, %v2176
    %v2178 = vpop.f32.mrf.mxu0
    %v2179 = vpop.f32.mrf.mxu0
    %v2180 = vadd.f32 %v2131, %v2179
    %v2181 = vpop.f32.mrf.mxu0
    %2182 = vmatprep.mubr.bf16.mxu0 0
    %2183 = vmatmul.mubr.bf16.gmra.mxu0 %v1980
    %v2184 = vpop.f32.mrf.mxu0
    %v2185 = vadd.f32 %v2136, %v2184
    %v2186 = vpop.f32.mrf.mxu0
    %v2187 = vpop.f32.mrf.mxu0
    %v2188 = vadd.f32 %v2139, %v2187
    %v2189 = vpop.f32.mrf.mxu0
    %2190 = vdwg.mxu0
    %v2191 = vmax.f32 %v2177, %v2180
    %v2192 = vmax.f32 %v2185, %v2188
    %v2193 = vmax.f32 %v2191, %v2192
    %v2194 = vadd.f32 %v2193, %v762
    %v2195 = vpack.c.bf16 %v2194, %v2194
    %v2196 = vld [vmem:[%s3 + $0x200] sm:$0xf]
    %v2197 = vld [vmem:[%s3 + $0x204] sm:$0xf]
    %v2198 = vld [vmem:[%s3 + $0x208] sm:$0xf]
    %v2199 = vld [vmem:[%s3 + $0x20c] sm:$0xf]
    %v2200 = vld [vmem:[%s3 + $0x210] sm:$0xf]
    %v2201 = vld [vmem:[%s3 + $0x214] sm:$0xf]
    %v2202 = vld [vmem:[%s3 + $0x218] sm:$0xf]
    %v2203 = vld [vmem:[%s3 + $0x21c] sm:$0xf]
    %v2204 = vld [vmem:[%s3 + $0x220] sm:$0xf]
    %v2205 = vld [vmem:[%s3 + $0x224] sm:$0xf]
    %v2206 = vld [vmem:[%s3 + $0x228] sm:$0xf]
    %v2207 = vld [vmem:[%s3 + $0x22c] sm:$0xf]
    %v2208 = vld [vmem:[%s3 + $0x230] sm:$0xf]
    %v2209 = vld [vmem:[%s3 + $0x234] sm:$0xf]
    %v2210 = vld [vmem:[%s3 + $0x238] sm:$0xf]
    %v2211 = vld [vmem:[%s3 + $0x23c] sm:$0xf]
    %v2228 = vunpack.c.l.b16 %v2196
    %v2229 = vunpack.c.l.b16 %v2197
    %v2230 = vunpack.c.l.b16 %v2198
    %v2231 = vunpack.c.l.b16 %v2199
    %v2232 = vunpack.c.l.b16 %v2200
    %v2233 = vunpack.c.l.b16 %v2201
    %v2234 = vunpack.c.l.b16 %v2202
    %v2235 = vunpack.c.l.b16 %v2203
    %v2236 = vunpack.c.l.b16 %v2204
    %v2237 = vunpack.c.l.b16 %v2205
    %v2238 = vunpack.c.l.b16 %v2206
    %v2239 = vunpack.c.l.b16 %v2207
    %v2240 = vunpack.c.l.b16 %v2208
    %v2241 = vunpack.c.l.b16 %v2209
    %v2242 = vunpack.c.l.b16 %v2210
    %v2243 = vunpack.c.l.b16 %v2211
    %v2244 = vpack.c.b16 %v2229, %v2228
    %v2245 = vpack.c.b16 %v2231, %v2230
    %v2246 = vpack.c.b16 %v2233, %v2232
    %v2247 = vpack.c.b16 %v2235, %v2234
    %v2248 = vpack.c.b16 %v2237, %v2236
    %v2249 = vpack.c.b16 %v2239, %v2238
    %v2250 = vpack.c.b16 %v2241, %v2240
    %v2251 = vpack.c.b16 %v2243, %v2242
    %2260 = vmatprep.subr.bf16.mxu0 0
    %2261 = vmatpush1.bf16.msra.mxu0 %v2251
    %2262 = vmatprep.subr.bf16.mxu0 0
    %2263 = vmatpush1.bf16.msra.mxu0 %v2250
    %2264 = vmatprep.subr.bf16.mxu0 0
    %2265 = vmatpush1.bf16.msra.mxu0 %v2249
    %2266 = vmatprep.subr.bf16.mxu0 0
    %2267 = vmatpush1.bf16.msra.mxu0 %v2248
    %2268 = vmatprep.subr.bf16.mxu0 0
    %2269 = vmatpush1.bf16.msra.mxu0 %v2247
    %2270 = vmatprep.subr.bf16.mxu0 0
    %2271 = vmatpush1.bf16.msra.mxu0 %v2246
    %2272 = vmatprep.subr.bf16.mxu0 0
    %2273 = vmatpush1.bf16.msra.mxu0 %v2245
    %2274 = vmatprep.subr.bf16.mxu0 0
    %2275 = vmatpush1.bf16.msra.mxu0 %v2244
    %2276 = vmatprep.subr.bf16.mxu0 0
    %2277 = vmatpush2.bf16.msra.mxu0 0
    %2278 = vmatprep.subr.bf16.mxu0 0
    %2279 = vmatpush2.bf16.msra.mxu0 0
    %2280 = vmatprep.subr.bf16.mxu0 0
    %2281 = vmatpush2.bf16.msra.mxu0 0
    %2282 = vmatprep.subr.bf16.mxu0 0
    %2283 = vmatpush2.bf16.msra.mxu0 0
    %2284 = vmatprep.subr.bf16.mxu0 0
    %2285 = vmatpush2.bf16.msra.mxu0 0
    %2286 = vmatprep.subr.bf16.mxu0 0
    %2287 = vmatpush2.bf16.msra.mxu0 0
    %2288 = vmatprep.subr.bf16.mxu0 0
    %2289 = vmatpush2.bf16.msra.mxu0 0
    %2290 = vmatprep.subr.bf16.mxu0 0
    %2291 = vmatpush2.bf16.msra.mxu0 0
    %2292 = vmatprep.mubr.bf16.mxu0 0
    %2293 = vmatmul.mubr.bf16.gmra.mxu0 %v2195
    %v2294 = vpop.f32.mrf.mxu0
    %v2295 = vadd.f32 0.0, %v2294
    %v2296 = vpop.f32.mrf.mxu0
    %v2297 = vpop.f32.mrf.mxu0
    %v2298 = vpop.f32.mrf.mxu0
    %2299 = vdwg.mxu0
    %v2300 = vadd.f32 %v1906, %v2295
    %v2301 = vld [vmem:[%s3 + $0x240] sm:$0xf]
    %v2302 = vld [vmem:[%s3 + $0x244] sm:$0xf]
    %v2303 = vld [vmem:[%s3 + $0x248] sm:$0xf]
    %v2304 = vld [vmem:[%s3 + $0x24c] sm:$0xf]
    %v2305 = vld [vmem:[%s3 + $0x250] sm:$0xf]
    %v2306 = vld [vmem:[%s3 + $0x254] sm:$0xf]
    %v2307 = vld [vmem:[%s3 + $0x258] sm:$0xf]
    %v2308 = vld [vmem:[%s3 + $0x25c] sm:$0xf]
    %v2309 = vld [vmem:[%s3 + $0x260] sm:$0xf]
    %v2310 = vld [vmem:[%s3 + $0x264] sm:$0xf]
    %v2311 = vld [vmem:[%s3 + $0x268] sm:$0xf]
    %v2312 = vld [vmem:[%s3 + $0x26c] sm:$0xf]
    %v2313 = vld [vmem:[%s3 + $0x270] sm:$0xf]
    %v2314 = vld [vmem:[%s3 + $0x274] sm:$0xf]
    %v2315 = vld [vmem:[%s3 + $0x278] sm:$0xf]
    %v2316 = vld [vmem:[%s3 + $0x27c] sm:$0xf]
    %v2318 = vrot.slane %v2195, 1
    %v2336 = vunpack.c.l.b16 %v2301
    %v2337 = vunpack.c.l.b16 %v2302
    %v2338 = vunpack.c.l.b16 %v2303
    %v2339 = vunpack.c.l.b16 %v2304
    %v2340 = vunpack.c.l.b16 %v2305
    %v2341 = vunpack.c.l.b16 %v2306
    %v2342 = vunpack.c.l.b16 %v2307
    %v2343 = vunpack.c.l.b16 %v2308
    %v2344 = vunpack.c.l.b16 %v2309
    %v2345 = vunpack.c.l.b16 %v2310
    %v2346 = vunpack.c.l.b16 %v2311
    %v2347 = vunpack.c.l.b16 %v2312
    %v2348 = vunpack.c.l.b16 %v2313
    %v2349 = vunpack.c.l.b16 %v2314
    %v2350 = vunpack.c.l.b16 %v2315
    %v2351 = vunpack.c.l.b16 %v2316
    %v2352 = vpack.c.b16 %v2337, %v2336
    %v2353 = vpack.c.b16 %v2339, %v2338
    %v2354 = vpack.c.b16 %v2341, %v2340
    %v2355 = vpack.c.b16 %v2343, %v2342
    %v2356 = vpack.c.b16 %v2345, %v2344
    %v2357 = vpack.c.b16 %v2347, %v2346
    %v2358 = vpack.c.b16 %v2349, %v2348
    %v2359 = vpack.c.b16 %v2351, %v2350
    %2368 = vmatprep.subr.bf16.mxu0 0
    %2369 = vmatpush1.bf16.msra.mxu0 %v2359
    %2370 = vmatprep.subr.bf16.mxu0 0
    %2371 = vmatpush1.bf16.msra.mxu0 %v2358
    %2372 = vmatprep.subr.bf16.mxu0 0
    %2373 = vmatpush1.bf16.msra.mxu0 %v2357
    %2374 = vmatprep.subr.bf16.mxu0 0
    %2375 = vmatpush1.bf16.msra.mxu0 %v2356
    %2376 = vmatprep.subr.bf16.mxu0 0
    %2377 = vmatpush1.bf16.msra.mxu0 %v2355
    %2378 = vmatprep.subr.bf16.mxu0 0
    %2379 = vmatpush1.bf16.msra.mxu0 %v2354
    %2380 = vmatprep.subr.bf16.mxu0 0
    %2381 = vmatpush1.bf16.msra.mxu0 %v2353
    %2382 = vmatprep.subr.bf16.mxu0 0
    %2383 = vmatpush1.bf16.msra.mxu0 %v2352
    %2384 = vmatprep.subr.bf16.mxu0 0
    %2385 = vmatpush2.bf16.msra.mxu0 0
    %2386 = vmatprep.subr.bf16.mxu0 0
    %2387 = vmatpush2.bf16.msra.mxu0 0
    %2388 = vmatprep.subr.bf16.mxu0 0
    %2389 = vmatpush2.bf16.msra.mxu0 0
    %2390 = vmatprep.subr.bf16.mxu0 0
    %2391 = vmatpush2.bf16.msra.mxu0 0
    %2392 = vmatprep.subr.bf16.mxu0 0
    %2393 = vmatpush2.bf16.msra.mxu0 0
    %2394 = vmatprep.subr.bf16.mxu0 0
    %2395 = vmatpush2.bf16.msra.mxu0 0
    %2396 = vmatprep.subr.bf16.mxu0 0
    %2397 = vmatpush2.bf16.msra.mxu0 0
    %2398 = vmatprep.subr.bf16.mxu0 0
    %2399 = vmatpush2.bf16.msra.mxu0 0
    %2400 = vmatprep.mubr.bf16.mxu0 0
    %2401 = vmatmul.mubr.bf16.gmra.mxu0 %v2318
    %v2402 = vpop.f32.mrf.mxu0
    %v2403 = vadd.f32 0.0, %v2402
    %v2404 = vpop.f32.mrf.mxu0
    %v2405 = vpop.f32.mrf.mxu0
    %v2406 = vpop.f32.mrf.mxu0
    %2407 = vdwg.mxu0
    %v2408 = vadd.f32 %v2300, %v2403
    %v2409 = vld [vmem:[%s3 + $0x280] sm:$0xf]
    %v2410 = vld [vmem:[%s3 + $0x284] sm:$0xf]
    %v2411 = vld [vmem:[%s3 + $0x288] sm:$0xf]
    %v2412 = vld [vmem:[%s3 + $0x28c] sm:$0xf]
    %v2413 = vld [vmem:[%s3 + $0x290] sm:$0xf]
    %v2414 = vld [vmem:[%s3 + $0x294] sm:$0xf]
    %v2415 = vld [vmem:[%s3 + $0x298] sm:$0xf]
    %v2416 = vld [vmem:[%s3 + $0x29c] sm:$0xf]
    %v2417 = vld [vmem:[%s3 + $0x2a0] sm:$0xf]
    %v2418 = vld [vmem:[%s3 + $0x2a4] sm:$0xf]
    %v2419 = vld [vmem:[%s3 + $0x2a8] sm:$0xf]
    %v2420 = vld [vmem:[%s3 + $0x2ac] sm:$0xf]
    %v2421 = vld [vmem:[%s3 + $0x2b0] sm:$0xf]
    %v2422 = vld [vmem:[%s3 + $0x2b4] sm:$0xf]
    %v2423 = vld [vmem:[%s3 + $0x2b8] sm:$0xf]
    %v2424 = vld [vmem:[%s3 + $0x2bc] sm:$0xf]
    %v2425 = vrot.slane %v2195, 2
    %v2443 = vunpack.c.l.b16 %v2409
    %v2444 = vunpack.c.l.b16 %v2410
    %v2445 = vunpack.c.l.b16 %v2411
    %v2446 = vunpack.c.l.b16 %v2412
    %v2447 = vunpack.c.l.b16 %v2413
    %v2448 = vunpack.c.l.b16 %v2414
    %v2449 = vunpack.c.l.b16 %v2415
    %v2450 = vunpack.c.l.b16 %v2416
    %v2451 = vunpack.c.l.b16 %v2417
    %v2452 = vunpack.c.l.b16 %v2418
    %v2453 = vunpack.c.l.b16 %v2419
    %v2454 = vunpack.c.l.b16 %v2420
    %v2455 = vunpack.c.l.b16 %v2421
    %v2456 = vunpack.c.l.b16 %v2422
    %v2457 = vunpack.c.l.b16 %v2423
    %v2458 = vunpack.c.l.b16 %v2424
    %v2459 = vpack.c.b16 %v2444, %v2443
    %v2460 = vpack.c.b16 %v2446, %v2445
    %v2461 = vpack.c.b16 %v2448, %v2447
    %v2462 = vpack.c.b16 %v2450, %v2449
    %v2463 = vpack.c.b16 %v2452, %v2451
    %v2464 = vpack.c.b16 %v2454, %v2453
    %v2465 = vpack.c.b16 %v2456, %v2455
    %v2466 = vpack.c.b16 %v2458, %v2457
    %2475 = vmatprep.subr.bf16.mxu0 0
    %2476 = vmatpush1.bf16.msra.mxu0 %v2466
    %2477 = vmatprep.subr.bf16.mxu0 0
    %2478 = vmatpush1.bf16.msra.mxu0 %v2465
    %2479 = vmatprep.subr.bf16.mxu0 0
    %2480 = vmatpush1.bf16.msra.mxu0 %v2464
    %2481 = vmatprep.subr.bf16.mxu0 0
    %2482 = vmatpush1.bf16.msra.mxu0 %v2463
    %2483 = vmatprep.subr.bf16.mxu0 0
    %2484 = vmatpush1.bf16.msra.mxu0 %v2462
    %2485 = vmatprep.subr.bf16.mxu0 0
    %2486 = vmatpush1.bf16.msra.mxu0 %v2461
    %2487 = vmatprep.subr.bf16.mxu0 0
    %2488 = vmatpush1.bf16.msra.mxu0 %v2460
    %2489 = vmatprep.subr.bf16.mxu0 0
    %2490 = vmatpush1.bf16.msra.mxu0 %v2459
    %2491 = vmatprep.subr.bf16.mxu0 0
    %2492 = vmatpush2.bf16.msra.mxu0 0
    %2493 = vmatprep.subr.bf16.mxu0 0
    %2494 = vmatpush2.bf16.msra.mxu0 0
    %2495 = vmatprep.subr.bf16.mxu0 0
    %2496 = vmatpush2.bf16.msra.mxu0 0
    %2497 = vmatprep.subr.bf16.mxu0 0
    %2498 = vmatpush2.bf16.msra.mxu0 0
    %2499 = vmatprep.subr.bf16.mxu0 0
    %2500 = vmatpush2.bf16.msra.mxu0 0
    %2501 = vmatprep.subr.bf16.mxu0 0
    %2502 = vmatpush2.bf16.msra.mxu0 0
    %2503 = vmatprep.subr.bf16.mxu0 0
    %2504 = vmatpush2.bf16.msra.mxu0 0
    %2505 = vmatprep.subr.bf16.mxu0 0
    %2506 = vmatpush2.bf16.msra.mxu0 0
    %2507 = vmatprep.mubr.bf16.mxu0 0
    %2508 = vmatmul.mubr.bf16.gmra.mxu0 %v2425
    %v2509 = vpop.f32.mrf.mxu0
    %v2510 = vadd.f32 0.0, %v2509
    %v2511 = vpop.f32.mrf.mxu0
    %v2512 = vpop.f32.mrf.mxu0
    %v2513 = vpop.f32.mrf.mxu0
    %2514 = vdwg.mxu0
    %v2515 = vadd.f32 %v2408, %v2510
    %v2516 = vld [vmem:[%s3 + $0x2c0] sm:$0xf]
    %v2517 = vld [vmem:[%s3 + $0x2c4] sm:$0xf]
    %v2518 = vld [vmem:[%s3 + $0x2c8] sm:$0xf]
    %v2519 = vld [vmem:[%s3 + $0x2cc] sm:$0xf]
    %v2520 = vld [vmem:[%s3 + $0x2d0] sm:$0xf]
    %v2521 = vld [vmem:[%s3 + $0x2d4] sm:$0xf]
    %v2522 = vld [vmem:[%s3 + $0x2d8] sm:$0xf]
    %v2523 = vld [vmem:[%s3 + $0x2dc] sm:$0xf]
    %v2524 = vld [vmem:[%s3 + $0x2e0] sm:$0xf]
    %v2525 = vld [vmem:[%s3 + $0x2e4] sm:$0xf]
    %v2526 = vld [vmem:[%s3 + $0x2e8] sm:$0xf]
    %v2527 = vld [vmem:[%s3 + $0x2ec] sm:$0xf]
    %v2528 = vld [vmem:[%s3 + $0x2f0] sm:$0xf]
    %v2529 = vld [vmem:[%s3 + $0x2f4] sm:$0xf]
    %v2530 = vld [vmem:[%s3 + $0x2f8] sm:$0xf]
    %v2531 = vld [vmem:[%s3 + $0x2fc] sm:$0xf]
    %v2532 = vrot.slane %v2195, 3
    %v2550 = vunpack.c.l.b16 %v2516
    %v2551 = vunpack.c.l.b16 %v2517
    %v2552 = vunpack.c.l.b16 %v2518
    %v2553 = vunpack.c.l.b16 %v2519
    %v2554 = vunpack.c.l.b16 %v2520
    %v2555 = vunpack.c.l.b16 %v2521
    %v2556 = vunpack.c.l.b16 %v2522
    %v2557 = vunpack.c.l.b16 %v2523
    %v2558 = vunpack.c.l.b16 %v2524
    %v2559 = vunpack.c.l.b16 %v2525
    %v2560 = vunpack.c.l.b16 %v2526
    %v2561 = vunpack.c.l.b16 %v2527
    %v2562 = vunpack.c.l.b16 %v2528
    %v2563 = vunpack.c.l.b16 %v2529
    %v2564 = vunpack.c.l.b16 %v2530
    %v2565 = vunpack.c.l.b16 %v2531
    %v2566 = vpack.c.b16 %v2551, %v2550
    %v2567 = vpack.c.b16 %v2553, %v2552
    %v2568 = vpack.c.b16 %v2555, %v2554
    %v2569 = vpack.c.b16 %v2557, %v2556
    %v2570 = vpack.c.b16 %v2559, %v2558
    %v2571 = vpack.c.b16 %v2561, %v2560
    %v2572 = vpack.c.b16 %v2563, %v2562
    %v2573 = vpack.c.b16 %v2565, %v2564
    %2582 = vmatprep.subr.bf16.mxu0 0
    %2583 = vmatpush1.bf16.msra.mxu0 %v2573
    %2584 = vmatprep.subr.bf16.mxu0 0
    %2585 = vmatpush1.bf16.msra.mxu0 %v2572
    %2586 = vmatprep.subr.bf16.mxu0 0
    %2587 = vmatpush1.bf16.msra.mxu0 %v2571
    %2588 = vmatprep.subr.bf16.mxu0 0
    %2589 = vmatpush1.bf16.msra.mxu0 %v2570
    %2590 = vmatprep.subr.bf16.mxu0 0
    %2591 = vmatpush1.bf16.msra.mxu0 %v2569
    %2592 = vmatprep.subr.bf16.mxu0 0
    %2593 = vmatpush1.bf16.msra.mxu0 %v2568
    %2594 = vmatprep.subr.bf16.mxu0 0
    %2595 = vmatpush1.bf16.msra.mxu0 %v2567
    %2596 = vmatprep.subr.bf16.mxu0 0
    %2597 = vmatpush1.bf16.msra.mxu0 %v2566
    %2598 = vmatprep.subr.bf16.mxu0 0
    %2599 = vmatpush2.bf16.msra.mxu0 0
    %2600 = vmatprep.subr.bf16.mxu0 0
    %2601 = vmatpush2.bf16.msra.mxu0 0
    %2602 = vmatprep.subr.bf16.mxu0 0
    %2603 = vmatpush2.bf16.msra.mxu0 0
    %2604 = vmatprep.subr.bf16.mxu0 0
    %2605 = vmatpush2.bf16.msra.mxu0 0
    %2606 = vmatprep.subr.bf16.mxu0 0
    %2607 = vmatpush2.bf16.msra.mxu0 0
    %2608 = vmatprep.subr.bf16.mxu0 0
    %2609 = vmatpush2.bf16.msra.mxu0 0
    %2610 = vmatprep.subr.bf16.mxu0 0
    %2611 = vmatpush2.bf16.msra.mxu0 0
    %2612 = vmatprep.subr.bf16.mxu0 0
    %2613 = vmatpush2.bf16.msra.mxu0 0
    %2614 = vmatprep.mubr.bf16.mxu0 0
    %2615 = vmatmul.mubr.bf16.gmra.mxu0 %v2532
    %v2616 = vpop.f32.mrf.mxu0
    %v2617 = vadd.f32 0.0, %v2616
    %v2618 = vpop.f32.mrf.mxu0
    %v2619 = vpop.f32.mrf.mxu0
    %v2620 = vpop.f32.mrf.mxu0
    %2621 = vdwg.mxu0
    %v2622 = vadd.f32 %v2515, %v2617
    %v2623 = vld [vmem:[%s0 + $0x150] sm:$0xff]
    %v2624 = vld [vmem:[%s0 + $0x158] sm:$0xff]
    %v2625 = vld [vmem:[%s0 + $0x160] sm:$0xff]
    %v2626 = vld [vmem:[%s0 + $0x168] sm:$0xf]
    %v2627 = vld [vmem:[%s0 + $0x16c] sm:$0xff]
    %v2628 = vld [vmem:[%s0 + $0x174] sm:$0xff]
    %v2629 = vld [vmem:[%s0 + $0x17c] sm:$0xff]
    %v2630 = vld [vmem:[%s0 + $0x184] sm:$0xf]
    %v2631 = vld [vmem:[%s0 + $0x188] sm:$0xff]
    %v2632 = vld [vmem:[%s0 + $0x190] sm:$0xff]
    %v2633 = vld [vmem:[%s0 + $0x198] sm:$0xff]
    %v2634 = vld [vmem:[%s0 + $0x1a0] sm:$0xf]
    %v2635 = vld [vmem:[%s0 + $0x1a4] sm:$0xff]
    %v2636 = vld [vmem:[%s0 + $0x1ac] sm:$0xff]
    %v2637 = vld [vmem:[%s0 + $0x1b4] sm:$0xff]
    %v2638 = vld [vmem:[%s0 + $0x1bc] sm:$0xf]
    %v2655 = vunpack.c.l.b16 %v2623
    %v2656 = vunpack.c.h.b16 %v2623
    %v2657 = vunpack.c.l.b16 %v2624
    %v2658 = vunpack.c.h.b16 %v2624
    %v2659 = vunpack.c.l.b16 %v2625
    %v2660 = vunpack.c.h.b16 %v2625
    %v2661 = vunpack.c.l.b16 %v2626
    %v2662 = vunpack.c.l.b16 %v2627
    %v2663 = vunpack.c.h.b16 %v2627
    %v2664 = vunpack.c.l.b16 %v2628
    %v2665 = vunpack.c.h.b16 %v2628
    %v2666 = vunpack.c.l.b16 %v2629
    %v2667 = vunpack.c.h.b16 %v2629
    %v2668 = vunpack.c.l.b16 %v2630
    %v2669 = vunpack.c.l.b16 %v2631
    %v2670 = vunpack.c.h.b16 %v2631
    %v2671 = vunpack.c.l.b16 %v2632
    %v2672 = vunpack.c.h.b16 %v2632
    %v2673 = vunpack.c.l.b16 %v2633
    %v2674 = vunpack.c.h.b16 %v2633
    %v2675 = vunpack.c.l.b16 %v2634
    %v2676 = vunpack.c.l.b16 %v2635
    %v2677 = vunpack.c.h.b16 %v2635
    %v2678 = vunpack.c.l.b16 %v2636
    %v2679 = vunpack.c.h.b16 %v2636
    %v2680 = vunpack.c.l.b16 %v2637
    %v2681 = vunpack.c.h.b16 %v2637
    %v2682 = vunpack.c.l.b16 %v2638
    %v2683 = vpack.c.b16 %v2662, %v2655
    %v2684 = vpack.c.b16 %v2663, %v2656
    %v2685 = vpack.c.b16 %v2664, %v2657
    %v2686 = vpack.c.b16 %v2665, %v2658
    %v2687 = vpack.c.b16 %v2666, %v2659
    %v2688 = vpack.c.b16 %v2667, %v2660
    %v2689 = vpack.c.b16 %v2668, %v2661
    %v2690 = vpack.c.b16 %v2676, %v2669
    %v2691 = vpack.c.b16 %v2677, %v2670
    %v2692 = vpack.c.b16 %v2678, %v2671
    %v2693 = vpack.c.b16 %v2679, %v2672
    %v2694 = vpack.c.b16 %v2680, %v2673
    %v2695 = vpack.c.b16 %v2681, %v2674
    %v2696 = vpack.c.b16 %v2682, %v2675
    %2711 = vmatprep.subr.bf16.mxu0 0
    %2712 = vmatpush1.bf16.msra.mxu0 %v453
    %2713 = vmatprep.subr.bf16.mxu0 0
    %2714 = vmatpush1.bf16.msra.mxu0 %v452
    %2715 = vmatprep.subr.bf16.mxu0 0
    %2716 = vmatpush1.bf16.msra.mxu0 %v451
    %2717 = vmatprep.subr.bf16.mxu0 0
    %2718 = vmatpush1.bf16.msra.mxu0 %v450
    %2719 = vmatprep.subr.bf16.mxu0 0
    %2720 = vmatpush1.bf16.msra.mxu0 %v449
    %2721 = vmatprep.subr.bf16.mxu0 0
    %2722 = vmatpush1.bf16.msra.mxu0 %v448
    %2723 = vmatprep.subr.bf16.mxu0 0
    %2724 = vmatpush1.bf16.msra.mxu0 %v447
    %2725 = vmatprep.subr.bf16.mxu0 0
    %2726 = vmatpush1.bf16.msra.mxu0 %v446
    %2727 = vmatprep.subr.bf16.mxu0 0
    %2728 = vmatpush2.bf16.msra.mxu0 %v461
    %2729 = vmatprep.subr.bf16.mxu0 0
    %2730 = vmatpush2.bf16.msra.mxu0 %v460
    %2731 = vmatprep.subr.bf16.mxu0 0
    %2732 = vmatpush2.bf16.msra.mxu0 %v459
    %2733 = vmatprep.subr.bf16.mxu0 0
    %2734 = vmatpush2.bf16.msra.mxu0 %v458
    %2735 = vmatprep.subr.bf16.mxu0 0
    %2736 = vmatpush2.bf16.msra.mxu0 %v457
    %2737 = vmatprep.subr.bf16.mxu0 0
    %2738 = vmatpush2.bf16.msra.mxu0 %v456
    %2739 = vmatprep.subr.bf16.mxu0 0
    %2740 = vmatpush2.bf16.msra.mxu0 %v455
    %2741 = vmatprep.subr.bf16.mxu0 0
    %2742 = vmatpush2.bf16.msra.mxu0 %v454
    %2743 = vmatprep.mubr.bf16.mxu0 %v2684
    %2744 = vmatmul.mubr.bf16.gmra.mxu0 %v2683
    %v2745 = vpop.f32.mrf.mxu0
    %v2746 = vadd.f32 0.0, %v2745
    %v2747 = vpop.f32.mrf.mxu0
    %v2748 = vpop.f32.mrf.mxu0
    %v2749 = vadd.f32 0.0, %v2748
    %v2750 = vpop.f32.mrf.mxu0
    %2751 = vmatprep.mubr.bf16.mxu0 %v2691
    %2752 = vmatmul.mubr.bf16.gmra.mxu0 %v2690
    %v2753 = vpop.f32.mrf.mxu0
    %v2754 = vadd.f32 0.0, %v2753
    %v2755 = vpop.f32.mrf.mxu0
    %v2756 = vpop.f32.mrf.mxu0
    %v2757 = vadd.f32 0.0, %v2756
    %v2758 = vpop.f32.mrf.mxu0
    %2759 = vdwg.mxu0
    %2760 = vmatprep.subr.bf16.mxu0 0
    %2761 = vmatpush1.bf16.msra.mxu0 %v469
    %2762 = vmatprep.subr.bf16.mxu0 0
    %2763 = vmatpush1.bf16.msra.mxu0 %v468
    %2764 = vmatprep.subr.bf16.mxu0 0
    %2765 = vmatpush1.bf16.msra.mxu0 %v467
    %2766 = vmatprep.subr.bf16.mxu0 0
    %2767 = vmatpush1.bf16.msra.mxu0 %v466
    %2768 = vmatprep.subr.bf16.mxu0 0
    %2769 = vmatpush1.bf16.msra.mxu0 %v465
    %2770 = vmatprep.subr.bf16.mxu0 0
    %2771 = vmatpush1.bf16.msra.mxu0 %v464
    %2772 = vmatprep.subr.bf16.mxu0 0
    %2773 = vmatpush1.bf16.msra.mxu0 %v463
    %2774 = vmatprep.subr.bf16.mxu0 0
    %2775 = vmatpush1.bf16.msra.mxu0 %v462
    %2776 = vmatprep.subr.bf16.mxu0 0
    %2777 = vmatpush2.bf16.msra.mxu0 %v477
    %2778 = vmatprep.subr.bf16.mxu0 0
    %2779 = vmatpush2.bf16.msra.mxu0 %v476
    %2780 = vmatprep.subr.bf16.mxu0 0
    %2781 = vmatpush2.bf16.msra.mxu0 %v475
    %2782 = vmatprep.subr.bf16.mxu0 0
    %2783 = vmatpush2.bf16.msra.mxu0 %v474
    %2784 = vmatprep.subr.bf16.mxu0 0
    %2785 = vmatpush2.bf16.msra.mxu0 %v473
    %2786 = vmatprep.subr.bf16.mxu0 0
    %2787 = vmatpush2.bf16.msra.mxu0 %v472
    %2788 = vmatprep.subr.bf16.mxu0 0
    %2789 = vmatpush2.bf16.msra.mxu0 %v471
    %2790 = vmatprep.subr.bf16.mxu0 0
    %2791 = vmatpush2.bf16.msra.mxu0 %v470
    %2792 = vmatprep.mubr.bf16.mxu0 %v2686
    %2793 = vmatmul.mubr.bf16.gmra.mxu0 %v2685
    %v2794 = vpop.f32.mrf.mxu0
    %v2795 = vadd.f32 %v2746, %v2794
    %v2796 = vpop.f32.mrf.mxu0
    %v2797 = vpop.f32.mrf.mxu0
    %v2798 = vadd.f32 %v2749, %v2797
    %v2799 = vpop.f32.mrf.mxu0
    %2800 = vmatprep.mubr.bf16.mxu0 %v2693
    %2801 = vmatmul.mubr.bf16.gmra.mxu0 %v2692
    %v2802 = vpop.f32.mrf.mxu0
    %v2803 = vadd.f32 %v2754, %v2802
    %v2804 = vpop.f32.mrf.mxu0
    %v2805 = vpop.f32.mrf.mxu0
    %v2806 = vadd.f32 %v2757, %v2805
    %v2807 = vpop.f32.mrf.mxu0
    %2808 = vdwg.mxu0
    %2809 = vmatprep.subr.bf16.mxu0 0
    %2810 = vmatpush1.bf16.msra.mxu0 %v485
    %2811 = vmatprep.subr.bf16.mxu0 0
    %2812 = vmatpush1.bf16.msra.mxu0 %v484
    %2813 = vmatprep.subr.bf16.mxu0 0
    %2814 = vmatpush1.bf16.msra.mxu0 %v483
    %2815 = vmatprep.subr.bf16.mxu0 0
    %2816 = vmatpush1.bf16.msra.mxu0 %v482
    %2817 = vmatprep.subr.bf16.mxu0 0
    %2818 = vmatpush1.bf16.msra.mxu0 %v481
    %2819 = vmatprep.subr.bf16.mxu0 0
    %2820 = vmatpush1.bf16.msra.mxu0 %v480
    %2821 = vmatprep.subr.bf16.mxu0 0
    %2822 = vmatpush1.bf16.msra.mxu0 %v479
    %2823 = vmatprep.subr.bf16.mxu0 0
    %2824 = vmatpush1.bf16.msra.mxu0 %v478
    %2825 = vmatprep.subr.bf16.mxu0 0
    %2826 = vmatpush2.bf16.msra.mxu0 %v493
    %2827 = vmatprep.subr.bf16.mxu0 0
    %2828 = vmatpush2.bf16.msra.mxu0 %v492
    %2829 = vmatprep.subr.bf16.mxu0 0
    %2830 = vmatpush2.bf16.msra.mxu0 %v491
    %2831 = vmatprep.subr.bf16.mxu0 0
    %2832 = vmatpush2.bf16.msra.mxu0 %v490
    %2833 = vmatprep.subr.bf16.mxu0 0
    %2834 = vmatpush2.bf16.msra.mxu0 %v489
    %2835 = vmatprep.subr.bf16.mxu0 0
    %2836 = vmatpush2.bf16.msra.mxu0 %v488
    %2837 = vmatprep.subr.bf16.mxu0 0
    %2838 = vmatpush2.bf16.msra.mxu0 %v487
    %2839 = vmatprep.subr.bf16.mxu0 0
    %2840 = vmatpush2.bf16.msra.mxu0 %v486
    %2841 = vmatprep.mubr.bf16.mxu0 %v2688
    %2842 = vmatmul.mubr.bf16.gmra.mxu0 %v2687
    %v2843 = vpop.f32.mrf.mxu0
    %v2844 = vadd.f32 %v2795, %v2843
    %v2845 = vpop.f32.mrf.mxu0
    %v2846 = vpop.f32.mrf.mxu0
    %v2847 = vadd.f32 %v2798, %v2846
    %v2848 = vpop.f32.mrf.mxu0
    %2849 = vmatprep.mubr.bf16.mxu0 %v2695
    %2850 = vmatmul.mubr.bf16.gmra.mxu0 %v2694
    %v2851 = vpop.f32.mrf.mxu0
    %v2852 = vadd.f32 %v2803, %v2851
    %v2853 = vpop.f32.mrf.mxu0
    %v2854 = vpop.f32.mrf.mxu0
    %v2855 = vadd.f32 %v2806, %v2854
    %v2856 = vpop.f32.mrf.mxu0
    %2857 = vdwg.mxu0
    %2858 = vmatprep.subr.bf16.mxu0 0
    %2859 = vmatpush1.bf16.msra.mxu0 %v501
    %2860 = vmatprep.subr.bf16.mxu0 0
    %2861 = vmatpush1.bf16.msra.mxu0 %v500
    %2862 = vmatprep.subr.bf16.mxu0 0
    %2863 = vmatpush1.bf16.msra.mxu0 %v499
    %2864 = vmatprep.subr.bf16.mxu0 0
    %2865 = vmatpush1.bf16.msra.mxu0 %v498
    %2866 = vmatprep.subr.bf16.mxu0 0
    %2867 = vmatpush1.bf16.msra.mxu0 %v497
    %2868 = vmatprep.subr.bf16.mxu0 0
    %2869 = vmatpush1.bf16.msra.mxu0 %v496
    %2870 = vmatprep.subr.bf16.mxu0 0
    %2871 = vmatpush1.bf16.msra.mxu0 %v495
    %2872 = vmatprep.subr.bf16.mxu0 0
    %2873 = vmatpush1.bf16.msra.mxu0 %v494
    %2874 = vmatprep.subr.bf16.mxu0 0
    %2875 = vmatpush2.bf16.msra.mxu0 0
    %2876 = vmatprep.subr.bf16.mxu0 0
    %2877 = vmatpush2.bf16.msra.mxu0 0
    %2878 = vmatprep.subr.bf16.mxu0 0
    %2879 = vmatpush2.bf16.msra.mxu0 0
    %2880 = vmatprep.subr.bf16.mxu0 0
    %2881 = vmatpush2.bf16.msra.mxu0 0
    %2882 = vmatprep.subr.bf16.mxu0 0
    %2883 = vmatpush2.bf16.msra.mxu0 0
    %2884 = vmatprep.subr.bf16.mxu0 0
    %2885 = vmatpush2.bf16.msra.mxu0 0
    %2886 = vmatprep.subr.bf16.mxu0 0
    %2887 = vmatpush2.bf16.msra.mxu0 0
    %2888 = vmatprep.subr.bf16.mxu0 0
    %2889 = vmatpush2.bf16.msra.mxu0 0
    %2890 = vmatprep.mubr.bf16.mxu0 0
    %2891 = vmatmul.mubr.bf16.gmra.mxu0 %v2689
    %v2892 = vpop.f32.mrf.mxu0
    %v2893 = vadd.f32 %v2844, %v2892
    %v2894 = vpop.f32.mrf.mxu0
    %v2895 = vpop.f32.mrf.mxu0
    %v2896 = vadd.f32 %v2847, %v2895
    %v2897 = vpop.f32.mrf.mxu0
    %2898 = vmatprep.mubr.bf16.mxu0 0
    %2899 = vmatmul.mubr.bf16.gmra.mxu0 %v2696
    %v2900 = vpop.f32.mrf.mxu0
    %v2901 = vadd.f32 %v2852, %v2900
    %v2902 = vpop.f32.mrf.mxu0
    %v2903 = vpop.f32.mrf.mxu0
    %v2904 = vadd.f32 %v2855, %v2903
    %v2905 = vpop.f32.mrf.mxu0
    %2906 = vdwg.mxu0
    %v2907 = vmax.f32 %v2893, %v2896
    %v2908 = vmax.f32 %v2901, %v2904
    %v2909 = vmax.f32 %v2907, %v2908
    %v2910 = vadd.f32 %v2909, %v762
    %v2911 = vpack.c.bf16 %v2910, %v2910
    %v2912 = vld [vmem:[%s3 + $0x300] sm:$0xf]
    %v2913 = vld [vmem:[%s3 + $0x304] sm:$0xf]
    %v2914 = vld [vmem:[%s3 + $0x308] sm:$0xf]
    %v2915 = vld [vmem:[%s3 + $0x30c] sm:$0xf]
    %v2916 = vld [vmem:[%s3 + $0x310] sm:$0xf]
    %v2917 = vld [vmem:[%s3 + $0x314] sm:$0xf]
    %v2918 = vld [vmem:[%s3 + $0x318] sm:$0xf]
    %v2919 = vld [vmem:[%s3 + $0x31c] sm:$0xf]
    %v2920 = vld [vmem:[%s3 + $0x320] sm:$0xf]
    %v2921 = vld [vmem:[%s3 + $0x324] sm:$0xf]
    %v2922 = vld [vmem:[%s3 + $0x328] sm:$0xf]
    %v2923 = vld [vmem:[%s3 + $0x32c] sm:$0xf]
    %v2924 = vld [vmem:[%s3 + $0x330] sm:$0xf]
    %v2925 = vld [vmem:[%s3 + $0x334] sm:$0xf]
    %v2926 = vld [vmem:[%s3 + $0x338] sm:$0xf]
    %v2927 = vld [vmem:[%s3 + $0x33c] sm:$0xf]
    %v2944 = vunpack.c.l.b16 %v2912
    %v2945 = vunpack.c.l.b16 %v2913
    %v2946 = vunpack.c.l.b16 %v2914
    %v2947 = vunpack.c.l.b16 %v2915
    %v2948 = vunpack.c.l.b16 %v2916
    %v2949 = vunpack.c.l.b16 %v2917
    %v2950 = vunpack.c.l.b16 %v2918
    %v2951 = vunpack.c.l.b16 %v2919
    %v2952 = vunpack.c.l.b16 %v2920
    %v2953 = vunpack.c.l.b16 %v2921
    %v2954 = vunpack.c.l.b16 %v2922
    %v2955 = vunpack.c.l.b16 %v2923
    %v2956 = vunpack.c.l.b16 %v2924
    %v2957 = vunpack.c.l.b16 %v2925
    %v2958 = vunpack.c.l.b16 %v2926
    %v2959 = vunpack.c.l.b16 %v2927
    %v2960 = vpack.c.b16 %v2945, %v2944
    %v2961 = vpack.c.b16 %v2947, %v2946
    %v2962 = vpack.c.b16 %v2949, %v2948
    %v2963 = vpack.c.b16 %v2951, %v2950
    %v2964 = vpack.c.b16 %v2953, %v2952
    %v2965 = vpack.c.b16 %v2955, %v2954
    %v2966 = vpack.c.b16 %v2957, %v2956
    %v2967 = vpack.c.b16 %v2959, %v2958
    %2976 = vmatprep.subr.bf16.mxu0 0
    %2977 = vmatpush1.bf16.msra.mxu0 %v2967
    %2978 = vmatprep.subr.bf16.mxu0 0
    %2979 = vmatpush1.bf16.msra.mxu0 %v2966
    %2980 = vmatprep.subr.bf16.mxu0 0
    %2981 = vmatpush1.bf16.msra.mxu0 %v2965
    %2982 = vmatprep.subr.bf16.mxu0 0
    %2983 = vmatpush1.bf16.msra.mxu0 %v2964
    %2984 = vmatprep.subr.bf16.mxu0 0
    %2985 = vmatpush1.bf16.msra.mxu0 %v2963
    %2986 = vmatprep.subr.bf16.mxu0 0
    %2987 = vmatpush1.bf16.msra.mxu0 %v2962
    %2988 = vmatprep.subr.bf16.mxu0 0
    %2989 = vmatpush1.bf16.msra.mxu0 %v2961
    %2990 = vmatprep.subr.bf16.mxu0 0
    %2991 = vmatpush1.bf16.msra.mxu0 %v2960
    %2992 = vmatprep.subr.bf16.mxu0 0
    %2993 = vmatpush2.bf16.msra.mxu0 0
    %2994 = vmatprep.subr.bf16.mxu0 0
    %2995 = vmatpush2.bf16.msra.mxu0 0
    %2996 = vmatprep.subr.bf16.mxu0 0
    %2997 = vmatpush2.bf16.msra.mxu0 0
    %2998 = vmatprep.subr.bf16.mxu0 0
    %2999 = vmatpush2.bf16.msra.mxu0 0
    %3000 = vmatprep.subr.bf16.mxu0 0
    %3001 = vmatpush2.bf16.msra.mxu0 0
    %3002 = vmatprep.subr.bf16.mxu0 0
    %3003 = vmatpush2.bf16.msra.mxu0 0
    %3004 = vmatprep.subr.bf16.mxu0 0
    %3005 = vmatpush2.bf16.msra.mxu0 0
    %3006 = vmatprep.subr.bf16.mxu0 0
    %3007 = vmatpush2.bf16.msra.mxu0 0
    %3008 = vmatprep.mubr.bf16.mxu0 0
    %3009 = vmatmul.mubr.bf16.gmra.mxu0 %v2911
    %v3010 = vpop.f32.mrf.mxu0
    %v3011 = vadd.f32 0.0, %v3010
    %v3012 = vpop.f32.mrf.mxu0
    %v3013 = vpop.f32.mrf.mxu0
    %v3014 = vpop.f32.mrf.mxu0
    %3015 = vdwg.mxu0
    %v3016 = vadd.f32 %v2622, %v3011
    %v3017 = vld [vmem:[%s3 + $0x340] sm:$0xf]
    %v3018 = vld [vmem:[%s3 + $0x344] sm:$0xf]
    %v3019 = vld [vmem:[%s3 + $0x348] sm:$0xf]
    %v3020 = vld [vmem:[%s3 + $0x34c] sm:$0xf]
    %v3021 = vld [vmem:[%s3 + $0x350] sm:$0xf]
    %v3022 = vld [vmem:[%s3 + $0x354] sm:$0xf]
    %v3023 = vld [vmem:[%s3 + $0x358] sm:$0xf]
    %v3024 = vld [vmem:[%s3 + $0x35c] sm:$0xf]
    %v3025 = vld [vmem:[%s3 + $0x360] sm:$0xf]
    %v3026 = vld [vmem:[%s3 + $0x364] sm:$0xf]
    %v3027 = vld [vmem:[%s3 + $0x368] sm:$0xf]
    %v3028 = vld [vmem:[%s3 + $0x36c] sm:$0xf]
    %v3029 = vld [vmem:[%s3 + $0x370] sm:$0xf]
    %v3030 = vld [vmem:[%s3 + $0x374] sm:$0xf]
    %v3031 = vld [vmem:[%s3 + $0x378] sm:$0xf]
    %v3032 = vld [vmem:[%s3 + $0x37c] sm:$0xf]
    %v3034 = vrot.slane %v2911, 1
    %v3052 = vunpack.c.l.b16 %v3017
    %v3053 = vunpack.c.l.b16 %v3018
    %v3054 = vunpack.c.l.b16 %v3019
    %v3055 = vunpack.c.l.b16 %v3020
    %v3056 = vunpack.c.l.b16 %v3021
    %v3057 = vunpack.c.l.b16 %v3022
    %v3058 = vunpack.c.l.b16 %v3023
    %v3059 = vunpack.c.l.b16 %v3024
    %v3060 = vunpack.c.l.b16 %v3025
    %v3061 = vunpack.c.l.b16 %v3026
    %v3062 = vunpack.c.l.b16 %v3027
    %v3063 = vunpack.c.l.b16 %v3028
    %v3064 = vunpack.c.l.b16 %v3029
    %v3065 = vunpack.c.l.b16 %v3030
    %v3066 = vunpack.c.l.b16 %v3031
    %v3067 = vunpack.c.l.b16 %v3032
    %v3068 = vpack.c.b16 %v3053, %v3052
    %v3069 = vpack.c.b16 %v3055, %v3054
    %v3070 = vpack.c.b16 %v3057, %v3056
    %v3071 = vpack.c.b16 %v3059, %v3058
    %v3072 = vpack.c.b16 %v3061, %v3060
    %v3073 = vpack.c.b16 %v3063, %v3062
    %v3074 = vpack.c.b16 %v3065, %v3064
    %v3075 = vpack.c.b16 %v3067, %v3066
    %3084 = vmatprep.subr.bf16.mxu0 0
    %3085 = vmatpush1.bf16.msra.mxu0 %v3075
    %3086 = vmatprep.subr.bf16.mxu0 0
    %3087 = vmatpush1.bf16.msra.mxu0 %v3074
    %3088 = vmatprep.subr.bf16.mxu0 0
    %3089 = vmatpush1.bf16.msra.mxu0 %v3073
    %3090 = vmatprep.subr.bf16.mxu0 0
    %3091 = vmatpush1.bf16.msra.mxu0 %v3072
    %3092 = vmatprep.subr.bf16.mxu0 0
    %3093 = vmatpush1.bf16.msra.mxu0 %v3071
    %3094 = vmatprep.subr.bf16.mxu0 0
    %3095 = vmatpush1.bf16.msra.mxu0 %v3070
    %3096 = vmatprep.subr.bf16.mxu0 0
    %3097 = vmatpush1.bf16.msra.mxu0 %v3069
    %3098 = vmatprep.subr.bf16.mxu0 0
    %3099 = vmatpush1.bf16.msra.mxu0 %v3068
    %3100 = vmatprep.subr.bf16.mxu0 0
    %3101 = vmatpush2.bf16.msra.mxu0 0
    %3102 = vmatprep.subr.bf16.mxu0 0
    %3103 = vmatpush2.bf16.msra.mxu0 0
    %3104 = vmatprep.subr.bf16.mxu0 0
    %3105 = vmatpush2.bf16.msra.mxu0 0
    %3106 = vmatprep.subr.bf16.mxu0 0
    %3107 = vmatpush2.bf16.msra.mxu0 0
    %3108 = vmatprep.subr.bf16.mxu0 0
    %3109 = vmatpush2.bf16.msra.mxu0 0
    %3110 = vmatprep.subr.bf16.mxu0 0
    %3111 = vmatpush2.bf16.msra.mxu0 0
    %3112 = vmatprep.subr.bf16.mxu0 0
    %3113 = vmatpush2.bf16.msra.mxu0 0
    %3114 = vmatprep.subr.bf16.mxu0 0
    %3115 = vmatpush2.bf16.msra.mxu0 0
    %3116 = vmatprep.mubr.bf16.mxu0 0
    %3117 = vmatmul.mubr.bf16.gmra.mxu0 %v3034
    %v3118 = vpop.f32.mrf.mxu0
    %v3119 = vadd.f32 0.0, %v3118
    %v3120 = vpop.f32.mrf.mxu0
    %v3121 = vpop.f32.mrf.mxu0
    %v3122 = vpop.f32.mrf.mxu0
    %3123 = vdwg.mxu0
    %v3124 = vadd.f32 %v3016, %v3119
    %v3125 = vld [vmem:[%s3 + $0x380] sm:$0xf]
    %v3126 = vld [vmem:[%s3 + $0x384] sm:$0xf]
    %v3127 = vld [vmem:[%s3 + $0x388] sm:$0xf]
    %v3128 = vld [vmem:[%s3 + $0x38c] sm:$0xf]
    %v3129 = vld [vmem:[%s3 + $0x390] sm:$0xf]
    %v3130 = vld [vmem:[%s3 + $0x394] sm:$0xf]
    %v3131 = vld [vmem:[%s3 + $0x398] sm:$0xf]
    %v3132 = vld [vmem:[%s3 + $0x39c] sm:$0xf]
    %v3133 = vld [vmem:[%s3 + $0x3a0] sm:$0xf]
    %v3134 = vld [vmem:[%s3 + $0x3a4] sm:$0xf]
    %v3135 = vld [vmem:[%s3 + $0x3a8] sm:$0xf]
    %v3136 = vld [vmem:[%s3 + $0x3ac] sm:$0xf]
    %v3137 = vld [vmem:[%s3 + $0x3b0] sm:$0xf]
    %v3138 = vld [vmem:[%s3 + $0x3b4] sm:$0xf]
    %v3139 = vld [vmem:[%s3 + $0x3b8] sm:$0xf]
    %v3140 = vld [vmem:[%s3 + $0x3bc] sm:$0xf]
    %v3141 = vrot.slane %v2911, 2
    %v3159 = vunpack.c.l.b16 %v3125
    %v3160 = vunpack.c.l.b16 %v3126
    %v3161 = vunpack.c.l.b16 %v3127
    %v3162 = vunpack.c.l.b16 %v3128
    %v3163 = vunpack.c.l.b16 %v3129
    %v3164 = vunpack.c.l.b16 %v3130
    %v3165 = vunpack.c.l.b16 %v3131
    %v3166 = vunpack.c.l.b16 %v3132
    %v3167 = vunpack.c.l.b16 %v3133
    %v3168 = vunpack.c.l.b16 %v3134
    %v3169 = vunpack.c.l.b16 %v3135
    %v3170 = vunpack.c.l.b16 %v3136
    %v3171 = vunpack.c.l.b16 %v3137
    %v3172 = vunpack.c.l.b16 %v3138
    %v3173 = vunpack.c.l.b16 %v3139
    %v3174 = vunpack.c.l.b16 %v3140
    %v3175 = vpack.c.b16 %v3160, %v3159
    %v3176 = vpack.c.b16 %v3162, %v3161
    %v3177 = vpack.c.b16 %v3164, %v3163
    %v3178 = vpack.c.b16 %v3166, %v3165
    %v3179 = vpack.c.b16 %v3168, %v3167
    %v3180 = vpack.c.b16 %v3170, %v3169
    %v3181 = vpack.c.b16 %v3172, %v3171
    %v3182 = vpack.c.b16 %v3174, %v3173
    %3191 = vmatprep.subr.bf16.mxu0 0
    %3192 = vmatpush1.bf16.msra.mxu0 %v3182
    %3193 = vmatprep.subr.bf16.mxu0 0
    %3194 = vmatpush1.bf16.msra.mxu0 %v3181
    %3195 = vmatprep.subr.bf16.mxu0 0
    %3196 = vmatpush1.bf16.msra.mxu0 %v3180
    %3197 = vmatprep.subr.bf16.mxu0 0
    %3198 = vmatpush1.bf16.msra.mxu0 %v3179
    %3199 = vmatprep.subr.bf16.mxu0 0
    %3200 = vmatpush1.bf16.msra.mxu0 %v3178
    %3201 = vmatprep.subr.bf16.mxu0 0
    %3202 = vmatpush1.bf16.msra.mxu0 %v3177
    %3203 = vmatprep.subr.bf16.mxu0 0
    %3204 = vmatpush1.bf16.msra.mxu0 %v3176
    %3205 = vmatprep.subr.bf16.mxu0 0
    %3206 = vmatpush1.bf16.msra.mxu0 %v3175
    %3207 = vmatprep.subr.bf16.mxu0 0
    %3208 = vmatpush2.bf16.msra.mxu0 0
    %3209 = vmatprep.subr.bf16.mxu0 0
    %3210 = vmatpush2.bf16.msra.mxu0 0
    %3211 = vmatprep.subr.bf16.mxu0 0
    %3212 = vmatpush2.bf16.msra.mxu0 0
    %3213 = vmatprep.subr.bf16.mxu0 0
    %3214 = vmatpush2.bf16.msra.mxu0 0
    %3215 = vmatprep.subr.bf16.mxu0 0
    %3216 = vmatpush2.bf16.msra.mxu0 0
    %3217 = vmatprep.subr.bf16.mxu0 0
    %3218 = vmatpush2.bf16.msra.mxu0 0
    %3219 = vmatprep.subr.bf16.mxu0 0
    %3220 = vmatpush2.bf16.msra.mxu0 0
    %3221 = vmatprep.subr.bf16.mxu0 0
    %3222 = vmatpush2.bf16.msra.mxu0 0
    %3223 = vmatprep.mubr.bf16.mxu0 0
    %3224 = vmatmul.mubr.bf16.gmra.mxu0 %v3141
    %v3225 = vpop.f32.mrf.mxu0
    %v3226 = vadd.f32 0.0, %v3225
    %v3227 = vpop.f32.mrf.mxu0
    %v3228 = vpop.f32.mrf.mxu0
    %v3229 = vpop.f32.mrf.mxu0
    %3230 = vdwg.mxu0
    %v3231 = vadd.f32 %v3124, %v3226
    %v3232 = vld [vmem:[%s3 + $0x3c0] sm:$0xf]
    %v3233 = vld [vmem:[%s3 + $0x3c4] sm:$0xf]
    %v3234 = vld [vmem:[%s3 + $0x3c8] sm:$0xf]
    %v3235 = vld [vmem:[%s3 + $0x3cc] sm:$0xf]
    %v3236 = vld [vmem:[%s3 + $0x3d0] sm:$0xf]
    %v3237 = vld [vmem:[%s3 + $0x3d4] sm:$0xf]
    %v3238 = vld [vmem:[%s3 + $0x3d8] sm:$0xf]
    %v3239 = vld [vmem:[%s3 + $0x3dc] sm:$0xf]
    %v3240 = vld [vmem:[%s3 + $0x3e0] sm:$0xf]
    %v3241 = vld [vmem:[%s3 + $0x3e4] sm:$0xf]
    %v3242 = vld [vmem:[%s3 + $0x3e8] sm:$0xf]
    %v3243 = vld [vmem:[%s3 + $0x3ec] sm:$0xf]
    %v3244 = vld [vmem:[%s3 + $0x3f0] sm:$0xf]
    %v3245 = vld [vmem:[%s3 + $0x3f4] sm:$0xf]
    %v3246 = vld [vmem:[%s3 + $0x3f8] sm:$0xf]
    %v3247 = vld [vmem:[%s3 + $0x3fc] sm:$0xf]
    %v3248 = vrot.slane %v2911, 3
    %v3266 = vunpack.c.l.b16 %v3232
    %v3267 = vunpack.c.l.b16 %v3233
    %v3268 = vunpack.c.l.b16 %v3234
    %v3269 = vunpack.c.l.b16 %v3235
    %v3270 = vunpack.c.l.b16 %v3236
    %v3271 = vunpack.c.l.b16 %v3237
    %v3272 = vunpack.c.l.b16 %v3238
    %v3273 = vunpack.c.l.b16 %v3239
    %v3274 = vunpack.c.l.b16 %v3240
    %v3275 = vunpack.c.l.b16 %v3241
    %v3276 = vunpack.c.l.b16 %v3242
    %v3277 = vunpack.c.l.b16 %v3243
    %v3278 = vunpack.c.l.b16 %v3244
    %v3279 = vunpack.c.l.b16 %v3245
    %v3280 = vunpack.c.l.b16 %v3246
    %v3281 = vunpack.c.l.b16 %v3247
    %v3282 = vpack.c.b16 %v3267, %v3266
    %v3283 = vpack.c.b16 %v3269, %v3268
    %v3284 = vpack.c.b16 %v3271, %v3270
    %v3285 = vpack.c.b16 %v3273, %v3272
    %v3286 = vpack.c.b16 %v3275, %v3274
    %v3287 = vpack.c.b16 %v3277, %v3276
    %v3288 = vpack.c.b16 %v3279, %v3278
    %v3289 = vpack.c.b16 %v3281, %v3280
    %3298 = vmatprep.subr.bf16.mxu0 0
    %3299 = vmatpush1.bf16.msra.mxu0 %v3289
    %3300 = vmatprep.subr.bf16.mxu0 0
    %3301 = vmatpush1.bf16.msra.mxu0 %v3288
    %3302 = vmatprep.subr.bf16.mxu0 0
    %3303 = vmatpush1.bf16.msra.mxu0 %v3287
    %3304 = vmatprep.subr.bf16.mxu0 0
    %3305 = vmatpush1.bf16.msra.mxu0 %v3286
    %3306 = vmatprep.subr.bf16.mxu0 0
    %3307 = vmatpush1.bf16.msra.mxu0 %v3285
    %3308 = vmatprep.subr.bf16.mxu0 0
    %3309 = vmatpush1.bf16.msra.mxu0 %v3284
    %3310 = vmatprep.subr.bf16.mxu0 0
    %3311 = vmatpush1.bf16.msra.mxu0 %v3283
    %3312 = vmatprep.subr.bf16.mxu0 0
    %3313 = vmatpush1.bf16.msra.mxu0 %v3282
    %3314 = vmatprep.subr.bf16.mxu0 0
    %3315 = vmatpush2.bf16.msra.mxu0 0
    %3316 = vmatprep.subr.bf16.mxu0 0
    %3317 = vmatpush2.bf16.msra.mxu0 0
    %3318 = vmatprep.subr.bf16.mxu0 0
    %3319 = vmatpush2.bf16.msra.mxu0 0
    %3320 = vmatprep.subr.bf16.mxu0 0
    %3321 = vmatpush2.bf16.msra.mxu0 0
    %3322 = vmatprep.subr.bf16.mxu0 0
    %3323 = vmatpush2.bf16.msra.mxu0 0
    %3324 = vmatprep.subr.bf16.mxu0 0
    %3325 = vmatpush2.bf16.msra.mxu0 0
    %3326 = vmatprep.subr.bf16.mxu0 0
    %3327 = vmatpush2.bf16.msra.mxu0 0
    %3328 = vmatprep.subr.bf16.mxu0 0
    %3329 = vmatpush2.bf16.msra.mxu0 0
    %3330 = vmatprep.mubr.bf16.mxu0 0
    %3331 = vmatmul.mubr.bf16.gmra.mxu0 %v3248
    %v3332 = vpop.f32.mrf.mxu0
    %v3333 = vadd.f32 0.0, %v3332
    %v3334 = vpop.f32.mrf.mxu0
    %v3335 = vpop.f32.mrf.mxu0
    %v3336 = vpop.f32.mrf.mxu0
    %3337 = vdwg.mxu0
    %v3338 = vadd.f32 %v3231, %v3333
    %v3339 = vld [vmem:[%s4] sm:$0x1]
    %v3341 = vlaneseq
    %v3342 = vshrl.u32 %v3341, 7
    %v3343 = vsub.s32 0, %v3342
    %v3344 = vrot.slane %v3339, %v3343
    %v3346 = vadd.f32 %v3338, %v3344
    %3347 = vst [vmem:[#allocation2] sm:$0x3] %v3346
    // Predicated region
    $region22: #{cifar10_forward.5} parent=1 // pred_check
      _
    $region23: #{cifar10_forward.5} parent=1 // pred_check_branch
      %3349 = sbr.rel (0) target = $region25
    $region24: #{cifar10_forward.5} parent=1 // pred_region
      %s3351 = ssub.s32 32, 32
      %3352 = vsyncadd [#allocation3], %s3351
      %s3354 = sshll.u32 [#allocation2], 4
      %s3355 = int_to_ptr.vmem [resolvable:$true] %s3354
      %3357 = dma.vmem_to_hbm [thread:$0]  %s3355, 32, %s5, [#allocation3]
    $region25: #{cifar10_forward.5} parent=1 // pred_fallthru
      _
    // Predicated region
    $region26: #{cifar10_forward.5} parent=1 // pred_check
      _
    $region27: #{cifar10_forward.5} parent=1 // pred_check_branch
      %3359 = sbr.rel (0) target = $region29
    $region28: #{cifar10_forward.5} parent=1 // pred_region
      %3360 = dma.done [#allocation3], 32
    $region29: #{cifar10_forward.5} parent=1 // pred_fallthru
      _
    %3361 = vsyncpa [#allocation3], 1

</llo_original>
